<compile_context>
chip_gen: v7x
topology: tpu7x:2x2x1
jax: 0.10.0
libtpu: 0.0.40
codegen_flags: <defaults>
</compile_context>

<pallas_src>
import jax
import jax.numpy as jnp
from jax import lax
from jax.experimental import pallas as pl
from jax.experimental.pallas import tpu as pltpu


# ----------------------------- Pallas kernel ------------------------------- #
def _make_nca_kernel(C, Cout, LEN, nsteps, taps):
    """Fused multi-step NCA kernel for a static configuration."""
    n_wcols = len(taps) * C

    def kernel(x_ref, weff_ref, beff_ref, w2_ref, masks_ref, out_ref):
        # x_ref    : (C, LEN)        padded-flat state (interior = x, halo/margins = 0)
        # weff_ref : (9*C, Cout, 1)  folded 3x3 weights; row t*C+c holds W_eff[tap t, in-ch c, :]
        # beff_ref : (Cout, 1)       folded bias
        # w2_ref   : (Cout, Cout, 1) brain layer-1 weights; w2_ref[o] = w2[o, :, None]
        # masks_ref: (nsteps, 1, LEN) Bernoulli masks in padded-flat layout (0 outside interior)
        # out_ref  : (C, LEN)        state / result, resident in VMEM across all steps
        out_ref[...] = x_ref[...]

        # Hoist the small weight-column loads out of the step loop (loaded once, reused
        # by every step of the static unroll).
        w_cols = [weff_ref[j] for j in range(n_wcols)]   # each (Cout, 1)
        w2_cols = [w2_ref[o] for o in range(Cout)]       # each (Cout, 1)
        beff = beff_ref[...]                             # (Cout, 1)

        for s in range(nsteps):                          # static unroll over NCA steps
            xb = out_ref[...]                            # (C, LEN) current state
            mask = masks_ref[s]                          # (1, LEN), zero outside interior

            # Folded 3x3 conv + bias + ReLU over the whole padded-flat buffer.
            # pltpu.roll follows np.roll: roll(x, s)[i] = x[i - s], so shift = (-d) % LEN
            # gives roll(x)[i] = x[i + d] (wraparound never reaches interior positions
            # since the margins are >= |d|).  Garbage at non-interior positions is
            # masked away below.
            acc = None
            for t, d in enumerate(taps):                 # 9 taps, static unroll (XLU rolls)
                xt = xb if d == 0 else pltpu.roll(xb, shift=(-d) % LEN, axis=1)
                for c in range(C):                       # static unroll over input channels
                    term = w_cols[t * C + c] * xt[c:c + 1, :]     # (Cout,1)*(1,LEN) VPU FMA
                    acc = term if acc is None else acc + term
            h = jnp.maximum(acc + beff, 0.0)             # (Cout, LEN)

            # Brain layer 1: 1x1 conv, no bias, no activation (VPU broadcast-FMA).
            y = w2_cols[0] * h[0:1, :]
            for o in range(1, Cout):
                y = y + w2_cols[o] * h[o:o + 1, :]       # (Cout, LEN)

            # Masked residual update.  mask == 0 on the halo and margins, so the zero
            # padding of the state is preserved exactly (finite * 0 == 0).
            out_ref[...] = xb + y * mask

    return kernel


# ------------------------------ JAX wrapper -------------------------------- #
@jax.jit
def nca_conv_forward(x_nchw, params, masks):
    """NCAConv.forward with all steps fused into a single Pallas call.

    x_nchw: (N, C, H, W).  masks: (nsteps, N, H, W) float {0,1}, broadcast over channels.
    """
    w_init, b_init, w1, b1, w2 = params
    N, C, H, W = x_nchw.shape
    Cout = w2.shape[-1]
    S = masks.shape[0]
    Hp, Wp = H + 2, W + 2                      # "same" zero padding for the 3x3 conv
    P = N * Hp * Wp                            # padded-flat pixel count
    M = Wp + 1                                 # max |tap offset| of a 3x3 conv
    LEFT = 128                                 # lane-aligned left margin (>= M)
    LEN = ((LEFT + P + M + 127) // 128) * 128  # lane-dense buffer length (multiple of 128)

    # --- fold init_conv (depthwise 3x3, F filters/channel) with brain layer-0 (1x1) ---
    w_eff = jnp.einsum('hwcf,fco->hwco', w_init, w1).reshape(9 * C, Cout)[..., None]
    b_eff = (jnp.einsum('cf,fco->o', b_init, w1) + b1[0]).reshape(Cout, 1)
    w2_cols = w2[:, :, None]                   # (Cout, Cout, 1); [o] = column for input-ch o

    # --- pack x into the padded-flat, channels-on-sublane / pixels-on-lane layout ---
    xc = jnp.transpose(x_nchw, (1, 0, 2, 3))                     # (C, N, H, W)
    xp = jnp.pad(xc, ((0, 0), (0, 0), (1, 1), (1, 1)))           # (C, N, Hp, Wp)
    xbuf = jnp.zeros((C, LEN), x_nchw.dtype).at[:, LEFT:LEFT + P].set(xp.reshape(C, P))

    # --- per-step masks in the same layout, zero outside the interior ---
    mp = jnp.pad(masks, ((0, 0), (0, 0), (1, 1), (1, 1)))        # (S, N, Hp, Wp)
    mbuf = jnp.zeros((S, 1, LEN), jnp.float32).at[:, 0, LEFT:LEFT + P].set(mp.reshape(S, P))

    # Tap offsets in the padded-flat pixel axis, same ordering as the w_eff rows.
    taps = tuple((kh - 1) * Wp + (kw - 1) for kh in range(3) for kw in range(3))

    kernel = _make_nca_kernel(C, Cout, LEN, S, taps)
    vmem = pl.BlockSpec(memory_space=pltpu.MemorySpace.VMEM)
    # TODO(synk): for production-size N/H/W add a grid over batch/row tiles with a halo
    # (marked "parallel" for v7x's 2 TensorCores); at this toy size the whole problem
    # (< 0.5 MiB) lives comfortably in VMEM with a single grid-less call.
    out = pl.pallas_call(
        kernel,
        out_shape=jax.ShapeDtypeStruct((C, LEN), x_nchw.dtype),
        in_specs=[vmem] * 5,
        out_specs=vmem,
        compiler_params=pltpu.CompilerParams(vmem_limit_bytes=32 * 1024 * 1024),
    )(xbuf, w_eff, b_eff, w2_cols, mbuf)

    # --- unpack: padded-flat -> NCHW ---
    out = out[:, LEFT:LEFT + P].reshape(C, N, Hp, Wp)[:, :, 1:H + 1, 1:W + 1]
    return jnp.transpose(out, (1, 0, 2, 3))


# ------------------------- pure-JAX reference ------------------------------ #
def ref_forward(x_nchw, params, masks):
    """Unfused / unfolded reference of the module forward (NHWC internally)."""
    w_init, b_init, w1, b1, w2 = params
    C, F = b_init.shape
    Cout = w2.shape[-1]
    x = jnp.transpose(x_nchw, (0, 2, 3, 1))
    w_dw = w_init.reshape(3, 3, 1, C * F)                        # HWIO, groups=C
    w1_flat = jnp.transpose(w1, (1, 0, 2)).reshape(C * F, Cout)  # channel order c*F+f
    for s in range(masks.shape[0]):
        mask = masks[s][..., None]                               # (N, H, W, 1)
        y0 = lax.conv_general_dilated(
            x, w_dw, window_strides=(1, 1), padding='SAME',
            dimension_numbers=('NHWC', 'HWIO', 'NHWC'),
            feature_group_count=C) + b_init.reshape(C * F)
        h = jnp.maximum(jnp.einsum('nhwi,io->nhwo', y0, w1_flat) + b1[0], 0.0)
        y = jnp.einsum('nhwi,io->nhwo', h, w2)
        x = x + y * mask
    return jnp.transpose(x, (0, 3, 1, 2))


# --------------------------------- main ------------------------------------ #
if __name__ == "__main__":
    N, C, H, W = 2, 4, 16, 16
    F = 4                 # init_filters
    Cout = C              # out_channels must equal in_channels in NCAConv
    KEEP_P = 0.5          # 1 - mask_drop_p
    NSTEPS = 4            # deterministic pick from nsteps=(4, 8)
    # TODO(synk): the module samples nsteps via Python random.randint at call time;
    # that host-side choice has no kernel equivalent, so a fixed step count is used.

    key = jax.random.PRNGKey(0)
    kx, kw0, kb0, kw1, kb1, kw2, kmask = jax.random.split(key, 7)

    x = jax.random.normal(kx, (N, C, H, W), dtype=jnp.float32)

    # Deterministic synthetic parameters (shapes follow the module __init__).
    w_init = 0.1 * jax.random.normal(kw0, (3, 3, C, F), dtype=jnp.float32)
    b_init = 0.1 * jax.random.normal(kb0, (C, F), dtype=jnp.float32)
    w1 = 0.1 * jax.random.normal(kw1, (F, C, Cout), dtype=jnp.float32)
    b1 = 0.1 * jax.random.normal(kb1, (1, Cout), dtype=jnp.float32)
    w2 = 0.1 * jax.random.normal(kw2, (Cout, Cout), dtype=jnp.float32)
    params = (w_init, b_init, w1, b1, w2)

    # Per-step Bernoulli masks: floor(U[0,1) + keep_p), one value per (n, h, w).
    # Generated host-side so the kernel and the reference consume identical masks;
    # they could be generated in-kernel with pltpu.prng_random_bits instead.
    masks = jnp.floor(
        jax.random.uniform(kmask, (NSTEPS, N, H, W), dtype=jnp.float32) + KEEP_P)

    out = jax.block_until_ready(nca_conv_forward(x, params, masks))
    ref = jax.block_until_ready(ref_forward(x, params, masks))

    assert out.shape == (N, C, H, W)
    err = float(jnp.max(jnp.abs(out - ref)))
    assert jnp.allclose(out, ref, rtol=1e-4, atol=1e-4), err

    print("KERNEL_OK")
</pallas_src>

<mosaic_0001>
module attributes {stable_mosaic.version = 11 : i64} {
  func.func @kernel(%arg0: memref<4x896xf32, #tpu.memory_space<vmem>>, %arg1: memref<36x4x1xf32, #tpu.memory_space<vmem>>, %arg2: memref<4x1xf32, #tpu.memory_space<vmem>>, %arg3: memref<4x4x1xf32, #tpu.memory_space<vmem>>, %arg4: memref<4x1x896xf32, #tpu.memory_space<vmem>>, %arg5: memref<4x896xf32, #tpu.memory_space<vmem>>) attributes {dimension_semantics = [], scalar_prefetch = 0 : i64, scratch_operands = 0 : i64, tpu.core_type = #tpu.core_type<tc>} {
    %c0 = arith.constant 0 : index
    %c0_0 = arith.constant 0 : index
    %0 = vector.load %arg0[%c0, %c0_0] : memref<4x896xf32, #tpu.memory_space<vmem>>, vector<4x896xf32>
    %c0_1 = arith.constant 0 : index
    %c0_2 = arith.constant 0 : index
    %1 = vector.load %arg5[%c0_1, %c0_2] : memref<4x896xf32, #tpu.memory_space<vmem>>, vector<4x896xf32>
    tpu.vector_store %arg5[%c0_1, %c0_2], %0 {strides = array<i32>} : memref<4x896xf32, #tpu.memory_space<vmem>>, vector<4x896xf32>,
    %c0_3 = arith.constant 0 : index
    %c0_4 = arith.constant 0 : index
    %c0_5 = arith.constant 0 : index
    %2 = vector.load %arg1[%c0_3, %c0_4, %c0_5] : memref<36x4x1xf32, #tpu.memory_space<vmem>>, vector<1x4x1xf32>
    %3 = vector.shape_cast %2 : vector<1x4x1xf32> to vector<4x1xf32>
    %c1 = arith.constant 1 : index
    %c0_6 = arith.constant 0 : index
    %c0_7 = arith.constant 0 : index
    %4 = vector.load %arg1[%c1, %c0_6, %c0_7] : memref<36x4x1xf32, #tpu.memory_space<vmem>>, vector<1x4x1xf32>
    %5 = vector.shape_cast %4 : vector<1x4x1xf32> to vector<4x1xf32>
    %c2 = arith.constant 2 : index
    %c0_8 = arith.constant 0 : index
    %c0_9 = arith.constant 0 : index
    %6 = vector.load %arg1[%c2, %c0_8, %c0_9] : memref<36x4x1xf32, #tpu.memory_space<vmem>>, vector<1x4x1xf32>
    %7 = vector.shape_cast %6 : vector<1x4x1xf32> to vector<4x1xf32>
    %c3 = arith.constant 3 : index
    %c0_10 = arith.constant 0 : index
    %c0_11 = arith.constant 0 : index
    %8 = vector.load %arg1[%c3, %c0_10, %c0_11] : memref<36x4x1xf32, #tpu.memory_space<vmem>>, vector<1x4x1xf32>
    %9 = vector.shape_cast %8 : vector<1x4x1xf32> to vector<4x1xf32>
    %c4 = arith.constant 4 : index
    %c0_12 = arith.constant 0 : index
    %c0_13 = arith.constant 0 : index
    %10 = vector.load %arg1[%c4, %c0_12, %c0_13] : memref<36x4x1xf32, #tpu.memory_space<vmem>>, vector<1x4x1xf32>
    %11 = vector.shape_cast %10 : vector<1x4x1xf32> to vector<4x1xf32>
    %c5 = arith.constant 5 : index
    %c0_14 = arith.constant 0 : index
    %c0_15 = arith.constant 0 : index
    %12 = vector.load %arg1[%c5, %c0_14, %c0_15] : memref<36x4x1xf32, #tpu.memory_space<vmem>>, vector<1x4x1xf32>
    %13 = vector.shape_cast %12 : vector<1x4x1xf32> to vector<4x1xf32>
    %c6 = arith.constant 6 : index
    %c0_16 = arith.constant 0 : index
    %c0_17 = arith.constant 0 : index
    %14 = vector.load %arg1[%c6, %c0_16, %c0_17] : memref<36x4x1xf32, #tpu.memory_space<vmem>>, vector<1x4x1xf32>
    %15 = vector.shape_cast %14 : vector<1x4x1xf32> to vector<4x1xf32>
    %c7 = arith.constant 7 : index
    %c0_18 = arith.constant 0 : index
    %c0_19 = arith.constant 0 : index
    %16 = vector.load %arg1[%c7, %c0_18, %c0_19] : memref<36x4x1xf32, #tpu.memory_space<vmem>>, vector<1x4x1xf32>
    %17 = vector.shape_cast %16 : vector<1x4x1xf32> to vector<4x1xf32>
    %c8 = arith.constant 8 : index
    %c0_20 = arith.constant 0 : index
    %c0_21 = arith.constant 0 : index
    %18 = vector.load %arg1[%c8, %c0_20, %c0_21] : memref<36x4x1xf32, #tpu.memory_space<vmem>>, vector<1x4x1xf32>
    %19 = vector.shape_cast %18 : vector<1x4x1xf32> to vector<4x1xf32>
    %c9 = arith.constant 9 : index
    %c0_22 = arith.constant 0 : index
    %c0_23 = arith.constant 0 : index
    %20 = vector.load %arg1[%c9, %c0_22, %c0_23] : memref<36x4x1xf32, #tpu.memory_space<vmem>>, vector<1x4x1xf32>
    %21 = vector.shape_cast %20 : vector<1x4x1xf32> to vector<4x1xf32>
    %c10 = arith.constant 10 : index
    %c0_24 = arith.constant 0 : index
    %c0_25 = arith.constant 0 : index
    %22 = vector.load %arg1[%c10, %c0_24, %c0_25] : memref<36x4x1xf32, #tpu.memory_space<vmem>>, vector<1x4x1xf32>
    %23 = vector.shape_cast %22 : vector<1x4x1xf32> to vector<4x1xf32>
    %c11 = arith.constant 11 : index
    %c0_26 = arith.constant 0 : index
    %c0_27 = arith.constant 0 : index
    %24 = vector.load %arg1[%c11, %c0_26, %c0_27] : memref<36x4x1xf32, #tpu.memory_space<vmem>>, vector<1x4x1xf32>
    %25 = vector.shape_cast %24 : vector<1x4x1xf32> to vector<4x1xf32>
    %c12 = arith.constant 12 : index
    %c0_28 = arith.constant 0 : index
    %c0_29 = arith.constant 0 : index
    %26 = vector.load %arg1[%c12, %c0_28, %c0_29] : memref<36x4x1xf32, #tpu.memory_space<vmem>>, vector<1x4x1xf32>
    %27 = vector.shape_cast %26 : vector<1x4x1xf32> to vector<4x1xf32>
    %c13 = arith.constant 13 : index
    %c0_30 = arith.constant 0 : index
    %c0_31 = arith.constant 0 : index
    %28 = vector.load %arg1[%c13, %c0_30, %c0_31] : memref<36x4x1xf32, #tpu.memory_space<vmem>>, vector<1x4x1xf32>
    %29 = vector.shape_cast %28 : vector<1x4x1xf32> to vector<4x1xf32>
    %c14 = arith.constant 14 : index
    %c0_32 = arith.constant 0 : index
    %c0_33 = arith.constant 0 : index
    %30 = vector.load %arg1[%c14, %c0_32, %c0_33] : memref<36x4x1xf32, #tpu.memory_space<vmem>>, vector<1x4x1xf32>
    %31 = vector.shape_cast %30 : vector<1x4x1xf32> to vector<4x1xf32>
    %c15 = arith.constant 15 : index
    %c0_34 = arith.constant 0 : index
    %c0_35 = arith.constant 0 : index
    %32 = vector.load %arg1[%c15, %c0_34, %c0_35] : memref<36x4x1xf32, #tpu.memory_space<vmem>>, vector<1x4x1xf32>
    %33 = vector.shape_cast %32 : vector<1x4x1xf32> to vector<4x1xf32>
    %c16 = arith.constant 16 : index
    %c0_36 = arith.constant 0 : index
    %c0_37 = arith.constant 0 : index
    %34 = vector.load %arg1[%c16, %c0_36, %c0_37] : memref<36x4x1xf32, #tpu.memory_space<vmem>>, vector<1x4x1xf32>
    %35 = vector.shape_cast %34 : vector<1x4x1xf32> to vector<4x1xf32>
    %c17 = arith.constant 17 : index
    %c0_38 = arith.constant 0 : index
    %c0_39 = arith.constant 0 : index
    %36 = vector.load %arg1[%c17, %c0_38, %c0_39] : memref<36x4x1xf32, #tpu.memory_space<vmem>>, vector<1x4x1xf32>
    %37 = vector.shape_cast %36 : vector<1x4x1xf32> to vector<4x1xf32>
    %c18 = arith.constant 18 : index
    %c0_40 = arith.constant 0 : index
    %c0_41 = arith.constant 0 : index
    %38 = vector.load %arg1[%c18, %c0_40, %c0_41] : memref<36x4x1xf32, #tpu.memory_space<vmem>>, vector<1x4x1xf32>
    %39 = vector.shape_cast %38 : vector<1x4x1xf32> to vector<4x1xf32>
    %c19 = arith.constant 19 : index
    %c0_42 = arith.constant 0 : index
    %c0_43 = arith.constant 0 : index
    %40 = vector.load %arg1[%c19, %c0_42, %c0_43] : memref<36x4x1xf32, #tpu.memory_space<vmem>>, vector<1x4x1xf32>
    %41 = vector.shape_cast %40 : vector<1x4x1xf32> to vector<4x1xf32>
    %c20 = arith.constant 20 : index
    %c0_44 = arith.constant 0 : index
    %c0_45 = arith.constant 0 : index
    %42 = vector.load %arg1[%c20, %c0_44, %c0_45] : memref<36x4x1xf32, #tpu.memory_space<vmem>>, vector<1x4x1xf32>
    %43 = vector.shape_cast %42 : vector<1x4x1xf32> to vector<4x1xf32>
    %c21 = arith.constant 21 : index
    %c0_46 = arith.constant 0 : index
    %c0_47 = arith.constant 0 : index
    %44 = vector.load %arg1[%c21, %c0_46, %c0_47] : memref<36x4x1xf32, #tpu.memory_space<vmem>>, vector<1x4x1xf32>
    %45 = vector.shape_cast %44 : vector<1x4x1xf32> to vector<4x1xf32>
    %c22 = arith.constant 22 : index
    %c0_48 = arith.constant 0 : index
    %c0_49 = arith.constant 0 : index
    %46 = vector.load %arg1[%c22, %c0_48, %c0_49] : memref<36x4x1xf32, #tpu.memory_space<vmem>>, vector<1x4x1xf32>
    %47 = vector.shape_cast %46 : vector<1x4x1xf32> to vector<4x1xf32>
    %c23 = arith.constant 23 : index
    %c0_50 = arith.constant 0 : index
    %c0_51 = arith.constant 0 : index
    %48 = vector.load %arg1[%c23, %c0_50, %c0_51] : memref<36x4x1xf32, #tpu.memory_space<vmem>>, vector<1x4x1xf32>
    %49 = vector.shape_cast %48 : vector<1x4x1xf32> to vector<4x1xf32>
    %c24 = arith.constant 24 : index
    %c0_52 = arith.constant 0 : index
    %c0_53 = arith.constant 0 : index
    %50 = vector.load %arg1[%c24, %c0_52, %c0_53] : memref<36x4x1xf32, #tpu.memory_space<vmem>>, vector<1x4x1xf32>
    %51 = vector.shape_cast %50 : vector<1x4x1xf32> to vector<4x1xf32>
    %c25 = arith.constant 25 : index
    %c0_54 = arith.constant 0 : index
    %c0_55 = arith.constant 0 : index
    %52 = vector.load %arg1[%c25, %c0_54, %c0_55] : memref<36x4x1xf32, #tpu.memory_space<vmem>>, vector<1x4x1xf32>
    %53 = vector.shape_cast %52 : vector<1x4x1xf32> to vector<4x1xf32>
    %c26 = arith.constant 26 : index
    %c0_56 = arith.constant 0 : index
    %c0_57 = arith.constant 0 : index
    %54 = vector.load %arg1[%c26, %c0_56, %c0_57] : memref<36x4x1xf32, #tpu.memory_space<vmem>>, vector<1x4x1xf32>
    %55 = vector.shape_cast %54 : vector<1x4x1xf32> to vector<4x1xf32>
    %c27 = arith.constant 27 : index
    %c0_58 = arith.constant 0 : index
    %c0_59 = arith.constant 0 : index
    %56 = vector.load %arg1[%c27, %c0_58, %c0_59] : memref<36x4x1xf32, #tpu.memory_space<vmem>>, vector<1x4x1xf32>
    %57 = vector.shape_cast %56 : vector<1x4x1xf32> to vector<4x1xf32>
    %c28 = arith.constant 28 : index
    %c0_60 = arith.constant 0 : index
    %c0_61 = arith.constant 0 : index
    %58 = vector.load %arg1[%c28, %c0_60, %c0_61] : memref<36x4x1xf32, #tpu.memory_space<vmem>>, vector<1x4x1xf32>
    %59 = vector.shape_cast %58 : vector<1x4x1xf32> to vector<4x1xf32>
    %c29 = arith.constant 29 : index
    %c0_62 = arith.constant 0 : index
    %c0_63 = arith.constant 0 : index
    %60 = vector.load %arg1[%c29, %c0_62, %c0_63] : memref<36x4x1xf32, #tpu.memory_space<vmem>>, vector<1x4x1xf32>
    %61 = vector.shape_cast %60 : vector<1x4x1xf32> to vector<4x1xf32>
    %c30 = arith.constant 30 : index
    %c0_64 = arith.constant 0 : index
    %c0_65 = arith.constant 0 : index
    %62 = vector.load %arg1[%c30, %c0_64, %c0_65] : memref<36x4x1xf32, #tpu.memory_space<vmem>>, vector<1x4x1xf32>
    %63 = vector.shape_cast %62 : vector<1x4x1xf32> to vector<4x1xf32>
    %c31 = arith.constant 31 : index
    %c0_66 = arith.constant 0 : index
    %c0_67 = arith.constant 0 : index
    %64 = vector.load %arg1[%c31, %c0_66, %c0_67] : memref<36x4x1xf32, #tpu.memory_space<vmem>>, vector<1x4x1xf32>
    %65 = vector.shape_cast %64 : vector<1x4x1xf32> to vector<4x1xf32>
    %c32 = arith.constant 32 : index
    %c0_68 = arith.constant 0 : index
    %c0_69 = arith.constant 0 : index
    %66 = vector.load %arg1[%c32, %c0_68, %c0_69] : memref<36x4x1xf32, #tpu.memory_space<vmem>>, vector<1x4x1xf32>
    %67 = vector.shape_cast %66 : vector<1x4x1xf32> to vector<4x1xf32>
    %c33 = arith.constant 33 : index
    %c0_70 = arith.constant 0 : index
    %c0_71 = arith.constant 0 : index
    %68 = vector.load %arg1[%c33, %c0_70, %c0_71] : memref<36x4x1xf32, #tpu.memory_space<vmem>>, vector<1x4x1xf32>
    %69 = vector.shape_cast %68 : vector<1x4x1xf32> to vector<4x1xf32>
    %c34 = arith.constant 34 : index
    %c0_72 = arith.constant 0 : index
    %c0_73 = arith.constant 0 : index
    %70 = vector.load %arg1[%c34, %c0_72, %c0_73] : memref<36x4x1xf32, #tpu.memory_space<vmem>>, vector<1x4x1xf32>
    %71 = vector.shape_cast %70 : vector<1x4x1xf32> to vector<4x1xf32>
    %c35 = arith.constant 35 : index
    %c0_74 = arith.constant 0 : index
    %c0_75 = arith.constant 0 : index
    %72 = vector.load %arg1[%c35, %c0_74, %c0_75] : memref<36x4x1xf32, #tpu.memory_space<vmem>>, vector<1x4x1xf32>
    %73 = vector.shape_cast %72 : vector<1x4x1xf32> to vector<4x1xf32>
    %c0_76 = arith.constant 0 : index
    %c0_77 = arith.constant 0 : index
    %c0_78 = arith.constant 0 : index
    %74 = vector.load %arg3[%c0_76, %c0_77, %c0_78] : memref<4x4x1xf32, #tpu.memory_space<vmem>>, vector<1x4x1xf32>
    %75 = vector.shape_cast %74 : vector<1x4x1xf32> to vector<4x1xf32>
    %c1_79 = arith.constant 1 : index
    %c0_80 = arith.constant 0 : index
    %c0_81 = arith.constant 0 : index
    %76 = vector.load %arg3[%c1_79, %c0_80, %c0_81] : memref<4x4x1xf32, #tpu.memory_space<vmem>>, vector<1x4x1xf32>
    %77 = vector.shape_cast %76 : vector<1x4x1xf32> to vector<4x1xf32>
    %c2_82 = arith.constant 2 : index
    %c0_83 = arith.constant 0 : index
    %c0_84 = arith.constant 0 : index
    %78 = vector.load %arg3[%c2_82, %c0_83, %c0_84] : memref<4x4x1xf32, #tpu.memory_space<vmem>>, vector<1x4x1xf32>
    %79 = vector.shape_cast %78 : vector<1x4x1xf32> to vector<4x1xf32>
    %c3_85 = arith.constant 3 : index
    %c0_86 = arith.constant 0 : index
    %c0_87 = arith.constant 0 : index
    %80 = vector.load %arg3[%c3_85, %c0_86, %c0_87] : memref<4x4x1xf32, #tpu.memory_space<vmem>>, vector<1x4x1xf32>
    %81 = vector.shape_cast %80 : vector<1x4x1xf32> to vector<4x1xf32>
    %c0_88 = arith.constant 0 : index
    %c0_89 = arith.constant 0 : index
    %82 = vector.load %arg2[%c0_88, %c0_89] : memref<4x1xf32, #tpu.memory_space<vmem>>, vector<4x1xf32>
    %c0_90 = arith.constant 0 : index
    %c0_91 = arith.constant 0 : index
    %83 = vector.load %arg5[%c0_90, %c0_91] : memref<4x896xf32, #tpu.memory_space<vmem>>, vector<4x896xf32>
    %c0_92 = arith.constant 0 : index
    %c0_93 = arith.constant 0 : index
    %c0_94 = arith.constant 0 : index
    %84 = vector.load %arg4[%c0_92, %c0_93, %c0_94] : memref<4x1x896xf32, #tpu.memory_space<vmem>>, vector<1x1x896xf32>
    %85 = vector.shape_cast %84 : vector<1x1x896xf32> to vector<1x896xf32>
    %c19_i32 = arith.constant 19 : i32
    %86 = tpu.dynamic_rotate %83 by %c19_i32 dim 1 : vector<4x896xf32>, i32 -> vector<4x896xf32>
    %87 = vector.extract_strided_slice %86 {offsets = [0, 0], sizes = [1, 896], strides = [1, 1]} : vector<4x896xf32> to vector<1x896xf32>
    %88 = vector.broadcast %3 : vector<4x1xf32> to vector<4x896xf32>
    %89 = vector.broadcast %87 : vector<1x896xf32> to vector<4x896xf32>
    %90 = arith.mulf %88, %89 : vector<4x896xf32>
    %91 = vector.extract_strided_slice %86 {offsets = [1, 0], sizes = [1, 896], strides = [1, 1]} : vector<4x896xf32> to vector<1x896xf32>
    %92 = vector.broadcast %5 : vector<4x1xf32> to vector<4x896xf32>
    %93 = vector.broadcast %91 : vector<1x896xf32> to vector<4x896xf32>
    %94 = arith.mulf %92, %93 : vector<4x896xf32>
    %95 = arith.addf %90, %94 : vector<4x896xf32>
    %96 = vector.extract_strided_slice %86 {offsets = [2, 0], sizes = [1, 896], strides = [1, 1]} : vector<4x896xf32> to vector<1x896xf32>
    %97 = vector.broadcast %7 : vector<4x1xf32> to vector<4x896xf32>
    %98 = vector.broadcast %96 : vector<1x896xf32> to vector<4x896xf32>
    %99 = arith.mulf %97, %98 : vector<4x896xf32>
    %100 = arith.addf %95, %99 : vector<4x896xf32>
    %101 = vector.extract_strided_slice %86 {offsets = [3, 0], sizes = [1, 896], strides = [1, 1]} : vector<4x896xf32> to vector<1x896xf32>
    %102 = vector.broadcast %9 : vector<4x1xf32> to vector<4x896xf32>
    %103 = vector.broadcast %101 : vector<1x896xf32> to vector<4x896xf32>
    %104 = arith.mulf %102, %103 : vector<4x896xf32>
    %105 = arith.addf %100, %104 : vector<4x896xf32>
    %c18_i32 = arith.constant 18 : i32
    %106 = tpu.dynamic_rotate %83 by %c18_i32 dim 1 : vector<4x896xf32>, i32 -> vector<4x896xf32>
    %107 = vector.extract_strided_slice %106 {offsets = [0, 0], sizes = [1, 896], strides = [1, 1]} : vector<4x896xf32> to vector<1x896xf32>
    %108 = vector.broadcast %11 : vector<4x1xf32> to vector<4x896xf32>
    %109 = vector.broadcast %107 : vector<1x896xf32> to vector<4x896xf32>
    %110 = arith.mulf %108, %109 : vector<4x896xf32>
    %111 = arith.addf %105, %110 : vector<4x896xf32>
    %112 = vector.extract_strided_slice %106 {offsets = [1, 0], sizes = [1, 896], strides = [1, 1]} : vector<4x896xf32> to vector<1x896xf32>
    %113 = vector.broadcast %13 : vector<4x1xf32> to vector<4x896xf32>
    %114 = vector.broadcast %112 : vector<1x896xf32> to vector<4x896xf32>
    %115 = arith.mulf %113, %114 : vector<4x896xf32>
    %116 = arith.addf %111, %115 : vector<4x896xf32>
    %117 = vector.extract_strided_slice %106 {offsets = [2, 0], sizes = [1, 896], strides = [1, 1]} : vector<4x896xf32> to vector<1x896xf32>
    %118 = vector.broadcast %15 : vector<4x1xf32> to vector<4x896xf32>
    %119 = vector.broadcast %117 : vector<1x896xf32> to vector<4x896xf32>
    %120 = arith.mulf %118, %119 : vector<4x896xf32>
    %121 = arith.addf %116, %120 : vector<4x896xf32>
    %122 = vector.extract_strided_slice %106 {offsets = [3, 0], sizes = [1, 896], strides = [1, 1]} : vector<4x896xf32> to vector<1x896xf32>
    %123 = vector.broadcast %17 : vector<4x1xf32> to vector<4x896xf32>
    %124 = vector.broadcast %122 : vector<1x896xf32> to vector<4x896xf32>
    %125 = arith.mulf %123, %124 : vector<4x896xf32>
    %126 = arith.addf %121, %125 : vector<4x896xf32>
    %c17_i32 = arith.constant 17 : i32
    %127 = tpu.dynamic_rotate %83 by %c17_i32 dim 1 : vector<4x896xf32>, i32 -> vector<4x896xf32>
    %128 = vector.extract_strided_slice %127 {offsets = [0, 0], sizes = [1, 896], strides = [1, 1]} : vector<4x896xf32> to vector<1x896xf32>
    %129 = vector.broadcast %19 : vector<4x1xf32> to vector<4x896xf32>
    %130 = vector.broadcast %128 : vector<1x896xf32> to vector<4x896xf32>
    %131 = arith.mulf %129, %130 : vector<4x896xf32>
    %132 = arith.addf %126, %131 : vector<4x896xf32>
    %133 = vector.extract_strided_slice %127 {offsets = [1, 0], sizes = [1, 896], strides = [1, 1]} : vector<4x896xf32> to vector<1x896xf32>
    %134 = vector.broadcast %21 : vector<4x1xf32> to vector<4x896xf32>
    %135 = vector.broadcast %133 : vector<1x896xf32> to vector<4x896xf32>
    %136 = arith.mulf %134, %135 : vector<4x896xf32>
    %137 = arith.addf %132, %136 : vector<4x896xf32>
    %138 = vector.extract_strided_slice %127 {offsets = [2, 0], sizes = [1, 896], strides = [1, 1]} : vector<4x896xf32> to vector<1x896xf32>
    %139 = vector.broadcast %23 : vector<4x1xf32> to vector<4x896xf32>
    %140 = vector.broadcast %138 : vector<1x896xf32> to vector<4x896xf32>
    %141 = arith.mulf %139, %140 : vector<4x896xf32>
    %142 = arith.addf %137, %141 : vector<4x896xf32>
    %143 = vector.extract_strided_slice %127 {offsets = [3, 0], sizes = [1, 896], strides = [1, 1]} : vector<4x896xf32> to vector<1x896xf32>
    %144 = vector.broadcast %25 : vector<4x1xf32> to vector<4x896xf32>
    %145 = vector.broadcast %143 : vector<1x896xf32> to vector<4x896xf32>
    %146 = arith.mulf %144, %145 : vector<4x896xf32>
    %147 = arith.addf %142, %146 : vector<4x896xf32>
    %c1_i32 = arith.constant 1 : i32
    %148 = tpu.dynamic_rotate %83 by %c1_i32 dim 1 : vector<4x896xf32>, i32 -> vector<4x896xf32>
    %149 = vector.extract_strided_slice %148 {offsets = [0, 0], sizes = [1, 896], strides = [1, 1]} : vector<4x896xf32> to vector<1x896xf32>
    %150 = vector.broadcast %27 : vector<4x1xf32> to vector<4x896xf32>
    %151 = vector.broadcast %149 : vector<1x896xf32> to vector<4x896xf32>
    %152 = arith.mulf %150, %151 : vector<4x896xf32>
    %153 = arith.addf %147, %152 : vector<4x896xf32>
    %154 = vector.extract_strided_slice %148 {offsets = [1, 0], sizes = [1, 896], strides = [1, 1]} : vector<4x896xf32> to vector<1x896xf32>
    %155 = vector.broadcast %29 : vector<4x1xf32> to vector<4x896xf32>
    %156 = vector.broadcast %154 : vector<1x896xf32> to vector<4x896xf32>
    %157 = arith.mulf %155, %156 : vector<4x896xf32>
    %158 = arith.addf %153, %157 : vector<4x896xf32>
    %159 = vector.extract_strided_slice %148 {offsets = [2, 0], sizes = [1, 896], strides = [1, 1]} : vector<4x896xf32> to vector<1x896xf32>
    %160 = vector.broadcast %31 : vector<4x1xf32> to vector<4x896xf32>
    %161 = vector.broadcast %159 : vector<1x896xf32> to vector<4x896xf32>
    %162 = arith.mulf %160, %161 : vector<4x896xf32>
    %163 = arith.addf %158, %162 : vector<4x896xf32>
    %164 = vector.extract_strided_slice %148 {offsets = [3, 0], sizes = [1, 896], strides = [1, 1]} : vector<4x896xf32> to vector<1x896xf32>
    %165 = vector.broadcast %33 : vector<4x1xf32> to vector<4x896xf32>
    %166 = vector.broadcast %164 : vector<1x896xf32> to vector<4x896xf32>
    %167 = arith.mulf %165, %166 : vector<4x896xf32>
    %168 = arith.addf %163, %167 : vector<4x896xf32>
    %169 = vector.extract_strided_slice %83 {offsets = [0, 0], sizes = [1, 896], strides = [1, 1]} : vector<4x896xf32> to vector<1x896xf32>
    %170 = vector.broadcast %35 : vector<4x1xf32> to vector<4x896xf32>
    %171 = vector.broadcast %169 : vector<1x896xf32> to vector<4x896xf32>
    %172 = arith.mulf %170, %171 : vector<4x896xf32>
    %173 = arith.addf %168, %172 : vector<4x896xf32>
    %174 = vector.extract_strided_slice %83 {offsets = [1, 0], sizes = [1, 896], strides = [1, 1]} : vector<4x896xf32> to vector<1x896xf32>
    %175 = vector.broadcast %37 : vector<4x1xf32> to vector<4x896xf32>
    %176 = vector.broadcast %174 : vector<1x896xf32> to vector<4x896xf32>
    %177 = arith.mulf %175, %176 : vector<4x896xf32>
    %178 = arith.addf %173, %177 : vector<4x896xf32>
    %179 = vector.extract_strided_slice %83 {offsets = [2, 0], sizes = [1, 896], strides = [1, 1]} : vector<4x896xf32> to vector<1x896xf32>
    %180 = vector.broadcast %39 : vector<4x1xf32> to vector<4x896xf32>
    %181 = vector.broadcast %179 : vector<1x896xf32> to vector<4x896xf32>
    %182 = arith.mulf %180, %181 : vector<4x896xf32>
    %183 = arith.addf %178, %182 : vector<4x896xf32>
    %184 = vector.extract_strided_slice %83 {offsets = [3, 0], sizes = [1, 896], strides = [1, 1]} : vector<4x896xf32> to vector<1x896xf32>
    %185 = vector.broadcast %41 : vector<4x1xf32> to vector<4x896xf32>
    %186 = vector.broadcast %184 : vector<1x896xf32> to vector<4x896xf32>
    %187 = arith.mulf %185, %186 : vector<4x896xf32>
    %188 = arith.addf %183, %187 : vector<4x896xf32>
    %c895_i32 = arith.constant 895 : i32
    %189 = tpu.dynamic_rotate %83 by %c895_i32 dim 1 : vector<4x896xf32>, i32 -> vector<4x896xf32>
    %190 = vector.extract_strided_slice %189 {offsets = [0, 0], sizes = [1, 896], strides = [1, 1]} : vector<4x896xf32> to vector<1x896xf32>
    %191 = vector.broadcast %43 : vector<4x1xf32> to vector<4x896xf32>
    %192 = vector.broadcast %190 : vector<1x896xf32> to vector<4x896xf32>
    %193 = arith.mulf %191, %192 : vector<4x896xf32>
    %194 = arith.addf %188, %193 : vector<4x896xf32>
    %195 = vector.extract_strided_slice %189 {offsets = [1, 0], sizes = [1, 896], strides = [1, 1]} : vector<4x896xf32> to vector<1x896xf32>
    %196 = vector.broadcast %45 : vector<4x1xf32> to vector<4x896xf32>
    %197 = vector.broadcast %195 : vector<1x896xf32> to vector<4x896xf32>
    %198 = arith.mulf %196, %197 : vector<4x896xf32>
    %199 = arith.addf %194, %198 : vector<4x896xf32>
    %200 = vector.extract_strided_slice %189 {offsets = [2, 0], sizes = [1, 896], strides = [1, 1]} : vector<4x896xf32> to vector<1x896xf32>
    %201 = vector.broadcast %47 : vector<4x1xf32> to vector<4x896xf32>
    %202 = vector.broadcast %200 : vector<1x896xf32> to vector<4x896xf32>
    %203 = arith.mulf %201, %202 : vector<4x896xf32>
    %204 = arith.addf %199, %203 : vector<4x896xf32>
    %205 = vector.extract_strided_slice %189 {offsets = [3, 0], sizes = [1, 896], strides = [1, 1]} : vector<4x896xf32> to vector<1x896xf32>
    %206 = vector.broadcast %49 : vector<4x1xf32> to vector<4x896xf32>
    %207 = vector.broadcast %205 : vector<1x896xf32> to vector<4x896xf32>
    %208 = arith.mulf %206, %207 : vector<4x896xf32>
    %209 = arith.addf %204, %208 : vector<4x896xf32>
    %c879_i32 = arith.constant 879 : i32
    %210 = tpu.dynamic_rotate %83 by %c879_i32 dim 1 : vector<4x896xf32>, i32 -> vector<4x896xf32>
    %211 = vector.extract_strided_slice %210 {offsets = [0, 0], sizes = [1, 896], strides = [1, 1]} : vector<4x896xf32> to vector<1x896xf32>
    %212 = vector.broadcast %51 : vector<4x1xf32> to vector<4x896xf32>
    %213 = vector.broadcast %211 : vector<1x896xf32> to vector<4x896xf32>
    %214 = arith.mulf %212, %213 : vector<4x896xf32>
    %215 = arith.addf %209, %214 : vector<4x896xf32>
    %216 = vector.extract_strided_slice %210 {offsets = [1, 0], sizes = [1, 896], strides = [1, 1]} : vector<4x896xf32> to vector<1x896xf32>
    %217 = vector.broadcast %53 : vector<4x1xf32> to vector<4x896xf32>
    %218 = vector.broadcast %216 : vector<1x896xf32> to vector<4x896xf32>
    %219 = arith.mulf %217, %218 : vector<4x896xf32>
    %220 = arith.addf %215, %219 : vector<4x896xf32>
    %221 = vector.extract_strided_slice %210 {offsets = [2, 0], sizes = [1, 896], strides = [1, 1]} : vector<4x896xf32> to vector<1x896xf32>
    %222 = vector.broadcast %55 : vector<4x1xf32> to vector<4x896xf32>
    %223 = vector.broadcast %221 : vector<1x896xf32> to vector<4x896xf32>
    %224 = arith.mulf %222, %223 : vector<4x896xf32>
    %225 = arith.addf %220, %224 : vector<4x896xf32>
    %226 = vector.extract_strided_slice %210 {offsets = [3, 0], sizes = [1, 896], strides = [1, 1]} : vector<4x896xf32> to vector<1x896xf32>
    %227 = vector.broadcast %57 : vector<4x1xf32> to vector<4x896xf32>
    %228 = vector.broadcast %226 : vector<1x896xf32> to vector<4x896xf32>
    %229 = arith.mulf %227, %228 : vector<4x896xf32>
    %230 = arith.addf %225, %229 : vector<4x896xf32>
    %c878_i32 = arith.constant 878 : i32
    %231 = tpu.dynamic_rotate %83 by %c878_i32 dim 1 : vector<4x896xf32>, i32 -> vector<4x896xf32>
    %232 = vector.extract_strided_slice %231 {offsets = [0, 0], sizes = [1, 896], strides = [1, 1]} : vector<4x896xf32> to vector<1x896xf32>
    %233 = vector.broadcast %59 : vector<4x1xf32> to vector<4x896xf32>
    %234 = vector.broadcast %232 : vector<1x896xf32> to vector<4x896xf32>
    %235 = arith.mulf %233, %234 : vector<4x896xf32>
    %236 = arith.addf %230, %235 : vector<4x896xf32>
    %237 = vector.extract_strided_slice %231 {offsets = [1, 0], sizes = [1, 896], strides = [1, 1]} : vector<4x896xf32> to vector<1x896xf32>
    %238 = vector.broadcast %61 : vector<4x1xf32> to vector<4x896xf32>
    %239 = vector.broadcast %237 : vector<1x896xf32> to vector<4x896xf32>
    %240 = arith.mulf %238, %239 : vector<4x896xf32>
    %241 = arith.addf %236, %240 : vector<4x896xf32>
    %242 = vector.extract_strided_slice %231 {offsets = [2, 0], sizes = [1, 896], strides = [1, 1]} : vector<4x896xf32> to vector<1x896xf32>
    %243 = vector.broadcast %63 : vector<4x1xf32> to vector<4x896xf32>
    %244 = vector.broadcast %242 : vector<1x896xf32> to vector<4x896xf32>
    %245 = arith.mulf %243, %244 : vector<4x896xf32>
    %246 = arith.addf %241, %245 : vector<4x896xf32>
    %247 = vector.extract_strided_slice %231 {offsets = [3, 0], sizes = [1, 896], strides = [1, 1]} : vector<4x896xf32> to vector<1x896xf32>
    %248 = vector.broadcast %65 : vector<4x1xf32> to vector<4x896xf32>
    %249 = vector.broadcast %247 : vector<1x896xf32> to vector<4x896xf32>
    %250 = arith.mulf %248, %249 : vector<4x896xf32>
    %251 = arith.addf %246, %250 : vector<4x896xf32>
    %c877_i32 = arith.constant 877 : i32
    %252 = tpu.dynamic_rotate %83 by %c877_i32 dim 1 : vector<4x896xf32>, i32 -> vector<4x896xf32>
    %253 = vector.extract_strided_slice %252 {offsets = [0, 0], sizes = [1, 896], strides = [1, 1]} : vector<4x896xf32> to vector<1x896xf32>
    %254 = vector.broadcast %67 : vector<4x1xf32> to vector<4x896xf32>
    %255 = vector.broadcast %253 : vector<1x896xf32> to vector<4x896xf32>
    %256 = arith.mulf %254, %255 : vector<4x896xf32>
    %257 = arith.addf %251, %256 : vector<4x896xf32>
    %258 = vector.extract_strided_slice %252 {offsets = [1, 0], sizes = [1, 896], strides = [1, 1]} : vector<4x896xf32> to vector<1x896xf32>
    %259 = vector.broadcast %69 : vector<4x1xf32> to vector<4x896xf32>
    %260 = vector.broadcast %258 : vector<1x896xf32> to vector<4x896xf32>
    %261 = arith.mulf %259, %260 : vector<4x896xf32>
    %262 = arith.addf %257, %261 : vector<4x896xf32>
    %263 = vector.extract_strided_slice %252 {offsets = [2, 0], sizes = [1, 896], strides = [1, 1]} : vector<4x896xf32> to vector<1x896xf32>
    %264 = vector.broadcast %71 : vector<4x1xf32> to vector<4x896xf32>
    %265 = vector.broadcast %263 : vector<1x896xf32> to vector<4x896xf32>
    %266 = arith.mulf %264, %265 : vector<4x896xf32>
    %267 = arith.addf %262, %266 : vector<4x896xf32>
    %268 = vector.extract_strided_slice %252 {offsets = [3, 0], sizes = [1, 896], strides = [1, 1]} : vector<4x896xf32> to vector<1x896xf32>
    %269 = vector.broadcast %73 : vector<4x1xf32> to vector<4x896xf32>
    %270 = vector.broadcast %268 : vector<1x896xf32> to vector<4x896xf32>
    %271 = arith.mulf %269, %270 : vector<4x896xf32>
    %272 = arith.addf %267, %271 : vector<4x896xf32>
    %273 = vector.broadcast %82 : vector<4x1xf32> to vector<4x896xf32>
    %274 = arith.addf %272, %273 : vector<4x896xf32>
    %cst = arith.constant 0.000000e+00 : f32
    %275 = vector.broadcast %cst : f32 to vector<4x896xf32>
    %276 = arith.maximumf %274, %275 : vector<4x896xf32>
    %277 = vector.extract_strided_slice %276 {offsets = [0, 0], sizes = [1, 896], strides = [1, 1]} : vector<4x896xf32> to vector<1x896xf32>
    %278 = vector.broadcast %75 : vector<4x1xf32> to vector<4x896xf32>
    %279 = vector.broadcast %277 : vector<1x896xf32> to vector<4x896xf32>
    %280 = arith.mulf %278, %279 : vector<4x896xf32>
    %281 = vector.extract_strided_slice %276 {offsets = [1, 0], sizes = [1, 896], strides = [1, 1]} : vector<4x896xf32> to vector<1x896xf32>
    %282 = vector.broadcast %77 : vector<4x1xf32> to vector<4x896xf32>
    %283 = vector.broadcast %281 : vector<1x896xf32> to vector<4x896xf32>
    %284 = arith.mulf %282, %283 : vector<4x896xf32>
    %285 = arith.addf %280, %284 : vector<4x896xf32>
    %286 = vector.extract_strided_slice %276 {offsets = [2, 0], sizes = [1, 896], strides = [1, 1]} : vector<4x896xf32> to vector<1x896xf32>
    %287 = vector.broadcast %79 : vector<4x1xf32> to vector<4x896xf32>
    %288 = vector.broadcast %286 : vector<1x896xf32> to vector<4x896xf32>
    %289 = arith.mulf %287, %288 : vector<4x896xf32>
    %290 = arith.addf %285, %289 : vector<4x896xf32>
    %291 = vector.extract_strided_slice %276 {offsets = [3, 0], sizes = [1, 896], strides = [1, 1]} : vector<4x896xf32> to vector<1x896xf32>
    %292 = vector.broadcast %81 : vector<4x1xf32> to vector<4x896xf32>
    %293 = vector.broadcast %291 : vector<1x896xf32> to vector<4x896xf32>
    %294 = arith.mulf %292, %293 : vector<4x896xf32>
    %295 = arith.addf %290, %294 : vector<4x896xf32>
    %296 = vector.broadcast %85 : vector<1x896xf32> to vector<4x896xf32>
    %297 = arith.mulf %295, %296 : vector<4x896xf32>
    %298 = arith.addf %83, %297 : vector<4x896xf32>
    %c0_95 = arith.constant 0 : index
    %c0_96 = arith.constant 0 : index
    %299 = vector.load %arg5[%c0_95, %c0_96] : memref<4x896xf32, #tpu.memory_space<vmem>>, vector<4x896xf32>
    tpu.vector_store %arg5[%c0_95, %c0_96], %298 {strides = array<i32>} : memref<4x896xf32, #tpu.memory_space<vmem>>, vector<4x896xf32>,
    %c0_97 = arith.constant 0 : index
    %c0_98 = arith.constant 0 : index
    %300 = vector.load %arg5[%c0_97, %c0_98] : memref<4x896xf32, #tpu.memory_space<vmem>>, vector<4x896xf32>
    %c1_99 = arith.constant 1 : index
    %c0_100 = arith.constant 0 : index
    %c0_101 = arith.constant 0 : index
    %301 = vector.load %arg4[%c1_99, %c0_100, %c0_101] : memref<4x1x896xf32, #tpu.memory_space<vmem>>, vector<1x1x896xf32>
    %302 = vector.shape_cast %301 : vector<1x1x896xf32> to vector<1x896xf32>
    %c19_i32_102 = arith.constant 19 : i32
    %303 = tpu.dynamic_rotate %300 by %c19_i32_102 dim 1 : vector<4x896xf32>, i32 -> vector<4x896xf32>
    %304 = vector.extract_strided_slice %303 {offsets = [0, 0], sizes = [1, 896], strides = [1, 1]} : vector<4x896xf32> to vector<1x896xf32>
    %305 = vector.broadcast %3 : vector<4x1xf32> to vector<4x896xf32>
    %306 = vector.broadcast %304 : vector<1x896xf32> to vector<4x896xf32>
    %307 = arith.mulf %305, %306 : vector<4x896xf32>
    %308 = vector.extract_strided_slice %303 {offsets = [1, 0], sizes = [1, 896], strides = [1, 1]} : vector<4x896xf32> to vector<1x896xf32>
    %309 = vector.broadcast %5 : vector<4x1xf32> to vector<4x896xf32>
    %310 = vector.broadcast %308 : vector<1x896xf32> to vector<4x896xf32>
    %311 = arith.mulf %309, %310 : vector<4x896xf32>
    %312 = arith.addf %307, %311 : vector<4x896xf32>
    %313 = vector.extract_strided_slice %303 {offsets = [2, 0], sizes = [1, 896], strides = [1, 1]} : vector<4x896xf32> to vector<1x896xf32>
    %314 = vector.broadcast %7 : vector<4x1xf32> to vector<4x896xf32>
    %315 = vector.broadcast %313 : vector<1x896xf32> to vector<4x896xf32>
    %316 = arith.mulf %314, %315 : vector<4x896xf32>
    %317 = arith.addf %312, %316 : vector<4x896xf32>
    %318 = vector.extract_strided_slice %303 {offsets = [3, 0], sizes = [1, 896], strides = [1, 1]} : vector<4x896xf32> to vector<1x896xf32>
    %319 = vector.broadcast %9 : vector<4x1xf32> to vector<4x896xf32>
    %320 = vector.broadcast %318 : vector<1x896xf32> to vector<4x896xf32>
    %321 = arith.mulf %319, %320 : vector<4x896xf32>
    %322 = arith.addf %317, %321 : vector<4x896xf32>
    %c18_i32_103 = arith.constant 18 : i32
    %323 = tpu.dynamic_rotate %300 by %c18_i32_103 dim 1 : vector<4x896xf32>, i32 -> vector<4x896xf32>
    %324 = vector.extract_strided_slice %323 {offsets = [0, 0], sizes = [1, 896], strides = [1, 1]} : vector<4x896xf32> to vector<1x896xf32>
    %325 = vector.broadcast %11 : vector<4x1xf32> to vector<4x896xf32>
    %326 = vector.broadcast %324 : vector<1x896xf32> to vector<4x896xf32>
    %327 = arith.mulf %325, %326 : vector<4x896xf32>
    %328 = arith.addf %322, %327 : vector<4x896xf32>
    %329 = vector.extract_strided_slice %323 {offsets = [1, 0], sizes = [1, 896], strides = [1, 1]} : vector<4x896xf32> to vector<1x896xf32>
    %330 = vector.broadcast %13 : vector<4x1xf32> to vector<4x896xf32>
    %331 = vector.broadcast %329 : vector<1x896xf32> to vector<4x896xf32>
    %332 = arith.mulf %330, %331 : vector<4x896xf32>
    %333 = arith.addf %328, %332 : vector<4x896xf32>
    %334 = vector.extract_strided_slice %323 {offsets = [2, 0], sizes = [1, 896], strides = [1, 1]} : vector<4x896xf32> to vector<1x896xf32>
    %335 = vector.broadcast %15 : vector<4x1xf32> to vector<4x896xf32>
    %336 = vector.broadcast %334 : vector<1x896xf32> to vector<4x896xf32>
    %337 = arith.mulf %335, %336 : vector<4x896xf32>
    %338 = arith.addf %333, %337 : vector<4x896xf32>
    %339 = vector.extract_strided_slice %323 {offsets = [3, 0], sizes = [1, 896], strides = [1, 1]} : vector<4x896xf32> to vector<1x896xf32>
    %340 = vector.broadcast %17 : vector<4x1xf32> to vector<4x896xf32>
    %341 = vector.broadcast %339 : vector<1x896xf32> to vector<4x896xf32>
    %342 = arith.mulf %340, %341 : vector<4x896xf32>
    %343 = arith.addf %338, %342 : vector<4x896xf32>
    %c17_i32_104 = arith.constant 17 : i32
    %344 = tpu.dynamic_rotate %300 by %c17_i32_104 dim 1 : vector<4x896xf32>, i32 -> vector<4x896xf32>
    %345 = vector.extract_strided_slice %344 {offsets = [0, 0], sizes = [1, 896], strides = [1, 1]} : vector<4x896xf32> to vector<1x896xf32>
    %346 = vector.broadcast %19 : vector<4x1xf32> to vector<4x896xf32>
    %347 = vector.broadcast %345 : vector<1x896xf32> to vector<4x896xf32>
    %348 = arith.mulf %346, %347 : vector<4x896xf32>
    %349 = arith.addf %343, %348 : vector<4x896xf32>
    %350 = vector.extract_strided_slice %344 {offsets = [1, 0], sizes = [1, 896], strides = [1, 1]} : vector<4x896xf32> to vector<1x896xf32>
    %351 = vector.broadcast %21 : vector<4x1xf32> to vector<4x896xf32>
    %352 = vector.broadcast %350 : vector<1x896xf32> to vector<4x896xf32>
    %353 = arith.mulf %351, %352 : vector<4x896xf32>
    %354 = arith.addf %349, %353 : vector<4x896xf32>
    %355 = vector.extract_strided_slice %344 {offsets = [2, 0], sizes = [1, 896], strides = [1, 1]} : vector<4x896xf32> to vector<1x896xf32>
    %356 = vector.broadcast %23 : vector<4x1xf32> to vector<4x896xf32>
    %357 = vector.broadcast %355 : vector<1x896xf32> to vector<4x896xf32>
    %358 = arith.mulf %356, %357 : vector<4x896xf32>
    %359 = arith.addf %354, %358 : vector<4x896xf32>
    %360 = vector.extract_strided_slice %344 {offsets = [3, 0], sizes = [1, 896], strides = [1, 1]} : vector<4x896xf32> to vector<1x896xf32>
    %361 = vector.broadcast %25 : vector<4x1xf32> to vector<4x896xf32>
    %362 = vector.broadcast %360 : vector<1x896xf32> to vector<4x896xf32>
    %363 = arith.mulf %361, %362 : vector<4x896xf32>
    %364 = arith.addf %359, %363 : vector<4x896xf32>
    %c1_i32_105 = arith.constant 1 : i32
    %365 = tpu.dynamic_rotate %300 by %c1_i32_105 dim 1 : vector<4x896xf32>, i32 -> vector<4x896xf32>
    %366 = vector.extract_strided_slice %365 {offsets = [0, 0], sizes = [1, 896], strides = [1, 1]} : vector<4x896xf32> to vector<1x896xf32>
    %367 = vector.broadcast %27 : vector<4x1xf32> to vector<4x896xf32>
    %368 = vector.broadcast %366 : vector<1x896xf32> to vector<4x896xf32>
    %369 = arith.mulf %367, %368 : vector<4x896xf32>
    %370 = arith.addf %364, %369 : vector<4x896xf32>
    %371 = vector.extract_strided_slice %365 {offsets = [1, 0], sizes = [1, 896], strides = [1, 1]} : vector<4x896xf32> to vector<1x896xf32>
    %372 = vector.broadcast %29 : vector<4x1xf32> to vector<4x896xf32>
    %373 = vector.broadcast %371 : vector<1x896xf32> to vector<4x896xf32>
    %374 = arith.mulf %372, %373 : vector<4x896xf32>
    %375 = arith.addf %370, %374 : vector<4x896xf32>
    %376 = vector.extract_strided_slice %365 {offsets = [2, 0], sizes = [1, 896], strides = [1, 1]} : vector<4x896xf32> to vector<1x896xf32>
    %377 = vector.broadcast %31 : vector<4x1xf32> to vector<4x896xf32>
    %378 = vector.broadcast %376 : vector<1x896xf32> to vector<4x896xf32>
    %379 = arith.mulf %377, %378 : vector<4x896xf32>
    %380 = arith.addf %375, %379 : vector<4x896xf32>
    %381 = vector.extract_strided_slice %365 {offsets = [3, 0], sizes = [1, 896], strides = [1, 1]} : vector<4x896xf32> to vector<1x896xf32>
    %382 = vector.broadcast %33 : vector<4x1xf32> to vector<4x896xf32>
    %383 = vector.broadcast %381 : vector<1x896xf32> to vector<4x896xf32>
    %384 = arith.mulf %382, %383 : vector<4x896xf32>
    %385 = arith.addf %380, %384 : vector<4x896xf32>
    %386 = vector.extract_strided_slice %300 {offsets = [0, 0], sizes = [1, 896], strides = [1, 1]} : vector<4x896xf32> to vector<1x896xf32>
    %387 = vector.broadcast %35 : vector<4x1xf32> to vector<4x896xf32>
    %388 = vector.broadcast %386 : vector<1x896xf32> to vector<4x896xf32>
    %389 = arith.mulf %387, %388 : vector<4x896xf32>
    %390 = arith.addf %385, %389 : vector<4x896xf32>
    %391 = vector.extract_strided_slice %300 {offsets = [1, 0], sizes = [1, 896], strides = [1, 1]} : vector<4x896xf32> to vector<1x896xf32>
    %392 = vector.broadcast %37 : vector<4x1xf32> to vector<4x896xf32>
    %393 = vector.broadcast %391 : vector<1x896xf32> to vector<4x896xf32>
    %394 = arith.mulf %392, %393 : vector<4x896xf32>
    %395 = arith.addf %390, %394 : vector<4x896xf32>
    %396 = vector.extract_strided_slice %300 {offsets = [2, 0], sizes = [1, 896], strides = [1, 1]} : vector<4x896xf32> to vector<1x896xf32>
    %397 = vector.broadcast %39 : vector<4x1xf32> to vector<4x896xf32>
    %398 = vector.broadcast %396 : vector<1x896xf32> to vector<4x896xf32>
    %399 = arith.mulf %397, %398 : vector<4x896xf32>
    %400 = arith.addf %395, %399 : vector<4x896xf32>
    %401 = vector.extract_strided_slice %300 {offsets = [3, 0], sizes = [1, 896], strides = [1, 1]} : vector<4x896xf32> to vector<1x896xf32>
    %402 = vector.broadcast %41 : vector<4x1xf32> to vector<4x896xf32>
    %403 = vector.broadcast %401 : vector<1x896xf32> to vector<4x896xf32>
    %404 = arith.mulf %402, %403 : vector<4x896xf32>
    %405 = arith.addf %400, %404 : vector<4x896xf32>
    %c895_i32_106 = arith.constant 895 : i32
    %406 = tpu.dynamic_rotate %300 by %c895_i32_106 dim 1 : vector<4x896xf32>, i32 -> vector<4x896xf32>
    %407 = vector.extract_strided_slice %406 {offsets = [0, 0], sizes = [1, 896], strides = [1, 1]} : vector<4x896xf32> to vector<1x896xf32>
    %408 = vector.broadcast %43 : vector<4x1xf32> to vector<4x896xf32>
    %409 = vector.broadcast %407 : vector<1x896xf32> to vector<4x896xf32>
    %410 = arith.mulf %408, %409 : vector<4x896xf32>
    %411 = arith.addf %405, %410 : vector<4x896xf32>
    %412 = vector.extract_strided_slice %406 {offsets = [1, 0], sizes = [1, 896], strides = [1, 1]} : vector<4x896xf32> to vector<1x896xf32>
    %413 = vector.broadcast %45 : vector<4x1xf32> to vector<4x896xf32>
    %414 = vector.broadcast %412 : vector<1x896xf32> to vector<4x896xf32>
    %415 = arith.mulf %413, %414 : vector<4x896xf32>
    %416 = arith.addf %411, %415 : vector<4x896xf32>
    %417 = vector.extract_strided_slice %406 {offsets = [2, 0], sizes = [1, 896], strides = [1, 1]} : vector<4x896xf32> to vector<1x896xf32>
    %418 = vector.broadcast %47 : vector<4x1xf32> to vector<4x896xf32>
    %419 = vector.broadcast %417 : vector<1x896xf32> to vector<4x896xf32>
    %420 = arith.mulf %418, %419 : vector<4x896xf32>
    %421 = arith.addf %416, %420 : vector<4x896xf32>
    %422 = vector.extract_strided_slice %406 {offsets = [3, 0], sizes = [1, 896], strides = [1, 1]} : vector<4x896xf32> to vector<1x896xf32>
    %423 = vector.broadcast %49 : vector<4x1xf32> to vector<4x896xf32>
    %424 = vector.broadcast %422 : vector<1x896xf32> to vector<4x896xf32>
    %425 = arith.mulf %423, %424 : vector<4x896xf32>
    %426 = arith.addf %421, %425 : vector<4x896xf32>
    %c879_i32_107 = arith.constant 879 : i32
    %427 = tpu.dynamic_rotate %300 by %c879_i32_107 dim 1 : vector<4x896xf32>, i32 -> vector<4x896xf32>
    %428 = vector.extract_strided_slice %427 {offsets = [0, 0], sizes = [1, 896], strides = [1, 1]} : vector<4x896xf32> to vector<1x896xf32>
    %429 = vector.broadcast %51 : vector<4x1xf32> to vector<4x896xf32>
    %430 = vector.broadcast %428 : vector<1x896xf32> to vector<4x896xf32>
    %431 = arith.mulf %429, %430 : vector<4x896xf32>
    %432 = arith.addf %426, %431 : vector<4x896xf32>
    %433 = vector.extract_strided_slice %427 {offsets = [1, 0], sizes = [1, 896], strides = [1, 1]} : vector<4x896xf32> to vector<1x896xf32>
    %434 = vector.broadcast %53 : vector<4x1xf32> to vector<4x896xf32>
    %435 = vector.broadcast %433 : vector<1x896xf32> to vector<4x896xf32>
    %436 = arith.mulf %434, %435 : vector<4x896xf32>
    %437 = arith.addf %432, %436 : vector<4x896xf32>
    %438 = vector.extract_strided_slice %427 {offsets = [2, 0], sizes = [1, 896], strides = [1, 1]} : vector<4x896xf32> to vector<1x896xf32>
    %439 = vector.broadcast %55 : vector<4x1xf32> to vector<4x896xf32>
    %440 = vector.broadcast %438 : vector<1x896xf32> to vector<4x896xf32>
    %441 = arith.mulf %439, %440 : vector<4x896xf32>
    %442 = arith.addf %437, %441 : vector<4x896xf32>
    %443 = vector.extract_strided_slice %427 {offsets = [3, 0], sizes = [1, 896], strides = [1, 1]} : vector<4x896xf32> to vector<1x896xf32>
    %444 = vector.broadcast %57 : vector<4x1xf32> to vector<4x896xf32>
    %445 = vector.broadcast %443 : vector<1x896xf32> to vector<4x896xf32>
    %446 = arith.mulf %444, %445 : vector<4x896xf32>
    %447 = arith.addf %442, %446 : vector<4x896xf32>
    %c878_i32_108 = arith.constant 878 : i32
    %448 = tpu.dynamic_rotate %300 by %c878_i32_108 dim 1 : vector<4x896xf32>, i32 -> vector<4x896xf32>
    %449 = vector.extract_strided_slice %448 {offsets = [0, 0], sizes = [1, 896], strides = [1, 1]} : vector<4x896xf32> to vector<1x896xf32>
    %450 = vector.broadcast %59 : vector<4x1xf32> to vector<4x896xf32>
    %451 = vector.broadcast %449 : vector<1x896xf32> to vector<4x896xf32>
    %452 = arith.mulf %450, %451 : vector<4x896xf32>
    %453 = arith.addf %447, %452 : vector<4x896xf32>
    %454 = vector.extract_strided_slice %448 {offsets = [1, 0], sizes = [1, 896], strides = [1, 1]} : vector<4x896xf32> to vector<1x896xf32>
    %455 = vector.broadcast %61 : vector<4x1xf32> to vector<4x896xf32>
    %456 = vector.broadcast %454 : vector<1x896xf32> to vector<4x896xf32>
    %457 = arith.mulf %455, %456 : vector<4x896xf32>
    %458 = arith.addf %453, %457 : vector<4x896xf32>
    %459 = vector.extract_strided_slice %448 {offsets = [2, 0], sizes = [1, 896], strides = [1, 1]} : vector<4x896xf32> to vector<1x896xf32>
    %460 = vector.broadcast %63 : vector<4x1xf32> to vector<4x896xf32>
    %461 = vector.broadcast %459 : vector<1x896xf32> to vector<4x896xf32>
    %462 = arith.mulf %460, %461 : vector<4x896xf32>
    %463 = arith.addf %458, %462 : vector<4x896xf32>
    %464 = vector.extract_strided_slice %448 {offsets = [3, 0], sizes = [1, 896], strides = [1, 1]} : vector<4x896xf32> to vector<1x896xf32>
    %465 = vector.broadcast %65 : vector<4x1xf32> to vector<4x896xf32>
    %466 = vector.broadcast %464 : vector<1x896xf32> to vector<4x896xf32>
    %467 = arith.mulf %465, %466 : vector<4x896xf32>
    %468 = arith.addf %463, %467 : vector<4x896xf32>
    %c877_i32_109 = arith.constant 877 : i32
    %469 = tpu.dynamic_rotate %300 by %c877_i32_109 dim 1 : vector<4x896xf32>, i32 -> vector<4x896xf32>
    %470 = vector.extract_strided_slice %469 {offsets = [0, 0], sizes = [1, 896], strides = [1, 1]} : vector<4x896xf32> to vector<1x896xf32>
    %471 = vector.broadcast %67 : vector<4x1xf32> to vector<4x896xf32>
    %472 = vector.broadcast %470 : vector<1x896xf32> to vector<4x896xf32>
    %473 = arith.mulf %471, %472 : vector<4x896xf32>
    %474 = arith.addf %468, %473 : vector<4x896xf32>
    %475 = vector.extract_strided_slice %469 {offsets = [1, 0], sizes = [1, 896], strides = [1, 1]} : vector<4x896xf32> to vector<1x896xf32>
    %476 = vector.broadcast %69 : vector<4x1xf32> to vector<4x896xf32>
    %477 = vector.broadcast %475 : vector<1x896xf32> to vector<4x896xf32>
    %478 = arith.mulf %476, %477 : vector<4x896xf32>
    %479 = arith.addf %474, %478 : vector<4x896xf32>
    %480 = vector.extract_strided_slice %469 {offsets = [2, 0], sizes = [1, 896], strides = [1, 1]} : vector<4x896xf32> to vector<1x896xf32>
    %481 = vector.broadcast %71 : vector<4x1xf32> to vector<4x896xf32>
    %482 = vector.broadcast %480 : vector<1x896xf32> to vector<4x896xf32>
    %483 = arith.mulf %481, %482 : vector<4x896xf32>
    %484 = arith.addf %479, %483 : vector<4x896xf32>
    %485 = vector.extract_strided_slice %469 {offsets = [3, 0], sizes = [1, 896], strides = [1, 1]} : vector<4x896xf32> to vector<1x896xf32>
    %486 = vector.broadcast %73 : vector<4x1xf32> to vector<4x896xf32>
    %487 = vector.broadcast %485 : vector<1x896xf32> to vector<4x896xf32>
    %488 = arith.mulf %486, %487 : vector<4x896xf32>
    %489 = arith.addf %484, %488 : vector<4x896xf32>
    %490 = vector.broadcast %82 : vector<4x1xf32> to vector<4x896xf32>
    %491 = arith.addf %489, %490 : vector<4x896xf32>
    %cst_110 = arith.constant 0.000000e+00 : f32
    %492 = vector.broadcast %cst_110 : f32 to vector<4x896xf32>
    %493 = arith.maximumf %491, %492 : vector<4x896xf32>
    %494 = vector.extract_strided_slice %493 {offsets = [0, 0], sizes = [1, 896], strides = [1, 1]} : vector<4x896xf32> to vector<1x896xf32>
    %495 = vector.broadcast %75 : vector<4x1xf32> to vector<4x896xf32>
    %496 = vector.broadcast %494 : vector<1x896xf32> to vector<4x896xf32>
    %497 = arith.mulf %495, %496 : vector<4x896xf32>
    %498 = vector.extract_strided_slice %493 {offsets = [1, 0], sizes = [1, 896], strides = [1, 1]} : vector<4x896xf32> to vector<1x896xf32>
    %499 = vector.broadcast %77 : vector<4x1xf32> to vector<4x896xf32>
    %500 = vector.broadcast %498 : vector<1x896xf32> to vector<4x896xf32>
    %501 = arith.mulf %499, %500 : vector<4x896xf32>
    %502 = arith.addf %497, %501 : vector<4x896xf32>
    %503 = vector.extract_strided_slice %493 {offsets = [2, 0], sizes = [1, 896], strides = [1, 1]} : vector<4x896xf32> to vector<1x896xf32>
    %504 = vector.broadcast %79 : vector<4x1xf32> to vector<4x896xf32>
    %505 = vector.broadcast %503 : vector<1x896xf32> to vector<4x896xf32>
    %506 = arith.mulf %504, %505 : vector<4x896xf32>
    %507 = arith.addf %502, %506 : vector<4x896xf32>
    %508 = vector.extract_strided_slice %493 {offsets = [3, 0], sizes = [1, 896], strides = [1, 1]} : vector<4x896xf32> to vector<1x896xf32>
    %509 = vector.broadcast %81 : vector<4x1xf32> to vector<4x896xf32>
    %510 = vector.broadcast %508 : vector<1x896xf32> to vector<4x896xf32>
    %511 = arith.mulf %509, %510 : vector<4x896xf32>
    %512 = arith.addf %507, %511 : vector<4x896xf32>
    %513 = vector.broadcast %302 : vector<1x896xf32> to vector<4x896xf32>
    %514 = arith.mulf %512, %513 : vector<4x896xf32>
    %515 = arith.addf %300, %514 : vector<4x896xf32>
    %c0_111 = arith.constant 0 : index
    %c0_112 = arith.constant 0 : index
    %516 = vector.load %arg5[%c0_111, %c0_112] : memref<4x896xf32, #tpu.memory_space<vmem>>, vector<4x896xf32>
    tpu.vector_store %arg5[%c0_111, %c0_112], %515 {strides = array<i32>} : memref<4x896xf32, #tpu.memory_space<vmem>>, vector<4x896xf32>,
    %c0_113 = arith.constant 0 : index
    %c0_114 = arith.constant 0 : index
    %517 = vector.load %arg5[%c0_113, %c0_114] : memref<4x896xf32, #tpu.memory_space<vmem>>, vector<4x896xf32>
    %c2_115 = arith.constant 2 : index
    %c0_116 = arith.constant 0 : index
    %c0_117 = arith.constant 0 : index
    %518 = vector.load %arg4[%c2_115, %c0_116, %c0_117] : memref<4x1x896xf32, #tpu.memory_space<vmem>>, vector<1x1x896xf32>
    %519 = vector.shape_cast %518 : vector<1x1x896xf32> to vector<1x896xf32>
    %c19_i32_118 = arith.constant 19 : i32
    %520 = tpu.dynamic_rotate %517 by %c19_i32_118 dim 1 : vector<4x896xf32>, i32 -> vector<4x896xf32>
    %521 = vector.extract_strided_slice %520 {offsets = [0, 0], sizes = [1, 896], strides = [1, 1]} : vector<4x896xf32> to vector<1x896xf32>
    %522 = vector.broadcast %3 : vector<4x1xf32> to vector<4x896xf32>
    %523 = vector.broadcast %521 : vector<1x896xf32> to vector<4x896xf32>
    %524 = arith.mulf %522, %523 : vector<4x896xf32>
    %525 = vector.extract_strided_slice %520 {offsets = [1, 0], sizes = [1, 896], strides = [1, 1]} : vector<4x896xf32> to vector<1x896xf32>
    %526 = vector.broadcast %5 : vector<4x1xf32> to vector<4x896xf32>
    %527 = vector.broadcast %525 : vector<1x896xf32> to vector<4x896xf32>
    %528 = arith.mulf %526, %527 : vector<4x896xf32>
    %529 = arith.addf %524, %528 : vector<4x896xf32>
    %530 = vector.extract_strided_slice %520 {offsets = [2, 0], sizes = [1, 896], strides = [1, 1]} : vector<4x896xf32> to vector<1x896xf32>
    %531 = vector.broadcast %7 : vector<4x1xf32> to vector<4x896xf32>
    %532 = vector.broadcast %530 : vector<1x896xf32> to vector<4x896xf32>
    %533 = arith.mulf %531, %532 : vector<4x896xf32>
    %534 = arith.addf %529, %533 : vector<4x896xf32>
    %535 = vector.extract_strided_slice %520 {offsets = [3, 0], sizes = [1, 896], strides = [1, 1]} : vector<4x896xf32> to vector<1x896xf32>
    %536 = vector.broadcast %9 : vector<4x1xf32> to vector<4x896xf32>
    %537 = vector.broadcast %535 : vector<1x896xf32> to vector<4x896xf32>
    %538 = arith.mulf %536, %537 : vector<4x896xf32>
    %539 = arith.addf %534, %538 : vector<4x896xf32>
    %c18_i32_119 = arith.constant 18 : i32
    %540 = tpu.dynamic_rotate %517 by %c18_i32_119 dim 1 : vector<4x896xf32>, i32 -> vector<4x896xf32>
    %541 = vector.extract_strided_slice %540 {offsets = [0, 0], sizes = [1, 896], strides = [1, 1]} : vector<4x896xf32> to vector<1x896xf32>
    %542 = vector.broadcast %11 : vector<4x1xf32> to vector<4x896xf32>
    %543 = vector.broadcast %541 : vector<1x896xf32> to vector<4x896xf32>
    %544 = arith.mulf %542, %543 : vector<4x896xf32>
    %545 = arith.addf %539, %544 : vector<4x896xf32>
    %546 = vector.extract_strided_slice %540 {offsets = [1, 0], sizes = [1, 896], strides = [1, 1]} : vector<4x896xf32> to vector<1x896xf32>
    %547 = vector.broadcast %13 : vector<4x1xf32> to vector<4x896xf32>
    %548 = vector.broadcast %546 : vector<1x896xf32> to vector<4x896xf32>
    %549 = arith.mulf %547, %548 : vector<4x896xf32>
    %550 = arith.addf %545, %549 : vector<4x896xf32>
    %551 = vector.extract_strided_slice %540 {offsets = [2, 0], sizes = [1, 896], strides = [1, 1]} : vector<4x896xf32> to vector<1x896xf32>
    %552 = vector.broadcast %15 : vector<4x1xf32> to vector<4x896xf32>
    %553 = vector.broadcast %551 : vector<1x896xf32> to vector<4x896xf32>
    %554 = arith.mulf %552, %553 : vector<4x896xf32>
    %555 = arith.addf %550, %554 : vector<4x896xf32>
    %556 = vector.extract_strided_slice %540 {offsets = [3, 0], sizes = [1, 896], strides = [1, 1]} : vector<4x896xf32> to vector<1x896xf32>
    %557 = vector.broadcast %17 : vector<4x1xf32> to vector<4x896xf32>
    %558 = vector.broadcast %556 : vector<1x896xf32> to vector<4x896xf32>
    %559 = arith.mulf %557, %558 : vector<4x896xf32>
    %560 = arith.addf %555, %559 : vector<4x896xf32>
    %c17_i32_120 = arith.constant 17 : i32
    %561 = tpu.dynamic_rotate %517 by %c17_i32_120 dim 1 : vector<4x896xf32>, i32 -> vector<4x896xf32>
    %562 = vector.extract_strided_slice %561 {offsets = [0, 0], sizes = [1, 896], strides = [1, 1]} : vector<4x896xf32> to vector<1x896xf32>
    %563 = vector.broadcast %19 : vector<4x1xf32> to vector<4x896xf32>
    %564 = vector.broadcast %562 : vector<1x896xf32> to vector<4x896xf32>
    %565 = arith.mulf %563, %564 : vector<4x896xf32>
    %566 = arith.addf %560, %565 : vector<4x896xf32>
    %567 = vector.extract_strided_slice %561 {offsets = [1, 0], sizes = [1, 896], strides = [1, 1]} : vector<4x896xf32> to vector<1x896xf32>
    %568 = vector.broadcast %21 : vector<4x1xf32> to vector<4x896xf32>
    %569 = vector.broadcast %567 : vector<1x896xf32> to vector<4x896xf32>
    %570 = arith.mulf %568, %569 : vector<4x896xf32>
    %571 = arith.addf %566, %570 : vector<4x896xf32>
    %572 = vector.extract_strided_slice %561 {offsets = [2, 0], sizes = [1, 896], strides = [1, 1]} : vector<4x896xf32> to vector<1x896xf32>
    %573 = vector.broadcast %23 : vector<4x1xf32> to vector<4x896xf32>
    %574 = vector.broadcast %572 : vector<1x896xf32> to vector<4x896xf32>
    %575 = arith.mulf %573, %574 : vector<4x896xf32>
    %576 = arith.addf %571, %575 : vector<4x896xf32>
    %577 = vector.extract_strided_slice %561 {offsets = [3, 0], sizes = [1, 896], strides = [1, 1]} : vector<4x896xf32> to vector<1x896xf32>
    %578 = vector.broadcast %25 : vector<4x1xf32> to vector<4x896xf32>
    %579 = vector.broadcast %577 : vector<1x896xf32> to vector<4x896xf32>
    %580 = arith.mulf %578, %579 : vector<4x896xf32>
    %581 = arith.addf %576, %580 : vector<4x896xf32>
    %c1_i32_121 = arith.constant 1 : i32
    %582 = tpu.dynamic_rotate %517 by %c1_i32_121 dim 1 : vector<4x896xf32>, i32 -> vector<4x896xf32>
    %583 = vector.extract_strided_slice %582 {offsets = [0, 0], sizes = [1, 896], strides = [1, 1]} : vector<4x896xf32> to vector<1x896xf32>
    %584 = vector.broadcast %27 : vector<4x1xf32> to vector<4x896xf32>
    %585 = vector.broadcast %583 : vector<1x896xf32> to vector<4x896xf32>
    %586 = arith.mulf %584, %585 : vector<4x896xf32>
    %587 = arith.addf %581, %586 : vector<4x896xf32>
    %588 = vector.extract_strided_slice %582 {offsets = [1, 0], sizes = [1, 896], strides = [1, 1]} : vector<4x896xf32> to vector<1x896xf32>
    %589 = vector.broadcast %29 : vector<4x1xf32> to vector<4x896xf32>
    %590 = vector.broadcast %588 : vector<1x896xf32> to vector<4x896xf32>
    %591 = arith.mulf %589, %590 : vector<4x896xf32>
    %592 = arith.addf %587, %591 : vector<4x896xf32>
    %593 = vector.extract_strided_slice %582 {offsets = [2, 0], sizes = [1, 896], strides = [1, 1]} : vector<4x896xf32> to vector<1x896xf32>
    %594 = vector.broadcast %31 : vector<4x1xf32> to vector<4x896xf32>
    %595 = vector.broadcast %593 : vector<1x896xf32> to vector<4x896xf32>
    %596 = arith.mulf %594, %595 : vector<4x896xf32>
    %597 = arith.addf %592, %596 : vector<4x896xf32>
    %598 = vector.extract_strided_slice %582 {offsets = [3, 0], sizes = [1, 896], strides = [1, 1]} : vector<4x896xf32> to vector<1x896xf32>
    %599 = vector.broadcast %33 : vector<4x1xf32> to vector<4x896xf32>
    %600 = vector.broadcast %598 : vector<1x896xf32> to vector<4x896xf32>
    %601 = arith.mulf %599, %600 : vector<4x896xf32>
    %602 = arith.addf %597, %601 : vector<4x896xf32>
    %603 = vector.extract_strided_slice %517 {offsets = [0, 0], sizes = [1, 896], strides = [1, 1]} : vector<4x896xf32> to vector<1x896xf32>
    %604 = vector.broadcast %35 : vector<4x1xf32> to vector<4x896xf32>
    %605 = vector.broadcast %603 : vector<1x896xf32> to vector<4x896xf32>
    %606 = arith.mulf %604, %605 : vector<4x896xf32>
    %607 = arith.addf %602, %606 : vector<4x896xf32>
    %608 = vector.extract_strided_slice %517 {offsets = [1, 0], sizes = [1, 896], strides = [1, 1]} : vector<4x896xf32> to vector<1x896xf32>
    %609 = vector.broadcast %37 : vector<4x1xf32> to vector<4x896xf32>
    %610 = vector.broadcast %608 : vector<1x896xf32> to vector<4x896xf32>
    %611 = arith.mulf %609, %610 : vector<4x896xf32>
    %612 = arith.addf %607, %611 : vector<4x896xf32>
    %613 = vector.extract_strided_slice %517 {offsets = [2, 0], sizes = [1, 896], strides = [1, 1]} : vector<4x896xf32> to vector<1x896xf32>
    %614 = vector.broadcast %39 : vector<4x1xf32> to vector<4x896xf32>
    %615 = vector.broadcast %613 : vector<1x896xf32> to vector<4x896xf32>
    %616 = arith.mulf %614, %615 : vector<4x896xf32>
    %617 = arith.addf %612, %616 : vector<4x896xf32>
    %618 = vector.extract_strided_slice %517 {offsets = [3, 0], sizes = [1, 896], strides = [1, 1]} : vector<4x896xf32> to vector<1x896xf32>
    %619 = vector.broadcast %41 : vector<4x1xf32> to vector<4x896xf32>
    %620 = vector.broadcast %618 : vector<1x896xf32> to vector<4x896xf32>
    %621 = arith.mulf %619, %620 : vector<4x896xf32>
    %622 = arith.addf %617, %621 : vector<4x896xf32>
    %c895_i32_122 = arith.constant 895 : i32
    %623 = tpu.dynamic_rotate %517 by %c895_i32_122 dim 1 : vector<4x896xf32>, i32 -> vector<4x896xf32>
    %624 = vector.extract_strided_slice %623 {offsets = [0, 0], sizes = [1, 896], strides = [1, 1]} : vector<4x896xf32> to vector<1x896xf32>
    %625 = vector.broadcast %43 : vector<4x1xf32> to vector<4x896xf32>
    %626 = vector.broadcast %624 : vector<1x896xf32> to vector<4x896xf32>
    %627 = arith.mulf %625, %626 : vector<4x896xf32>
    %628 = arith.addf %622, %627 : vector<4x896xf32>
    %629 = vector.extract_strided_slice %623 {offsets = [1, 0], sizes = [1, 896], strides = [1, 1]} : vector<4x896xf32> to vector<1x896xf32>
    %630 = vector.broadcast %45 : vector<4x1xf32> to vector<4x896xf32>
    %631 = vector.broadcast %629 : vector<1x896xf32> to vector<4x896xf32>
    %632 = arith.mulf %630, %631 : vector<4x896xf32>
    %633 = arith.addf %628, %632 : vector<4x896xf32>
    %634 = vector.extract_strided_slice %623 {offsets = [2, 0], sizes = [1, 896], strides = [1, 1]} : vector<4x896xf32> to vector<1x896xf32>
    %635 = vector.broadcast %47 : vector<4x1xf32> to vector<4x896xf32>
    %636 = vector.broadcast %634 : vector<1x896xf32> to vector<4x896xf32>
    %637 = arith.mulf %635, %636 : vector<4x896xf32>
    %638 = arith.addf %633, %637 : vector<4x896xf32>
    %639 = vector.extract_strided_slice %623 {offsets = [3, 0], sizes = [1, 896], strides = [1, 1]} : vector<4x896xf32> to vector<1x896xf32>
    %640 = vector.broadcast %49 : vector<4x1xf32> to vector<4x896xf32>
    %641 = vector.broadcast %639 : vector<1x896xf32> to vector<4x896xf32>
    %642 = arith.mulf %640, %641 : vector<4x896xf32>
    %643 = arith.addf %638, %642 : vector<4x896xf32>
    %c879_i32_123 = arith.constant 879 : i32
    %644 = tpu.dynamic_rotate %517 by %c879_i32_123 dim 1 : vector<4x896xf32>, i32 -> vector<4x896xf32>
    %645 = vector.extract_strided_slice %644 {offsets = [0, 0], sizes = [1, 896], strides = [1, 1]} : vector<4x896xf32> to vector<1x896xf32>
    %646 = vector.broadcast %51 : vector<4x1xf32> to vector<4x896xf32>
    %647 = vector.broadcast %645 : vector<1x896xf32> to vector<4x896xf32>
    %648 = arith.mulf %646, %647 : vector<4x896xf32>
    %649 = arith.addf %643, %648 : vector<4x896xf32>
    %650 = vector.extract_strided_slice %644 {offsets = [1, 0], sizes = [1, 896], strides = [1, 1]} : vector<4x896xf32> to vector<1x896xf32>
    %651 = vector.broadcast %53 : vector<4x1xf32> to vector<4x896xf32>
    %652 = vector.broadcast %650 : vector<1x896xf32> to vector<4x896xf32>
    %653 = arith.mulf %651, %652 : vector<4x896xf32>
    %654 = arith.addf %649, %653 : vector<4x896xf32>
    %655 = vector.extract_strided_slice %644 {offsets = [2, 0], sizes = [1, 896], strides = [1, 1]} : vector<4x896xf32> to vector<1x896xf32>
    %656 = vector.broadcast %55 : vector<4x1xf32> to vector<4x896xf32>
    %657 = vector.broadcast %655 : vector<1x896xf32> to vector<4x896xf32>
    %658 = arith.mulf %656, %657 : vector<4x896xf32>
    %659 = arith.addf %654, %658 : vector<4x896xf32>
    %660 = vector.extract_strided_slice %644 {offsets = [3, 0], sizes = [1, 896], strides = [1, 1]} : vector<4x896xf32> to vector<1x896xf32>
    %661 = vector.broadcast %57 : vector<4x1xf32> to vector<4x896xf32>
    %662 = vector.broadcast %660 : vector<1x896xf32> to vector<4x896xf32>
    %663 = arith.mulf %661, %662 : vector<4x896xf32>
    %664 = arith.addf %659, %663 : vector<4x896xf32>
    %c878_i32_124 = arith.constant 878 : i32
    %665 = tpu.dynamic_rotate %517 by %c878_i32_124 dim 1 : vector<4x896xf32>, i32 -> vector<4x896xf32>
    %666 = vector.extract_strided_slice %665 {offsets = [0, 0], sizes = [1, 896], strides = [1, 1]} : vector<4x896xf32> to vector<1x896xf32>
    %667 = vector.broadcast %59 : vector<4x1xf32> to vector<4x896xf32>
    %668 = vector.broadcast %666 : vector<1x896xf32> to vector<4x896xf32>
    %669 = arith.mulf %667, %668 : vector<4x896xf32>
    %670 = arith.addf %664, %669 : vector<4x896xf32>
    %671 = vector.extract_strided_slice %665 {offsets = [1, 0], sizes = [1, 896], strides = [1, 1]} : vector<4x896xf32> to vector<1x896xf32>
    %672 = vector.broadcast %61 : vector<4x1xf32> to vector<4x896xf32>
    %673 = vector.broadcast %671 : vector<1x896xf32> to vector<4x896xf32>
    %674 = arith.mulf %672, %673 : vector<4x896xf32>
    %675 = arith.addf %670, %674 : vector<4x896xf32>
    %676 = vector.extract_strided_slice %665 {offsets = [2, 0], sizes = [1, 896], strides = [1, 1]} : vector<4x896xf32> to vector<1x896xf32>
    %677 = vector.broadcast %63 : vector<4x1xf32> to vector<4x896xf32>
    %678 = vector.broadcast %676 : vector<1x896xf32> to vector<4x896xf32>
    %679 = arith.mulf %677, %678 : vector<4x896xf32>
    %680 = arith.addf %675, %679 : vector<4x896xf32>
    %681 = vector.extract_strided_slice %665 {offsets = [3, 0], sizes = [1, 896], strides = [1, 1]} : vector<4x896xf32> to vector<1x896xf32>
    %682 = vector.broadcast %65 : vector<4x1xf32> to vector<4x896xf32>
    %683 = vector.broadcast %681 : vector<1x896xf32> to vector<4x896xf32>
    %684 = arith.mulf %682, %683 : vector<4x896xf32>
    %685 = arith.addf %680, %684 : vector<4x896xf32>
    %c877_i32_125 = arith.constant 877 : i32
    %686 = tpu.dynamic_rotate %517 by %c877_i32_125 dim 1 : vector<4x896xf32>, i32 -> vector<4x896xf32>
    %687 = vector.extract_strided_slice %686 {offsets = [0, 0], sizes = [1, 896], strides = [1, 1]} : vector<4x896xf32> to vector<1x896xf32>
    %688 = vector.broadcast %67 : vector<4x1xf32> to vector<4x896xf32>
    %689 = vector.broadcast %687 : vector<1x896xf32> to vector<4x896xf32>
    %690 = arith.mulf %688, %689 : vector<4x896xf32>
    %691 = arith.addf %685, %690 : vector<4x896xf32>
    %692 = vector.extract_strided_slice %686 {offsets = [1, 0], sizes = [1, 896], strides = [1, 1]} : vector<4x896xf32> to vector<1x896xf32>
    %693 = vector.broadcast %69 : vector<4x1xf32> to vector<4x896xf32>
    %694 = vector.broadcast %692 : vector<1x896xf32> to vector<4x896xf32>
    %695 = arith.mulf %693, %694 : vector<4x896xf32>
    %696 = arith.addf %691, %695 : vector<4x896xf32>
    %697 = vector.extract_strided_slice %686 {offsets = [2, 0], sizes = [1, 896], strides = [1, 1]} : vector<4x896xf32> to vector<1x896xf32>
    %698 = vector.broadcast %71 : vector<4x1xf32> to vector<4x896xf32>
    %699 = vector.broadcast %697 : vector<1x896xf32> to vector<4x896xf32>
    %700 = arith.mulf %698, %699 : vector<4x896xf32>
    %701 = arith.addf %696, %700 : vector<4x896xf32>
    %702 = vector.extract_strided_slice %686 {offsets = [3, 0], sizes = [1, 896], strides = [1, 1]} : vector<4x896xf32> to vector<1x896xf32>
    %703 = vector.broadcast %73 : vector<4x1xf32> to vector<4x896xf32>
    %704 = vector.broadcast %702 : vector<1x896xf32> to vector<4x896xf32>
    %705 = arith.mulf %703, %704 : vector<4x896xf32>
    %706 = arith.addf %701, %705 : vector<4x896xf32>
    %707 = vector.broadcast %82 : vector<4x1xf32> to vector<4x896xf32>
    %708 = arith.addf %706, %707 : vector<4x896xf32>
    %cst_126 = arith.constant 0.000000e+00 : f32
    %709 = vector.broadcast %cst_126 : f32 to vector<4x896xf32>
    %710 = arith.maximumf %708, %709 : vector<4x896xf32>
    %711 = vector.extract_strided_slice %710 {offsets = [0, 0], sizes = [1, 896], strides = [1, 1]} : vector<4x896xf32> to vector<1x896xf32>
    %712 = vector.broadcast %75 : vector<4x1xf32> to vector<4x896xf32>
    %713 = vector.broadcast %711 : vector<1x896xf32> to vector<4x896xf32>
    %714 = arith.mulf %712, %713 : vector<4x896xf32>
    %715 = vector.extract_strided_slice %710 {offsets = [1, 0], sizes = [1, 896], strides = [1, 1]} : vector<4x896xf32> to vector<1x896xf32>
    %716 = vector.broadcast %77 : vector<4x1xf32> to vector<4x896xf32>
    %717 = vector.broadcast %715 : vector<1x896xf32> to vector<4x896xf32>
    %718 = arith.mulf %716, %717 : vector<4x896xf32>
    %719 = arith.addf %714, %718 : vector<4x896xf32>
    %720 = vector.extract_strided_slice %710 {offsets = [2, 0], sizes = [1, 896], strides = [1, 1]} : vector<4x896xf32> to vector<1x896xf32>
    %721 = vector.broadcast %79 : vector<4x1xf32> to vector<4x896xf32>
    %722 = vector.broadcast %720 : vector<1x896xf32> to vector<4x896xf32>
    %723 = arith.mulf %721, %722 : vector<4x896xf32>
    %724 = arith.addf %719, %723 : vector<4x896xf32>
    %725 = vector.extract_strided_slice %710 {offsets = [3, 0], sizes = [1, 896], strides = [1, 1]} : vector<4x896xf32> to vector<1x896xf32>
    %726 = vector.broadcast %81 : vector<4x1xf32> to vector<4x896xf32>
    %727 = vector.broadcast %725 : vector<1x896xf32> to vector<4x896xf32>
    %728 = arith.mulf %726, %727 : vector<4x896xf32>
    %729 = arith.addf %724, %728 : vector<4x896xf32>
    %730 = vector.broadcast %519 : vector<1x896xf32> to vector<4x896xf32>
    %731 = arith.mulf %729, %730 : vector<4x896xf32>
    %732 = arith.addf %517, %731 : vector<4x896xf32>
    %c0_127 = arith.constant 0 : index
    %c0_128 = arith.constant 0 : index
    %733 = vector.load %arg5[%c0_127, %c0_128] : memref<4x896xf32, #tpu.memory_space<vmem>>, vector<4x896xf32>
    tpu.vector_store %arg5[%c0_127, %c0_128], %732 {strides = array<i32>} : memref<4x896xf32, #tpu.memory_space<vmem>>, vector<4x896xf32>,
    %c0_129 = arith.constant 0 : index
    %c0_130 = arith.constant 0 : index
    %734 = vector.load %arg5[%c0_129, %c0_130] : memref<4x896xf32, #tpu.memory_space<vmem>>, vector<4x896xf32>
    %c3_131 = arith.constant 3 : index
    %c0_132 = arith.constant 0 : index
    %c0_133 = arith.constant 0 : index
    %735 = vector.load %arg4[%c3_131, %c0_132, %c0_133] : memref<4x1x896xf32, #tpu.memory_space<vmem>>, vector<1x1x896xf32>
    %736 = vector.shape_cast %735 : vector<1x1x896xf32> to vector<1x896xf32>
    %c19_i32_134 = arith.constant 19 : i32
    %737 = tpu.dynamic_rotate %734 by %c19_i32_134 dim 1 : vector<4x896xf32>, i32 -> vector<4x896xf32>
    %738 = vector.extract_strided_slice %737 {offsets = [0, 0], sizes = [1, 896], strides = [1, 1]} : vector<4x896xf32> to vector<1x896xf32>
    %739 = vector.broadcast %3 : vector<4x1xf32> to vector<4x896xf32>
    %740 = vector.broadcast %738 : vector<1x896xf32> to vector<4x896xf32>
    %741 = arith.mulf %739, %740 : vector<4x896xf32>
    %742 = vector.extract_strided_slice %737 {offsets = [1, 0], sizes = [1, 896], strides = [1, 1]} : vector<4x896xf32> to vector<1x896xf32>
    %743 = vector.broadcast %5 : vector<4x1xf32> to vector<4x896xf32>
    %744 = vector.broadcast %742 : vector<1x896xf32> to vector<4x896xf32>
    %745 = arith.mulf %743, %744 : vector<4x896xf32>
    %746 = arith.addf %741, %745 : vector<4x896xf32>
    %747 = vector.extract_strided_slice %737 {offsets = [2, 0], sizes = [1, 896], strides = [1, 1]} : vector<4x896xf32> to vector<1x896xf32>
    %748 = vector.broadcast %7 : vector<4x1xf32> to vector<4x896xf32>
    %749 = vector.broadcast %747 : vector<1x896xf32> to vector<4x896xf32>
    %750 = arith.mulf %748, %749 : vector<4x896xf32>
    %751 = arith.addf %746, %750 : vector<4x896xf32>
    %752 = vector.extract_strided_slice %737 {offsets = [3, 0], sizes = [1, 896], strides = [1, 1]} : vector<4x896xf32> to vector<1x896xf32>
    %753 = vector.broadcast %9 : vector<4x1xf32> to vector<4x896xf32>
    %754 = vector.broadcast %752 : vector<1x896xf32> to vector<4x896xf32>
    %755 = arith.mulf %753, %754 : vector<4x896xf32>
    %756 = arith.addf %751, %755 : vector<4x896xf32>
    %c18_i32_135 = arith.constant 18 : i32
    %757 = tpu.dynamic_rotate %734 by %c18_i32_135 dim 1 : vector<4x896xf32>, i32 -> vector<4x896xf32>
    %758 = vector.extract_strided_slice %757 {offsets = [0, 0], sizes = [1, 896], strides = [1, 1]} : vector<4x896xf32> to vector<1x896xf32>
    %759 = vector.broadcast %11 : vector<4x1xf32> to vector<4x896xf32>
    %760 = vector.broadcast %758 : vector<1x896xf32> to vector<4x896xf32>
    %761 = arith.mulf %759, %760 : vector<4x896xf32>
    %762 = arith.addf %756, %761 : vector<4x896xf32>
    %763 = vector.extract_strided_slice %757 {offsets = [1, 0], sizes = [1, 896], strides = [1, 1]} : vector<4x896xf32> to vector<1x896xf32>
    %764 = vector.broadcast %13 : vector<4x1xf32> to vector<4x896xf32>
    %765 = vector.broadcast %763 : vector<1x896xf32> to vector<4x896xf32>
    %766 = arith.mulf %764, %765 : vector<4x896xf32>
    %767 = arith.addf %762, %766 : vector<4x896xf32>
    %768 = vector.extract_strided_slice %757 {offsets = [2, 0], sizes = [1, 896], strides = [1, 1]} : vector<4x896xf32> to vector<1x896xf32>
    %769 = vector.broadcast %15 : vector<4x1xf32> to vector<4x896xf32>
    %770 = vector.broadcast %768 : vector<1x896xf32> to vector<4x896xf32>
    %771 = arith.mulf %769, %770 : vector<4x896xf32>
    %772 = arith.addf %767, %771 : vector<4x896xf32>
    %773 = vector.extract_strided_slice %757 {offsets = [3, 0], sizes = [1, 896], strides = [1, 1]} : vector<4x896xf32> to vector<1x896xf32>
    %774 = vector.broadcast %17 : vector<4x1xf32> to vector<4x896xf32>
    %775 = vector.broadcast %773 : vector<1x896xf32> to vector<4x896xf32>
    %776 = arith.mulf %774, %775 : vector<4x896xf32>
    %777 = arith.addf %772, %776 : vector<4x896xf32>
    %c17_i32_136 = arith.constant 17 : i32
    %778 = tpu.dynamic_rotate %734 by %c17_i32_136 dim 1 : vector<4x896xf32>, i32 -> vector<4x896xf32>
    %779 = vector.extract_strided_slice %778 {offsets = [0, 0], sizes = [1, 896], strides = [1, 1]} : vector<4x896xf32> to vector<1x896xf32>
    %780 = vector.broadcast %19 : vector<4x1xf32> to vector<4x896xf32>
    %781 = vector.broadcast %779 : vector<1x896xf32> to vector<4x896xf32>
    %782 = arith.mulf %780, %781 : vector<4x896xf32>
    %783 = arith.addf %777, %782 : vector<4x896xf32>
    %784 = vector.extract_strided_slice %778 {offsets = [1, 0], sizes = [1, 896], strides = [1, 1]} : vector<4x896xf32> to vector<1x896xf32>
    %785 = vector.broadcast %21 : vector<4x1xf32> to vector<4x896xf32>
    %786 = vector.broadcast %784 : vector<1x896xf32> to vector<4x896xf32>
    %787 = arith.mulf %785, %786 : vector<4x896xf32>
    %788 = arith.addf %783, %787 : vector<4x896xf32>
    %789 = vector.extract_strided_slice %778 {offsets = [2, 0], sizes = [1, 896], strides = [1, 1]} : vector<4x896xf32> to vector<1x896xf32>
    %790 = vector.broadcast %23 : vector<4x1xf32> to vector<4x896xf32>
    %791 = vector.broadcast %789 : vector<1x896xf32> to vector<4x896xf32>
    %792 = arith.mulf %790, %791 : vector<4x896xf32>
    %793 = arith.addf %788, %792 : vector<4x896xf32>
    %794 = vector.extract_strided_slice %778 {offsets = [3, 0], sizes = [1, 896], strides = [1, 1]} : vector<4x896xf32> to vector<1x896xf32>
    %795 = vector.broadcast %25 : vector<4x1xf32> to vector<4x896xf32>
    %796 = vector.broadcast %794 : vector<1x896xf32> to vector<4x896xf32>
    %797 = arith.mulf %795, %796 : vector<4x896xf32>
    %798 = arith.addf %793, %797 : vector<4x896xf32>
    %c1_i32_137 = arith.constant 1 : i32
    %799 = tpu.dynamic_rotate %734 by %c1_i32_137 dim 1 : vector<4x896xf32>, i32 -> vector<4x896xf32>
    %800 = vector.extract_strided_slice %799 {offsets = [0, 0], sizes = [1, 896], strides = [1, 1]} : vector<4x896xf32> to vector<1x896xf32>
    %801 = vector.broadcast %27 : vector<4x1xf32> to vector<4x896xf32>
    %802 = vector.broadcast %800 : vector<1x896xf32> to vector<4x896xf32>
    %803 = arith.mulf %801, %802 : vector<4x896xf32>
    %804 = arith.addf %798, %803 : vector<4x896xf32>
    %805 = vector.extract_strided_slice %799 {offsets = [1, 0], sizes = [1, 896], strides = [1, 1]} : vector<4x896xf32> to vector<1x896xf32>
    %806 = vector.broadcast %29 : vector<4x1xf32> to vector<4x896xf32>
    %807 = vector.broadcast %805 : vector<1x896xf32> to vector<4x896xf32>
    %808 = arith.mulf %806, %807 : vector<4x896xf32>
    %809 = arith.addf %804, %808 : vector<4x896xf32>
    %810 = vector.extract_strided_slice %799 {offsets = [2, 0], sizes = [1, 896], strides = [1, 1]} : vector<4x896xf32> to vector<1x896xf32>
    %811 = vector.broadcast %31 : vector<4x1xf32> to vector<4x896xf32>
    %812 = vector.broadcast %810 : vector<1x896xf32> to vector<4x896xf32>
    %813 = arith.mulf %811, %812 : vector<4x896xf32>
    %814 = arith.addf %809, %813 : vector<4x896xf32>
    %815 = vector.extract_strided_slice %799 {offsets = [3, 0], sizes = [1, 896], strides = [1, 1]} : vector<4x896xf32> to vector<1x896xf32>
    %816 = vector.broadcast %33 : vector<4x1xf32> to vector<4x896xf32>
    %817 = vector.broadcast %815 : vector<1x896xf32> to vector<4x896xf32>
    %818 = arith.mulf %816, %817 : vector<4x896xf32>
    %819 = arith.addf %814, %818 : vector<4x896xf32>
    %820 = vector.extract_strided_slice %734 {offsets = [0, 0], sizes = [1, 896], strides = [1, 1]} : vector<4x896xf32> to vector<1x896xf32>
    %821 = vector.broadcast %35 : vector<4x1xf32> to vector<4x896xf32>
    %822 = vector.broadcast %820 : vector<1x896xf32> to vector<4x896xf32>
    %823 = arith.mulf %821, %822 : vector<4x896xf32>
    %824 = arith.addf %819, %823 : vector<4x896xf32>
    %825 = vector.extract_strided_slice %734 {offsets = [1, 0], sizes = [1, 896], strides = [1, 1]} : vector<4x896xf32> to vector<1x896xf32>
    %826 = vector.broadcast %37 : vector<4x1xf32> to vector<4x896xf32>
    %827 = vector.broadcast %825 : vector<1x896xf32> to vector<4x896xf32>
    %828 = arith.mulf %826, %827 : vector<4x896xf32>
    %829 = arith.addf %824, %828 : vector<4x896xf32>
    %830 = vector.extract_strided_slice %734 {offsets = [2, 0], sizes = [1, 896], strides = [1, 1]} : vector<4x896xf32> to vector<1x896xf32>
    %831 = vector.broadcast %39 : vector<4x1xf32> to vector<4x896xf32>
    %832 = vector.broadcast %830 : vector<1x896xf32> to vector<4x896xf32>
    %833 = arith.mulf %831, %832 : vector<4x896xf32>
    %834 = arith.addf %829, %833 : vector<4x896xf32>
    %835 = vector.extract_strided_slice %734 {offsets = [3, 0], sizes = [1, 896], strides = [1, 1]} : vector<4x896xf32> to vector<1x896xf32>
    %836 = vector.broadcast %41 : vector<4x1xf32> to vector<4x896xf32>
    %837 = vector.broadcast %835 : vector<1x896xf32> to vector<4x896xf32>
    %838 = arith.mulf %836, %837 : vector<4x896xf32>
    %839 = arith.addf %834, %838 : vector<4x896xf32>
    %c895_i32_138 = arith.constant 895 : i32
    %840 = tpu.dynamic_rotate %734 by %c895_i32_138 dim 1 : vector<4x896xf32>, i32 -> vector<4x896xf32>
    %841 = vector.extract_strided_slice %840 {offsets = [0, 0], sizes = [1, 896], strides = [1, 1]} : vector<4x896xf32> to vector<1x896xf32>
    %842 = vector.broadcast %43 : vector<4x1xf32> to vector<4x896xf32>
    %843 = vector.broadcast %841 : vector<1x896xf32> to vector<4x896xf32>
    %844 = arith.mulf %842, %843 : vector<4x896xf32>
    %845 = arith.addf %839, %844 : vector<4x896xf32>
    %846 = vector.extract_strided_slice %840 {offsets = [1, 0], sizes = [1, 896], strides = [1, 1]} : vector<4x896xf32> to vector<1x896xf32>
    %847 = vector.broadcast %45 : vector<4x1xf32> to vector<4x896xf32>
    %848 = vector.broadcast %846 : vector<1x896xf32> to vector<4x896xf32>
    %849 = arith.mulf %847, %848 : vector<4x896xf32>
    %850 = arith.addf %845, %849 : vector<4x896xf32>
    %851 = vector.extract_strided_slice %840 {offsets = [2, 0], sizes = [1, 896], strides = [1, 1]} : vector<4x896xf32> to vector<1x896xf32>
    %852 = vector.broadcast %47 : vector<4x1xf32> to vector<4x896xf32>
    %853 = vector.broadcast %851 : vector<1x896xf32> to vector<4x896xf32>
    %854 = arith.mulf %852, %853 : vector<4x896xf32>
    %855 = arith.addf %850, %854 : vector<4x896xf32>
    %856 = vector.extract_strided_slice %840 {offsets = [3, 0], sizes = [1, 896], strides = [1, 1]} : vector<4x896xf32> to vector<1x896xf32>
    %857 = vector.broadcast %49 : vector<4x1xf32> to vector<4x896xf32>
    %858 = vector.broadcast %856 : vector<1x896xf32> to vector<4x896xf32>
    %859 = arith.mulf %857, %858 : vector<4x896xf32>
    %860 = arith.addf %855, %859 : vector<4x896xf32>
    %c879_i32_139 = arith.constant 879 : i32
    %861 = tpu.dynamic_rotate %734 by %c879_i32_139 dim 1 : vector<4x896xf32>, i32 -> vector<4x896xf32>
    %862 = vector.extract_strided_slice %861 {offsets = [0, 0], sizes = [1, 896], strides = [1, 1]} : vector<4x896xf32> to vector<1x896xf32>
    %863 = vector.broadcast %51 : vector<4x1xf32> to vector<4x896xf32>
    %864 = vector.broadcast %862 : vector<1x896xf32> to vector<4x896xf32>
    %865 = arith.mulf %863, %864 : vector<4x896xf32>
    %866 = arith.addf %860, %865 : vector<4x896xf32>
    %867 = vector.extract_strided_slice %861 {offsets = [1, 0], sizes = [1, 896], strides = [1, 1]} : vector<4x896xf32> to vector<1x896xf32>
    %868 = vector.broadcast %53 : vector<4x1xf32> to vector<4x896xf32>
    %869 = vector.broadcast %867 : vector<1x896xf32> to vector<4x896xf32>
    %870 = arith.mulf %868, %869 : vector<4x896xf32>
    %871 = arith.addf %866, %870 : vector<4x896xf32>
    %872 = vector.extract_strided_slice %861 {offsets = [2, 0], sizes = [1, 896], strides = [1, 1]} : vector<4x896xf32> to vector<1x896xf32>
    %873 = vector.broadcast %55 : vector<4x1xf32> to vector<4x896xf32>
    %874 = vector.broadcast %872 : vector<1x896xf32> to vector<4x896xf32>
    %875 = arith.mulf %873, %874 : vector<4x896xf32>
    %876 = arith.addf %871, %875 : vector<4x896xf32>
    %877 = vector.extract_strided_slice %861 {offsets = [3, 0], sizes = [1, 896], strides = [1, 1]} : vector<4x896xf32> to vector<1x896xf32>
    %878 = vector.broadcast %57 : vector<4x1xf32> to vector<4x896xf32>
    %879 = vector.broadcast %877 : vector<1x896xf32> to vector<4x896xf32>
    %880 = arith.mulf %878, %879 : vector<4x896xf32>
    %881 = arith.addf %876, %880 : vector<4x896xf32>
    %c878_i32_140 = arith.constant 878 : i32
    %882 = tpu.dynamic_rotate %734 by %c878_i32_140 dim 1 : vector<4x896xf32>, i32 -> vector<4x896xf32>
    %883 = vector.extract_strided_slice %882 {offsets = [0, 0], sizes = [1, 896], strides = [1, 1]} : vector<4x896xf32> to vector<1x896xf32>
    %884 = vector.broadcast %59 : vector<4x1xf32> to vector<4x896xf32>
    %885 = vector.broadcast %883 : vector<1x896xf32> to vector<4x896xf32>
    %886 = arith.mulf %884, %885 : vector<4x896xf32>
    %887 = arith.addf %881, %886 : vector<4x896xf32>
    %888 = vector.extract_strided_slice %882 {offsets = [1, 0], sizes = [1, 896], strides = [1, 1]} : vector<4x896xf32> to vector<1x896xf32>
    %889 = vector.broadcast %61 : vector<4x1xf32> to vector<4x896xf32>
    %890 = vector.broadcast %888 : vector<1x896xf32> to vector<4x896xf32>
    %891 = arith.mulf %889, %890 : vector<4x896xf32>
    %892 = arith.addf %887, %891 : vector<4x896xf32>
    %893 = vector.extract_strided_slice %882 {offsets = [2, 0], sizes = [1, 896], strides = [1, 1]} : vector<4x896xf32> to vector<1x896xf32>
    %894 = vector.broadcast %63 : vector<4x1xf32> to vector<4x896xf32>
    %895 = vector.broadcast %893 : vector<1x896xf32> to vector<4x896xf32>
    %896 = arith.mulf %894, %895 : vector<4x896xf32>
    %897 = arith.addf %892, %896 : vector<4x896xf32>
    %898 = vector.extract_strided_slice %882 {offsets = [3, 0], sizes = [1, 896], strides = [1, 1]} : vector<4x896xf32> to vector<1x896xf32>
    %899 = vector.broadcast %65 : vector<4x1xf32> to vector<4x896xf32>
    %900 = vector.broadcast %898 : vector<1x896xf32> to vector<4x896xf32>
    %901 = arith.mulf %899, %900 : vector<4x896xf32>
    %902 = arith.addf %897, %901 : vector<4x896xf32>
    %c877_i32_141 = arith.constant 877 : i32
    %903 = tpu.dynamic_rotate %734 by %c877_i32_141 dim 1 : vector<4x896xf32>, i32 -> vector<4x896xf32>
    %904 = vector.extract_strided_slice %903 {offsets = [0, 0], sizes = [1, 896], strides = [1, 1]} : vector<4x896xf32> to vector<1x896xf32>
    %905 = vector.broadcast %67 : vector<4x1xf32> to vector<4x896xf32>
    %906 = vector.broadcast %904 : vector<1x896xf32> to vector<4x896xf32>
    %907 = arith.mulf %905, %906 : vector<4x896xf32>
    %908 = arith.addf %902, %907 : vector<4x896xf32>
    %909 = vector.extract_strided_slice %903 {offsets = [1, 0], sizes = [1, 896], strides = [1, 1]} : vector<4x896xf32> to vector<1x896xf32>
    %910 = vector.broadcast %69 : vector<4x1xf32> to vector<4x896xf32>
    %911 = vector.broadcast %909 : vector<1x896xf32> to vector<4x896xf32>
    %912 = arith.mulf %910, %911 : vector<4x896xf32>
    %913 = arith.addf %908, %912 : vector<4x896xf32>
    %914 = vector.extract_strided_slice %903 {offsets = [2, 0], sizes = [1, 896], strides = [1, 1]} : vector<4x896xf32> to vector<1x896xf32>
    %915 = vector.broadcast %71 : vector<4x1xf32> to vector<4x896xf32>
    %916 = vector.broadcast %914 : vector<1x896xf32> to vector<4x896xf32>
    %917 = arith.mulf %915, %916 : vector<4x896xf32>
    %918 = arith.addf %913, %917 : vector<4x896xf32>
    %919 = vector.extract_strided_slice %903 {offsets = [3, 0], sizes = [1, 896], strides = [1, 1]} : vector<4x896xf32> to vector<1x896xf32>
    %920 = vector.broadcast %73 : vector<4x1xf32> to vector<4x896xf32>
    %921 = vector.broadcast %919 : vector<1x896xf32> to vector<4x896xf32>
    %922 = arith.mulf %920, %921 : vector<4x896xf32>
    %923 = arith.addf %918, %922 : vector<4x896xf32>
    %924 = vector.broadcast %82 : vector<4x1xf32> to vector<4x896xf32>
    %925 = arith.addf %923, %924 : vector<4x896xf32>
    %cst_142 = arith.constant 0.000000e+00 : f32
    %926 = vector.broadcast %cst_142 : f32 to vector<4x896xf32>
    %927 = arith.maximumf %925, %926 : vector<4x896xf32>
    %928 = vector.extract_strided_slice %927 {offsets = [0, 0], sizes = [1, 896], strides = [1, 1]} : vector<4x896xf32> to vector<1x896xf32>
    %929 = vector.broadcast %75 : vector<4x1xf32> to vector<4x896xf32>
    %930 = vector.broadcast %928 : vector<1x896xf32> to vector<4x896xf32>
    %931 = arith.mulf %929, %930 : vector<4x896xf32>
    %932 = vector.extract_strided_slice %927 {offsets = [1, 0], sizes = [1, 896], strides = [1, 1]} : vector<4x896xf32> to vector<1x896xf32>
    %933 = vector.broadcast %77 : vector<4x1xf32> to vector<4x896xf32>
    %934 = vector.broadcast %932 : vector<1x896xf32> to vector<4x896xf32>
    %935 = arith.mulf %933, %934 : vector<4x896xf32>
    %936 = arith.addf %931, %935 : vector<4x896xf32>
    %937 = vector.extract_strided_slice %927 {offsets = [2, 0], sizes = [1, 896], strides = [1, 1]} : vector<4x896xf32> to vector<1x896xf32>
    %938 = vector.broadcast %79 : vector<4x1xf32> to vector<4x896xf32>
    %939 = vector.broadcast %937 : vector<1x896xf32> to vector<4x896xf32>
    %940 = arith.mulf %938, %939 : vector<4x896xf32>
    %941 = arith.addf %936, %940 : vector<4x896xf32>
    %942 = vector.extract_strided_slice %927 {offsets = [3, 0], sizes = [1, 896], strides = [1, 1]} : vector<4x896xf32> to vector<1x896xf32>
    %943 = vector.broadcast %81 : vector<4x1xf32> to vector<4x896xf32>
    %944 = vector.broadcast %942 : vector<1x896xf32> to vector<4x896xf32>
    %945 = arith.mulf %943, %944 : vector<4x896xf32>
    %946 = arith.addf %941, %945 : vector<4x896xf32>
    %947 = vector.broadcast %736 : vector<1x896xf32> to vector<4x896xf32>
    %948 = arith.mulf %946, %947 : vector<4x896xf32>
    %949 = arith.addf %734, %948 : vector<4x896xf32>
    %c0_143 = arith.constant 0 : index
    %c0_144 = arith.constant 0 : index
    %950 = vector.load %arg5[%c0_143, %c0_144] : memref<4x896xf32, #tpu.memory_space<vmem>>, vector<4x896xf32>
    tpu.vector_store %arg5[%c0_143, %c0_144], %949 {strides = array<i32>} : memref<4x896xf32, #tpu.memory_space<vmem>>, vector<4x896xf32>,
    return
  }
}

</mosaic_0001>

<llo_original>
// kernel: nca_conv_forward.1
$region0: #{nca_conv_forward.1}
  #allocation0 [shape = 'u32[]', space=smem, size = 0x4, offset = 0x4, fixed_abs, tag = 'smem constant byte address 0x4 - core index']
  #allocation1 [shape = 'u32[144,128]{1,0:T(1,128)}', space=vmem, size = 0x12000, scoped, tag = 'internal scratch']
  %s0 = inlined_call_operand.vmem [shape: f32[4,896], index: 0, kind: input, shape index: {}]
  %s1 = inlined_call_operand.vmem [shape: f32[36,4,1], index: 1, kind: input, shape index: {}]
  %s2 = inlined_call_operand.vmem [shape: f32[4,1], index: 2, kind: input, shape index: {}]
  %s3 = inlined_call_operand.vmem [shape: f32[4,4,1], index: 3, kind: input, shape index: {}]
  %s4 = inlined_call_operand.vmem [shape: f32[4,1,896], index: 4, kind: input, shape index: {}]
  %s5 = inlined_call_operand.vmem [shape: f32[4,896], index: 5, kind: output, shape index: {}]
  %s6 = sld [smem:[#allocation0]]
  $region30: #{nca_conv_forward.1} parent=0
    _
  %s8 = ssub.s32 1, %s6
  %s9 = scalar_select 0, %s8, %s6
  // Predicated region
  $region2: #{nca_conv_forward.1} parent=0 // pred_check
    _
  $region3: #{nca_conv_forward.1} parent=0 // pred_check_branch
    %11 = sbr.rel (0) target = $region5
  $region4: #{nca_conv_forward.1} parent=0 // pred_region
    _
  $region5: #{nca_conv_forward.1} parent=0 // pred_fallthru
    _
  // Predicated region
  $region6: #{nca_conv_forward.1} parent=0 // pred_check
    _
  $region7: #{nca_conv_forward.1} parent=0 // pred_check_branch
    %13 = sbr.rel (0) target = $region9
  $region8: #{nca_conv_forward.1} parent=0 // pred_region
    _
  $region9: #{nca_conv_forward.1} parent=0 // pred_fallthru
    _
  // Predicated region
  $region10: #{nca_conv_forward.1} parent=0 // pred_check
    _
  $region11: #{nca_conv_forward.1} parent=0 // pred_check_branch
    %15 = sbr.rel (0) target = $region13
  $region12: #{nca_conv_forward.1} parent=0 // pred_region
    _
  $region13: #{nca_conv_forward.1} parent=0 // pred_fallthru
    _
  // Predicated region
  $region14: #{nca_conv_forward.1} parent=0 // pred_check
    _
  $region15: #{nca_conv_forward.1} parent=0 // pred_check_branch
    %17 = sbr.rel (0) target = $region17
  $region16: #{nca_conv_forward.1} parent=0 // pred_region
    _
  $region17: #{nca_conv_forward.1} parent=0 // pred_fallthru
    _
  // Predicated region
  $region18: #{nca_conv_forward.1} parent=0 // pred_check
    _
  $region19: #{nca_conv_forward.1} parent=0 // pred_check_branch
    %19 = sbr.rel (0) target = $region21
  $region20: #{nca_conv_forward.1} parent=0 // pred_region
    _
  $region21: #{nca_conv_forward.1} parent=0 // pred_fallthru
    _
  %v20 = vld [vmem:[%s0] sm:$0xff]
  %v21 = vld [vmem:[%s0 + $0x8] sm:$0xff]
  %v22 = vld [vmem:[%s0 + $0x10] sm:$0xff]
  %v23 = vld [vmem:[%s0 + $0x18] sm:$0xf]
  %24 = vst [vmem:[%s5] sm:$0xff] %v20
  %25 = vst [vmem:[%s5 + $0x8] sm:$0xff] %v21
  %26 = vst [vmem:[%s5 + $0x10] sm:$0xff] %v22
  %27 = vst [vmem:[%s5 + $0x18] sm:$0xf] %v23
  %v28 = vld [vmem:[%s1] sm:$0xf]
  %s29 = scalar_lea.vmem %s1, 4
  %v30 = vld [vmem:[%s29] sm:$0xf]
  %s31 = scalar_lea.vmem %s1, 8
  %v32 = vld [vmem:[%s31] sm:$0xf]
  %s33 = scalar_lea.vmem %s1, 12
  %v34 = vld [vmem:[%s33] sm:$0xf]
  %s35 = scalar_lea.vmem %s1, 16
  %v36 = vld [vmem:[%s35] sm:$0xf]
  %s37 = scalar_lea.vmem %s1, 20
  %v38 = vld [vmem:[%s37] sm:$0xf]
  %s39 = scalar_lea.vmem %s1, 24
  %v40 = vld [vmem:[%s39] sm:$0xf]
  %s41 = scalar_lea.vmem %s1, 28
  %v42 = vld [vmem:[%s41] sm:$0xf]
  %s43 = scalar_lea.vmem %s1, 32
  %v44 = vld [vmem:[%s43] sm:$0xf]
  %s45 = scalar_lea.vmem %s1, 36
  %v46 = vld [vmem:[%s45] sm:$0xf]
  %s47 = scalar_lea.vmem %s1, 40
  %v48 = vld [vmem:[%s47] sm:$0xf]
  %s49 = scalar_lea.vmem %s1, 44
  %v50 = vld [vmem:[%s49] sm:$0xf]
  %s51 = scalar_lea.vmem %s1, 48
  %v52 = vld [vmem:[%s51] sm:$0xf]
  %s53 = scalar_lea.vmem %s1, 52
  %v54 = vld [vmem:[%s53] sm:$0xf]
  %s55 = scalar_lea.vmem %s1, 56
  %v56 = vld [vmem:[%s55] sm:$0xf]
  %s57 = scalar_lea.vmem %s1, 60
  %v58 = vld [vmem:[%s57] sm:$0xf]
  %s59 = scalar_lea.vmem %s1, 64
  %v60 = vld [vmem:[%s59] sm:$0xf]
  %s61 = scalar_lea.vmem %s1, 68
  %v62 = vld [vmem:[%s61] sm:$0xf]
  %s63 = scalar_lea.vmem %s1, 72
  %v64 = vld [vmem:[%s63] sm:$0xf]
  %s65 = scalar_lea.vmem %s1, 76
  %v66 = vld [vmem:[%s65] sm:$0xf]
  %s67 = scalar_lea.vmem %s1, 80
  %v68 = vld [vmem:[%s67] sm:$0xf]
  %s69 = scalar_lea.vmem %s1, 84
  %v70 = vld [vmem:[%s69] sm:$0xf]
  %s71 = scalar_lea.vmem %s1, 88
  %v72 = vld [vmem:[%s71] sm:$0xf]
  %s73 = scalar_lea.vmem %s1, 92
  %v74 = vld [vmem:[%s73] sm:$0xf]
  %s75 = scalar_lea.vmem %s1, 96
  %v76 = vld [vmem:[%s75] sm:$0xf]
  %s77 = scalar_lea.vmem %s1, 100
  %v78 = vld [vmem:[%s77] sm:$0xf]
  %s79 = scalar_lea.vmem %s1, 104
  %v80 = vld [vmem:[%s79] sm:$0xf]
  %s81 = scalar_lea.vmem %s1, 108
  %v82 = vld [vmem:[%s81] sm:$0xf]
  %s83 = scalar_lea.vmem %s1, 112
  %v84 = vld [vmem:[%s83] sm:$0xf]
  %s85 = scalar_lea.vmem %s1, 116
  %v86 = vld [vmem:[%s85] sm:$0xf]
  %s87 = scalar_lea.vmem %s1, 120
  %v88 = vld [vmem:[%s87] sm:$0xf]
  %s89 = scalar_lea.vmem %s1, 124
  %v90 = vld [vmem:[%s89] sm:$0xf]
  %s91 = scalar_lea.vmem %s1, 128
  %v92 = vld [vmem:[%s91] sm:$0xf]
  %s93 = scalar_lea.vmem %s1, 132
  %v94 = vld [vmem:[%s93] sm:$0xf]
  %s95 = scalar_lea.vmem %s1, 136
  %v96 = vld [vmem:[%s95] sm:$0xf]
  %s97 = scalar_lea.vmem %s1, 140
  %v98 = vld [vmem:[%s97] sm:$0xf]
  %v99 = vld [vmem:[%s3] sm:$0xf]
  %s100 = scalar_lea.vmem %s3, 4
  %v101 = vld [vmem:[%s100] sm:$0xf]
  %s102 = scalar_lea.vmem %s3, 8
  %v103 = vld [vmem:[%s102] sm:$0xf]
  %s104 = scalar_lea.vmem %s3, 12
  %v105 = vld [vmem:[%s104] sm:$0xf]
  %v106 = vld [vmem:[%s2] sm:$0xf]
  %v107 = vld [vmem:[%s5] sm:$0xff]
  %v108 = vld [vmem:[%s5 + $0x8] sm:$0xff]
  %v109 = vld [vmem:[%s5 + $0x10] sm:$0xff]
  %v110 = vld [vmem:[%s5 + $0x18] sm:$0xf]
  %v111 = vld [vmem:[%s4] sm:$0xff]
  %v116 = vcombine.high %v107, %v107
  %v117 = vcombine.high %v108, %v108
  %v118 = vcombine.high %v109, %v109
  %122 = vrot.lane.b32.xlu0 %v107, 19
  %v123 = vpop.permute.xlu0 %122
  %124 = vrot.lane.b32.xlu0 %v116, 19
  %v125 = vpop.permute.xlu0 %124
  %126 = vrot.lane.b32.xlu0 %v108, 19
  %v127 = vpop.permute.xlu0 %126
  %128 = vrot.lane.b32.xlu0 %v117, 19
  %v129 = vpop.permute.xlu0 %128
  %130 = vrot.lane.b32.xlu0 %v109, 19
  %v131 = vpop.permute.xlu0 %130
  %132 = vrot.lane.b32.xlu0 %v118, 19
  %v133 = vpop.permute.xlu0 %132
  %134 = vrot.lane.b32.xlu0 %v110, 19
  %v135 = vpop.permute.xlu0 %134
  %v136 = vlaneseq
  %v137 = vand.u32 %v136, 127
  %vm138 = vcmp.lt.s32.totalorder %v137, 19
  %v139 = vsel %vm138, %v133, %v135
  %v140 = vsel %vm138, %v131, %v133
  %v141 = vsel %vm138, %v129, %v131
  %v142 = vsel %vm138, %v127, %v129
  %v143 = vsel %vm138, %v125, %v127
  %v144 = vsel %vm138, %v123, %v125
  %v145 = vsel %vm138, %v135, %v123
  %147 = vset.pattern.permute.xlu0 0
  %148 = vperm.xlu0 %147, %v28
  %v149 = vpop.permute.xlu0 %148
  %v151 = vlaneseq
  %v152 = vshrl.u32 %v151, 7
  %v153 = vsub.s32 0, %v152
  %v154 = vrot.slane %v145, %v153
  %v155 = vlaneseq
  %v156 = vshrl.u32 %v155, 7
  %v157 = vsub.s32 0, %v156
  %v158 = vrot.slane %v144, %v157
  %v159 = vlaneseq
  %v160 = vshrl.u32 %v159, 7
  %v161 = vsub.s32 0, %v160
  %v162 = vrot.slane %v143, %v161
  %v163 = vlaneseq
  %v164 = vshrl.u32 %v163, 7
  %v165 = vsub.s32 0, %v164
  %v166 = vrot.slane %v142, %v165
  %v167 = vlaneseq
  %v168 = vshrl.u32 %v167, 7
  %v169 = vsub.s32 0, %v168
  %v170 = vrot.slane %v141, %v169
  %v171 = vlaneseq
  %v172 = vshrl.u32 %v171, 7
  %v173 = vsub.s32 0, %v172
  %v174 = vrot.slane %v140, %v173
  %v175 = vlaneseq
  %v176 = vshrl.u32 %v175, 7
  %v177 = vsub.s32 0, %v176
  %v178 = vrot.slane %v139, %v177
  %v179 = vmul.f32 %v149, %v154
  %v180 = vmul.f32 %v149, %v158
  %v181 = vmul.f32 %v149, %v162
  %v182 = vmul.f32 %v149, %v166
  %v183 = vmul.f32 %v149, %v170
  %v184 = vmul.f32 %v149, %v174
  %v185 = vmul.f32 %v149, %v178
  %187 = vset.pattern.permute.xlu0 0
  %188 = vperm.xlu0 %187, %v30
  %v189 = vpop.permute.xlu0 %188
  %v191 = vlaneseq
  %v192 = vshrl.u32 %v191, 7
  %v193 = vsub.s32 1, %v192
  %v194 = vrot.slane %v145, %v193
  %v195 = vlaneseq
  %v196 = vshrl.u32 %v195, 7
  %v197 = vsub.s32 1, %v196
  %v198 = vrot.slane %v144, %v197
  %v199 = vlaneseq
  %v200 = vshrl.u32 %v199, 7
  %v201 = vsub.s32 1, %v200
  %v202 = vrot.slane %v143, %v201
  %v203 = vlaneseq
  %v204 = vshrl.u32 %v203, 7
  %v205 = vsub.s32 1, %v204
  %v206 = vrot.slane %v142, %v205
  %v207 = vlaneseq
  %v208 = vshrl.u32 %v207, 7
  %v209 = vsub.s32 1, %v208
  %v210 = vrot.slane %v141, %v209
  %v211 = vlaneseq
  %v212 = vshrl.u32 %v211, 7
  %v213 = vsub.s32 1, %v212
  %v214 = vrot.slane %v140, %v213
  %v215 = vlaneseq
  %v216 = vshrl.u32 %v215, 7
  %v217 = vsub.s32 1, %v216
  %v218 = vrot.slane %v139, %v217
  %v219 = vmul.f32 %v189, %v194
  %v220 = vmul.f32 %v189, %v198
  %v221 = vmul.f32 %v189, %v202
  %v222 = vmul.f32 %v189, %v206
  %v223 = vmul.f32 %v189, %v210
  %v224 = vmul.f32 %v189, %v214
  %v225 = vmul.f32 %v189, %v218
  %v226 = vadd.f32 %v179, %v219
  %v227 = vadd.f32 %v180, %v220
  %v228 = vadd.f32 %v181, %v221
  %v229 = vadd.f32 %v182, %v222
  %v230 = vadd.f32 %v183, %v223
  %v231 = vadd.f32 %v184, %v224
  %v232 = vadd.f32 %v185, %v225
  %234 = vset.pattern.permute.xlu0 0
  %235 = vperm.xlu0 %234, %v32
  %v236 = vpop.permute.xlu0 %235
  %v238 = vlaneseq
  %v239 = vshrl.u32 %v238, 7
  %v240 = vsub.s32 2, %v239
  %v241 = vrot.slane %v145, %v240
  %v242 = vlaneseq
  %v243 = vshrl.u32 %v242, 7
  %v244 = vsub.s32 2, %v243
  %v245 = vrot.slane %v144, %v244
  %v246 = vlaneseq
  %v247 = vshrl.u32 %v246, 7
  %v248 = vsub.s32 2, %v247
  %v249 = vrot.slane %v143, %v248
  %v250 = vlaneseq
  %v251 = vshrl.u32 %v250, 7
  %v252 = vsub.s32 2, %v251
  %v253 = vrot.slane %v142, %v252
  %v254 = vlaneseq
  %v255 = vshrl.u32 %v254, 7
  %v256 = vsub.s32 2, %v255
  %v257 = vrot.slane %v141, %v256
  %v258 = vlaneseq
  %v259 = vshrl.u32 %v258, 7
  %v260 = vsub.s32 2, %v259
  %v261 = vrot.slane %v140, %v260
  %v262 = vlaneseq
  %v263 = vshrl.u32 %v262, 7
  %v264 = vsub.s32 2, %v263
  %v265 = vrot.slane %v139, %v264
  %v266 = vmul.f32 %v236, %v241
  %v267 = vmul.f32 %v236, %v245
  %v268 = vmul.f32 %v236, %v249
  %v269 = vmul.f32 %v236, %v253
  %v270 = vmul.f32 %v236, %v257
  %v271 = vmul.f32 %v236, %v261
  %v272 = vmul.f32 %v236, %v265
  %v273 = vadd.f32 %v226, %v266
  %v274 = vadd.f32 %v227, %v267
  %v275 = vadd.f32 %v228, %v268
  %v276 = vadd.f32 %v229, %v269
  %v277 = vadd.f32 %v230, %v270
  %v278 = vadd.f32 %v231, %v271
  %v279 = vadd.f32 %v232, %v272
  %281 = vset.pattern.permute.xlu0 0
  %282 = vperm.xlu0 %281, %v34
  %v283 = vpop.permute.xlu0 %282
  %v285 = vlaneseq
  %v286 = vshrl.u32 %v285, 7
  %v287 = vsub.s32 3, %v286
  %v288 = vrot.slane %v145, %v287
  %v289 = vlaneseq
  %v290 = vshrl.u32 %v289, 7
  %v291 = vsub.s32 3, %v290
  %v292 = vrot.slane %v144, %v291
  %v293 = vlaneseq
  %v294 = vshrl.u32 %v293, 7
  %v295 = vsub.s32 3, %v294
  %v296 = vrot.slane %v143, %v295
  %v297 = vlaneseq
  %v298 = vshrl.u32 %v297, 7
  %v299 = vsub.s32 3, %v298
  %v300 = vrot.slane %v142, %v299
  %v301 = vlaneseq
  %v302 = vshrl.u32 %v301, 7
  %v303 = vsub.s32 3, %v302
  %v304 = vrot.slane %v141, %v303
  %v305 = vlaneseq
  %v306 = vshrl.u32 %v305, 7
  %v307 = vsub.s32 3, %v306
  %v308 = vrot.slane %v140, %v307
  %v309 = vlaneseq
  %v310 = vshrl.u32 %v309, 7
  %v311 = vsub.s32 3, %v310
  %v312 = vrot.slane %v139, %v311
  %v313 = vmul.f32 %v283, %v288
  %v314 = vmul.f32 %v283, %v292
  %v315 = vmul.f32 %v283, %v296
  %v316 = vmul.f32 %v283, %v300
  %v317 = vmul.f32 %v283, %v304
  %v318 = vmul.f32 %v283, %v308
  %v319 = vmul.f32 %v283, %v312
  %v320 = vadd.f32 %v273, %v313
  %v321 = vadd.f32 %v274, %v314
  %v322 = vadd.f32 %v275, %v315
  %v323 = vadd.f32 %v276, %v316
  %v324 = vadd.f32 %v277, %v317
  %v325 = vadd.f32 %v278, %v318
  %v326 = vadd.f32 %v279, %v319
  %327 = vrot.lane.b32.xlu0 %v107, 18
  %v328 = vpop.permute.xlu0 %327
  %329 = vrot.lane.b32.xlu0 %v116, 18
  %v330 = vpop.permute.xlu0 %329
  %331 = vrot.lane.b32.xlu0 %v108, 18
  %v332 = vpop.permute.xlu0 %331
  %333 = vrot.lane.b32.xlu0 %v117, 18
  %v334 = vpop.permute.xlu0 %333
  %335 = vrot.lane.b32.xlu0 %v109, 18
  %v336 = vpop.permute.xlu0 %335
  %337 = vrot.lane.b32.xlu0 %v118, 18
  %v338 = vpop.permute.xlu0 %337
  %339 = vrot.lane.b32.xlu0 %v110, 18
  %v340 = vpop.permute.xlu0 %339
  %vm341 = vcmp.lt.s32.totalorder %v137, 18
  %v342 = vsel %vm341, %v338, %v340
  %v343 = vsel %vm341, %v336, %v338
  %v344 = vsel %vm341, %v334, %v336
  %v345 = vsel %vm341, %v332, %v334
  %v346 = vsel %vm341, %v330, %v332
  %v347 = vsel %vm341, %v328, %v330
  %v348 = vsel %vm341, %v340, %v328
  %350 = vset.pattern.permute.xlu0 0
  %351 = vperm.xlu0 %350, %v36
  %v352 = vpop.permute.xlu0 %351
  %v354 = vlaneseq
  %v355 = vshrl.u32 %v354, 7
  %v356 = vsub.s32 0, %v355
  %v357 = vrot.slane %v348, %v356
  %v358 = vlaneseq
  %v359 = vshrl.u32 %v358, 7
  %v360 = vsub.s32 0, %v359
  %v361 = vrot.slane %v347, %v360
  %v362 = vlaneseq
  %v363 = vshrl.u32 %v362, 7
  %v364 = vsub.s32 0, %v363
  %v365 = vrot.slane %v346, %v364
  %v366 = vlaneseq
  %v367 = vshrl.u32 %v366, 7
  %v368 = vsub.s32 0, %v367
  %v369 = vrot.slane %v345, %v368
  %v370 = vlaneseq
  %v371 = vshrl.u32 %v370, 7
  %v372 = vsub.s32 0, %v371
  %v373 = vrot.slane %v344, %v372
  %v374 = vlaneseq
  %v375 = vshrl.u32 %v374, 7
  %v376 = vsub.s32 0, %v375
  %v377 = vrot.slane %v343, %v376
  %v378 = vlaneseq
  %v379 = vshrl.u32 %v378, 7
  %v380 = vsub.s32 0, %v379
  %v381 = vrot.slane %v342, %v380
  %v382 = vmul.f32 %v352, %v357
  %v383 = vmul.f32 %v352, %v361
  %v384 = vmul.f32 %v352, %v365
  %v385 = vmul.f32 %v352, %v369
  %v386 = vmul.f32 %v352, %v373
  %v387 = vmul.f32 %v352, %v377
  %v388 = vmul.f32 %v352, %v381
  %v389 = vadd.f32 %v320, %v382
  %v390 = vadd.f32 %v321, %v383
  %v391 = vadd.f32 %v322, %v384
  %v392 = vadd.f32 %v323, %v385
  %v393 = vadd.f32 %v324, %v386
  %v394 = vadd.f32 %v325, %v387
  %v395 = vadd.f32 %v326, %v388
  %397 = vset.pattern.permute.xlu0 0
  %398 = vperm.xlu0 %397, %v38
  %v399 = vpop.permute.xlu0 %398
  %v401 = vlaneseq
  %v402 = vshrl.u32 %v401, 7
  %v403 = vsub.s32 1, %v402
  %v404 = vrot.slane %v348, %v403
  %v405 = vlaneseq
  %v406 = vshrl.u32 %v405, 7
  %v407 = vsub.s32 1, %v406
  %v408 = vrot.slane %v347, %v407
  %v409 = vlaneseq
  %v410 = vshrl.u32 %v409, 7
  %v411 = vsub.s32 1, %v410
  %v412 = vrot.slane %v346, %v411
  %v413 = vlaneseq
  %v414 = vshrl.u32 %v413, 7
  %v415 = vsub.s32 1, %v414
  %v416 = vrot.slane %v345, %v415
  %v417 = vlaneseq
  %v418 = vshrl.u32 %v417, 7
  %v419 = vsub.s32 1, %v418
  %v420 = vrot.slane %v344, %v419
  %v421 = vlaneseq
  %v422 = vshrl.u32 %v421, 7
  %v423 = vsub.s32 1, %v422
  %v424 = vrot.slane %v343, %v423
  %v425 = vlaneseq
  %v426 = vshrl.u32 %v425, 7
  %v427 = vsub.s32 1, %v426
  %v428 = vrot.slane %v342, %v427
  %v429 = vmul.f32 %v399, %v404
  %v430 = vmul.f32 %v399, %v408
  %v431 = vmul.f32 %v399, %v412
  %v432 = vmul.f32 %v399, %v416
  %v433 = vmul.f32 %v399, %v420
  %v434 = vmul.f32 %v399, %v424
  %v435 = vmul.f32 %v399, %v428
  %v436 = vadd.f32 %v389, %v429
  %v437 = vadd.f32 %v390, %v430
  %v438 = vadd.f32 %v391, %v431
  %v439 = vadd.f32 %v392, %v432
  %v440 = vadd.f32 %v393, %v433
  %v441 = vadd.f32 %v394, %v434
  %v442 = vadd.f32 %v395, %v435
  %444 = vset.pattern.permute.xlu0 0
  %445 = vperm.xlu0 %444, %v40
  %v446 = vpop.permute.xlu0 %445
  %v448 = vlaneseq
  %v449 = vshrl.u32 %v448, 7
  %v450 = vsub.s32 2, %v449
  %v451 = vrot.slane %v348, %v450
  %v452 = vlaneseq
  %v453 = vshrl.u32 %v452, 7
  %v454 = vsub.s32 2, %v453
  %v455 = vrot.slane %v347, %v454
  %v456 = vlaneseq
  %v457 = vshrl.u32 %v456, 7
  %v458 = vsub.s32 2, %v457
  %v459 = vrot.slane %v346, %v458
  %v460 = vlaneseq
  %v461 = vshrl.u32 %v460, 7
  %v462 = vsub.s32 2, %v461
  %v463 = vrot.slane %v345, %v462
  %v464 = vlaneseq
  %v465 = vshrl.u32 %v464, 7
  %v466 = vsub.s32 2, %v465
  %v467 = vrot.slane %v344, %v466
  %v468 = vlaneseq
  %v469 = vshrl.u32 %v468, 7
  %v470 = vsub.s32 2, %v469
  %v471 = vrot.slane %v343, %v470
  %v472 = vlaneseq
  %v473 = vshrl.u32 %v472, 7
  %v474 = vsub.s32 2, %v473
  %v475 = vrot.slane %v342, %v474
  %v476 = vmul.f32 %v446, %v451
  %v477 = vmul.f32 %v446, %v455
  %v478 = vmul.f32 %v446, %v459
  %v479 = vmul.f32 %v446, %v463
  %v480 = vmul.f32 %v446, %v467
  %v481 = vmul.f32 %v446, %v471
  %v482 = vmul.f32 %v446, %v475
  %v483 = vadd.f32 %v436, %v476
  %v484 = vadd.f32 %v437, %v477
  %v485 = vadd.f32 %v438, %v478
  %v486 = vadd.f32 %v439, %v479
  %v487 = vadd.f32 %v440, %v480
  %v488 = vadd.f32 %v441, %v481
  %v489 = vadd.f32 %v442, %v482
  %491 = vset.pattern.permute.xlu0 0
  %492 = vperm.xlu0 %491, %v42
  %v493 = vpop.permute.xlu0 %492
  %v495 = vlaneseq
  %v496 = vshrl.u32 %v495, 7
  %v497 = vsub.s32 3, %v496
  %v498 = vrot.slane %v348, %v497
  %v499 = vlaneseq
  %v500 = vshrl.u32 %v499, 7
  %v501 = vsub.s32 3, %v500
  %v502 = vrot.slane %v347, %v501
  %v503 = vlaneseq
  %v504 = vshrl.u32 %v503, 7
  %v505 = vsub.s32 3, %v504
  %v506 = vrot.slane %v346, %v505
  %v507 = vlaneseq
  %v508 = vshrl.u32 %v507, 7
  %v509 = vsub.s32 3, %v508
  %v510 = vrot.slane %v345, %v509
  %v511 = vlaneseq
  %v512 = vshrl.u32 %v511, 7
  %v513 = vsub.s32 3, %v512
  %v514 = vrot.slane %v344, %v513
  %v515 = vlaneseq
  %v516 = vshrl.u32 %v515, 7
  %v517 = vsub.s32 3, %v516
  %v518 = vrot.slane %v343, %v517
  %v519 = vlaneseq
  %v520 = vshrl.u32 %v519, 7
  %v521 = vsub.s32 3, %v520
  %v522 = vrot.slane %v342, %v521
  %v523 = vmul.f32 %v493, %v498
  %v524 = vmul.f32 %v493, %v502
  %v525 = vmul.f32 %v493, %v506
  %v526 = vmul.f32 %v493, %v510
  %v527 = vmul.f32 %v493, %v514
  %v528 = vmul.f32 %v493, %v518
  %v529 = vmul.f32 %v493, %v522
  %v530 = vadd.f32 %v483, %v523
  %v531 = vadd.f32 %v484, %v524
  %v532 = vadd.f32 %v485, %v525
  %v533 = vadd.f32 %v486, %v526
  %v534 = vadd.f32 %v487, %v527
  %v535 = vadd.f32 %v488, %v528
  %v536 = vadd.f32 %v489, %v529
  %537 = vrot.lane.b32.xlu0 %v107, 17
  %v538 = vpop.permute.xlu0 %537
  %539 = vrot.lane.b32.xlu0 %v116, 17
  %v540 = vpop.permute.xlu0 %539
  %541 = vrot.lane.b32.xlu0 %v108, 17
  %v542 = vpop.permute.xlu0 %541
  %543 = vrot.lane.b32.xlu0 %v117, 17
  %v544 = vpop.permute.xlu0 %543
  %545 = vrot.lane.b32.xlu0 %v109, 17
  %v546 = vpop.permute.xlu0 %545
  %547 = vrot.lane.b32.xlu0 %v118, 17
  %v548 = vpop.permute.xlu0 %547
  %549 = vrot.lane.b32.xlu0 %v110, 17
  %v550 = vpop.permute.xlu0 %549
  %vm551 = vcmp.lt.s32.totalorder %v137, 17
  %v552 = vsel %vm551, %v548, %v550
  %v553 = vsel %vm551, %v546, %v548
  %v554 = vsel %vm551, %v544, %v546
  %v555 = vsel %vm551, %v542, %v544
  %v556 = vsel %vm551, %v540, %v542
  %v557 = vsel %vm551, %v538, %v540
  %v558 = vsel %vm551, %v550, %v538
  %560 = vset.pattern.permute.xlu0 0
  %561 = vperm.xlu0 %560, %v44
  %v562 = vpop.permute.xlu0 %561
  %v564 = vlaneseq
  %v565 = vshrl.u32 %v564, 7
  %v566 = vsub.s32 0, %v565
  %v567 = vrot.slane %v558, %v566
  %v568 = vlaneseq
  %v569 = vshrl.u32 %v568, 7
  %v570 = vsub.s32 0, %v569
  %v571 = vrot.slane %v557, %v570
  %v572 = vlaneseq
  %v573 = vshrl.u32 %v572, 7
  %v574 = vsub.s32 0, %v573
  %v575 = vrot.slane %v556, %v574
  %v576 = vlaneseq
  %v577 = vshrl.u32 %v576, 7
  %v578 = vsub.s32 0, %v577
  %v579 = vrot.slane %v555, %v578
  %v580 = vlaneseq
  %v581 = vshrl.u32 %v580, 7
  %v582 = vsub.s32 0, %v581
  %v583 = vrot.slane %v554, %v582
  %v584 = vlaneseq
  %v585 = vshrl.u32 %v584, 7
  %v586 = vsub.s32 0, %v585
  %v587 = vrot.slane %v553, %v586
  %v588 = vlaneseq
  %v589 = vshrl.u32 %v588, 7
  %v590 = vsub.s32 0, %v589
  %v591 = vrot.slane %v552, %v590
  %v592 = vmul.f32 %v562, %v567
  %v593 = vmul.f32 %v562, %v571
  %v594 = vmul.f32 %v562, %v575
  %v595 = vmul.f32 %v562, %v579
  %v596 = vmul.f32 %v562, %v583
  %v597 = vmul.f32 %v562, %v587
  %v598 = vmul.f32 %v562, %v591
  %v599 = vadd.f32 %v530, %v592
  %v600 = vadd.f32 %v531, %v593
  %v601 = vadd.f32 %v532, %v594
  %v602 = vadd.f32 %v533, %v595
  %v603 = vadd.f32 %v534, %v596
  %v604 = vadd.f32 %v535, %v597
  %v605 = vadd.f32 %v536, %v598
  %607 = vset.pattern.permute.xlu0 0
  %608 = vperm.xlu0 %607, %v46
  %v609 = vpop.permute.xlu0 %608
  %v611 = vlaneseq
  %v612 = vshrl.u32 %v611, 7
  %v613 = vsub.s32 1, %v612
  %v614 = vrot.slane %v558, %v613
  %v615 = vlaneseq
  %v616 = vshrl.u32 %v615, 7
  %v617 = vsub.s32 1, %v616
  %v618 = vrot.slane %v557, %v617
  %v619 = vlaneseq
  %v620 = vshrl.u32 %v619, 7
  %v621 = vsub.s32 1, %v620
  %v622 = vrot.slane %v556, %v621
  %v623 = vlaneseq
  %v624 = vshrl.u32 %v623, 7
  %v625 = vsub.s32 1, %v624
  %v626 = vrot.slane %v555, %v625
  %v627 = vlaneseq
  %v628 = vshrl.u32 %v627, 7
  %v629 = vsub.s32 1, %v628
  %v630 = vrot.slane %v554, %v629
  %v631 = vlaneseq
  %v632 = vshrl.u32 %v631, 7
  %v633 = vsub.s32 1, %v632
  %v634 = vrot.slane %v553, %v633
  %v635 = vlaneseq
  %v636 = vshrl.u32 %v635, 7
  %v637 = vsub.s32 1, %v636
  %v638 = vrot.slane %v552, %v637
  %v639 = vmul.f32 %v609, %v614
  %v640 = vmul.f32 %v609, %v618
  %v641 = vmul.f32 %v609, %v622
  %v642 = vmul.f32 %v609, %v626
  %v643 = vmul.f32 %v609, %v630
  %v644 = vmul.f32 %v609, %v634
  %v645 = vmul.f32 %v609, %v638
  %v646 = vadd.f32 %v599, %v639
  %v647 = vadd.f32 %v600, %v640
  %v648 = vadd.f32 %v601, %v641
  %v649 = vadd.f32 %v602, %v642
  %v650 = vadd.f32 %v603, %v643
  %v651 = vadd.f32 %v604, %v644
  %v652 = vadd.f32 %v605, %v645
  %654 = vset.pattern.permute.xlu0 0
  %655 = vperm.xlu0 %654, %v48
  %v656 = vpop.permute.xlu0 %655
  %v658 = vlaneseq
  %v659 = vshrl.u32 %v658, 7
  %v660 = vsub.s32 2, %v659
  %v661 = vrot.slane %v558, %v660
  %v662 = vlaneseq
  %v663 = vshrl.u32 %v662, 7
  %v664 = vsub.s32 2, %v663
  %v665 = vrot.slane %v557, %v664
  %v666 = vlaneseq
  %v667 = vshrl.u32 %v666, 7
  %v668 = vsub.s32 2, %v667
  %v669 = vrot.slane %v556, %v668
  %v670 = vlaneseq
  %v671 = vshrl.u32 %v670, 7
  %v672 = vsub.s32 2, %v671
  %v673 = vrot.slane %v555, %v672
  %v674 = vlaneseq
  %v675 = vshrl.u32 %v674, 7
  %v676 = vsub.s32 2, %v675
  %v677 = vrot.slane %v554, %v676
  %v678 = vlaneseq
  %v679 = vshrl.u32 %v678, 7
  %v680 = vsub.s32 2, %v679
  %v681 = vrot.slane %v553, %v680
  %v682 = vlaneseq
  %v683 = vshrl.u32 %v682, 7
  %v684 = vsub.s32 2, %v683
  %v685 = vrot.slane %v552, %v684
  %v686 = vmul.f32 %v656, %v661
  %v687 = vmul.f32 %v656, %v665
  %v688 = vmul.f32 %v656, %v669
  %v689 = vmul.f32 %v656, %v673
  %v690 = vmul.f32 %v656, %v677
  %v691 = vmul.f32 %v656, %v681
  %v692 = vmul.f32 %v656, %v685
  %v693 = vadd.f32 %v646, %v686
  %v694 = vadd.f32 %v647, %v687
  %v695 = vadd.f32 %v648, %v688
  %v696 = vadd.f32 %v649, %v689
  %v697 = vadd.f32 %v650, %v690
  %v698 = vadd.f32 %v651, %v691
  %v699 = vadd.f32 %v652, %v692
  %701 = vset.pattern.permute.xlu0 0
  %702 = vperm.xlu0 %701, %v50
  %v703 = vpop.permute.xlu0 %702
  %v705 = vlaneseq
  %v706 = vshrl.u32 %v705, 7
  %v707 = vsub.s32 3, %v706
  %v708 = vrot.slane %v558, %v707
  %v709 = vlaneseq
  %v710 = vshrl.u32 %v709, 7
  %v711 = vsub.s32 3, %v710
  %v712 = vrot.slane %v557, %v711
  %v713 = vlaneseq
  %v714 = vshrl.u32 %v713, 7
  %v715 = vsub.s32 3, %v714
  %v716 = vrot.slane %v556, %v715
  %v717 = vlaneseq
  %v718 = vshrl.u32 %v717, 7
  %v719 = vsub.s32 3, %v718
  %v720 = vrot.slane %v555, %v719
  %v721 = vlaneseq
  %v722 = vshrl.u32 %v721, 7
  %v723 = vsub.s32 3, %v722
  %v724 = vrot.slane %v554, %v723
  %v725 = vlaneseq
  %v726 = vshrl.u32 %v725, 7
  %v727 = vsub.s32 3, %v726
  %v728 = vrot.slane %v553, %v727
  %v729 = vlaneseq
  %v730 = vshrl.u32 %v729, 7
  %v731 = vsub.s32 3, %v730
  %v732 = vrot.slane %v552, %v731
  %v733 = vmul.f32 %v703, %v708
  %v734 = vmul.f32 %v703, %v712
  %v735 = vmul.f32 %v703, %v716
  %v736 = vmul.f32 %v703, %v720
  %v737 = vmul.f32 %v703, %v724
  %v738 = vmul.f32 %v703, %v728
  %v739 = vmul.f32 %v703, %v732
  %v740 = vadd.f32 %v693, %v733
  %v741 = vadd.f32 %v694, %v734
  %v742 = vadd.f32 %v695, %v735
  %v743 = vadd.f32 %v696, %v736
  %v744 = vadd.f32 %v697, %v737
  %v745 = vadd.f32 %v698, %v738
  %v746 = vadd.f32 %v699, %v739
  %747 = vrot.lane.b32.xlu0 %v107, 1
  %v748 = vpop.permute.xlu0 %747
  %749 = vrot.lane.b32.xlu0 %v116, 1
  %v750 = vpop.permute.xlu0 %749
  %751 = vrot.lane.b32.xlu0 %v108, 1
  %v752 = vpop.permute.xlu0 %751
  %753 = vrot.lane.b32.xlu0 %v117, 1
  %v754 = vpop.permute.xlu0 %753
  %755 = vrot.lane.b32.xlu0 %v109, 1
  %v756 = vpop.permute.xlu0 %755
  %757 = vrot.lane.b32.xlu0 %v118, 1
  %v758 = vpop.permute.xlu0 %757
  %759 = vrot.lane.b32.xlu0 %v110, 1
  %v760 = vpop.permute.xlu0 %759
  %vm761 = vcmp.lt.s32.totalorder %v137, 1
  %v762 = vsel %vm761, %v758, %v760
  %v763 = vsel %vm761, %v756, %v758
  %v764 = vsel %vm761, %v754, %v756
  %v765 = vsel %vm761, %v752, %v754
  %v766 = vsel %vm761, %v750, %v752
  %v767 = vsel %vm761, %v748, %v750
  %v768 = vsel %vm761, %v760, %v748
  %770 = vset.pattern.permute.xlu0 0
  %771 = vperm.xlu0 %770, %v52
  %v772 = vpop.permute.xlu0 %771
  %v774 = vlaneseq
  %v775 = vshrl.u32 %v774, 7
  %v776 = vsub.s32 0, %v775
  %v777 = vrot.slane %v768, %v776
  %v778 = vlaneseq
  %v779 = vshrl.u32 %v778, 7
  %v780 = vsub.s32 0, %v779
  %v781 = vrot.slane %v767, %v780
  %v782 = vlaneseq
  %v783 = vshrl.u32 %v782, 7
  %v784 = vsub.s32 0, %v783
  %v785 = vrot.slane %v766, %v784
  %v786 = vlaneseq
  %v787 = vshrl.u32 %v786, 7
  %v788 = vsub.s32 0, %v787
  %v789 = vrot.slane %v765, %v788
  %v790 = vlaneseq
  %v791 = vshrl.u32 %v790, 7
  %v792 = vsub.s32 0, %v791
  %v793 = vrot.slane %v764, %v792
  %v794 = vlaneseq
  %v795 = vshrl.u32 %v794, 7
  %v796 = vsub.s32 0, %v795
  %v797 = vrot.slane %v763, %v796
  %v798 = vlaneseq
  %v799 = vshrl.u32 %v798, 7
  %v800 = vsub.s32 0, %v799
  %v801 = vrot.slane %v762, %v800
  %v802 = vmul.f32 %v772, %v777
  %v803 = vmul.f32 %v772, %v781
  %v804 = vmul.f32 %v772, %v785
  %v805 = vmul.f32 %v772, %v789
  %v806 = vmul.f32 %v772, %v793
  %v807 = vmul.f32 %v772, %v797
  %v808 = vmul.f32 %v772, %v801
  %v809 = vadd.f32 %v740, %v802
  %v810 = vadd.f32 %v741, %v803
  %v811 = vadd.f32 %v742, %v804
  %v812 = vadd.f32 %v743, %v805
  %v813 = vadd.f32 %v744, %v806
  %v814 = vadd.f32 %v745, %v807
  %v815 = vadd.f32 %v746, %v808
  %817 = vset.pattern.permute.xlu0 0
  %818 = vperm.xlu0 %817, %v54
  %v819 = vpop.permute.xlu0 %818
  %v821 = vlaneseq
  %v822 = vshrl.u32 %v821, 7
  %v823 = vsub.s32 1, %v822
  %v824 = vrot.slane %v768, %v823
  %v825 = vlaneseq
  %v826 = vshrl.u32 %v825, 7
  %v827 = vsub.s32 1, %v826
  %v828 = vrot.slane %v767, %v827
  %v829 = vlaneseq
  %v830 = vshrl.u32 %v829, 7
  %v831 = vsub.s32 1, %v830
  %v832 = vrot.slane %v766, %v831
  %v833 = vlaneseq
  %v834 = vshrl.u32 %v833, 7
  %v835 = vsub.s32 1, %v834
  %v836 = vrot.slane %v765, %v835
  %v837 = vlaneseq
  %v838 = vshrl.u32 %v837, 7
  %v839 = vsub.s32 1, %v838
  %v840 = vrot.slane %v764, %v839
  %v841 = vlaneseq
  %v842 = vshrl.u32 %v841, 7
  %v843 = vsub.s32 1, %v842
  %v844 = vrot.slane %v763, %v843
  %v845 = vlaneseq
  %v846 = vshrl.u32 %v845, 7
  %v847 = vsub.s32 1, %v846
  %v848 = vrot.slane %v762, %v847
  %v849 = vmul.f32 %v819, %v824
  %v850 = vmul.f32 %v819, %v828
  %v851 = vmul.f32 %v819, %v832
  %v852 = vmul.f32 %v819, %v836
  %v853 = vmul.f32 %v819, %v840
  %v854 = vmul.f32 %v819, %v844
  %v855 = vmul.f32 %v819, %v848
  %v856 = vadd.f32 %v809, %v849
  %v857 = vadd.f32 %v810, %v850
  %v858 = vadd.f32 %v811, %v851
  %v859 = vadd.f32 %v812, %v852
  %v860 = vadd.f32 %v813, %v853
  %v861 = vadd.f32 %v814, %v854
  %v862 = vadd.f32 %v815, %v855
  %864 = vset.pattern.permute.xlu0 0
  %865 = vperm.xlu0 %864, %v56
  %v866 = vpop.permute.xlu0 %865
  %v868 = vlaneseq
  %v869 = vshrl.u32 %v868, 7
  %v870 = vsub.s32 2, %v869
  %v871 = vrot.slane %v768, %v870
  %v872 = vlaneseq
  %v873 = vshrl.u32 %v872, 7
  %v874 = vsub.s32 2, %v873
  %v875 = vrot.slane %v767, %v874
  %v876 = vlaneseq
  %v877 = vshrl.u32 %v876, 7
  %v878 = vsub.s32 2, %v877
  %v879 = vrot.slane %v766, %v878
  %v880 = vlaneseq
  %v881 = vshrl.u32 %v880, 7
  %v882 = vsub.s32 2, %v881
  %v883 = vrot.slane %v765, %v882
  %v884 = vlaneseq
  %v885 = vshrl.u32 %v884, 7
  %v886 = vsub.s32 2, %v885
  %v887 = vrot.slane %v764, %v886
  %v888 = vlaneseq
  %v889 = vshrl.u32 %v888, 7
  %v890 = vsub.s32 2, %v889
  %v891 = vrot.slane %v763, %v890
  %v892 = vlaneseq
  %v893 = vshrl.u32 %v892, 7
  %v894 = vsub.s32 2, %v893
  %v895 = vrot.slane %v762, %v894
  %v896 = vmul.f32 %v866, %v871
  %v897 = vmul.f32 %v866, %v875
  %v898 = vmul.f32 %v866, %v879
  %v899 = vmul.f32 %v866, %v883
  %v900 = vmul.f32 %v866, %v887
  %v901 = vmul.f32 %v866, %v891
  %v902 = vmul.f32 %v866, %v895
  %v903 = vadd.f32 %v856, %v896
  %v904 = vadd.f32 %v857, %v897
  %v905 = vadd.f32 %v858, %v898
  %v906 = vadd.f32 %v859, %v899
  %v907 = vadd.f32 %v860, %v900
  %v908 = vadd.f32 %v861, %v901
  %v909 = vadd.f32 %v862, %v902
  %911 = vset.pattern.permute.xlu0 0
  %912 = vperm.xlu0 %911, %v58
  %v913 = vpop.permute.xlu0 %912
  %v915 = vlaneseq
  %v916 = vshrl.u32 %v915, 7
  %v917 = vsub.s32 3, %v916
  %v918 = vrot.slane %v768, %v917
  %v919 = vlaneseq
  %v920 = vshrl.u32 %v919, 7
  %v921 = vsub.s32 3, %v920
  %v922 = vrot.slane %v767, %v921
  %v923 = vlaneseq
  %v924 = vshrl.u32 %v923, 7
  %v925 = vsub.s32 3, %v924
  %v926 = vrot.slane %v766, %v925
  %v927 = vlaneseq
  %v928 = vshrl.u32 %v927, 7
  %v929 = vsub.s32 3, %v928
  %v930 = vrot.slane %v765, %v929
  %v931 = vlaneseq
  %v932 = vshrl.u32 %v931, 7
  %v933 = vsub.s32 3, %v932
  %v934 = vrot.slane %v764, %v933
  %v935 = vlaneseq
  %v936 = vshrl.u32 %v935, 7
  %v937 = vsub.s32 3, %v936
  %v938 = vrot.slane %v763, %v937
  %v939 = vlaneseq
  %v940 = vshrl.u32 %v939, 7
  %v941 = vsub.s32 3, %v940
  %v942 = vrot.slane %v762, %v941
  %v943 = vmul.f32 %v913, %v918
  %v944 = vmul.f32 %v913, %v922
  %v945 = vmul.f32 %v913, %v926
  %v946 = vmul.f32 %v913, %v930
  %v947 = vmul.f32 %v913, %v934
  %v948 = vmul.f32 %v913, %v938
  %v949 = vmul.f32 %v913, %v942
  %v950 = vadd.f32 %v903, %v943
  %v951 = vadd.f32 %v904, %v944
  %v952 = vadd.f32 %v905, %v945
  %v953 = vadd.f32 %v906, %v946
  %v954 = vadd.f32 %v907, %v947
  %v955 = vadd.f32 %v908, %v948
  %v956 = vadd.f32 %v909, %v949
  %958 = vset.pattern.permute.xlu0 0
  %959 = vperm.xlu0 %958, %v60
  %v960 = vpop.permute.xlu0 %959
  %v962 = vlaneseq
  %v963 = vshrl.u32 %v962, 7
  %v964 = vsub.s32 0, %v963
  %v965 = vrot.slane %v107, %v964
  %v966 = vlaneseq
  %v967 = vshrl.u32 %v966, 7
  %v968 = vsub.s32 4, %v967
  %v969 = vrot.slane %v107, %v968
  %v970 = vlaneseq
  %v971 = vshrl.u32 %v970, 7
  %v972 = vsub.s32 0, %v971
  %v973 = vrot.slane %v108, %v972
  %v974 = vlaneseq
  %v975 = vshrl.u32 %v974, 7
  %v976 = vsub.s32 4, %v975
  %v977 = vrot.slane %v108, %v976
  %v978 = vlaneseq
  %v979 = vshrl.u32 %v978, 7
  %v980 = vsub.s32 0, %v979
  %v981 = vrot.slane %v109, %v980
  %v982 = vlaneseq
  %v983 = vshrl.u32 %v982, 7
  %v984 = vsub.s32 4, %v983
  %v985 = vrot.slane %v109, %v984
  %v986 = vlaneseq
  %v987 = vshrl.u32 %v986, 7
  %v988 = vsub.s32 0, %v987
  %v989 = vrot.slane %v110, %v988
  %v997 = vlaneseq
  %v998 = vshrl.u32 %v997, 7
  %v999 = vsub.s32 0, %v998
  %v1000 = vrot.slane %v965, %v999
  %v1001 = vlaneseq
  %v1002 = vshrl.u32 %v1001, 7
  %v1003 = vsub.s32 0, %v1002
  %v1004 = vrot.slane %v969, %v1003
  %v1005 = vlaneseq
  %v1006 = vshrl.u32 %v1005, 7
  %v1007 = vsub.s32 0, %v1006
  %v1008 = vrot.slane %v973, %v1007
  %v1009 = vlaneseq
  %v1010 = vshrl.u32 %v1009, 7
  %v1011 = vsub.s32 0, %v1010
  %v1012 = vrot.slane %v977, %v1011
  %v1013 = vlaneseq
  %v1014 = vshrl.u32 %v1013, 7
  %v1015 = vsub.s32 0, %v1014
  %v1016 = vrot.slane %v981, %v1015
  %v1017 = vlaneseq
  %v1018 = vshrl.u32 %v1017, 7
  %v1019 = vsub.s32 0, %v1018
  %v1020 = vrot.slane %v985, %v1019
  %v1021 = vlaneseq
  %v1022 = vshrl.u32 %v1021, 7
  %v1023 = vsub.s32 0, %v1022
  %v1024 = vrot.slane %v989, %v1023
  %v1025 = vmul.f32 %v960, %v1000
  %v1026 = vmul.f32 %v960, %v1004
  %v1027 = vmul.f32 %v960, %v1008
  %v1028 = vmul.f32 %v960, %v1012
  %v1029 = vmul.f32 %v960, %v1016
  %v1030 = vmul.f32 %v960, %v1020
  %v1031 = vmul.f32 %v960, %v1024
  %v1032 = vadd.f32 %v950, %v1025
  %v1033 = vadd.f32 %v951, %v1026
  %v1034 = vadd.f32 %v952, %v1027
  %v1035 = vadd.f32 %v953, %v1028
  %v1036 = vadd.f32 %v954, %v1029
  %v1037 = vadd.f32 %v955, %v1030
  %v1038 = vadd.f32 %v956, %v1031
  %1040 = vset.pattern.permute.xlu0 0
  %1041 = vperm.xlu0 %1040, %v62
  %v1042 = vpop.permute.xlu0 %1041
  %v1044 = vlaneseq
  %v1045 = vshrl.u32 %v1044, 7
  %v1046 = vsub.s32 1, %v1045
  %v1047 = vrot.slane %v107, %v1046
  %v1048 = vlaneseq
  %v1049 = vshrl.u32 %v1048, 7
  %v1050 = vsub.s32 5, %v1049
  %v1051 = vrot.slane %v107, %v1050
  %v1052 = vlaneseq
  %v1053 = vshrl.u32 %v1052, 7
  %v1054 = vsub.s32 1, %v1053
  %v1055 = vrot.slane %v108, %v1054
  %v1056 = vlaneseq
  %v1057 = vshrl.u32 %v1056, 7
  %v1058 = vsub.s32 5, %v1057
  %v1059 = vrot.slane %v108, %v1058
  %v1060 = vlaneseq
  %v1061 = vshrl.u32 %v1060, 7
  %v1062 = vsub.s32 1, %v1061
  %v1063 = vrot.slane %v109, %v1062
  %v1064 = vlaneseq
  %v1065 = vshrl.u32 %v1064, 7
  %v1066 = vsub.s32 5, %v1065
  %v1067 = vrot.slane %v109, %v1066
  %v1068 = vlaneseq
  %v1069 = vshrl.u32 %v1068, 7
  %v1070 = vsub.s32 1, %v1069
  %v1071 = vrot.slane %v110, %v1070
  %v1079 = vlaneseq
  %v1080 = vshrl.u32 %v1079, 7
  %v1081 = vsub.s32 1, %v1080
  %v1082 = vrot.slane %v1047, %v1081
  %v1083 = vlaneseq
  %v1084 = vshrl.u32 %v1083, 7
  %v1085 = vsub.s32 1, %v1084
  %v1086 = vrot.slane %v1051, %v1085
  %v1087 = vlaneseq
  %v1088 = vshrl.u32 %v1087, 7
  %v1089 = vsub.s32 1, %v1088
  %v1090 = vrot.slane %v1055, %v1089
  %v1091 = vlaneseq
  %v1092 = vshrl.u32 %v1091, 7
  %v1093 = vsub.s32 1, %v1092
  %v1094 = vrot.slane %v1059, %v1093
  %v1095 = vlaneseq
  %v1096 = vshrl.u32 %v1095, 7
  %v1097 = vsub.s32 1, %v1096
  %v1098 = vrot.slane %v1063, %v1097
  %v1099 = vlaneseq
  %v1100 = vshrl.u32 %v1099, 7
  %v1101 = vsub.s32 1, %v1100
  %v1102 = vrot.slane %v1067, %v1101
  %v1103 = vlaneseq
  %v1104 = vshrl.u32 %v1103, 7
  %v1105 = vsub.s32 1, %v1104
  %v1106 = vrot.slane %v1071, %v1105
  %v1107 = vmul.f32 %v1042, %v1082
  %v1108 = vmul.f32 %v1042, %v1086
  %v1109 = vmul.f32 %v1042, %v1090
  %v1110 = vmul.f32 %v1042, %v1094
  %v1111 = vmul.f32 %v1042, %v1098
  %v1112 = vmul.f32 %v1042, %v1102
  %v1113 = vmul.f32 %v1042, %v1106
  %v1114 = vadd.f32 %v1032, %v1107
  %v1115 = vadd.f32 %v1033, %v1108
  %v1116 = vadd.f32 %v1034, %v1109
  %v1117 = vadd.f32 %v1035, %v1110
  %v1118 = vadd.f32 %v1036, %v1111
  %v1119 = vadd.f32 %v1037, %v1112
  %v1120 = vadd.f32 %v1038, %v1113
  %1122 = vset.pattern.permute.xlu0 0
  %1123 = vperm.xlu0 %1122, %v64
  %v1124 = vpop.permute.xlu0 %1123
  %v1126 = vlaneseq
  %v1127 = vshrl.u32 %v1126, 7
  %v1128 = vsub.s32 2, %v1127
  %v1129 = vrot.slane %v107, %v1128
  %v1130 = vlaneseq
  %v1131 = vshrl.u32 %v1130, 7
  %v1132 = vsub.s32 6, %v1131
  %v1133 = vrot.slane %v107, %v1132
  %v1134 = vlaneseq
  %v1135 = vshrl.u32 %v1134, 7
  %v1136 = vsub.s32 2, %v1135
  %v1137 = vrot.slane %v108, %v1136
  %v1138 = vlaneseq
  %v1139 = vshrl.u32 %v1138, 7
  %v1140 = vsub.s32 6, %v1139
  %v1141 = vrot.slane %v108, %v1140
  %v1142 = vlaneseq
  %v1143 = vshrl.u32 %v1142, 7
  %v1144 = vsub.s32 2, %v1143
  %v1145 = vrot.slane %v109, %v1144
  %v1146 = vlaneseq
  %v1147 = vshrl.u32 %v1146, 7
  %v1148 = vsub.s32 6, %v1147
  %v1149 = vrot.slane %v109, %v1148
  %v1150 = vlaneseq
  %v1151 = vshrl.u32 %v1150, 7
  %v1152 = vsub.s32 2, %v1151
  %v1153 = vrot.slane %v110, %v1152
  %v1161 = vlaneseq
  %v1162 = vshrl.u32 %v1161, 7
  %v1163 = vsub.s32 2, %v1162
  %v1164 = vrot.slane %v1129, %v1163
  %v1165 = vlaneseq
  %v1166 = vshrl.u32 %v1165, 7
  %v1167 = vsub.s32 2, %v1166
  %v1168 = vrot.slane %v1133, %v1167
  %v1169 = vlaneseq
  %v1170 = vshrl.u32 %v1169, 7
  %v1171 = vsub.s32 2, %v1170
  %v1172 = vrot.slane %v1137, %v1171
  %v1173 = vlaneseq
  %v1174 = vshrl.u32 %v1173, 7
  %v1175 = vsub.s32 2, %v1174
  %v1176 = vrot.slane %v1141, %v1175
  %v1177 = vlaneseq
  %v1178 = vshrl.u32 %v1177, 7
  %v1179 = vsub.s32 2, %v1178
  %v1180 = vrot.slane %v1145, %v1179
  %v1181 = vlaneseq
  %v1182 = vshrl.u32 %v1181, 7
  %v1183 = vsub.s32 2, %v1182
  %v1184 = vrot.slane %v1149, %v1183
  %v1185 = vlaneseq
  %v1186 = vshrl.u32 %v1185, 7
  %v1187 = vsub.s32 2, %v1186
  %v1188 = vrot.slane %v1153, %v1187
  %v1189 = vmul.f32 %v1124, %v1164
  %v1190 = vmul.f32 %v1124, %v1168
  %v1191 = vmul.f32 %v1124, %v1172
  %v1192 = vmul.f32 %v1124, %v1176
  %v1193 = vmul.f32 %v1124, %v1180
  %v1194 = vmul.f32 %v1124, %v1184
  %v1195 = vmul.f32 %v1124, %v1188
  %v1196 = vadd.f32 %v1114, %v1189
  %v1197 = vadd.f32 %v1115, %v1190
  %v1198 = vadd.f32 %v1116, %v1191
  %v1199 = vadd.f32 %v1117, %v1192
  %v1200 = vadd.f32 %v1118, %v1193
  %v1201 = vadd.f32 %v1119, %v1194
  %v1202 = vadd.f32 %v1120, %v1195
  %1204 = vset.pattern.permute.xlu0 0
  %1205 = vperm.xlu0 %1204, %v66
  %v1206 = vpop.permute.xlu0 %1205
  %v1208 = vlaneseq
  %v1209 = vshrl.u32 %v1208, 7
  %v1210 = vsub.s32 3, %v1209
  %v1211 = vrot.slane %v107, %v1210
  %v1212 = vlaneseq
  %v1213 = vshrl.u32 %v1212, 7
  %v1214 = vsub.s32 7, %v1213
  %v1215 = vrot.slane %v107, %v1214
  %v1216 = vlaneseq
  %v1217 = vshrl.u32 %v1216, 7
  %v1218 = vsub.s32 3, %v1217
  %v1219 = vrot.slane %v108, %v1218
  %v1220 = vlaneseq
  %v1221 = vshrl.u32 %v1220, 7
  %v1222 = vsub.s32 7, %v1221
  %v1223 = vrot.slane %v108, %v1222
  %v1224 = vlaneseq
  %v1225 = vshrl.u32 %v1224, 7
  %v1226 = vsub.s32 3, %v1225
  %v1227 = vrot.slane %v109, %v1226
  %v1228 = vlaneseq
  %v1229 = vshrl.u32 %v1228, 7
  %v1230 = vsub.s32 7, %v1229
  %v1231 = vrot.slane %v109, %v1230
  %v1232 = vlaneseq
  %v1233 = vshrl.u32 %v1232, 7
  %v1234 = vsub.s32 3, %v1233
  %v1235 = vrot.slane %v110, %v1234
  %v1243 = vlaneseq
  %v1244 = vshrl.u32 %v1243, 7
  %v1245 = vsub.s32 3, %v1244
  %v1246 = vrot.slane %v1211, %v1245
  %v1247 = vlaneseq
  %v1248 = vshrl.u32 %v1247, 7
  %v1249 = vsub.s32 3, %v1248
  %v1250 = vrot.slane %v1215, %v1249
  %v1251 = vlaneseq
  %v1252 = vshrl.u32 %v1251, 7
  %v1253 = vsub.s32 3, %v1252
  %v1254 = vrot.slane %v1219, %v1253
  %v1255 = vlaneseq
  %v1256 = vshrl.u32 %v1255, 7
  %v1257 = vsub.s32 3, %v1256
  %v1258 = vrot.slane %v1223, %v1257
  %v1259 = vlaneseq
  %v1260 = vshrl.u32 %v1259, 7
  %v1261 = vsub.s32 3, %v1260
  %v1262 = vrot.slane %v1227, %v1261
  %v1263 = vlaneseq
  %v1264 = vshrl.u32 %v1263, 7
  %v1265 = vsub.s32 3, %v1264
  %v1266 = vrot.slane %v1231, %v1265
  %v1267 = vlaneseq
  %v1268 = vshrl.u32 %v1267, 7
  %v1269 = vsub.s32 3, %v1268
  %v1270 = vrot.slane %v1235, %v1269
  %v1271 = vmul.f32 %v1206, %v1246
  %v1272 = vmul.f32 %v1206, %v1250
  %v1273 = vmul.f32 %v1206, %v1254
  %v1274 = vmul.f32 %v1206, %v1258
  %v1275 = vmul.f32 %v1206, %v1262
  %v1276 = vmul.f32 %v1206, %v1266
  %v1277 = vmul.f32 %v1206, %v1270
  %v1278 = vadd.f32 %v1196, %v1271
  %v1279 = vadd.f32 %v1197, %v1272
  %v1280 = vadd.f32 %v1198, %v1273
  %v1281 = vadd.f32 %v1199, %v1274
  %v1282 = vadd.f32 %v1200, %v1275
  %v1283 = vadd.f32 %v1201, %v1276
  %v1284 = vadd.f32 %v1202, %v1277
  %1285 = vrot.lane.b32.xlu0 %v107, 127
  %v1286 = vpop.permute.xlu0 %1285
  %1287 = vrot.lane.b32.xlu0 %v116, 127
  %v1288 = vpop.permute.xlu0 %1287
  %1289 = vrot.lane.b32.xlu0 %v108, 127
  %v1290 = vpop.permute.xlu0 %1289
  %1291 = vrot.lane.b32.xlu0 %v117, 127
  %v1292 = vpop.permute.xlu0 %1291
  %1293 = vrot.lane.b32.xlu0 %v109, 127
  %v1294 = vpop.permute.xlu0 %1293
  %1295 = vrot.lane.b32.xlu0 %v118, 127
  %v1296 = vpop.permute.xlu0 %1295
  %1297 = vrot.lane.b32.xlu0 %v110, 127
  %v1298 = vpop.permute.xlu0 %1297
  %vm1299 = vcmp.lt.s32.totalorder %v137, 127
  %v1300 = vsel %vm1299, %v1296, %v1298
  %v1301 = vsel %vm1299, %v1294, %v1296
  %v1302 = vsel %vm1299, %v1292, %v1294
  %v1303 = vsel %vm1299, %v1290, %v1292
  %v1304 = vsel %vm1299, %v1288, %v1290
  %v1305 = vsel %vm1299, %v1286, %v1288
  %v1306 = vsel %vm1299, %v1298, %v1286
  %1308 = vset.pattern.permute.xlu0 0
  %1309 = vperm.xlu0 %1308, %v68
  %v1310 = vpop.permute.xlu0 %1309
  %v1312 = vlaneseq
  %v1313 = vshrl.u32 %v1312, 7
  %v1314 = vsub.s32 0, %v1313
  %v1315 = vrot.slane %v1305, %v1314
  %v1316 = vlaneseq
  %v1317 = vshrl.u32 %v1316, 7
  %v1318 = vsub.s32 0, %v1317
  %v1319 = vrot.slane %v1304, %v1318
  %v1320 = vlaneseq
  %v1321 = vshrl.u32 %v1320, 7
  %v1322 = vsub.s32 0, %v1321
  %v1323 = vrot.slane %v1303, %v1322
  %v1324 = vlaneseq
  %v1325 = vshrl.u32 %v1324, 7
  %v1326 = vsub.s32 0, %v1325
  %v1327 = vrot.slane %v1302, %v1326
  %v1328 = vlaneseq
  %v1329 = vshrl.u32 %v1328, 7
  %v1330 = vsub.s32 0, %v1329
  %v1331 = vrot.slane %v1301, %v1330
  %v1332 = vlaneseq
  %v1333 = vshrl.u32 %v1332, 7
  %v1334 = vsub.s32 0, %v1333
  %v1335 = vrot.slane %v1300, %v1334
  %v1336 = vlaneseq
  %v1337 = vshrl.u32 %v1336, 7
  %v1338 = vsub.s32 0, %v1337
  %v1339 = vrot.slane %v1306, %v1338
  %v1340 = vmul.f32 %v1310, %v1315
  %v1341 = vmul.f32 %v1310, %v1319
  %v1342 = vmul.f32 %v1310, %v1323
  %v1343 = vmul.f32 %v1310, %v1327
  %v1344 = vmul.f32 %v1310, %v1331
  %v1345 = vmul.f32 %v1310, %v1335
  %v1346 = vmul.f32 %v1310, %v1339
  %v1347 = vadd.f32 %v1278, %v1340
  %v1348 = vadd.f32 %v1279, %v1341
  %v1349 = vadd.f32 %v1280, %v1342
  %v1350 = vadd.f32 %v1281, %v1343
  %v1351 = vadd.f32 %v1282, %v1344
  %v1352 = vadd.f32 %v1283, %v1345
  %v1353 = vadd.f32 %v1284, %v1346
  %1355 = vset.pattern.permute.xlu0 0
  %1356 = vperm.xlu0 %1355, %v70
  %v1357 = vpop.permute.xlu0 %1356
  %v1359 = vlaneseq
  %v1360 = vshrl.u32 %v1359, 7
  %v1361 = vsub.s32 1, %v1360
  %v1362 = vrot.slane %v1305, %v1361
  %v1363 = vlaneseq
  %v1364 = vshrl.u32 %v1363, 7
  %v1365 = vsub.s32 1, %v1364
  %v1366 = vrot.slane %v1304, %v1365
  %v1367 = vlaneseq
  %v1368 = vshrl.u32 %v1367, 7
  %v1369 = vsub.s32 1, %v1368
  %v1370 = vrot.slane %v1303, %v1369
  %v1371 = vlaneseq
  %v1372 = vshrl.u32 %v1371, 7
  %v1373 = vsub.s32 1, %v1372
  %v1374 = vrot.slane %v1302, %v1373
  %v1375 = vlaneseq
  %v1376 = vshrl.u32 %v1375, 7
  %v1377 = vsub.s32 1, %v1376
  %v1378 = vrot.slane %v1301, %v1377
  %v1379 = vlaneseq
  %v1380 = vshrl.u32 %v1379, 7
  %v1381 = vsub.s32 1, %v1380
  %v1382 = vrot.slane %v1300, %v1381
  %v1383 = vlaneseq
  %v1384 = vshrl.u32 %v1383, 7
  %v1385 = vsub.s32 1, %v1384
  %v1386 = vrot.slane %v1306, %v1385
  %v1387 = vmul.f32 %v1357, %v1362
  %v1388 = vmul.f32 %v1357, %v1366
  %v1389 = vmul.f32 %v1357, %v1370
  %v1390 = vmul.f32 %v1357, %v1374
  %v1391 = vmul.f32 %v1357, %v1378
  %v1392 = vmul.f32 %v1357, %v1382
  %v1393 = vmul.f32 %v1357, %v1386
  %v1394 = vadd.f32 %v1347, %v1387
  %v1395 = vadd.f32 %v1348, %v1388
  %v1396 = vadd.f32 %v1349, %v1389
  %v1397 = vadd.f32 %v1350, %v1390
  %v1398 = vadd.f32 %v1351, %v1391
  %v1399 = vadd.f32 %v1352, %v1392
  %v1400 = vadd.f32 %v1353, %v1393
  %1402 = vset.pattern.permute.xlu0 0
  %1403 = vperm.xlu0 %1402, %v72
  %v1404 = vpop.permute.xlu0 %1403
  %v1406 = vlaneseq
  %v1407 = vshrl.u32 %v1406, 7
  %v1408 = vsub.s32 2, %v1407
  %v1409 = vrot.slane %v1305, %v1408
  %v1410 = vlaneseq
  %v1411 = vshrl.u32 %v1410, 7
  %v1412 = vsub.s32 2, %v1411
  %v1413 = vrot.slane %v1304, %v1412
  %v1414 = vlaneseq
  %v1415 = vshrl.u32 %v1414, 7
  %v1416 = vsub.s32 2, %v1415
  %v1417 = vrot.slane %v1303, %v1416
  %v1418 = vlaneseq
  %v1419 = vshrl.u32 %v1418, 7
  %v1420 = vsub.s32 2, %v1419
  %v1421 = vrot.slane %v1302, %v1420
  %v1422 = vlaneseq
  %v1423 = vshrl.u32 %v1422, 7
  %v1424 = vsub.s32 2, %v1423
  %v1425 = vrot.slane %v1301, %v1424
  %v1426 = vlaneseq
  %v1427 = vshrl.u32 %v1426, 7
  %v1428 = vsub.s32 2, %v1427
  %v1429 = vrot.slane %v1300, %v1428
  %v1430 = vlaneseq
  %v1431 = vshrl.u32 %v1430, 7
  %v1432 = vsub.s32 2, %v1431
  %v1433 = vrot.slane %v1306, %v1432
  %v1434 = vmul.f32 %v1404, %v1409
  %v1435 = vmul.f32 %v1404, %v1413
  %v1436 = vmul.f32 %v1404, %v1417
  %v1437 = vmul.f32 %v1404, %v1421
  %v1438 = vmul.f32 %v1404, %v1425
  %v1439 = vmul.f32 %v1404, %v1429
  %v1440 = vmul.f32 %v1404, %v1433
  %v1441 = vadd.f32 %v1394, %v1434
  %v1442 = vadd.f32 %v1395, %v1435
  %v1443 = vadd.f32 %v1396, %v1436
  %v1444 = vadd.f32 %v1397, %v1437
  %v1445 = vadd.f32 %v1398, %v1438
  %v1446 = vadd.f32 %v1399, %v1439
  %v1447 = vadd.f32 %v1400, %v1440
  %1449 = vset.pattern.permute.xlu0 0
  %1450 = vperm.xlu0 %1449, %v74
  %v1451 = vpop.permute.xlu0 %1450
  %v1453 = vlaneseq
  %v1454 = vshrl.u32 %v1453, 7
  %v1455 = vsub.s32 3, %v1454
  %v1456 = vrot.slane %v1305, %v1455
  %v1457 = vlaneseq
  %v1458 = vshrl.u32 %v1457, 7
  %v1459 = vsub.s32 3, %v1458
  %v1460 = vrot.slane %v1304, %v1459
  %v1461 = vlaneseq
  %v1462 = vshrl.u32 %v1461, 7
  %v1463 = vsub.s32 3, %v1462
  %v1464 = vrot.slane %v1303, %v1463
  %v1465 = vlaneseq
  %v1466 = vshrl.u32 %v1465, 7
  %v1467 = vsub.s32 3, %v1466
  %v1468 = vrot.slane %v1302, %v1467
  %v1469 = vlaneseq
  %v1470 = vshrl.u32 %v1469, 7
  %v1471 = vsub.s32 3, %v1470
  %v1472 = vrot.slane %v1301, %v1471
  %v1473 = vlaneseq
  %v1474 = vshrl.u32 %v1473, 7
  %v1475 = vsub.s32 3, %v1474
  %v1476 = vrot.slane %v1300, %v1475
  %v1477 = vlaneseq
  %v1478 = vshrl.u32 %v1477, 7
  %v1479 = vsub.s32 3, %v1478
  %v1480 = vrot.slane %v1306, %v1479
  %v1481 = vmul.f32 %v1451, %v1456
  %v1482 = vmul.f32 %v1451, %v1460
  %v1483 = vmul.f32 %v1451, %v1464
  %v1484 = vmul.f32 %v1451, %v1468
  %v1485 = vmul.f32 %v1451, %v1472
  %v1486 = vmul.f32 %v1451, %v1476
  %v1487 = vmul.f32 %v1451, %v1480
  %v1488 = vadd.f32 %v1441, %v1481
  %v1489 = vadd.f32 %v1442, %v1482
  %v1490 = vadd.f32 %v1443, %v1483
  %v1491 = vadd.f32 %v1444, %v1484
  %v1492 = vadd.f32 %v1445, %v1485
  %v1493 = vadd.f32 %v1446, %v1486
  %v1494 = vadd.f32 %v1447, %v1487
  %1495 = vrot.lane.b32.xlu0 %v107, 111
  %v1496 = vpop.permute.xlu0 %1495
  %1497 = vrot.lane.b32.xlu0 %v116, 111
  %v1498 = vpop.permute.xlu0 %1497
  %1499 = vrot.lane.b32.xlu0 %v108, 111
  %v1500 = vpop.permute.xlu0 %1499
  %1501 = vrot.lane.b32.xlu0 %v117, 111
  %v1502 = vpop.permute.xlu0 %1501
  %1503 = vrot.lane.b32.xlu0 %v109, 111
  %v1504 = vpop.permute.xlu0 %1503
  %1505 = vrot.lane.b32.xlu0 %v118, 111
  %v1506 = vpop.permute.xlu0 %1505
  %1507 = vrot.lane.b32.xlu0 %v110, 111
  %v1508 = vpop.permute.xlu0 %1507
  %vm1509 = vcmp.lt.s32.totalorder %v137, 111
  %v1510 = vsel %vm1509, %v1506, %v1508
  %v1511 = vsel %vm1509, %v1504, %v1506
  %v1512 = vsel %vm1509, %v1502, %v1504
  %v1513 = vsel %vm1509, %v1500, %v1502
  %v1514 = vsel %vm1509, %v1498, %v1500
  %v1515 = vsel %vm1509, %v1496, %v1498
  %v1516 = vsel %vm1509, %v1508, %v1496
  %1518 = vset.pattern.permute.xlu0 0
  %1519 = vperm.xlu0 %1518, %v76
  %v1520 = vpop.permute.xlu0 %1519
  %v1522 = vlaneseq
  %v1523 = vshrl.u32 %v1522, 7
  %v1524 = vsub.s32 0, %v1523
  %v1525 = vrot.slane %v1515, %v1524
  %v1526 = vlaneseq
  %v1527 = vshrl.u32 %v1526, 7
  %v1528 = vsub.s32 0, %v1527
  %v1529 = vrot.slane %v1514, %v1528
  %v1530 = vlaneseq
  %v1531 = vshrl.u32 %v1530, 7
  %v1532 = vsub.s32 0, %v1531
  %v1533 = vrot.slane %v1513, %v1532
  %v1534 = vlaneseq
  %v1535 = vshrl.u32 %v1534, 7
  %v1536 = vsub.s32 0, %v1535
  %v1537 = vrot.slane %v1512, %v1536
  %v1538 = vlaneseq
  %v1539 = vshrl.u32 %v1538, 7
  %v1540 = vsub.s32 0, %v1539
  %v1541 = vrot.slane %v1511, %v1540
  %v1542 = vlaneseq
  %v1543 = vshrl.u32 %v1542, 7
  %v1544 = vsub.s32 0, %v1543
  %v1545 = vrot.slane %v1510, %v1544
  %v1546 = vlaneseq
  %v1547 = vshrl.u32 %v1546, 7
  %v1548 = vsub.s32 0, %v1547
  %v1549 = vrot.slane %v1516, %v1548
  %v1550 = vmul.f32 %v1520, %v1525
  %v1551 = vmul.f32 %v1520, %v1529
  %v1552 = vmul.f32 %v1520, %v1533
  %v1553 = vmul.f32 %v1520, %v1537
  %v1554 = vmul.f32 %v1520, %v1541
  %v1555 = vmul.f32 %v1520, %v1545
  %v1556 = vmul.f32 %v1520, %v1549
  %v1557 = vadd.f32 %v1488, %v1550
  %v1558 = vadd.f32 %v1489, %v1551
  %v1559 = vadd.f32 %v1490, %v1552
  %v1560 = vadd.f32 %v1491, %v1553
  %v1561 = vadd.f32 %v1492, %v1554
  %v1562 = vadd.f32 %v1493, %v1555
  %v1563 = vadd.f32 %v1494, %v1556
  %1565 = vset.pattern.permute.xlu0 0
  %1566 = vperm.xlu0 %1565, %v78
  %v1567 = vpop.permute.xlu0 %1566
  %v1569 = vlaneseq
  %v1570 = vshrl.u32 %v1569, 7
  %v1571 = vsub.s32 1, %v1570
  %v1572 = vrot.slane %v1515, %v1571
  %v1573 = vlaneseq
  %v1574 = vshrl.u32 %v1573, 7
  %v1575 = vsub.s32 1, %v1574
  %v1576 = vrot.slane %v1514, %v1575
  %v1577 = vlaneseq
  %v1578 = vshrl.u32 %v1577, 7
  %v1579 = vsub.s32 1, %v1578
  %v1580 = vrot.slane %v1513, %v1579
  %v1581 = vlaneseq
  %v1582 = vshrl.u32 %v1581, 7
  %v1583 = vsub.s32 1, %v1582
  %v1584 = vrot.slane %v1512, %v1583
  %v1585 = vlaneseq
  %v1586 = vshrl.u32 %v1585, 7
  %v1587 = vsub.s32 1, %v1586
  %v1588 = vrot.slane %v1511, %v1587
  %v1589 = vlaneseq
  %v1590 = vshrl.u32 %v1589, 7
  %v1591 = vsub.s32 1, %v1590
  %v1592 = vrot.slane %v1510, %v1591
  %v1593 = vlaneseq
  %v1594 = vshrl.u32 %v1593, 7
  %v1595 = vsub.s32 1, %v1594
  %v1596 = vrot.slane %v1516, %v1595
  %v1597 = vmul.f32 %v1567, %v1572
  %v1598 = vmul.f32 %v1567, %v1576
  %v1599 = vmul.f32 %v1567, %v1580
  %v1600 = vmul.f32 %v1567, %v1584
  %v1601 = vmul.f32 %v1567, %v1588
  %v1602 = vmul.f32 %v1567, %v1592
  %v1603 = vmul.f32 %v1567, %v1596
  %v1604 = vadd.f32 %v1557, %v1597
  %v1605 = vadd.f32 %v1558, %v1598
  %v1606 = vadd.f32 %v1559, %v1599
  %v1607 = vadd.f32 %v1560, %v1600
  %v1608 = vadd.f32 %v1561, %v1601
  %v1609 = vadd.f32 %v1562, %v1602
  %v1610 = vadd.f32 %v1563, %v1603
  %1612 = vset.pattern.permute.xlu0 0
  %1613 = vperm.xlu0 %1612, %v80
  %v1614 = vpop.permute.xlu0 %1613
  %v1616 = vlaneseq
  %v1617 = vshrl.u32 %v1616, 7
  %v1618 = vsub.s32 2, %v1617
  %v1619 = vrot.slane %v1515, %v1618
  %v1620 = vlaneseq
  %v1621 = vshrl.u32 %v1620, 7
  %v1622 = vsub.s32 2, %v1621
  %v1623 = vrot.slane %v1514, %v1622
  %v1624 = vlaneseq
  %v1625 = vshrl.u32 %v1624, 7
  %v1626 = vsub.s32 2, %v1625
  %v1627 = vrot.slane %v1513, %v1626
  %v1628 = vlaneseq
  %v1629 = vshrl.u32 %v1628, 7
  %v1630 = vsub.s32 2, %v1629
  %v1631 = vrot.slane %v1512, %v1630
  %v1632 = vlaneseq
  %v1633 = vshrl.u32 %v1632, 7
  %v1634 = vsub.s32 2, %v1633
  %v1635 = vrot.slane %v1511, %v1634
  %v1636 = vlaneseq
  %v1637 = vshrl.u32 %v1636, 7
  %v1638 = vsub.s32 2, %v1637
  %v1639 = vrot.slane %v1510, %v1638
  %v1640 = vlaneseq
  %v1641 = vshrl.u32 %v1640, 7
  %v1642 = vsub.s32 2, %v1641
  %v1643 = vrot.slane %v1516, %v1642
  %v1644 = vmul.f32 %v1614, %v1619
  %v1645 = vmul.f32 %v1614, %v1623
  %v1646 = vmul.f32 %v1614, %v1627
  %v1647 = vmul.f32 %v1614, %v1631
  %v1648 = vmul.f32 %v1614, %v1635
  %v1649 = vmul.f32 %v1614, %v1639
  %v1650 = vmul.f32 %v1614, %v1643
  %v1651 = vadd.f32 %v1604, %v1644
  %v1652 = vadd.f32 %v1605, %v1645
  %v1653 = vadd.f32 %v1606, %v1646
  %v1654 = vadd.f32 %v1607, %v1647
  %v1655 = vadd.f32 %v1608, %v1648
  %v1656 = vadd.f32 %v1609, %v1649
  %v1657 = vadd.f32 %v1610, %v1650
  %1659 = vset.pattern.permute.xlu0 0
  %1660 = vperm.xlu0 %1659, %v82
  %v1661 = vpop.permute.xlu0 %1660
  %v1663 = vlaneseq
  %v1664 = vshrl.u32 %v1663, 7
  %v1665 = vsub.s32 3, %v1664
  %v1666 = vrot.slane %v1515, %v1665
  %v1667 = vlaneseq
  %v1668 = vshrl.u32 %v1667, 7
  %v1669 = vsub.s32 3, %v1668
  %v1670 = vrot.slane %v1514, %v1669
  %v1671 = vlaneseq
  %v1672 = vshrl.u32 %v1671, 7
  %v1673 = vsub.s32 3, %v1672
  %v1674 = vrot.slane %v1513, %v1673
  %v1675 = vlaneseq
  %v1676 = vshrl.u32 %v1675, 7
  %v1677 = vsub.s32 3, %v1676
  %v1678 = vrot.slane %v1512, %v1677
  %v1679 = vlaneseq
  %v1680 = vshrl.u32 %v1679, 7
  %v1681 = vsub.s32 3, %v1680
  %v1682 = vrot.slane %v1511, %v1681
  %v1683 = vlaneseq
  %v1684 = vshrl.u32 %v1683, 7
  %v1685 = vsub.s32 3, %v1684
  %v1686 = vrot.slane %v1510, %v1685
  %v1687 = vlaneseq
  %v1688 = vshrl.u32 %v1687, 7
  %v1689 = vsub.s32 3, %v1688
  %v1690 = vrot.slane %v1516, %v1689
  %v1691 = vmul.f32 %v1661, %v1666
  %v1692 = vmul.f32 %v1661, %v1670
  %v1693 = vmul.f32 %v1661, %v1674
  %v1694 = vmul.f32 %v1661, %v1678
  %v1695 = vmul.f32 %v1661, %v1682
  %v1696 = vmul.f32 %v1661, %v1686
  %v1697 = vmul.f32 %v1661, %v1690
  %v1698 = vadd.f32 %v1651, %v1691
  %v1699 = vadd.f32 %v1652, %v1692
  %v1700 = vadd.f32 %v1653, %v1693
  %v1701 = vadd.f32 %v1654, %v1694
  %v1702 = vadd.f32 %v1655, %v1695
  %v1703 = vadd.f32 %v1656, %v1696
  %v1704 = vadd.f32 %v1657, %v1697
  %1705 = vrot.lane.b32.xlu0 %v107, 110
  %v1706 = vpop.permute.xlu0 %1705
  %1707 = vrot.lane.b32.xlu0 %v116, 110
  %v1708 = vpop.permute.xlu0 %1707
  %1709 = vrot.lane.b32.xlu0 %v108, 110
  %v1710 = vpop.permute.xlu0 %1709
  %1711 = vrot.lane.b32.xlu0 %v117, 110
  %v1712 = vpop.permute.xlu0 %1711
  %1713 = vrot.lane.b32.xlu0 %v109, 110
  %v1714 = vpop.permute.xlu0 %1713
  %1715 = vrot.lane.b32.xlu0 %v118, 110
  %v1716 = vpop.permute.xlu0 %1715
  %1717 = vrot.lane.b32.xlu0 %v110, 110
  %v1718 = vpop.permute.xlu0 %1717
  %vm1719 = vcmp.lt.s32.totalorder %v137, 110
  %v1720 = vsel %vm1719, %v1716, %v1718
  %v1721 = vsel %vm1719, %v1714, %v1716
  %v1722 = vsel %vm1719, %v1712, %v1714
  %v1723 = vsel %vm1719, %v1710, %v1712
  %v1724 = vsel %vm1719, %v1708, %v1710
  %v1725 = vsel %vm1719, %v1706, %v1708
  %v1726 = vsel %vm1719, %v1718, %v1706
  %1728 = vset.pattern.permute.xlu0 0
  %1729 = vperm.xlu0 %1728, %v84
  %v1730 = vpop.permute.xlu0 %1729
  %v1732 = vlaneseq
  %v1733 = vshrl.u32 %v1732, 7
  %v1734 = vsub.s32 0, %v1733
  %v1735 = vrot.slane %v1725, %v1734
  %v1736 = vlaneseq
  %v1737 = vshrl.u32 %v1736, 7
  %v1738 = vsub.s32 0, %v1737
  %v1739 = vrot.slane %v1724, %v1738
  %v1740 = vlaneseq
  %v1741 = vshrl.u32 %v1740, 7
  %v1742 = vsub.s32 0, %v1741
  %v1743 = vrot.slane %v1723, %v1742
  %v1744 = vlaneseq
  %v1745 = vshrl.u32 %v1744, 7
  %v1746 = vsub.s32 0, %v1745
  %v1747 = vrot.slane %v1722, %v1746
  %v1748 = vlaneseq
  %v1749 = vshrl.u32 %v1748, 7
  %v1750 = vsub.s32 0, %v1749
  %v1751 = vrot.slane %v1721, %v1750
  %v1752 = vlaneseq
  %v1753 = vshrl.u32 %v1752, 7
  %v1754 = vsub.s32 0, %v1753
  %v1755 = vrot.slane %v1720, %v1754
  %v1756 = vlaneseq
  %v1757 = vshrl.u32 %v1756, 7
  %v1758 = vsub.s32 0, %v1757
  %v1759 = vrot.slane %v1726, %v1758
  %v1760 = vmul.f32 %v1730, %v1735
  %v1761 = vmul.f32 %v1730, %v1739
  %v1762 = vmul.f32 %v1730, %v1743
  %v1763 = vmul.f32 %v1730, %v1747
  %v1764 = vmul.f32 %v1730, %v1751
  %v1765 = vmul.f32 %v1730, %v1755
  %v1766 = vmul.f32 %v1730, %v1759
  %v1767 = vadd.f32 %v1698, %v1760
  %v1768 = vadd.f32 %v1699, %v1761
  %v1769 = vadd.f32 %v1700, %v1762
  %v1770 = vadd.f32 %v1701, %v1763
  %v1771 = vadd.f32 %v1702, %v1764
  %v1772 = vadd.f32 %v1703, %v1765
  %v1773 = vadd.f32 %v1704, %v1766
  %1775 = vset.pattern.permute.xlu0 0
  %1776 = vperm.xlu0 %1775, %v86
  %v1777 = vpop.permute.xlu0 %1776
  %v1779 = vlaneseq
  %v1780 = vshrl.u32 %v1779, 7
  %v1781 = vsub.s32 1, %v1780
  %v1782 = vrot.slane %v1725, %v1781
  %v1783 = vlaneseq
  %v1784 = vshrl.u32 %v1783, 7
  %v1785 = vsub.s32 1, %v1784
  %v1786 = vrot.slane %v1724, %v1785
  %v1787 = vlaneseq
  %v1788 = vshrl.u32 %v1787, 7
  %v1789 = vsub.s32 1, %v1788
  %v1790 = vrot.slane %v1723, %v1789
  %v1791 = vlaneseq
  %v1792 = vshrl.u32 %v1791, 7
  %v1793 = vsub.s32 1, %v1792
  %v1794 = vrot.slane %v1722, %v1793
  %v1795 = vlaneseq
  %v1796 = vshrl.u32 %v1795, 7
  %v1797 = vsub.s32 1, %v1796
  %v1798 = vrot.slane %v1721, %v1797
  %v1799 = vlaneseq
  %v1800 = vshrl.u32 %v1799, 7
  %v1801 = vsub.s32 1, %v1800
  %v1802 = vrot.slane %v1720, %v1801
  %v1803 = vlaneseq
  %v1804 = vshrl.u32 %v1803, 7
  %v1805 = vsub.s32 1, %v1804
  %v1806 = vrot.slane %v1726, %v1805
  %v1807 = vmul.f32 %v1777, %v1782
  %v1808 = vmul.f32 %v1777, %v1786
  %v1809 = vmul.f32 %v1777, %v1790
  %v1810 = vmul.f32 %v1777, %v1794
  %v1811 = vmul.f32 %v1777, %v1798
  %v1812 = vmul.f32 %v1777, %v1802
  %v1813 = vmul.f32 %v1777, %v1806
  %v1814 = vadd.f32 %v1767, %v1807
  %v1815 = vadd.f32 %v1768, %v1808
  %v1816 = vadd.f32 %v1769, %v1809
  %v1817 = vadd.f32 %v1770, %v1810
  %v1818 = vadd.f32 %v1771, %v1811
  %v1819 = vadd.f32 %v1772, %v1812
  %v1820 = vadd.f32 %v1773, %v1813
  %1822 = vset.pattern.permute.xlu0 0
  %1823 = vperm.xlu0 %1822, %v88
  %v1824 = vpop.permute.xlu0 %1823
  %v1826 = vlaneseq
  %v1827 = vshrl.u32 %v1826, 7
  %v1828 = vsub.s32 2, %v1827
  %v1829 = vrot.slane %v1725, %v1828
  %v1830 = vlaneseq
  %v1831 = vshrl.u32 %v1830, 7
  %v1832 = vsub.s32 2, %v1831
  %v1833 = vrot.slane %v1724, %v1832
  %v1834 = vlaneseq
  %v1835 = vshrl.u32 %v1834, 7
  %v1836 = vsub.s32 2, %v1835
  %v1837 = vrot.slane %v1723, %v1836
  %v1838 = vlaneseq
  %v1839 = vshrl.u32 %v1838, 7
  %v1840 = vsub.s32 2, %v1839
  %v1841 = vrot.slane %v1722, %v1840
  %v1842 = vlaneseq
  %v1843 = vshrl.u32 %v1842, 7
  %v1844 = vsub.s32 2, %v1843
  %v1845 = vrot.slane %v1721, %v1844
  %v1846 = vlaneseq
  %v1847 = vshrl.u32 %v1846, 7
  %v1848 = vsub.s32 2, %v1847
  %v1849 = vrot.slane %v1720, %v1848
  %v1850 = vlaneseq
  %v1851 = vshrl.u32 %v1850, 7
  %v1852 = vsub.s32 2, %v1851
  %v1853 = vrot.slane %v1726, %v1852
  %v1854 = vmul.f32 %v1824, %v1829
  %v1855 = vmul.f32 %v1824, %v1833
  %v1856 = vmul.f32 %v1824, %v1837
  %v1857 = vmul.f32 %v1824, %v1841
  %v1858 = vmul.f32 %v1824, %v1845
  %v1859 = vmul.f32 %v1824, %v1849
  %v1860 = vmul.f32 %v1824, %v1853
  %v1861 = vadd.f32 %v1814, %v1854
  %v1862 = vadd.f32 %v1815, %v1855
  %v1863 = vadd.f32 %v1816, %v1856
  %v1864 = vadd.f32 %v1817, %v1857
  %v1865 = vadd.f32 %v1818, %v1858
  %v1866 = vadd.f32 %v1819, %v1859
  %v1867 = vadd.f32 %v1820, %v1860
  %1869 = vset.pattern.permute.xlu0 0
  %1870 = vperm.xlu0 %1869, %v90
  %v1871 = vpop.permute.xlu0 %1870
  %v1873 = vlaneseq
  %v1874 = vshrl.u32 %v1873, 7
  %v1875 = vsub.s32 3, %v1874
  %v1876 = vrot.slane %v1725, %v1875
  %v1877 = vlaneseq
  %v1878 = vshrl.u32 %v1877, 7
  %v1879 = vsub.s32 3, %v1878
  %v1880 = vrot.slane %v1724, %v1879
  %v1881 = vlaneseq
  %v1882 = vshrl.u32 %v1881, 7
  %v1883 = vsub.s32 3, %v1882
  %v1884 = vrot.slane %v1723, %v1883
  %v1885 = vlaneseq
  %v1886 = vshrl.u32 %v1885, 7
  %v1887 = vsub.s32 3, %v1886
  %v1888 = vrot.slane %v1722, %v1887
  %v1889 = vlaneseq
  %v1890 = vshrl.u32 %v1889, 7
  %v1891 = vsub.s32 3, %v1890
  %v1892 = vrot.slane %v1721, %v1891
  %v1893 = vlaneseq
  %v1894 = vshrl.u32 %v1893, 7
  %v1895 = vsub.s32 3, %v1894
  %v1896 = vrot.slane %v1720, %v1895
  %v1897 = vlaneseq
  %v1898 = vshrl.u32 %v1897, 7
  %v1899 = vsub.s32 3, %v1898
  %v1900 = vrot.slane %v1726, %v1899
  %v1901 = vmul.f32 %v1871, %v1876
  %v1902 = vmul.f32 %v1871, %v1880
  %v1903 = vmul.f32 %v1871, %v1884
  %v1904 = vmul.f32 %v1871, %v1888
  %v1905 = vmul.f32 %v1871, %v1892
  %v1906 = vmul.f32 %v1871, %v1896
  %v1907 = vmul.f32 %v1871, %v1900
  %v1908 = vadd.f32 %v1861, %v1901
  %v1909 = vadd.f32 %v1862, %v1902
  %v1910 = vadd.f32 %v1863, %v1903
  %v1911 = vadd.f32 %v1864, %v1904
  %v1912 = vadd.f32 %v1865, %v1905
  %v1913 = vadd.f32 %v1866, %v1906
  %v1914 = vadd.f32 %v1867, %v1907
  %1915 = vrot.lane.b32.xlu0 %v107, 109
  %v1916 = vpop.permute.xlu0 %1915
  %1917 = vrot.lane.b32.xlu0 %v116, 109
  %v1918 = vpop.permute.xlu0 %1917
  %1919 = vrot.lane.b32.xlu0 %v108, 109
  %v1920 = vpop.permute.xlu0 %1919
  %1921 = vrot.lane.b32.xlu0 %v117, 109
  %v1922 = vpop.permute.xlu0 %1921
  %1923 = vrot.lane.b32.xlu0 %v109, 109
  %v1924 = vpop.permute.xlu0 %1923
  %1925 = vrot.lane.b32.xlu0 %v118, 109
  %v1926 = vpop.permute.xlu0 %1925
  %1927 = vrot.lane.b32.xlu0 %v110, 109
  %v1928 = vpop.permute.xlu0 %1927
  %vm1929 = vcmp.lt.s32.totalorder %v137, 109
  %v1930 = vsel %vm1929, %v1926, %v1928
  %v1931 = vsel %vm1929, %v1924, %v1926
  %v1932 = vsel %vm1929, %v1922, %v1924
  %v1933 = vsel %vm1929, %v1920, %v1922
  %v1934 = vsel %vm1929, %v1918, %v1920
  %v1935 = vsel %vm1929, %v1916, %v1918
  %v1936 = vsel %vm1929, %v1928, %v1916
  %1938 = vset.pattern.permute.xlu0 0
  %1939 = vperm.xlu0 %1938, %v92
  %v1940 = vpop.permute.xlu0 %1939
  %v1942 = vlaneseq
  %v1943 = vshrl.u32 %v1942, 7
  %v1944 = vsub.s32 0, %v1943
  %v1945 = vrot.slane %v1935, %v1944
  %v1946 = vlaneseq
  %v1947 = vshrl.u32 %v1946, 7
  %v1948 = vsub.s32 0, %v1947
  %v1949 = vrot.slane %v1934, %v1948
  %v1950 = vlaneseq
  %v1951 = vshrl.u32 %v1950, 7
  %v1952 = vsub.s32 0, %v1951
  %v1953 = vrot.slane %v1933, %v1952
  %v1954 = vlaneseq
  %v1955 = vshrl.u32 %v1954, 7
  %v1956 = vsub.s32 0, %v1955
  %v1957 = vrot.slane %v1932, %v1956
  %v1958 = vlaneseq
  %v1959 = vshrl.u32 %v1958, 7
  %v1960 = vsub.s32 0, %v1959
  %v1961 = vrot.slane %v1931, %v1960
  %v1962 = vlaneseq
  %v1963 = vshrl.u32 %v1962, 7
  %v1964 = vsub.s32 0, %v1963
  %v1965 = vrot.slane %v1930, %v1964
  %v1966 = vlaneseq
  %v1967 = vshrl.u32 %v1966, 7
  %v1968 = vsub.s32 0, %v1967
  %v1969 = vrot.slane %v1936, %v1968
  %v1970 = vmul.f32 %v1940, %v1945
  %v1971 = vmul.f32 %v1940, %v1949
  %v1972 = vmul.f32 %v1940, %v1953
  %v1973 = vmul.f32 %v1940, %v1957
  %v1974 = vmul.f32 %v1940, %v1961
  %v1975 = vmul.f32 %v1940, %v1965
  %v1976 = vmul.f32 %v1940, %v1969
  %v1977 = vadd.f32 %v1908, %v1970
  %v1978 = vadd.f32 %v1909, %v1971
  %v1979 = vadd.f32 %v1910, %v1972
  %v1980 = vadd.f32 %v1911, %v1973
  %v1981 = vadd.f32 %v1912, %v1974
  %v1982 = vadd.f32 %v1913, %v1975
  %v1983 = vadd.f32 %v1914, %v1976
  %1985 = vset.pattern.permute.xlu0 0
  %1986 = vperm.xlu0 %1985, %v94
  %v1987 = vpop.permute.xlu0 %1986
  %v1989 = vlaneseq
  %v1990 = vshrl.u32 %v1989, 7
  %v1991 = vsub.s32 1, %v1990
  %v1992 = vrot.slane %v1935, %v1991
  %v1993 = vlaneseq
  %v1994 = vshrl.u32 %v1993, 7
  %v1995 = vsub.s32 1, %v1994
  %v1996 = vrot.slane %v1934, %v1995
  %v1997 = vlaneseq
  %v1998 = vshrl.u32 %v1997, 7
  %v1999 = vsub.s32 1, %v1998
  %v2000 = vrot.slane %v1933, %v1999
  %v2001 = vlaneseq
  %v2002 = vshrl.u32 %v2001, 7
  %v2003 = vsub.s32 1, %v2002
  %v2004 = vrot.slane %v1932, %v2003
  %v2005 = vlaneseq
  %v2006 = vshrl.u32 %v2005, 7
  %v2007 = vsub.s32 1, %v2006
  %v2008 = vrot.slane %v1931, %v2007
  %v2009 = vlaneseq
  %v2010 = vshrl.u32 %v2009, 7
  %v2011 = vsub.s32 1, %v2010
  %v2012 = vrot.slane %v1930, %v2011
  %v2013 = vlaneseq
  %v2014 = vshrl.u32 %v2013, 7
  %v2015 = vsub.s32 1, %v2014
  %v2016 = vrot.slane %v1936, %v2015
  %v2017 = vmul.f32 %v1987, %v1992
  %v2018 = vmul.f32 %v1987, %v1996
  %v2019 = vmul.f32 %v1987, %v2000
  %v2020 = vmul.f32 %v1987, %v2004
  %v2021 = vmul.f32 %v1987, %v2008
  %v2022 = vmul.f32 %v1987, %v2012
  %v2023 = vmul.f32 %v1987, %v2016
  %v2024 = vadd.f32 %v1977, %v2017
  %v2025 = vadd.f32 %v1978, %v2018
  %v2026 = vadd.f32 %v1979, %v2019
  %v2027 = vadd.f32 %v1980, %v2020
  %v2028 = vadd.f32 %v1981, %v2021
  %v2029 = vadd.f32 %v1982, %v2022
  %v2030 = vadd.f32 %v1983, %v2023
  %2032 = vset.pattern.permute.xlu0 0
  %2033 = vperm.xlu0 %2032, %v96
  %v2034 = vpop.permute.xlu0 %2033
  %v2036 = vlaneseq
  %v2037 = vshrl.u32 %v2036, 7
  %v2038 = vsub.s32 2, %v2037
  %v2039 = vrot.slane %v1935, %v2038
  %v2040 = vlaneseq
  %v2041 = vshrl.u32 %v2040, 7
  %v2042 = vsub.s32 2, %v2041
  %v2043 = vrot.slane %v1934, %v2042
  %v2044 = vlaneseq
  %v2045 = vshrl.u32 %v2044, 7
  %v2046 = vsub.s32 2, %v2045
  %v2047 = vrot.slane %v1933, %v2046
  %v2048 = vlaneseq
  %v2049 = vshrl.u32 %v2048, 7
  %v2050 = vsub.s32 2, %v2049
  %v2051 = vrot.slane %v1932, %v2050
  %v2052 = vlaneseq
  %v2053 = vshrl.u32 %v2052, 7
  %v2054 = vsub.s32 2, %v2053
  %v2055 = vrot.slane %v1931, %v2054
  %v2056 = vlaneseq
  %v2057 = vshrl.u32 %v2056, 7
  %v2058 = vsub.s32 2, %v2057
  %v2059 = vrot.slane %v1930, %v2058
  %v2060 = vlaneseq
  %v2061 = vshrl.u32 %v2060, 7
  %v2062 = vsub.s32 2, %v2061
  %v2063 = vrot.slane %v1936, %v2062
  %v2064 = vmul.f32 %v2034, %v2039
  %v2065 = vmul.f32 %v2034, %v2043
  %v2066 = vmul.f32 %v2034, %v2047
  %v2067 = vmul.f32 %v2034, %v2051
  %v2068 = vmul.f32 %v2034, %v2055
  %v2069 = vmul.f32 %v2034, %v2059
  %v2070 = vmul.f32 %v2034, %v2063
  %v2071 = vadd.f32 %v2024, %v2064
  %v2072 = vadd.f32 %v2025, %v2065
  %v2073 = vadd.f32 %v2026, %v2066
  %v2074 = vadd.f32 %v2027, %v2067
  %v2075 = vadd.f32 %v2028, %v2068
  %v2076 = vadd.f32 %v2029, %v2069
  %v2077 = vadd.f32 %v2030, %v2070
  %2079 = vset.pattern.permute.xlu0 0
  %2080 = vperm.xlu0 %2079, %v98
  %v2081 = vpop.permute.xlu0 %2080
  %v2083 = vlaneseq
  %v2084 = vshrl.u32 %v2083, 7
  %v2085 = vsub.s32 3, %v2084
  %v2086 = vrot.slane %v1935, %v2085
  %v2087 = vlaneseq
  %v2088 = vshrl.u32 %v2087, 7
  %v2089 = vsub.s32 3, %v2088
  %v2090 = vrot.slane %v1934, %v2089
  %v2091 = vlaneseq
  %v2092 = vshrl.u32 %v2091, 7
  %v2093 = vsub.s32 3, %v2092
  %v2094 = vrot.slane %v1933, %v2093
  %v2095 = vlaneseq
  %v2096 = vshrl.u32 %v2095, 7
  %v2097 = vsub.s32 3, %v2096
  %v2098 = vrot.slane %v1932, %v2097
  %v2099 = vlaneseq
  %v2100 = vshrl.u32 %v2099, 7
  %v2101 = vsub.s32 3, %v2100
  %v2102 = vrot.slane %v1931, %v2101
  %v2103 = vlaneseq
  %v2104 = vshrl.u32 %v2103, 7
  %v2105 = vsub.s32 3, %v2104
  %v2106 = vrot.slane %v1930, %v2105
  %v2107 = vlaneseq
  %v2108 = vshrl.u32 %v2107, 7
  %v2109 = vsub.s32 3, %v2108
  %v2110 = vrot.slane %v1936, %v2109
  %v2111 = vmul.f32 %v2081, %v2086
  %v2112 = vmul.f32 %v2081, %v2090
  %v2113 = vmul.f32 %v2081, %v2094
  %v2114 = vmul.f32 %v2081, %v2098
  %v2115 = vmul.f32 %v2081, %v2102
  %v2116 = vmul.f32 %v2081, %v2106
  %v2117 = vmul.f32 %v2081, %v2110
  %v2118 = vadd.f32 %v2071, %v2111
  %v2119 = vadd.f32 %v2072, %v2112
  %v2120 = vadd.f32 %v2073, %v2113
  %v2121 = vadd.f32 %v2074, %v2114
  %v2122 = vadd.f32 %v2075, %v2115
  %v2123 = vadd.f32 %v2076, %v2116
  %v2124 = vadd.f32 %v2077, %v2117
  %2126 = vset.pattern.permute.xlu0 0
  %2127 = vperm.xlu0 %2126, %v106
  %v2128 = vpop.permute.xlu0 %2127
  %v2130 = vadd.f32 %v2118, %v2128
  %v2131 = vadd.f32 %v2119, %v2128
  %v2132 = vadd.f32 %v2120, %v2128
  %v2133 = vadd.f32 %v2121, %v2128
  %v2134 = vadd.f32 %v2122, %v2128
  %v2135 = vadd.f32 %v2123, %v2128
  %v2136 = vadd.f32 %v2124, %v2128
  %v2137 = vmax.f32 %v2130, 0.0
  %v2138 = vmax.f32 %v2131, 0.0
  %v2139 = vmax.f32 %v2132, 0.0
  %v2140 = vmax.f32 %v2133, 0.0
  %v2141 = vmax.f32 %v2134, 0.0
  %v2142 = vmax.f32 %v2135, 0.0
  %v2143 = vmax.f32 %v2136, 0.0
  %2145 = vset.pattern.permute.xlu0 0
  %2146 = vperm.xlu0 %2145, %v99
  %v2147 = vpop.permute.xlu0 %2146
  %v2149 = vlaneseq
  %v2150 = vshrl.u32 %v2149, 7
  %v2151 = vsub.s32 0, %v2150
  %v2152 = vrot.slane %v2137, %v2151
  %v2153 = vlaneseq
  %v2154 = vshrl.u32 %v2153, 7
  %v2155 = vsub.s32 0, %v2154
  %v2156 = vrot.slane %v2138, %v2155
  %v2157 = vlaneseq
  %v2158 = vshrl.u32 %v2157, 7
  %v2159 = vsub.s32 0, %v2158
  %v2160 = vrot.slane %v2139, %v2159
  %v2161 = vlaneseq
  %v2162 = vshrl.u32 %v2161, 7
  %v2163 = vsub.s32 0, %v2162
  %v2164 = vrot.slane %v2140, %v2163
  %v2165 = vlaneseq
  %v2166 = vshrl.u32 %v2165, 7
  %v2167 = vsub.s32 0, %v2166
  %v2168 = vrot.slane %v2141, %v2167
  %v2169 = vlaneseq
  %v2170 = vshrl.u32 %v2169, 7
  %v2171 = vsub.s32 0, %v2170
  %v2172 = vrot.slane %v2142, %v2171
  %v2173 = vlaneseq
  %v2174 = vshrl.u32 %v2173, 7
  %v2175 = vsub.s32 0, %v2174
  %v2176 = vrot.slane %v2143, %v2175
  %v2177 = vmul.f32 %v2147, %v2152
  %v2178 = vmul.f32 %v2147, %v2156
  %v2179 = vmul.f32 %v2147, %v2160
  %v2180 = vmul.f32 %v2147, %v2164
  %v2181 = vmul.f32 %v2147, %v2168
  %v2182 = vmul.f32 %v2147, %v2172
  %v2183 = vmul.f32 %v2147, %v2176
  %2185 = vset.pattern.permute.xlu0 0
  %2186 = vperm.xlu0 %2185, %v101
  %v2187 = vpop.permute.xlu0 %2186
  %v2189 = vlaneseq
  %v2190 = vshrl.u32 %v2189, 7
  %v2191 = vsub.s32 1, %v2190
  %v2192 = vrot.slane %v2137, %v2191
  %v2193 = vlaneseq
  %v2194 = vshrl.u32 %v2193, 7
  %v2195 = vsub.s32 1, %v2194
  %v2196 = vrot.slane %v2138, %v2195
  %v2197 = vlaneseq
  %v2198 = vshrl.u32 %v2197, 7
  %v2199 = vsub.s32 1, %v2198
  %v2200 = vrot.slane %v2139, %v2199
  %v2201 = vlaneseq
  %v2202 = vshrl.u32 %v2201, 7
  %v2203 = vsub.s32 1, %v2202
  %v2204 = vrot.slane %v2140, %v2203
  %v2205 = vlaneseq
  %v2206 = vshrl.u32 %v2205, 7
  %v2207 = vsub.s32 1, %v2206
  %v2208 = vrot.slane %v2141, %v2207
  %v2209 = vlaneseq
  %v2210 = vshrl.u32 %v2209, 7
  %v2211 = vsub.s32 1, %v2210
  %v2212 = vrot.slane %v2142, %v2211
  %v2213 = vlaneseq
  %v2214 = vshrl.u32 %v2213, 7
  %v2215 = vsub.s32 1, %v2214
  %v2216 = vrot.slane %v2143, %v2215
  %v2217 = vmul.f32 %v2187, %v2192
  %v2218 = vmul.f32 %v2187, %v2196
  %v2219 = vmul.f32 %v2187, %v2200
  %v2220 = vmul.f32 %v2187, %v2204
  %v2221 = vmul.f32 %v2187, %v2208
  %v2222 = vmul.f32 %v2187, %v2212
  %v2223 = vmul.f32 %v2187, %v2216
  %v2224 = vadd.f32 %v2177, %v2217
  %v2225 = vadd.f32 %v2178, %v2218
  %v2226 = vadd.f32 %v2179, %v2219
  %v2227 = vadd.f32 %v2180, %v2220
  %v2228 = vadd.f32 %v2181, %v2221
  %v2229 = vadd.f32 %v2182, %v2222
  %v2230 = vadd.f32 %v2183, %v2223
  %2232 = vset.pattern.permute.xlu0 0
  %2233 = vperm.xlu0 %2232, %v103
  %v2234 = vpop.permute.xlu0 %2233
  %v2236 = vlaneseq
  %v2237 = vshrl.u32 %v2236, 7
  %v2238 = vsub.s32 2, %v2237
  %v2239 = vrot.slane %v2137, %v2238
  %v2240 = vlaneseq
  %v2241 = vshrl.u32 %v2240, 7
  %v2242 = vsub.s32 2, %v2241
  %v2243 = vrot.slane %v2138, %v2242
  %v2244 = vlaneseq
  %v2245 = vshrl.u32 %v2244, 7
  %v2246 = vsub.s32 2, %v2245
  %v2247 = vrot.slane %v2139, %v2246
  %v2248 = vlaneseq
  %v2249 = vshrl.u32 %v2248, 7
  %v2250 = vsub.s32 2, %v2249
  %v2251 = vrot.slane %v2140, %v2250
  %v2252 = vlaneseq
  %v2253 = vshrl.u32 %v2252, 7
  %v2254 = vsub.s32 2, %v2253
  %v2255 = vrot.slane %v2141, %v2254
  %v2256 = vlaneseq
  %v2257 = vshrl.u32 %v2256, 7
  %v2258 = vsub.s32 2, %v2257
  %v2259 = vrot.slane %v2142, %v2258
  %v2260 = vlaneseq
  %v2261 = vshrl.u32 %v2260, 7
  %v2262 = vsub.s32 2, %v2261
  %v2263 = vrot.slane %v2143, %v2262
  %v2264 = vmul.f32 %v2234, %v2239
  %v2265 = vmul.f32 %v2234, %v2243
  %v2266 = vmul.f32 %v2234, %v2247
  %v2267 = vmul.f32 %v2234, %v2251
  %v2268 = vmul.f32 %v2234, %v2255
  %v2269 = vmul.f32 %v2234, %v2259
  %v2270 = vmul.f32 %v2234, %v2263
  %v2271 = vadd.f32 %v2224, %v2264
  %v2272 = vadd.f32 %v2225, %v2265
  %v2273 = vadd.f32 %v2226, %v2266
  %v2274 = vadd.f32 %v2227, %v2267
  %v2275 = vadd.f32 %v2228, %v2268
  %v2276 = vadd.f32 %v2229, %v2269
  %v2277 = vadd.f32 %v2230, %v2270
  %2279 = vset.pattern.permute.xlu0 0
  %2280 = vperm.xlu0 %2279, %v105
  %v2281 = vpop.permute.xlu0 %2280
  %v2283 = vlaneseq
  %v2284 = vshrl.u32 %v2283, 7
  %v2285 = vsub.s32 3, %v2284
  %v2286 = vrot.slane %v2137, %v2285
  %v2287 = vlaneseq
  %v2288 = vshrl.u32 %v2287, 7
  %v2289 = vsub.s32 3, %v2288
  %v2290 = vrot.slane %v2138, %v2289
  %v2291 = vlaneseq
  %v2292 = vshrl.u32 %v2291, 7
  %v2293 = vsub.s32 3, %v2292
  %v2294 = vrot.slane %v2139, %v2293
  %v2295 = vlaneseq
  %v2296 = vshrl.u32 %v2295, 7
  %v2297 = vsub.s32 3, %v2296
  %v2298 = vrot.slane %v2140, %v2297
  %v2299 = vlaneseq
  %v2300 = vshrl.u32 %v2299, 7
  %v2301 = vsub.s32 3, %v2300
  %v2302 = vrot.slane %v2141, %v2301
  %v2303 = vlaneseq
  %v2304 = vshrl.u32 %v2303, 7
  %v2305 = vsub.s32 3, %v2304
  %v2306 = vrot.slane %v2142, %v2305
  %v2307 = vlaneseq
  %v2308 = vshrl.u32 %v2307, 7
  %v2309 = vsub.s32 3, %v2308
  %v2310 = vrot.slane %v2143, %v2309
  %v2311 = vmul.f32 %v2281, %v2286
  %v2312 = vmul.f32 %v2281, %v2290
  %v2313 = vmul.f32 %v2281, %v2294
  %v2314 = vmul.f32 %v2281, %v2298
  %v2315 = vmul.f32 %v2281, %v2302
  %v2316 = vmul.f32 %v2281, %v2306
  %v2317 = vmul.f32 %v2281, %v2310
  %v2318 = vadd.f32 %v2271, %v2311
  %v2319 = vadd.f32 %v2272, %v2312
  %v2320 = vadd.f32 %v2273, %v2313
  %v2321 = vadd.f32 %v2274, %v2314
  %v2322 = vadd.f32 %v2275, %v2315
  %v2323 = vadd.f32 %v2276, %v2316
  %v2324 = vadd.f32 %v2277, %v2317
  %v2326 = vlaneseq
  %v2327 = vshrl.u32 %v2326, 7
  %v2328 = vsub.s32 0, %v2327
  %v2329 = vrot.slane %v111, %v2328
  %v2330 = vlaneseq
  %v2331 = vshrl.u32 %v2330, 7
  %v2332 = vsub.s32 1, %v2331
  %v2333 = vrot.slane %v111, %v2332
  %v2334 = vlaneseq
  %v2335 = vshrl.u32 %v2334, 7
  %v2336 = vsub.s32 2, %v2335
  %v2337 = vrot.slane %v111, %v2336
  %v2338 = vlaneseq
  %v2339 = vshrl.u32 %v2338, 7
  %v2340 = vsub.s32 3, %v2339
  %v2341 = vrot.slane %v111, %v2340
  %v2342 = vlaneseq
  %v2343 = vshrl.u32 %v2342, 7
  %v2344 = vsub.s32 4, %v2343
  %v2345 = vrot.slane %v111, %v2344
  %v2346 = vlaneseq
  %v2347 = vshrl.u32 %v2346, 7
  %v2348 = vsub.s32 5, %v2347
  %v2349 = vrot.slane %v111, %v2348
  %v2350 = vlaneseq
  %v2351 = vshrl.u32 %v2350, 7
  %v2352 = vsub.s32 6, %v2351
  %v2353 = vrot.slane %v111, %v2352
  %v2361 = vmul.f32 %v2318, %v2329
  %v2362 = vmul.f32 %v2319, %v2333
  %v2363 = vmul.f32 %v2320, %v2337
  %v2364 = vmul.f32 %v2321, %v2341
  %v2365 = vmul.f32 %v2322, %v2345
  %v2366 = vmul.f32 %v2323, %v2349
  %v2367 = vmul.f32 %v2324, %v2353
  %v2374 = vcombine.low %v2361, %v2362
  %v2375 = vcombine.low %v2363, %v2364
  %v2376 = vcombine.low %v2365, %v2366
  %v2380 = vadd.f32 %v107, %v2374
  %v2381 = vadd.f32 %v108, %v2375
  %v2382 = vadd.f32 %v109, %v2376
  %v2383 = vadd.f32 %v110, %v2367
  %2384 = vst [vmem:[%s5] sm:$0xff] %v2380
  %2385 = vst [vmem:[%s5 + $0x8] sm:$0xff] %v2381
  %2386 = vst [vmem:[%s5 + $0x10] sm:$0xff] %v2382
  %2387 = vst [vmem:[%s5 + $0x18] sm:$0xf] %v2383
  %v2388 = vld [vmem:[%s5] sm:$0xff]
  %v2389 = vld [vmem:[%s5 + $0x8] sm:$0xff]
  %v2390 = vld [vmem:[%s5 + $0x10] sm:$0xff]
  %v2391 = vld [vmem:[%s5 + $0x18] sm:$0xf]
  %s2392 = scalar_lea.vmem %s4, 7
  %v2393 = vld [vmem:[%s2392] sm:$0xff]
  %v2398 = vcombine.high %v2388, %v2388
  %v2399 = vcombine.high %v2389, %v2389
  %v2400 = vcombine.high %v2390, %v2390
  %2404 = vrot.lane.b32.xlu0 %v2388, 19
  %v2405 = vpop.permute.xlu0 %2404
  %2406 = vrot.lane.b32.xlu0 %v2398, 19
  %v2407 = vpop.permute.xlu0 %2406
  %2408 = vrot.lane.b32.xlu0 %v2389, 19
  %v2409 = vpop.permute.xlu0 %2408
  %2410 = vrot.lane.b32.xlu0 %v2399, 19
  %v2411 = vpop.permute.xlu0 %2410
  %2412 = vrot.lane.b32.xlu0 %v2390, 19
  %v2413 = vpop.permute.xlu0 %2412
  %2414 = vrot.lane.b32.xlu0 %v2400, 19
  %v2415 = vpop.permute.xlu0 %2414
  %2416 = vrot.lane.b32.xlu0 %v2391, 19
  %v2417 = vpop.permute.xlu0 %2416
  %v2418 = vsel %vm138, %v2415, %v2417
  %v2419 = vsel %vm138, %v2413, %v2415
  %v2420 = vsel %vm138, %v2411, %v2413
  %v2421 = vsel %vm138, %v2409, %v2411
  %v2422 = vsel %vm138, %v2407, %v2409
  %v2423 = vsel %vm138, %v2405, %v2407
  %v2424 = vsel %vm138, %v2417, %v2405
  %v2425 = vlaneseq
  %v2426 = vshrl.u32 %v2425, 7
  %v2427 = vsub.s32 0, %v2426
  %v2428 = vrot.slane %v2424, %v2427
  %v2429 = vlaneseq
  %v2430 = vshrl.u32 %v2429, 7
  %v2431 = vsub.s32 0, %v2430
  %v2432 = vrot.slane %v2423, %v2431
  %v2433 = vlaneseq
  %v2434 = vshrl.u32 %v2433, 7
  %v2435 = vsub.s32 0, %v2434
  %v2436 = vrot.slane %v2422, %v2435
  %v2437 = vlaneseq
  %v2438 = vshrl.u32 %v2437, 7
  %v2439 = vsub.s32 0, %v2438
  %v2440 = vrot.slane %v2421, %v2439
  %v2441 = vlaneseq
  %v2442 = vshrl.u32 %v2441, 7
  %v2443 = vsub.s32 0, %v2442
  %v2444 = vrot.slane %v2420, %v2443
  %v2445 = vlaneseq
  %v2446 = vshrl.u32 %v2445, 7
  %v2447 = vsub.s32 0, %v2446
  %v2448 = vrot.slane %v2419, %v2447
  %v2449 = vlaneseq
  %v2450 = vshrl.u32 %v2449, 7
  %v2451 = vsub.s32 0, %v2450
  %v2452 = vrot.slane %v2418, %v2451
  %v2453 = vmul.f32 %v149, %v2428
  %v2454 = vmul.f32 %v149, %v2432
  %v2455 = vmul.f32 %v149, %v2436
  %v2456 = vmul.f32 %v149, %v2440
  %v2457 = vmul.f32 %v149, %v2444
  %v2458 = vmul.f32 %v149, %v2448
  %v2459 = vmul.f32 %v149, %v2452
  %v2460 = vlaneseq
  %v2461 = vshrl.u32 %v2460, 7
  %v2462 = vsub.s32 1, %v2461
  %v2463 = vrot.slane %v2424, %v2462
  %v2464 = vlaneseq
  %v2465 = vshrl.u32 %v2464, 7
  %v2466 = vsub.s32 1, %v2465
  %v2467 = vrot.slane %v2423, %v2466
  %v2468 = vlaneseq
  %v2469 = vshrl.u32 %v2468, 7
  %v2470 = vsub.s32 1, %v2469
  %v2471 = vrot.slane %v2422, %v2470
  %v2472 = vlaneseq
  %v2473 = vshrl.u32 %v2472, 7
  %v2474 = vsub.s32 1, %v2473
  %v2475 = vrot.slane %v2421, %v2474
  %v2476 = vlaneseq
  %v2477 = vshrl.u32 %v2476, 7
  %v2478 = vsub.s32 1, %v2477
  %v2479 = vrot.slane %v2420, %v2478
  %v2480 = vlaneseq
  %v2481 = vshrl.u32 %v2480, 7
  %v2482 = vsub.s32 1, %v2481
  %v2483 = vrot.slane %v2419, %v2482
  %v2484 = vlaneseq
  %v2485 = vshrl.u32 %v2484, 7
  %v2486 = vsub.s32 1, %v2485
  %v2487 = vrot.slane %v2418, %v2486
  %v2488 = vmul.f32 %v189, %v2463
  %v2489 = vmul.f32 %v189, %v2467
  %v2490 = vmul.f32 %v189, %v2471
  %v2491 = vmul.f32 %v189, %v2475
  %v2492 = vmul.f32 %v189, %v2479
  %v2493 = vmul.f32 %v189, %v2483
  %v2494 = vmul.f32 %v189, %v2487
  %v2495 = vadd.f32 %v2453, %v2488
  %v2496 = vadd.f32 %v2454, %v2489
  %v2497 = vadd.f32 %v2455, %v2490
  %v2498 = vadd.f32 %v2456, %v2491
  %v2499 = vadd.f32 %v2457, %v2492
  %v2500 = vadd.f32 %v2458, %v2493
  %v2501 = vadd.f32 %v2459, %v2494
  %v2502 = vlaneseq
  %v2503 = vshrl.u32 %v2502, 7
  %v2504 = vsub.s32 2, %v2503
  %v2505 = vrot.slane %v2424, %v2504
  %v2506 = vlaneseq
  %v2507 = vshrl.u32 %v2506, 7
  %v2508 = vsub.s32 2, %v2507
  %v2509 = vrot.slane %v2423, %v2508
  %v2510 = vlaneseq
  %v2511 = vshrl.u32 %v2510, 7
  %v2512 = vsub.s32 2, %v2511
  %v2513 = vrot.slane %v2422, %v2512
  %v2514 = vlaneseq
  %v2515 = vshrl.u32 %v2514, 7
  %v2516 = vsub.s32 2, %v2515
  %v2517 = vrot.slane %v2421, %v2516
  %v2518 = vlaneseq
  %v2519 = vshrl.u32 %v2518, 7
  %v2520 = vsub.s32 2, %v2519
  %v2521 = vrot.slane %v2420, %v2520
  %v2522 = vlaneseq
  %v2523 = vshrl.u32 %v2522, 7
  %v2524 = vsub.s32 2, %v2523
  %v2525 = vrot.slane %v2419, %v2524
  %v2526 = vlaneseq
  %v2527 = vshrl.u32 %v2526, 7
  %v2528 = vsub.s32 2, %v2527
  %v2529 = vrot.slane %v2418, %v2528
  %v2530 = vmul.f32 %v236, %v2505
  %v2531 = vmul.f32 %v236, %v2509
  %v2532 = vmul.f32 %v236, %v2513
  %v2533 = vmul.f32 %v236, %v2517
  %v2534 = vmul.f32 %v236, %v2521
  %v2535 = vmul.f32 %v236, %v2525
  %v2536 = vmul.f32 %v236, %v2529
  %v2537 = vadd.f32 %v2495, %v2530
  %v2538 = vadd.f32 %v2496, %v2531
  %v2539 = vadd.f32 %v2497, %v2532
  %v2540 = vadd.f32 %v2498, %v2533
  %v2541 = vadd.f32 %v2499, %v2534
  %v2542 = vadd.f32 %v2500, %v2535
  %v2543 = vadd.f32 %v2501, %v2536
  %v2544 = vlaneseq
  %v2545 = vshrl.u32 %v2544, 7
  %v2546 = vsub.s32 3, %v2545
  %v2547 = vrot.slane %v2424, %v2546
  %v2548 = vlaneseq
  %v2549 = vshrl.u32 %v2548, 7
  %v2550 = vsub.s32 3, %v2549
  %v2551 = vrot.slane %v2423, %v2550
  %v2552 = vlaneseq
  %v2553 = vshrl.u32 %v2552, 7
  %v2554 = vsub.s32 3, %v2553
  %v2555 = vrot.slane %v2422, %v2554
  %v2556 = vlaneseq
  %v2557 = vshrl.u32 %v2556, 7
  %v2558 = vsub.s32 3, %v2557
  %v2559 = vrot.slane %v2421, %v2558
  %v2560 = vlaneseq
  %v2561 = vshrl.u32 %v2560, 7
  %v2562 = vsub.s32 3, %v2561
  %v2563 = vrot.slane %v2420, %v2562
  %v2564 = vlaneseq
  %v2565 = vshrl.u32 %v2564, 7
  %v2566 = vsub.s32 3, %v2565
  %v2567 = vrot.slane %v2419, %v2566
  %v2568 = vlaneseq
  %v2569 = vshrl.u32 %v2568, 7
  %v2570 = vsub.s32 3, %v2569
  %v2571 = vrot.slane %v2418, %v2570
  %v2572 = vmul.f32 %v283, %v2547
  %v2573 = vmul.f32 %v283, %v2551
  %v2574 = vmul.f32 %v283, %v2555
  %v2575 = vmul.f32 %v283, %v2559
  %v2576 = vmul.f32 %v283, %v2563
  %v2577 = vmul.f32 %v283, %v2567
  %v2578 = vmul.f32 %v283, %v2571
  %v2579 = vadd.f32 %v2537, %v2572
  %v2580 = vadd.f32 %v2538, %v2573
  %v2581 = vadd.f32 %v2539, %v2574
  %v2582 = vadd.f32 %v2540, %v2575
  %v2583 = vadd.f32 %v2541, %v2576
  %v2584 = vadd.f32 %v2542, %v2577
  %v2585 = vadd.f32 %v2543, %v2578
  %2586 = vrot.lane.b32.xlu0 %v2388, 18
  %v2587 = vpop.permute.xlu0 %2586
  %2588 = vrot.lane.b32.xlu0 %v2398, 18
  %v2589 = vpop.permute.xlu0 %2588
  %2590 = vrot.lane.b32.xlu0 %v2389, 18
  %v2591 = vpop.permute.xlu0 %2590
  %2592 = vrot.lane.b32.xlu0 %v2399, 18
  %v2593 = vpop.permute.xlu0 %2592
  %2594 = vrot.lane.b32.xlu0 %v2390, 18
  %v2595 = vpop.permute.xlu0 %2594
  %2596 = vrot.lane.b32.xlu0 %v2400, 18
  %v2597 = vpop.permute.xlu0 %2596
  %2598 = vrot.lane.b32.xlu0 %v2391, 18
  %v2599 = vpop.permute.xlu0 %2598
  %v2600 = vsel %vm341, %v2597, %v2599
  %v2601 = vsel %vm341, %v2595, %v2597
  %v2602 = vsel %vm341, %v2593, %v2595
  %v2603 = vsel %vm341, %v2591, %v2593
  %v2604 = vsel %vm341, %v2589, %v2591
  %v2605 = vsel %vm341, %v2587, %v2589
  %v2606 = vsel %vm341, %v2599, %v2587
  %v2607 = vlaneseq
  %v2608 = vshrl.u32 %v2607, 7
  %v2609 = vsub.s32 0, %v2608
  %v2610 = vrot.slane %v2606, %v2609
  %v2611 = vlaneseq
  %v2612 = vshrl.u32 %v2611, 7
  %v2613 = vsub.s32 0, %v2612
  %v2614 = vrot.slane %v2605, %v2613
  %v2615 = vlaneseq
  %v2616 = vshrl.u32 %v2615, 7
  %v2617 = vsub.s32 0, %v2616
  %v2618 = vrot.slane %v2604, %v2617
  %v2619 = vlaneseq
  %v2620 = vshrl.u32 %v2619, 7
  %v2621 = vsub.s32 0, %v2620
  %v2622 = vrot.slane %v2603, %v2621
  %v2623 = vlaneseq
  %v2624 = vshrl.u32 %v2623, 7
  %v2625 = vsub.s32 0, %v2624
  %v2626 = vrot.slane %v2602, %v2625
  %v2627 = vlaneseq
  %v2628 = vshrl.u32 %v2627, 7
  %v2629 = vsub.s32 0, %v2628
  %v2630 = vrot.slane %v2601, %v2629
  %v2631 = vlaneseq
  %v2632 = vshrl.u32 %v2631, 7
  %v2633 = vsub.s32 0, %v2632
  %v2634 = vrot.slane %v2600, %v2633
  %v2635 = vmul.f32 %v352, %v2610
  %v2636 = vmul.f32 %v352, %v2614
  %v2637 = vmul.f32 %v352, %v2618
  %v2638 = vmul.f32 %v352, %v2622
  %v2639 = vmul.f32 %v352, %v2626
  %v2640 = vmul.f32 %v352, %v2630
  %v2641 = vmul.f32 %v352, %v2634
  %v2642 = vadd.f32 %v2579, %v2635
  %v2643 = vadd.f32 %v2580, %v2636
  %v2644 = vadd.f32 %v2581, %v2637
  %v2645 = vadd.f32 %v2582, %v2638
  %v2646 = vadd.f32 %v2583, %v2639
  %v2647 = vadd.f32 %v2584, %v2640
  %v2648 = vadd.f32 %v2585, %v2641
  %v2649 = vlaneseq
  %v2650 = vshrl.u32 %v2649, 7
  %v2651 = vsub.s32 1, %v2650
  %v2652 = vrot.slane %v2606, %v2651
  %v2653 = vlaneseq
  %v2654 = vshrl.u32 %v2653, 7
  %v2655 = vsub.s32 1, %v2654
  %v2656 = vrot.slane %v2605, %v2655
  %v2657 = vlaneseq
  %v2658 = vshrl.u32 %v2657, 7
  %v2659 = vsub.s32 1, %v2658
  %v2660 = vrot.slane %v2604, %v2659
  %v2661 = vlaneseq
  %v2662 = vshrl.u32 %v2661, 7
  %v2663 = vsub.s32 1, %v2662
  %v2664 = vrot.slane %v2603, %v2663
  %v2665 = vlaneseq
  %v2666 = vshrl.u32 %v2665, 7
  %v2667 = vsub.s32 1, %v2666
  %v2668 = vrot.slane %v2602, %v2667
  %v2669 = vlaneseq
  %v2670 = vshrl.u32 %v2669, 7
  %v2671 = vsub.s32 1, %v2670
  %v2672 = vrot.slane %v2601, %v2671
  %v2673 = vlaneseq
  %v2674 = vshrl.u32 %v2673, 7
  %v2675 = vsub.s32 1, %v2674
  %v2676 = vrot.slane %v2600, %v2675
  %v2677 = vmul.f32 %v399, %v2652
  %v2678 = vmul.f32 %v399, %v2656
  %v2679 = vmul.f32 %v399, %v2660
  %v2680 = vmul.f32 %v399, %v2664
  %v2681 = vmul.f32 %v399, %v2668
  %v2682 = vmul.f32 %v399, %v2672
  %v2683 = vmul.f32 %v399, %v2676
  %v2684 = vadd.f32 %v2642, %v2677
  %v2685 = vadd.f32 %v2643, %v2678
  %v2686 = vadd.f32 %v2644, %v2679
  %v2687 = vadd.f32 %v2645, %v2680
  %v2688 = vadd.f32 %v2646, %v2681
  %v2689 = vadd.f32 %v2647, %v2682
  %v2690 = vadd.f32 %v2648, %v2683
  %v2691 = vlaneseq
  %v2692 = vshrl.u32 %v2691, 7
  %v2693 = vsub.s32 2, %v2692
  %v2694 = vrot.slane %v2606, %v2693
  %v2695 = vlaneseq
  %v2696 = vshrl.u32 %v2695, 7
  %v2697 = vsub.s32 2, %v2696
  %v2698 = vrot.slane %v2605, %v2697
  %v2699 = vlaneseq
  %v2700 = vshrl.u32 %v2699, 7
  %v2701 = vsub.s32 2, %v2700
  %v2702 = vrot.slane %v2604, %v2701
  %v2703 = vlaneseq
  %v2704 = vshrl.u32 %v2703, 7
  %v2705 = vsub.s32 2, %v2704
  %v2706 = vrot.slane %v2603, %v2705
  %v2707 = vlaneseq
  %v2708 = vshrl.u32 %v2707, 7
  %v2709 = vsub.s32 2, %v2708
  %v2710 = vrot.slane %v2602, %v2709
  %v2711 = vlaneseq
  %v2712 = vshrl.u32 %v2711, 7
  %v2713 = vsub.s32 2, %v2712
  %v2714 = vrot.slane %v2601, %v2713
  %v2715 = vlaneseq
  %v2716 = vshrl.u32 %v2715, 7
  %v2717 = vsub.s32 2, %v2716
  %v2718 = vrot.slane %v2600, %v2717
  %v2719 = vmul.f32 %v446, %v2694
  %v2720 = vmul.f32 %v446, %v2698
  %v2721 = vmul.f32 %v446, %v2702
  %v2722 = vmul.f32 %v446, %v2706
  %v2723 = vmul.f32 %v446, %v2710
  %v2724 = vmul.f32 %v446, %v2714
  %v2725 = vmul.f32 %v446, %v2718
  %v2726 = vadd.f32 %v2684, %v2719
  %v2727 = vadd.f32 %v2685, %v2720
  %v2728 = vadd.f32 %v2686, %v2721
  %v2729 = vadd.f32 %v2687, %v2722
  %v2730 = vadd.f32 %v2688, %v2723
  %v2731 = vadd.f32 %v2689, %v2724
  %v2732 = vadd.f32 %v2690, %v2725
  %v2733 = vlaneseq
  %v2734 = vshrl.u32 %v2733, 7
  %v2735 = vsub.s32 3, %v2734
  %v2736 = vrot.slane %v2606, %v2735
  %v2737 = vlaneseq
  %v2738 = vshrl.u32 %v2737, 7
  %v2739 = vsub.s32 3, %v2738
  %v2740 = vrot.slane %v2605, %v2739
  %v2741 = vlaneseq
  %v2742 = vshrl.u32 %v2741, 7
  %v2743 = vsub.s32 3, %v2742
  %v2744 = vrot.slane %v2604, %v2743
  %v2745 = vlaneseq
  %v2746 = vshrl.u32 %v2745, 7
  %v2747 = vsub.s32 3, %v2746
  %v2748 = vrot.slane %v2603, %v2747
  %v2749 = vlaneseq
  %v2750 = vshrl.u32 %v2749, 7
  %v2751 = vsub.s32 3, %v2750
  %v2752 = vrot.slane %v2602, %v2751
  %v2753 = vlaneseq
  %v2754 = vshrl.u32 %v2753, 7
  %v2755 = vsub.s32 3, %v2754
  %v2756 = vrot.slane %v2601, %v2755
  %v2757 = vlaneseq
  %v2758 = vshrl.u32 %v2757, 7
  %v2759 = vsub.s32 3, %v2758
  %v2760 = vrot.slane %v2600, %v2759
  %v2761 = vmul.f32 %v493, %v2736
  %v2762 = vmul.f32 %v493, %v2740
  %v2763 = vmul.f32 %v493, %v2744
  %v2764 = vmul.f32 %v493, %v2748
  %v2765 = vmul.f32 %v493, %v2752
  %v2766 = vmul.f32 %v493, %v2756
  %v2767 = vmul.f32 %v493, %v2760
  %v2768 = vadd.f32 %v2726, %v2761
  %v2769 = vadd.f32 %v2727, %v2762
  %v2770 = vadd.f32 %v2728, %v2763
  %v2771 = vadd.f32 %v2729, %v2764
  %v2772 = vadd.f32 %v2730, %v2765
  %v2773 = vadd.f32 %v2731, %v2766
  %v2774 = vadd.f32 %v2732, %v2767
  %2775 = vrot.lane.b32.xlu0 %v2388, 17
  %v2776 = vpop.permute.xlu0 %2775
  %2777 = vrot.lane.b32.xlu0 %v2398, 17
  %v2778 = vpop.permute.xlu0 %2777
  %2779 = vrot.lane.b32.xlu0 %v2389, 17
  %v2780 = vpop.permute.xlu0 %2779
  %2781 = vrot.lane.b32.xlu0 %v2399, 17
  %v2782 = vpop.permute.xlu0 %2781
  %2783 = vrot.lane.b32.xlu0 %v2390, 17
  %v2784 = vpop.permute.xlu0 %2783
  %2785 = vrot.lane.b32.xlu0 %v2400, 17
  %v2786 = vpop.permute.xlu0 %2785
  %2787 = vrot.lane.b32.xlu0 %v2391, 17
  %v2788 = vpop.permute.xlu0 %2787
  %v2789 = vsel %vm551, %v2786, %v2788
  %v2790 = vsel %vm551, %v2784, %v2786
  %v2791 = vsel %vm551, %v2782, %v2784
  %v2792 = vsel %vm551, %v2780, %v2782
  %v2793 = vsel %vm551, %v2778, %v2780
  %v2794 = vsel %vm551, %v2776, %v2778
  %v2795 = vsel %vm551, %v2788, %v2776
  %v2796 = vlaneseq
  %v2797 = vshrl.u32 %v2796, 7
  %v2798 = vsub.s32 0, %v2797
  %v2799 = vrot.slane %v2795, %v2798
  %v2800 = vlaneseq
  %v2801 = vshrl.u32 %v2800, 7
  %v2802 = vsub.s32 0, %v2801
  %v2803 = vrot.slane %v2794, %v2802
  %v2804 = vlaneseq
  %v2805 = vshrl.u32 %v2804, 7
  %v2806 = vsub.s32 0, %v2805
  %v2807 = vrot.slane %v2793, %v2806
  %v2808 = vlaneseq
  %v2809 = vshrl.u32 %v2808, 7
  %v2810 = vsub.s32 0, %v2809
  %v2811 = vrot.slane %v2792, %v2810
  %v2812 = vlaneseq
  %v2813 = vshrl.u32 %v2812, 7
  %v2814 = vsub.s32 0, %v2813
  %v2815 = vrot.slane %v2791, %v2814
  %v2816 = vlaneseq
  %v2817 = vshrl.u32 %v2816, 7
  %v2818 = vsub.s32 0, %v2817
  %v2819 = vrot.slane %v2790, %v2818
  %v2820 = vlaneseq
  %v2821 = vshrl.u32 %v2820, 7
  %v2822 = vsub.s32 0, %v2821
  %v2823 = vrot.slane %v2789, %v2822
  %v2824 = vmul.f32 %v562, %v2799
  %v2825 = vmul.f32 %v562, %v2803
  %v2826 = vmul.f32 %v562, %v2807
  %v2827 = vmul.f32 %v562, %v2811
  %v2828 = vmul.f32 %v562, %v2815
  %v2829 = vmul.f32 %v562, %v2819
  %v2830 = vmul.f32 %v562, %v2823
  %v2831 = vadd.f32 %v2768, %v2824
  %v2832 = vadd.f32 %v2769, %v2825
  %v2833 = vadd.f32 %v2770, %v2826
  %v2834 = vadd.f32 %v2771, %v2827
  %v2835 = vadd.f32 %v2772, %v2828
  %v2836 = vadd.f32 %v2773, %v2829
  %v2837 = vadd.f32 %v2774, %v2830
  %v2838 = vlaneseq
  %v2839 = vshrl.u32 %v2838, 7
  %v2840 = vsub.s32 1, %v2839
  %v2841 = vrot.slane %v2795, %v2840
  %v2842 = vlaneseq
  %v2843 = vshrl.u32 %v2842, 7
  %v2844 = vsub.s32 1, %v2843
  %v2845 = vrot.slane %v2794, %v2844
  %v2846 = vlaneseq
  %v2847 = vshrl.u32 %v2846, 7
  %v2848 = vsub.s32 1, %v2847
  %v2849 = vrot.slane %v2793, %v2848
  %v2850 = vlaneseq
  %v2851 = vshrl.u32 %v2850, 7
  %v2852 = vsub.s32 1, %v2851
  %v2853 = vrot.slane %v2792, %v2852
  %v2854 = vlaneseq
  %v2855 = vshrl.u32 %v2854, 7
  %v2856 = vsub.s32 1, %v2855
  %v2857 = vrot.slane %v2791, %v2856
  %v2858 = vlaneseq
  %v2859 = vshrl.u32 %v2858, 7
  %v2860 = vsub.s32 1, %v2859
  %v2861 = vrot.slane %v2790, %v2860
  %v2862 = vlaneseq
  %v2863 = vshrl.u32 %v2862, 7
  %v2864 = vsub.s32 1, %v2863
  %v2865 = vrot.slane %v2789, %v2864
  %v2866 = vmul.f32 %v609, %v2841
  %v2867 = vmul.f32 %v609, %v2845
  %v2868 = vmul.f32 %v609, %v2849
  %v2869 = vmul.f32 %v609, %v2853
  %v2870 = vmul.f32 %v609, %v2857
  %v2871 = vmul.f32 %v609, %v2861
  %v2872 = vmul.f32 %v609, %v2865
  %v2873 = vadd.f32 %v2831, %v2866
  %v2874 = vadd.f32 %v2832, %v2867
  %v2875 = vadd.f32 %v2833, %v2868
  %v2876 = vadd.f32 %v2834, %v2869
  %v2877 = vadd.f32 %v2835, %v2870
  %v2878 = vadd.f32 %v2836, %v2871
  %v2879 = vadd.f32 %v2837, %v2872
  %v2880 = vlaneseq
  %v2881 = vshrl.u32 %v2880, 7
  %v2882 = vsub.s32 2, %v2881
  %v2883 = vrot.slane %v2795, %v2882
  %v2884 = vlaneseq
  %v2885 = vshrl.u32 %v2884, 7
  %v2886 = vsub.s32 2, %v2885
  %v2887 = vrot.slane %v2794, %v2886
  %v2888 = vlaneseq
  %v2889 = vshrl.u32 %v2888, 7
  %v2890 = vsub.s32 2, %v2889
  %v2891 = vrot.slane %v2793, %v2890
  %v2892 = vlaneseq
  %v2893 = vshrl.u32 %v2892, 7
  %v2894 = vsub.s32 2, %v2893
  %v2895 = vrot.slane %v2792, %v2894
  %v2896 = vlaneseq
  %v2897 = vshrl.u32 %v2896, 7
  %v2898 = vsub.s32 2, %v2897
  %v2899 = vrot.slane %v2791, %v2898
  %v2900 = vlaneseq
  %v2901 = vshrl.u32 %v2900, 7
  %v2902 = vsub.s32 2, %v2901
  %v2903 = vrot.slane %v2790, %v2902
  %v2904 = vlaneseq
  %v2905 = vshrl.u32 %v2904, 7
  %v2906 = vsub.s32 2, %v2905
  %v2907 = vrot.slane %v2789, %v2906
  %v2908 = vmul.f32 %v656, %v2883
  %v2909 = vmul.f32 %v656, %v2887
  %v2910 = vmul.f32 %v656, %v2891
  %v2911 = vmul.f32 %v656, %v2895
  %v2912 = vmul.f32 %v656, %v2899
  %v2913 = vmul.f32 %v656, %v2903
  %v2914 = vmul.f32 %v656, %v2907
  %v2915 = vadd.f32 %v2873, %v2908
  %v2916 = vadd.f32 %v2874, %v2909
  %v2917 = vadd.f32 %v2875, %v2910
  %v2918 = vadd.f32 %v2876, %v2911
  %v2919 = vadd.f32 %v2877, %v2912
  %v2920 = vadd.f32 %v2878, %v2913
  %v2921 = vadd.f32 %v2879, %v2914
  %v2922 = vlaneseq
  %v2923 = vshrl.u32 %v2922, 7
  %v2924 = vsub.s32 3, %v2923
  %v2925 = vrot.slane %v2795, %v2924
  %v2926 = vlaneseq
  %v2927 = vshrl.u32 %v2926, 7
  %v2928 = vsub.s32 3, %v2927
  %v2929 = vrot.slane %v2794, %v2928
  %v2930 = vlaneseq
  %v2931 = vshrl.u32 %v2930, 7
  %v2932 = vsub.s32 3, %v2931
  %v2933 = vrot.slane %v2793, %v2932
  %v2934 = vlaneseq
  %v2935 = vshrl.u32 %v2934, 7
  %v2936 = vsub.s32 3, %v2935
  %v2937 = vrot.slane %v2792, %v2936
  %v2938 = vlaneseq
  %v2939 = vshrl.u32 %v2938, 7
  %v2940 = vsub.s32 3, %v2939
  %v2941 = vrot.slane %v2791, %v2940
  %v2942 = vlaneseq
  %v2943 = vshrl.u32 %v2942, 7
  %v2944 = vsub.s32 3, %v2943
  %v2945 = vrot.slane %v2790, %v2944
  %v2946 = vlaneseq
  %v2947 = vshrl.u32 %v2946, 7
  %v2948 = vsub.s32 3, %v2947
  %v2949 = vrot.slane %v2789, %v2948
  %v2950 = vmul.f32 %v703, %v2925
  %v2951 = vmul.f32 %v703, %v2929
  %v2952 = vmul.f32 %v703, %v2933
  %v2953 = vmul.f32 %v703, %v2937
  %v2954 = vmul.f32 %v703, %v2941
  %v2955 = vmul.f32 %v703, %v2945
  %v2956 = vmul.f32 %v703, %v2949
  %v2957 = vadd.f32 %v2915, %v2950
  %v2958 = vadd.f32 %v2916, %v2951
  %v2959 = vadd.f32 %v2917, %v2952
  %v2960 = vadd.f32 %v2918, %v2953
  %v2961 = vadd.f32 %v2919, %v2954
  %v2962 = vadd.f32 %v2920, %v2955
  %v2963 = vadd.f32 %v2921, %v2956
  %2964 = vrot.lane.b32.xlu0 %v2388, 1
  %v2965 = vpop.permute.xlu0 %2964
  %2966 = vrot.lane.b32.xlu0 %v2398, 1
  %v2967 = vpop.permute.xlu0 %2966
  %2968 = vrot.lane.b32.xlu0 %v2389, 1
  %v2969 = vpop.permute.xlu0 %2968
  %2970 = vrot.lane.b32.xlu0 %v2399, 1
  %v2971 = vpop.permute.xlu0 %2970
  %2972 = vrot.lane.b32.xlu0 %v2390, 1
  %v2973 = vpop.permute.xlu0 %2972
  %2974 = vrot.lane.b32.xlu0 %v2400, 1
  %v2975 = vpop.permute.xlu0 %2974
  %2976 = vrot.lane.b32.xlu0 %v2391, 1
  %v2977 = vpop.permute.xlu0 %2976
  %v2978 = vsel %vm761, %v2975, %v2977
  %v2979 = vsel %vm761, %v2973, %v2975
  %v2980 = vsel %vm761, %v2971, %v2973
  %v2981 = vsel %vm761, %v2969, %v2971
  %v2982 = vsel %vm761, %v2967, %v2969
  %v2983 = vsel %vm761, %v2965, %v2967
  %v2984 = vsel %vm761, %v2977, %v2965
  %v2985 = vlaneseq
  %v2986 = vshrl.u32 %v2985, 7
  %v2987 = vsub.s32 0, %v2986
  %v2988 = vrot.slane %v2984, %v2987
  %v2989 = vlaneseq
  %v2990 = vshrl.u32 %v2989, 7
  %v2991 = vsub.s32 0, %v2990
  %v2992 = vrot.slane %v2983, %v2991
  %v2993 = vlaneseq
  %v2994 = vshrl.u32 %v2993, 7
  %v2995 = vsub.s32 0, %v2994
  %v2996 = vrot.slane %v2982, %v2995
  %v2997 = vlaneseq
  %v2998 = vshrl.u32 %v2997, 7
  %v2999 = vsub.s32 0, %v2998
  %v3000 = vrot.slane %v2981, %v2999
  %v3001 = vlaneseq
  %v3002 = vshrl.u32 %v3001, 7
  %v3003 = vsub.s32 0, %v3002
  %v3004 = vrot.slane %v2980, %v3003
  %v3005 = vlaneseq
  %v3006 = vshrl.u32 %v3005, 7
  %v3007 = vsub.s32 0, %v3006
  %v3008 = vrot.slane %v2979, %v3007
  %v3009 = vlaneseq
  %v3010 = vshrl.u32 %v3009, 7
  %v3011 = vsub.s32 0, %v3010
  %v3012 = vrot.slane %v2978, %v3011
  %v3013 = vmul.f32 %v772, %v2988
  %v3014 = vmul.f32 %v772, %v2992
  %v3015 = vmul.f32 %v772, %v2996
  %v3016 = vmul.f32 %v772, %v3000
  %v3017 = vmul.f32 %v772, %v3004
  %v3018 = vmul.f32 %v772, %v3008
  %v3019 = vmul.f32 %v772, %v3012
  %v3020 = vadd.f32 %v2957, %v3013
  %v3021 = vadd.f32 %v2958, %v3014
  %v3022 = vadd.f32 %v2959, %v3015
  %v3023 = vadd.f32 %v2960, %v3016
  %v3024 = vadd.f32 %v2961, %v3017
  %v3025 = vadd.f32 %v2962, %v3018
  %v3026 = vadd.f32 %v2963, %v3019
  %v3027 = vlaneseq
  %v3028 = vshrl.u32 %v3027, 7
  %v3029 = vsub.s32 1, %v3028
  %v3030 = vrot.slane %v2984, %v3029
  %v3031 = vlaneseq
  %v3032 = vshrl.u32 %v3031, 7
  %v3033 = vsub.s32 1, %v3032
  %v3034 = vrot.slane %v2983, %v3033
  %v3035 = vlaneseq
  %v3036 = vshrl.u32 %v3035, 7
  %v3037 = vsub.s32 1, %v3036
  %v3038 = vrot.slane %v2982, %v3037
  %v3039 = vlaneseq
  %v3040 = vshrl.u32 %v3039, 7
  %v3041 = vsub.s32 1, %v3040
  %v3042 = vrot.slane %v2981, %v3041
  %v3043 = vlaneseq
  %v3044 = vshrl.u32 %v3043, 7
  %v3045 = vsub.s32 1, %v3044
  %v3046 = vrot.slane %v2980, %v3045
  %v3047 = vlaneseq
  %v3048 = vshrl.u32 %v3047, 7
  %v3049 = vsub.s32 1, %v3048
  %v3050 = vrot.slane %v2979, %v3049
  %v3051 = vlaneseq
  %v3052 = vshrl.u32 %v3051, 7
  %v3053 = vsub.s32 1, %v3052
  %v3054 = vrot.slane %v2978, %v3053
  %v3055 = vmul.f32 %v819, %v3030
  %v3056 = vmul.f32 %v819, %v3034
  %v3057 = vmul.f32 %v819, %v3038
  %v3058 = vmul.f32 %v819, %v3042
  %v3059 = vmul.f32 %v819, %v3046
  %v3060 = vmul.f32 %v819, %v3050
  %v3061 = vmul.f32 %v819, %v3054
  %v3062 = vadd.f32 %v3020, %v3055
  %v3063 = vadd.f32 %v3021, %v3056
  %v3064 = vadd.f32 %v3022, %v3057
  %v3065 = vadd.f32 %v3023, %v3058
  %v3066 = vadd.f32 %v3024, %v3059
  %v3067 = vadd.f32 %v3025, %v3060
  %v3068 = vadd.f32 %v3026, %v3061
  %v3069 = vlaneseq
  %v3070 = vshrl.u32 %v3069, 7
  %v3071 = vsub.s32 2, %v3070
  %v3072 = vrot.slane %v2984, %v3071
  %v3073 = vlaneseq
  %v3074 = vshrl.u32 %v3073, 7
  %v3075 = vsub.s32 2, %v3074
  %v3076 = vrot.slane %v2983, %v3075
  %v3077 = vlaneseq
  %v3078 = vshrl.u32 %v3077, 7
  %v3079 = vsub.s32 2, %v3078
  %v3080 = vrot.slane %v2982, %v3079
  %v3081 = vlaneseq
  %v3082 = vshrl.u32 %v3081, 7
  %v3083 = vsub.s32 2, %v3082
  %v3084 = vrot.slane %v2981, %v3083
  %v3085 = vlaneseq
  %v3086 = vshrl.u32 %v3085, 7
  %v3087 = vsub.s32 2, %v3086
  %v3088 = vrot.slane %v2980, %v3087
  %v3089 = vlaneseq
  %v3090 = vshrl.u32 %v3089, 7
  %v3091 = vsub.s32 2, %v3090
  %v3092 = vrot.slane %v2979, %v3091
  %v3093 = vlaneseq
  %v3094 = vshrl.u32 %v3093, 7
  %v3095 = vsub.s32 2, %v3094
  %v3096 = vrot.slane %v2978, %v3095
  %v3097 = vmul.f32 %v866, %v3072
  %v3098 = vmul.f32 %v866, %v3076
  %v3099 = vmul.f32 %v866, %v3080
  %v3100 = vmul.f32 %v866, %v3084
  %v3101 = vmul.f32 %v866, %v3088
  %v3102 = vmul.f32 %v866, %v3092
  %v3103 = vmul.f32 %v866, %v3096
  %v3104 = vadd.f32 %v3062, %v3097
  %v3105 = vadd.f32 %v3063, %v3098
  %v3106 = vadd.f32 %v3064, %v3099
  %v3107 = vadd.f32 %v3065, %v3100
  %v3108 = vadd.f32 %v3066, %v3101
  %v3109 = vadd.f32 %v3067, %v3102
  %v3110 = vadd.f32 %v3068, %v3103
  %v3111 = vlaneseq
  %v3112 = vshrl.u32 %v3111, 7
  %v3113 = vsub.s32 3, %v3112
  %v3114 = vrot.slane %v2984, %v3113
  %v3115 = vlaneseq
  %v3116 = vshrl.u32 %v3115, 7
  %v3117 = vsub.s32 3, %v3116
  %v3118 = vrot.slane %v2983, %v3117
  %v3119 = vlaneseq
  %v3120 = vshrl.u32 %v3119, 7
  %v3121 = vsub.s32 3, %v3120
  %v3122 = vrot.slane %v2982, %v3121
  %v3123 = vlaneseq
  %v3124 = vshrl.u32 %v3123, 7
  %v3125 = vsub.s32 3, %v3124
  %v3126 = vrot.slane %v2981, %v3125
  %v3127 = vlaneseq
  %v3128 = vshrl.u32 %v3127, 7
  %v3129 = vsub.s32 3, %v3128
  %v3130 = vrot.slane %v2980, %v3129
  %v3131 = vlaneseq
  %v3132 = vshrl.u32 %v3131, 7
  %v3133 = vsub.s32 3, %v3132
  %v3134 = vrot.slane %v2979, %v3133
  %v3135 = vlaneseq
  %v3136 = vshrl.u32 %v3135, 7
  %v3137 = vsub.s32 3, %v3136
  %v3138 = vrot.slane %v2978, %v3137
  %v3139 = vmul.f32 %v913, %v3114
  %v3140 = vmul.f32 %v913, %v3118
  %v3141 = vmul.f32 %v913, %v3122
  %v3142 = vmul.f32 %v913, %v3126
  %v3143 = vmul.f32 %v913, %v3130
  %v3144 = vmul.f32 %v913, %v3134
  %v3145 = vmul.f32 %v913, %v3138
  %v3146 = vadd.f32 %v3104, %v3139
  %v3147 = vadd.f32 %v3105, %v3140
  %v3148 = vadd.f32 %v3106, %v3141
  %v3149 = vadd.f32 %v3107, %v3142
  %v3150 = vadd.f32 %v3108, %v3143
  %v3151 = vadd.f32 %v3109, %v3144
  %v3152 = vadd.f32 %v3110, %v3145
  %v3153 = vlaneseq
  %v3154 = vshrl.u32 %v3153, 7
  %v3155 = vsub.s32 0, %v3154
  %v3156 = vrot.slane %v2388, %v3155
  %v3157 = vlaneseq
  %v3158 = vshrl.u32 %v3157, 7
  %v3159 = vsub.s32 4, %v3158
  %v3160 = vrot.slane %v2388, %v3159
  %v3161 = vlaneseq
  %v3162 = vshrl.u32 %v3161, 7
  %v3163 = vsub.s32 0, %v3162
  %v3164 = vrot.slane %v2389, %v3163
  %v3165 = vlaneseq
  %v3166 = vshrl.u32 %v3165, 7
  %v3167 = vsub.s32 4, %v3166
  %v3168 = vrot.slane %v2389, %v3167
  %v3169 = vlaneseq
  %v3170 = vshrl.u32 %v3169, 7
  %v3171 = vsub.s32 0, %v3170
  %v3172 = vrot.slane %v2390, %v3171
  %v3173 = vlaneseq
  %v3174 = vshrl.u32 %v3173, 7
  %v3175 = vsub.s32 4, %v3174
  %v3176 = vrot.slane %v2390, %v3175
  %v3177 = vlaneseq
  %v3178 = vshrl.u32 %v3177, 7
  %v3179 = vsub.s32 0, %v3178
  %v3180 = vrot.slane %v2391, %v3179
  %v3188 = vlaneseq
  %v3189 = vshrl.u32 %v3188, 7
  %v3190 = vsub.s32 0, %v3189
  %v3191 = vrot.slane %v3156, %v3190
  %v3192 = vlaneseq
  %v3193 = vshrl.u32 %v3192, 7
  %v3194 = vsub.s32 0, %v3193
  %v3195 = vrot.slane %v3160, %v3194
  %v3196 = vlaneseq
  %v3197 = vshrl.u32 %v3196, 7
  %v3198 = vsub.s32 0, %v3197
  %v3199 = vrot.slane %v3164, %v3198
  %v3200 = vlaneseq
  %v3201 = vshrl.u32 %v3200, 7
  %v3202 = vsub.s32 0, %v3201
  %v3203 = vrot.slane %v3168, %v3202
  %v3204 = vlaneseq
  %v3205 = vshrl.u32 %v3204, 7
  %v3206 = vsub.s32 0, %v3205
  %v3207 = vrot.slane %v3172, %v3206
  %v3208 = vlaneseq
  %v3209 = vshrl.u32 %v3208, 7
  %v3210 = vsub.s32 0, %v3209
  %v3211 = vrot.slane %v3176, %v3210
  %v3212 = vlaneseq
  %v3213 = vshrl.u32 %v3212, 7
  %v3214 = vsub.s32 0, %v3213
  %v3215 = vrot.slane %v3180, %v3214
  %v3216 = vmul.f32 %v960, %v3191
  %v3217 = vmul.f32 %v960, %v3195
  %v3218 = vmul.f32 %v960, %v3199
  %v3219 = vmul.f32 %v960, %v3203
  %v3220 = vmul.f32 %v960, %v3207
  %v3221 = vmul.f32 %v960, %v3211
  %v3222 = vmul.f32 %v960, %v3215
  %v3223 = vadd.f32 %v3146, %v3216
  %v3224 = vadd.f32 %v3147, %v3217
  %v3225 = vadd.f32 %v3148, %v3218
  %v3226 = vadd.f32 %v3149, %v3219
  %v3227 = vadd.f32 %v3150, %v3220
  %v3228 = vadd.f32 %v3151, %v3221
  %v3229 = vadd.f32 %v3152, %v3222
  %v3230 = vlaneseq
  %v3231 = vshrl.u32 %v3230, 7
  %v3232 = vsub.s32 1, %v3231
  %v3233 = vrot.slane %v2388, %v3232
  %v3234 = vlaneseq
  %v3235 = vshrl.u32 %v3234, 7
  %v3236 = vsub.s32 5, %v3235
  %v3237 = vrot.slane %v2388, %v3236
  %v3238 = vlaneseq
  %v3239 = vshrl.u32 %v3238, 7
  %v3240 = vsub.s32 1, %v3239
  %v3241 = vrot.slane %v2389, %v3240
  %v3242 = vlaneseq
  %v3243 = vshrl.u32 %v3242, 7
  %v3244 = vsub.s32 5, %v3243
  %v3245 = vrot.slane %v2389, %v3244
  %v3246 = vlaneseq
  %v3247 = vshrl.u32 %v3246, 7
  %v3248 = vsub.s32 1, %v3247
  %v3249 = vrot.slane %v2390, %v3248
  %v3250 = vlaneseq
  %v3251 = vshrl.u32 %v3250, 7
  %v3252 = vsub.s32 5, %v3251
  %v3253 = vrot.slane %v2390, %v3252
  %v3254 = vlaneseq
  %v3255 = vshrl.u32 %v3254, 7
  %v3256 = vsub.s32 1, %v3255
  %v3257 = vrot.slane %v2391, %v3256
  %v3265 = vlaneseq
  %v3266 = vshrl.u32 %v3265, 7
  %v3267 = vsub.s32 1, %v3266
  %v3268 = vrot.slane %v3233, %v3267
  %v3269 = vlaneseq
  %v3270 = vshrl.u32 %v3269, 7
  %v3271 = vsub.s32 1, %v3270
  %v3272 = vrot.slane %v3237, %v3271
  %v3273 = vlaneseq
  %v3274 = vshrl.u32 %v3273, 7
  %v3275 = vsub.s32 1, %v3274
  %v3276 = vrot.slane %v3241, %v3275
  %v3277 = vlaneseq
  %v3278 = vshrl.u32 %v3277, 7
  %v3279 = vsub.s32 1, %v3278
  %v3280 = vrot.slane %v3245, %v3279
  %v3281 = vlaneseq
  %v3282 = vshrl.u32 %v3281, 7
  %v3283 = vsub.s32 1, %v3282
  %v3284 = vrot.slane %v3249, %v3283
  %v3285 = vlaneseq
  %v3286 = vshrl.u32 %v3285, 7
  %v3287 = vsub.s32 1, %v3286
  %v3288 = vrot.slane %v3253, %v3287
  %v3289 = vlaneseq
  %v3290 = vshrl.u32 %v3289, 7
  %v3291 = vsub.s32 1, %v3290
  %v3292 = vrot.slane %v3257, %v3291
  %v3293 = vmul.f32 %v1042, %v3268
  %v3294 = vmul.f32 %v1042, %v3272
  %v3295 = vmul.f32 %v1042, %v3276
  %v3296 = vmul.f32 %v1042, %v3280
  %v3297 = vmul.f32 %v1042, %v3284
  %v3298 = vmul.f32 %v1042, %v3288
  %v3299 = vmul.f32 %v1042, %v3292
  %v3300 = vadd.f32 %v3223, %v3293
  %v3301 = vadd.f32 %v3224, %v3294
  %v3302 = vadd.f32 %v3225, %v3295
  %v3303 = vadd.f32 %v3226, %v3296
  %v3304 = vadd.f32 %v3227, %v3297
  %v3305 = vadd.f32 %v3228, %v3298
  %v3306 = vadd.f32 %v3229, %v3299
  %v3307 = vlaneseq
  %v3308 = vshrl.u32 %v3307, 7
  %v3309 = vsub.s32 2, %v3308
  %v3310 = vrot.slane %v2388, %v3309
  %v3311 = vlaneseq
  %v3312 = vshrl.u32 %v3311, 7
  %v3313 = vsub.s32 6, %v3312
  %v3314 = vrot.slane %v2388, %v3313
  %v3315 = vlaneseq
  %v3316 = vshrl.u32 %v3315, 7
  %v3317 = vsub.s32 2, %v3316
  %v3318 = vrot.slane %v2389, %v3317
  %v3319 = vlaneseq
  %v3320 = vshrl.u32 %v3319, 7
  %v3321 = vsub.s32 6, %v3320
  %v3322 = vrot.slane %v2389, %v3321
  %v3323 = vlaneseq
  %v3324 = vshrl.u32 %v3323, 7
  %v3325 = vsub.s32 2, %v3324
  %v3326 = vrot.slane %v2390, %v3325
  %v3327 = vlaneseq
  %v3328 = vshrl.u32 %v3327, 7
  %v3329 = vsub.s32 6, %v3328
  %v3330 = vrot.slane %v2390, %v3329
  %v3331 = vlaneseq
  %v3332 = vshrl.u32 %v3331, 7
  %v3333 = vsub.s32 2, %v3332
  %v3334 = vrot.slane %v2391, %v3333
  %v3342 = vlaneseq
  %v3343 = vshrl.u32 %v3342, 7
  %v3344 = vsub.s32 2, %v3343
  %v3345 = vrot.slane %v3310, %v3344
  %v3346 = vlaneseq
  %v3347 = vshrl.u32 %v3346, 7
  %v3348 = vsub.s32 2, %v3347
  %v3349 = vrot.slane %v3314, %v3348
  %v3350 = vlaneseq
  %v3351 = vshrl.u32 %v3350, 7
  %v3352 = vsub.s32 2, %v3351
  %v3353 = vrot.slane %v3318, %v3352
  %v3354 = vlaneseq
  %v3355 = vshrl.u32 %v3354, 7
  %v3356 = vsub.s32 2, %v3355
  %v3357 = vrot.slane %v3322, %v3356
  %v3358 = vlaneseq
  %v3359 = vshrl.u32 %v3358, 7
  %v3360 = vsub.s32 2, %v3359
  %v3361 = vrot.slane %v3326, %v3360
  %v3362 = vlaneseq
  %v3363 = vshrl.u32 %v3362, 7
  %v3364 = vsub.s32 2, %v3363
  %v3365 = vrot.slane %v3330, %v3364
  %v3366 = vlaneseq
  %v3367 = vshrl.u32 %v3366, 7
  %v3368 = vsub.s32 2, %v3367
  %v3369 = vrot.slane %v3334, %v3368
  %v3370 = vmul.f32 %v1124, %v3345
  %v3371 = vmul.f32 %v1124, %v3349
  %v3372 = vmul.f32 %v1124, %v3353
  %v3373 = vmul.f32 %v1124, %v3357
  %v3374 = vmul.f32 %v1124, %v3361
  %v3375 = vmul.f32 %v1124, %v3365
  %v3376 = vmul.f32 %v1124, %v3369
  %v3377 = vadd.f32 %v3300, %v3370
  %v3378 = vadd.f32 %v3301, %v3371
  %v3379 = vadd.f32 %v3302, %v3372
  %v3380 = vadd.f32 %v3303, %v3373
  %v3381 = vadd.f32 %v3304, %v3374
  %v3382 = vadd.f32 %v3305, %v3375
  %v3383 = vadd.f32 %v3306, %v3376
  %v3384 = vlaneseq
  %v3385 = vshrl.u32 %v3384, 7
  %v3386 = vsub.s32 3, %v3385
  %v3387 = vrot.slane %v2388, %v3386
  %v3388 = vlaneseq
  %v3389 = vshrl.u32 %v3388, 7
  %v3390 = vsub.s32 7, %v3389
  %v3391 = vrot.slane %v2388, %v3390
  %v3392 = vlaneseq
  %v3393 = vshrl.u32 %v3392, 7
  %v3394 = vsub.s32 3, %v3393
  %v3395 = vrot.slane %v2389, %v3394
  %v3396 = vlaneseq
  %v3397 = vshrl.u32 %v3396, 7
  %v3398 = vsub.s32 7, %v3397
  %v3399 = vrot.slane %v2389, %v3398
  %v3400 = vlaneseq
  %v3401 = vshrl.u32 %v3400, 7
  %v3402 = vsub.s32 3, %v3401
  %v3403 = vrot.slane %v2390, %v3402
  %v3404 = vlaneseq
  %v3405 = vshrl.u32 %v3404, 7
  %v3406 = vsub.s32 7, %v3405
  %v3407 = vrot.slane %v2390, %v3406
  %v3408 = vlaneseq
  %v3409 = vshrl.u32 %v3408, 7
  %v3410 = vsub.s32 3, %v3409
  %v3411 = vrot.slane %v2391, %v3410
  %v3419 = vlaneseq
  %v3420 = vshrl.u32 %v3419, 7
  %v3421 = vsub.s32 3, %v3420
  %v3422 = vrot.slane %v3387, %v3421
  %v3423 = vlaneseq
  %v3424 = vshrl.u32 %v3423, 7
  %v3425 = vsub.s32 3, %v3424
  %v3426 = vrot.slane %v3391, %v3425
  %v3427 = vlaneseq
  %v3428 = vshrl.u32 %v3427, 7
  %v3429 = vsub.s32 3, %v3428
  %v3430 = vrot.slane %v3395, %v3429
  %v3431 = vlaneseq
  %v3432 = vshrl.u32 %v3431, 7
  %v3433 = vsub.s32 3, %v3432
  %v3434 = vrot.slane %v3399, %v3433
  %v3435 = vlaneseq
  %v3436 = vshrl.u32 %v3435, 7
  %v3437 = vsub.s32 3, %v3436
  %v3438 = vrot.slane %v3403, %v3437
  %v3439 = vlaneseq
  %v3440 = vshrl.u32 %v3439, 7
  %v3441 = vsub.s32 3, %v3440
  %v3442 = vrot.slane %v3407, %v3441
  %v3443 = vlaneseq
  %v3444 = vshrl.u32 %v3443, 7
  %v3445 = vsub.s32 3, %v3444
  %v3446 = vrot.slane %v3411, %v3445
  %v3447 = vmul.f32 %v1206, %v3422
  %v3448 = vmul.f32 %v1206, %v3426
  %v3449 = vmul.f32 %v1206, %v3430
  %v3450 = vmul.f32 %v1206, %v3434
  %v3451 = vmul.f32 %v1206, %v3438
  %v3452 = vmul.f32 %v1206, %v3442
  %v3453 = vmul.f32 %v1206, %v3446
  %v3454 = vadd.f32 %v3377, %v3447
  %v3455 = vadd.f32 %v3378, %v3448
  %v3456 = vadd.f32 %v3379, %v3449
  %v3457 = vadd.f32 %v3380, %v3450
  %v3458 = vadd.f32 %v3381, %v3451
  %v3459 = vadd.f32 %v3382, %v3452
  %v3460 = vadd.f32 %v3383, %v3453
  %3461 = vrot.lane.b32.xlu0 %v2388, 127
  %v3462 = vpop.permute.xlu0 %3461
  %3463 = vrot.lane.b32.xlu0 %v2398, 127
  %v3464 = vpop.permute.xlu0 %3463
  %3465 = vrot.lane.b32.xlu0 %v2389, 127
  %v3466 = vpop.permute.xlu0 %3465
  %3467 = vrot.lane.b32.xlu0 %v2399, 127
  %v3468 = vpop.permute.xlu0 %3467
  %3469 = vrot.lane.b32.xlu0 %v2390, 127
  %v3470 = vpop.permute.xlu0 %3469
  %3471 = vrot.lane.b32.xlu0 %v2400, 127
  %v3472 = vpop.permute.xlu0 %3471
  %3473 = vrot.lane.b32.xlu0 %v2391, 127
  %v3474 = vpop.permute.xlu0 %3473
  %v3475 = vsel %vm1299, %v3472, %v3474
  %v3476 = vsel %vm1299, %v3470, %v3472
  %v3477 = vsel %vm1299, %v3468, %v3470
  %v3478 = vsel %vm1299, %v3466, %v3468
  %v3479 = vsel %vm1299, %v3464, %v3466
  %v3480 = vsel %vm1299, %v3462, %v3464
  %v3481 = vsel %vm1299, %v3474, %v3462
  %v3482 = vlaneseq
  %v3483 = vshrl.u32 %v3482, 7
  %v3484 = vsub.s32 0, %v3483
  %v3485 = vrot.slane %v3480, %v3484
  %v3486 = vlaneseq
  %v3487 = vshrl.u32 %v3486, 7
  %v3488 = vsub.s32 0, %v3487
  %v3489 = vrot.slane %v3479, %v3488
  %v3490 = vlaneseq
  %v3491 = vshrl.u32 %v3490, 7
  %v3492 = vsub.s32 0, %v3491
  %v3493 = vrot.slane %v3478, %v3492
  %v3494 = vlaneseq
  %v3495 = vshrl.u32 %v3494, 7
  %v3496 = vsub.s32 0, %v3495
  %v3497 = vrot.slane %v3477, %v3496
  %v3498 = vlaneseq
  %v3499 = vshrl.u32 %v3498, 7
  %v3500 = vsub.s32 0, %v3499
  %v3501 = vrot.slane %v3476, %v3500
  %v3502 = vlaneseq
  %v3503 = vshrl.u32 %v3502, 7
  %v3504 = vsub.s32 0, %v3503
  %v3505 = vrot.slane %v3475, %v3504
  %v3506 = vlaneseq
  %v3507 = vshrl.u32 %v3506, 7
  %v3508 = vsub.s32 0, %v3507
  %v3509 = vrot.slane %v3481, %v3508
  %v3510 = vmul.f32 %v1310, %v3485
  %v3511 = vmul.f32 %v1310, %v3489
  %v3512 = vmul.f32 %v1310, %v3493
  %v3513 = vmul.f32 %v1310, %v3497
  %v3514 = vmul.f32 %v1310, %v3501
  %v3515 = vmul.f32 %v1310, %v3505
  %v3516 = vmul.f32 %v1310, %v3509
  %v3517 = vadd.f32 %v3454, %v3510
  %v3518 = vadd.f32 %v3455, %v3511
  %v3519 = vadd.f32 %v3456, %v3512
  %v3520 = vadd.f32 %v3457, %v3513
  %v3521 = vadd.f32 %v3458, %v3514
  %v3522 = vadd.f32 %v3459, %v3515
  %v3523 = vadd.f32 %v3460, %v3516
  %v3524 = vlaneseq
  %v3525 = vshrl.u32 %v3524, 7
  %v3526 = vsub.s32 1, %v3525
  %v3527 = vrot.slane %v3480, %v3526
  %v3528 = vlaneseq
  %v3529 = vshrl.u32 %v3528, 7
  %v3530 = vsub.s32 1, %v3529
  %v3531 = vrot.slane %v3479, %v3530
  %v3532 = vlaneseq
  %v3533 = vshrl.u32 %v3532, 7
  %v3534 = vsub.s32 1, %v3533
  %v3535 = vrot.slane %v3478, %v3534
  %v3536 = vlaneseq
  %v3537 = vshrl.u32 %v3536, 7
  %v3538 = vsub.s32 1, %v3537
  %v3539 = vrot.slane %v3477, %v3538
  %v3540 = vlaneseq
  %v3541 = vshrl.u32 %v3540, 7
  %v3542 = vsub.s32 1, %v3541
  %v3543 = vrot.slane %v3476, %v3542
  %v3544 = vlaneseq
  %v3545 = vshrl.u32 %v3544, 7
  %v3546 = vsub.s32 1, %v3545
  %v3547 = vrot.slane %v3475, %v3546
  %v3548 = vlaneseq
  %v3549 = vshrl.u32 %v3548, 7
  %v3550 = vsub.s32 1, %v3549
  %v3551 = vrot.slane %v3481, %v3550
  %v3552 = vmul.f32 %v1357, %v3527
  %v3553 = vmul.f32 %v1357, %v3531
  %v3554 = vmul.f32 %v1357, %v3535
  %v3555 = vmul.f32 %v1357, %v3539
  %v3556 = vmul.f32 %v1357, %v3543
  %v3557 = vmul.f32 %v1357, %v3547
  %v3558 = vmul.f32 %v1357, %v3551
  %v3559 = vadd.f32 %v3517, %v3552
  %v3560 = vadd.f32 %v3518, %v3553
  %v3561 = vadd.f32 %v3519, %v3554
  %v3562 = vadd.f32 %v3520, %v3555
  %v3563 = vadd.f32 %v3521, %v3556
  %v3564 = vadd.f32 %v3522, %v3557
  %v3565 = vadd.f32 %v3523, %v3558
  %v3566 = vlaneseq
  %v3567 = vshrl.u32 %v3566, 7
  %v3568 = vsub.s32 2, %v3567
  %v3569 = vrot.slane %v3480, %v3568
  %v3570 = vlaneseq
  %v3571 = vshrl.u32 %v3570, 7
  %v3572 = vsub.s32 2, %v3571
  %v3573 = vrot.slane %v3479, %v3572
  %v3574 = vlaneseq
  %v3575 = vshrl.u32 %v3574, 7
  %v3576 = vsub.s32 2, %v3575
  %v3577 = vrot.slane %v3478, %v3576
  %v3578 = vlaneseq
  %v3579 = vshrl.u32 %v3578, 7
  %v3580 = vsub.s32 2, %v3579
  %v3581 = vrot.slane %v3477, %v3580
  %v3582 = vlaneseq
  %v3583 = vshrl.u32 %v3582, 7
  %v3584 = vsub.s32 2, %v3583
  %v3585 = vrot.slane %v3476, %v3584
  %v3586 = vlaneseq
  %v3587 = vshrl.u32 %v3586, 7
  %v3588 = vsub.s32 2, %v3587
  %v3589 = vrot.slane %v3475, %v3588
  %v3590 = vlaneseq
  %v3591 = vshrl.u32 %v3590, 7
  %v3592 = vsub.s32 2, %v3591
  %v3593 = vrot.slane %v3481, %v3592
  %v3594 = vmul.f32 %v1404, %v3569
  %v3595 = vmul.f32 %v1404, %v3573
  %v3596 = vmul.f32 %v1404, %v3577
  %v3597 = vmul.f32 %v1404, %v3581
  %v3598 = vmul.f32 %v1404, %v3585
  %v3599 = vmul.f32 %v1404, %v3589
  %v3600 = vmul.f32 %v1404, %v3593
  %v3601 = vadd.f32 %v3559, %v3594
  %v3602 = vadd.f32 %v3560, %v3595
  %v3603 = vadd.f32 %v3561, %v3596
  %v3604 = vadd.f32 %v3562, %v3597
  %v3605 = vadd.f32 %v3563, %v3598
  %v3606 = vadd.f32 %v3564, %v3599
  %v3607 = vadd.f32 %v3565, %v3600
  %v3608 = vlaneseq
  %v3609 = vshrl.u32 %v3608, 7
  %v3610 = vsub.s32 3, %v3609
  %v3611 = vrot.slane %v3480, %v3610
  %v3612 = vlaneseq
  %v3613 = vshrl.u32 %v3612, 7
  %v3614 = vsub.s32 3, %v3613
  %v3615 = vrot.slane %v3479, %v3614
  %v3616 = vlaneseq
  %v3617 = vshrl.u32 %v3616, 7
  %v3618 = vsub.s32 3, %v3617
  %v3619 = vrot.slane %v3478, %v3618
  %v3620 = vlaneseq
  %v3621 = vshrl.u32 %v3620, 7
  %v3622 = vsub.s32 3, %v3621
  %v3623 = vrot.slane %v3477, %v3622
  %v3624 = vlaneseq
  %v3625 = vshrl.u32 %v3624, 7
  %v3626 = vsub.s32 3, %v3625
  %v3627 = vrot.slane %v3476, %v3626
  %v3628 = vlaneseq
  %v3629 = vshrl.u32 %v3628, 7
  %v3630 = vsub.s32 3, %v3629
  %v3631 = vrot.slane %v3475, %v3630
  %v3632 = vlaneseq
  %v3633 = vshrl.u32 %v3632, 7
  %v3634 = vsub.s32 3, %v3633
  %v3635 = vrot.slane %v3481, %v3634
  %v3636 = vmul.f32 %v1451, %v3611
  %v3637 = vmul.f32 %v1451, %v3615
  %v3638 = vmul.f32 %v1451, %v3619
  %v3639 = vmul.f32 %v1451, %v3623
  %v3640 = vmul.f32 %v1451, %v3627
  %v3641 = vmul.f32 %v1451, %v3631
  %v3642 = vmul.f32 %v1451, %v3635
  %v3643 = vadd.f32 %v3601, %v3636
  %v3644 = vadd.f32 %v3602, %v3637
  %v3645 = vadd.f32 %v3603, %v3638
  %v3646 = vadd.f32 %v3604, %v3639
  %v3647 = vadd.f32 %v3605, %v3640
  %v3648 = vadd.f32 %v3606, %v3641
  %v3649 = vadd.f32 %v3607, %v3642
  %3650 = vrot.lane.b32.xlu0 %v2388, 111
  %v3651 = vpop.permute.xlu0 %3650
  %3652 = vrot.lane.b32.xlu0 %v2398, 111
  %v3653 = vpop.permute.xlu0 %3652
  %3654 = vrot.lane.b32.xlu0 %v2389, 111
  %v3655 = vpop.permute.xlu0 %3654
  %3656 = vrot.lane.b32.xlu0 %v2399, 111
  %v3657 = vpop.permute.xlu0 %3656
  %3658 = vrot.lane.b32.xlu0 %v2390, 111
  %v3659 = vpop.permute.xlu0 %3658
  %3660 = vrot.lane.b32.xlu0 %v2400, 111
  %v3661 = vpop.permute.xlu0 %3660
  %3662 = vrot.lane.b32.xlu0 %v2391, 111
  %v3663 = vpop.permute.xlu0 %3662
  %v3664 = vsel %vm1509, %v3661, %v3663
  %v3665 = vsel %vm1509, %v3659, %v3661
  %v3666 = vsel %vm1509, %v3657, %v3659
  %v3667 = vsel %vm1509, %v3655, %v3657
  %v3668 = vsel %vm1509, %v3653, %v3655
  %v3669 = vsel %vm1509, %v3651, %v3653
  %v3670 = vsel %vm1509, %v3663, %v3651
  %v3671 = vlaneseq
  %v3672 = vshrl.u32 %v3671, 7
  %v3673 = vsub.s32 0, %v3672
  %v3674 = vrot.slane %v3669, %v3673
  %v3675 = vlaneseq
  %v3676 = vshrl.u32 %v3675, 7
  %v3677 = vsub.s32 0, %v3676
  %v3678 = vrot.slane %v3668, %v3677
  %v3679 = vlaneseq
  %v3680 = vshrl.u32 %v3679, 7
  %v3681 = vsub.s32 0, %v3680
  %v3682 = vrot.slane %v3667, %v3681
  %v3683 = vlaneseq
  %v3684 = vshrl.u32 %v3683, 7
  %v3685 = vsub.s32 0, %v3684
  %v3686 = vrot.slane %v3666, %v3685
  %v3687 = vlaneseq
  %v3688 = vshrl.u32 %v3687, 7
  %v3689 = vsub.s32 0, %v3688
  %v3690 = vrot.slane %v3665, %v3689
  %v3691 = vlaneseq
  %v3692 = vshrl.u32 %v3691, 7
  %v3693 = vsub.s32 0, %v3692
  %v3694 = vrot.slane %v3664, %v3693
  %v3695 = vlaneseq
  %v3696 = vshrl.u32 %v3695, 7
  %v3697 = vsub.s32 0, %v3696
  %v3698 = vrot.slane %v3670, %v3697
  %v3699 = vmul.f32 %v1520, %v3674
  %v3700 = vmul.f32 %v1520, %v3678
  %v3701 = vmul.f32 %v1520, %v3682
  %v3702 = vmul.f32 %v1520, %v3686
  %v3703 = vmul.f32 %v1520, %v3690
  %v3704 = vmul.f32 %v1520, %v3694
  %v3705 = vmul.f32 %v1520, %v3698
  %v3706 = vadd.f32 %v3643, %v3699
  %v3707 = vadd.f32 %v3644, %v3700
  %v3708 = vadd.f32 %v3645, %v3701
  %v3709 = vadd.f32 %v3646, %v3702
  %v3710 = vadd.f32 %v3647, %v3703
  %v3711 = vadd.f32 %v3648, %v3704
  %v3712 = vadd.f32 %v3649, %v3705
  %v3713 = vlaneseq
  %v3714 = vshrl.u32 %v3713, 7
  %v3715 = vsub.s32 1, %v3714
  %v3716 = vrot.slane %v3669, %v3715
  %v3717 = vlaneseq
  %v3718 = vshrl.u32 %v3717, 7
  %v3719 = vsub.s32 1, %v3718
  %v3720 = vrot.slane %v3668, %v3719
  %v3721 = vlaneseq
  %v3722 = vshrl.u32 %v3721, 7
  %v3723 = vsub.s32 1, %v3722
  %v3724 = vrot.slane %v3667, %v3723
  %v3725 = vlaneseq
  %v3726 = vshrl.u32 %v3725, 7
  %v3727 = vsub.s32 1, %v3726
  %v3728 = vrot.slane %v3666, %v3727
  %v3729 = vlaneseq
  %v3730 = vshrl.u32 %v3729, 7
  %v3731 = vsub.s32 1, %v3730
  %v3732 = vrot.slane %v3665, %v3731
  %v3733 = vlaneseq
  %v3734 = vshrl.u32 %v3733, 7
  %v3735 = vsub.s32 1, %v3734
  %v3736 = vrot.slane %v3664, %v3735
  %v3737 = vlaneseq
  %v3738 = vshrl.u32 %v3737, 7
  %v3739 = vsub.s32 1, %v3738
  %v3740 = vrot.slane %v3670, %v3739
  %v3741 = vmul.f32 %v1567, %v3716
  %v3742 = vmul.f32 %v1567, %v3720
  %v3743 = vmul.f32 %v1567, %v3724
  %v3744 = vmul.f32 %v1567, %v3728
  %v3745 = vmul.f32 %v1567, %v3732
  %v3746 = vmul.f32 %v1567, %v3736
  %v3747 = vmul.f32 %v1567, %v3740
  %v3748 = vadd.f32 %v3706, %v3741
  %v3749 = vadd.f32 %v3707, %v3742
  %v3750 = vadd.f32 %v3708, %v3743
  %v3751 = vadd.f32 %v3709, %v3744
  %v3752 = vadd.f32 %v3710, %v3745
  %v3753 = vadd.f32 %v3711, %v3746
  %v3754 = vadd.f32 %v3712, %v3747
  %v3755 = vlaneseq
  %v3756 = vshrl.u32 %v3755, 7
  %v3757 = vsub.s32 2, %v3756
  %v3758 = vrot.slane %v3669, %v3757
  %v3759 = vlaneseq
  %v3760 = vshrl.u32 %v3759, 7
  %v3761 = vsub.s32 2, %v3760
  %v3762 = vrot.slane %v3668, %v3761
  %v3763 = vlaneseq
  %v3764 = vshrl.u32 %v3763, 7
  %v3765 = vsub.s32 2, %v3764
  %v3766 = vrot.slane %v3667, %v3765
  %v3767 = vlaneseq
  %v3768 = vshrl.u32 %v3767, 7
  %v3769 = vsub.s32 2, %v3768
  %v3770 = vrot.slane %v3666, %v3769
  %v3771 = vlaneseq
  %v3772 = vshrl.u32 %v3771, 7
  %v3773 = vsub.s32 2, %v3772
  %v3774 = vrot.slane %v3665, %v3773
  %v3775 = vlaneseq
  %v3776 = vshrl.u32 %v3775, 7
  %v3777 = vsub.s32 2, %v3776
  %v3778 = vrot.slane %v3664, %v3777
  %v3779 = vlaneseq
  %v3780 = vshrl.u32 %v3779, 7
  %v3781 = vsub.s32 2, %v3780
  %v3782 = vrot.slane %v3670, %v3781
  %v3783 = vmul.f32 %v1614, %v3758
  %v3784 = vmul.f32 %v1614, %v3762
  %v3785 = vmul.f32 %v1614, %v3766
  %v3786 = vmul.f32 %v1614, %v3770
  %v3787 = vmul.f32 %v1614, %v3774
  %v3788 = vmul.f32 %v1614, %v3778
  %v3789 = vmul.f32 %v1614, %v3782
  %v3790 = vadd.f32 %v3748, %v3783
  %v3791 = vadd.f32 %v3749, %v3784
  %v3792 = vadd.f32 %v3750, %v3785
  %v3793 = vadd.f32 %v3751, %v3786
  %v3794 = vadd.f32 %v3752, %v3787
  %v3795 = vadd.f32 %v3753, %v3788
  %v3796 = vadd.f32 %v3754, %v3789
  %v3797 = vlaneseq
  %v3798 = vshrl.u32 %v3797, 7
  %v3799 = vsub.s32 3, %v3798
  %v3800 = vrot.slane %v3669, %v3799
  %v3801 = vlaneseq
  %v3802 = vshrl.u32 %v3801, 7
  %v3803 = vsub.s32 3, %v3802
  %v3804 = vrot.slane %v3668, %v3803
  %v3805 = vlaneseq
  %v3806 = vshrl.u32 %v3805, 7
  %v3807 = vsub.s32 3, %v3806
  %v3808 = vrot.slane %v3667, %v3807
  %v3809 = vlaneseq
  %v3810 = vshrl.u32 %v3809, 7
  %v3811 = vsub.s32 3, %v3810
  %v3812 = vrot.slane %v3666, %v3811
  %v3813 = vlaneseq
  %v3814 = vshrl.u32 %v3813, 7
  %v3815 = vsub.s32 3, %v3814
  %v3816 = vrot.slane %v3665, %v3815
  %v3817 = vlaneseq
  %v3818 = vshrl.u32 %v3817, 7
  %v3819 = vsub.s32 3, %v3818
  %v3820 = vrot.slane %v3664, %v3819
  %v3821 = vlaneseq
  %v3822 = vshrl.u32 %v3821, 7
  %v3823 = vsub.s32 3, %v3822
  %v3824 = vrot.slane %v3670, %v3823
  %v3825 = vmul.f32 %v1661, %v3800
  %v3826 = vmul.f32 %v1661, %v3804
  %v3827 = vmul.f32 %v1661, %v3808
  %v3828 = vmul.f32 %v1661, %v3812
  %v3829 = vmul.f32 %v1661, %v3816
  %v3830 = vmul.f32 %v1661, %v3820
  %v3831 = vmul.f32 %v1661, %v3824
  %v3832 = vadd.f32 %v3790, %v3825
  %v3833 = vadd.f32 %v3791, %v3826
  %v3834 = vadd.f32 %v3792, %v3827
  %v3835 = vadd.f32 %v3793, %v3828
  %v3836 = vadd.f32 %v3794, %v3829
  %v3837 = vadd.f32 %v3795, %v3830
  %v3838 = vadd.f32 %v3796, %v3831
  %3839 = vrot.lane.b32.xlu0 %v2388, 110
  %v3840 = vpop.permute.xlu0 %3839
  %3841 = vrot.lane.b32.xlu0 %v2398, 110
  %v3842 = vpop.permute.xlu0 %3841
  %3843 = vrot.lane.b32.xlu0 %v2389, 110
  %v3844 = vpop.permute.xlu0 %3843
  %3845 = vrot.lane.b32.xlu0 %v2399, 110
  %v3846 = vpop.permute.xlu0 %3845
  %3847 = vrot.lane.b32.xlu0 %v2390, 110
  %v3848 = vpop.permute.xlu0 %3847
  %3849 = vrot.lane.b32.xlu0 %v2400, 110
  %v3850 = vpop.permute.xlu0 %3849
  %3851 = vrot.lane.b32.xlu0 %v2391, 110
  %v3852 = vpop.permute.xlu0 %3851
  %v3853 = vsel %vm1719, %v3850, %v3852
  %v3854 = vsel %vm1719, %v3848, %v3850
  %v3855 = vsel %vm1719, %v3846, %v3848
  %v3856 = vsel %vm1719, %v3844, %v3846
  %v3857 = vsel %vm1719, %v3842, %v3844
  %v3858 = vsel %vm1719, %v3840, %v3842
  %v3859 = vsel %vm1719, %v3852, %v3840
  %v3860 = vlaneseq
  %v3861 = vshrl.u32 %v3860, 7
  %v3862 = vsub.s32 0, %v3861
  %v3863 = vrot.slane %v3858, %v3862
  %v3864 = vlaneseq
  %v3865 = vshrl.u32 %v3864, 7
  %v3866 = vsub.s32 0, %v3865
  %v3867 = vrot.slane %v3857, %v3866
  %v3868 = vlaneseq
  %v3869 = vshrl.u32 %v3868, 7
  %v3870 = vsub.s32 0, %v3869
  %v3871 = vrot.slane %v3856, %v3870
  %v3872 = vlaneseq
  %v3873 = vshrl.u32 %v3872, 7
  %v3874 = vsub.s32 0, %v3873
  %v3875 = vrot.slane %v3855, %v3874
  %v3876 = vlaneseq
  %v3877 = vshrl.u32 %v3876, 7
  %v3878 = vsub.s32 0, %v3877
  %v3879 = vrot.slane %v3854, %v3878
  %v3880 = vlaneseq
  %v3881 = vshrl.u32 %v3880, 7
  %v3882 = vsub.s32 0, %v3881
  %v3883 = vrot.slane %v3853, %v3882
  %v3884 = vlaneseq
  %v3885 = vshrl.u32 %v3884, 7
  %v3886 = vsub.s32 0, %v3885
  %v3887 = vrot.slane %v3859, %v3886
  %v3888 = vmul.f32 %v1730, %v3863
  %v3889 = vmul.f32 %v1730, %v3867
  %v3890 = vmul.f32 %v1730, %v3871
  %v3891 = vmul.f32 %v1730, %v3875
  %v3892 = vmul.f32 %v1730, %v3879
  %v3893 = vmul.f32 %v1730, %v3883
  %v3894 = vmul.f32 %v1730, %v3887
  %v3895 = vadd.f32 %v3832, %v3888
  %v3896 = vadd.f32 %v3833, %v3889
  %v3897 = vadd.f32 %v3834, %v3890
  %v3898 = vadd.f32 %v3835, %v3891
  %v3899 = vadd.f32 %v3836, %v3892
  %v3900 = vadd.f32 %v3837, %v3893
  %v3901 = vadd.f32 %v3838, %v3894
  %v3902 = vlaneseq
  %v3903 = vshrl.u32 %v3902, 7
  %v3904 = vsub.s32 1, %v3903
  %v3905 = vrot.slane %v3858, %v3904
  %v3906 = vlaneseq
  %v3907 = vshrl.u32 %v3906, 7
  %v3908 = vsub.s32 1, %v3907
  %v3909 = vrot.slane %v3857, %v3908
  %v3910 = vlaneseq
  %v3911 = vshrl.u32 %v3910, 7
  %v3912 = vsub.s32 1, %v3911
  %v3913 = vrot.slane %v3856, %v3912
  %v3914 = vlaneseq
  %v3915 = vshrl.u32 %v3914, 7
  %v3916 = vsub.s32 1, %v3915
  %v3917 = vrot.slane %v3855, %v3916
  %v3918 = vlaneseq
  %v3919 = vshrl.u32 %v3918, 7
  %v3920 = vsub.s32 1, %v3919
  %v3921 = vrot.slane %v3854, %v3920
  %v3922 = vlaneseq
  %v3923 = vshrl.u32 %v3922, 7
  %v3924 = vsub.s32 1, %v3923
  %v3925 = vrot.slane %v3853, %v3924
  %v3926 = vlaneseq
  %v3927 = vshrl.u32 %v3926, 7
  %v3928 = vsub.s32 1, %v3927
  %v3929 = vrot.slane %v3859, %v3928
  %v3930 = vmul.f32 %v1777, %v3905
  %v3931 = vmul.f32 %v1777, %v3909
  %v3932 = vmul.f32 %v1777, %v3913
  %v3933 = vmul.f32 %v1777, %v3917
  %v3934 = vmul.f32 %v1777, %v3921
  %v3935 = vmul.f32 %v1777, %v3925
  %v3936 = vmul.f32 %v1777, %v3929
  %v3937 = vadd.f32 %v3895, %v3930
  %v3938 = vadd.f32 %v3896, %v3931
  %v3939 = vadd.f32 %v3897, %v3932
  %v3940 = vadd.f32 %v3898, %v3933
  %v3941 = vadd.f32 %v3899, %v3934
  %v3942 = vadd.f32 %v3900, %v3935
  %v3943 = vadd.f32 %v3901, %v3936
  %v3944 = vlaneseq
  %v3945 = vshrl.u32 %v3944, 7
  %v3946 = vsub.s32 2, %v3945
  %v3947 = vrot.slane %v3858, %v3946
  %v3948 = vlaneseq
  %v3949 = vshrl.u32 %v3948, 7
  %v3950 = vsub.s32 2, %v3949
  %v3951 = vrot.slane %v3857, %v3950
  %v3952 = vlaneseq
  %v3953 = vshrl.u32 %v3952, 7
  %v3954 = vsub.s32 2, %v3953
  %v3955 = vrot.slane %v3856, %v3954
  %v3956 = vlaneseq
  %v3957 = vshrl.u32 %v3956, 7
  %v3958 = vsub.s32 2, %v3957
  %v3959 = vrot.slane %v3855, %v3958
  %v3960 = vlaneseq
  %v3961 = vshrl.u32 %v3960, 7
  %v3962 = vsub.s32 2, %v3961
  %v3963 = vrot.slane %v3854, %v3962
  %v3964 = vlaneseq
  %v3965 = vshrl.u32 %v3964, 7
  %v3966 = vsub.s32 2, %v3965
  %v3967 = vrot.slane %v3853, %v3966
  %v3968 = vlaneseq
  %v3969 = vshrl.u32 %v3968, 7
  %v3970 = vsub.s32 2, %v3969
  %v3971 = vrot.slane %v3859, %v3970
  %v3972 = vmul.f32 %v1824, %v3947
  %v3973 = vmul.f32 %v1824, %v3951
  %v3974 = vmul.f32 %v1824, %v3955
  %v3975 = vmul.f32 %v1824, %v3959
  %v3976 = vmul.f32 %v1824, %v3963
  %v3977 = vmul.f32 %v1824, %v3967
  %v3978 = vmul.f32 %v1824, %v3971
  %v3979 = vadd.f32 %v3937, %v3972
  %v3980 = vadd.f32 %v3938, %v3973
  %v3981 = vadd.f32 %v3939, %v3974
  %v3982 = vadd.f32 %v3940, %v3975
  %v3983 = vadd.f32 %v3941, %v3976
  %v3984 = vadd.f32 %v3942, %v3977
  %v3985 = vadd.f32 %v3943, %v3978
  %v3986 = vlaneseq
  %v3987 = vshrl.u32 %v3986, 7
  %v3988 = vsub.s32 3, %v3987
  %v3989 = vrot.slane %v3858, %v3988
  %v3990 = vlaneseq
  %v3991 = vshrl.u32 %v3990, 7
  %v3992 = vsub.s32 3, %v3991
  %v3993 = vrot.slane %v3857, %v3992
  %v3994 = vlaneseq
  %v3995 = vshrl.u32 %v3994, 7
  %v3996 = vsub.s32 3, %v3995
  %v3997 = vrot.slane %v3856, %v3996
  %v3998 = vlaneseq
  %v3999 = vshrl.u32 %v3998, 7
  %v4000 = vsub.s32 3, %v3999
  %v4001 = vrot.slane %v3855, %v4000
  %v4002 = vlaneseq
  %v4003 = vshrl.u32 %v4002, 7
  %v4004 = vsub.s32 3, %v4003
  %v4005 = vrot.slane %v3854, %v4004
  %v4006 = vlaneseq
  %v4007 = vshrl.u32 %v4006, 7
  %v4008 = vsub.s32 3, %v4007
  %v4009 = vrot.slane %v3853, %v4008
  %v4010 = vlaneseq
  %v4011 = vshrl.u32 %v4010, 7
  %v4012 = vsub.s32 3, %v4011
  %v4013 = vrot.slane %v3859, %v4012
  %v4014 = vmul.f32 %v1871, %v3989
  %v4015 = vmul.f32 %v1871, %v3993
  %v4016 = vmul.f32 %v1871, %v3997
  %v4017 = vmul.f32 %v1871, %v4001
  %v4018 = vmul.f32 %v1871, %v4005
  %v4019 = vmul.f32 %v1871, %v4009
  %v4020 = vmul.f32 %v1871, %v4013
  %v4021 = vadd.f32 %v3979, %v4014
  %v4022 = vadd.f32 %v3980, %v4015
  %v4023 = vadd.f32 %v3981, %v4016
  %v4024 = vadd.f32 %v3982, %v4017
  %v4025 = vadd.f32 %v3983, %v4018
  %v4026 = vadd.f32 %v3984, %v4019
  %v4027 = vadd.f32 %v3985, %v4020
  %4028 = vrot.lane.b32.xlu0 %v2388, 109
  %v4029 = vpop.permute.xlu0 %4028
  %4030 = vrot.lane.b32.xlu0 %v2398, 109
  %v4031 = vpop.permute.xlu0 %4030
  %4032 = vrot.lane.b32.xlu0 %v2389, 109
  %v4033 = vpop.permute.xlu0 %4032
  %4034 = vrot.lane.b32.xlu0 %v2399, 109
  %v4035 = vpop.permute.xlu0 %4034
  %4036 = vrot.lane.b32.xlu0 %v2390, 109
  %v4037 = vpop.permute.xlu0 %4036
  %4038 = vrot.lane.b32.xlu0 %v2400, 109
  %v4039 = vpop.permute.xlu0 %4038
  %4040 = vrot.lane.b32.xlu0 %v2391, 109
  %v4041 = vpop.permute.xlu0 %4040
  %v4042 = vsel %vm1929, %v4039, %v4041
  %v4043 = vsel %vm1929, %v4037, %v4039
  %v4044 = vsel %vm1929, %v4035, %v4037
  %v4045 = vsel %vm1929, %v4033, %v4035
  %v4046 = vsel %vm1929, %v4031, %v4033
  %v4047 = vsel %vm1929, %v4029, %v4031
  %v4048 = vsel %vm1929, %v4041, %v4029
  %v4049 = vlaneseq
  %v4050 = vshrl.u32 %v4049, 7
  %v4051 = vsub.s32 0, %v4050
  %v4052 = vrot.slane %v4047, %v4051
  %v4053 = vlaneseq
  %v4054 = vshrl.u32 %v4053, 7
  %v4055 = vsub.s32 0, %v4054
  %v4056 = vrot.slane %v4046, %v4055
  %v4057 = vlaneseq
  %v4058 = vshrl.u32 %v4057, 7
  %v4059 = vsub.s32 0, %v4058
  %v4060 = vrot.slane %v4045, %v4059
  %v4061 = vlaneseq
  %v4062 = vshrl.u32 %v4061, 7
  %v4063 = vsub.s32 0, %v4062
  %v4064 = vrot.slane %v4044, %v4063
  %v4065 = vlaneseq
  %v4066 = vshrl.u32 %v4065, 7
  %v4067 = vsub.s32 0, %v4066
  %v4068 = vrot.slane %v4043, %v4067
  %v4069 = vlaneseq
  %v4070 = vshrl.u32 %v4069, 7
  %v4071 = vsub.s32 0, %v4070
  %v4072 = vrot.slane %v4042, %v4071
  %v4073 = vlaneseq
  %v4074 = vshrl.u32 %v4073, 7
  %v4075 = vsub.s32 0, %v4074
  %v4076 = vrot.slane %v4048, %v4075
  %v4077 = vmul.f32 %v1940, %v4052
  %v4078 = vmul.f32 %v1940, %v4056
  %v4079 = vmul.f32 %v1940, %v4060
  %v4080 = vmul.f32 %v1940, %v4064
  %v4081 = vmul.f32 %v1940, %v4068
  %v4082 = vmul.f32 %v1940, %v4072
  %v4083 = vmul.f32 %v1940, %v4076
  %v4084 = vadd.f32 %v4021, %v4077
  %v4085 = vadd.f32 %v4022, %v4078
  %v4086 = vadd.f32 %v4023, %v4079
  %v4087 = vadd.f32 %v4024, %v4080
  %v4088 = vadd.f32 %v4025, %v4081
  %v4089 = vadd.f32 %v4026, %v4082
  %v4090 = vadd.f32 %v4027, %v4083
  %v4091 = vlaneseq
  %v4092 = vshrl.u32 %v4091, 7
  %v4093 = vsub.s32 1, %v4092
  %v4094 = vrot.slane %v4047, %v4093
  %v4095 = vlaneseq
  %v4096 = vshrl.u32 %v4095, 7
  %v4097 = vsub.s32 1, %v4096
  %v4098 = vrot.slane %v4046, %v4097
  %v4099 = vlaneseq
  %v4100 = vshrl.u32 %v4099, 7
  %v4101 = vsub.s32 1, %v4100
  %v4102 = vrot.slane %v4045, %v4101
  %v4103 = vlaneseq
  %v4104 = vshrl.u32 %v4103, 7
  %v4105 = vsub.s32 1, %v4104
  %v4106 = vrot.slane %v4044, %v4105
  %v4107 = vlaneseq
  %v4108 = vshrl.u32 %v4107, 7
  %v4109 = vsub.s32 1, %v4108
  %v4110 = vrot.slane %v4043, %v4109
  %v4111 = vlaneseq
  %v4112 = vshrl.u32 %v4111, 7
  %v4113 = vsub.s32 1, %v4112
  %v4114 = vrot.slane %v4042, %v4113
  %v4115 = vlaneseq
  %v4116 = vshrl.u32 %v4115, 7
  %v4117 = vsub.s32 1, %v4116
  %v4118 = vrot.slane %v4048, %v4117
  %v4119 = vmul.f32 %v1987, %v4094
  %v4120 = vmul.f32 %v1987, %v4098
  %v4121 = vmul.f32 %v1987, %v4102
  %v4122 = vmul.f32 %v1987, %v4106
  %v4123 = vmul.f32 %v1987, %v4110
  %v4124 = vmul.f32 %v1987, %v4114
  %v4125 = vmul.f32 %v1987, %v4118
  %v4126 = vadd.f32 %v4084, %v4119
  %v4127 = vadd.f32 %v4085, %v4120
  %v4128 = vadd.f32 %v4086, %v4121
  %v4129 = vadd.f32 %v4087, %v4122
  %v4130 = vadd.f32 %v4088, %v4123
  %v4131 = vadd.f32 %v4089, %v4124
  %v4132 = vadd.f32 %v4090, %v4125
  %v4133 = vlaneseq
  %v4134 = vshrl.u32 %v4133, 7
  %v4135 = vsub.s32 2, %v4134
  %v4136 = vrot.slane %v4047, %v4135
  %v4137 = vlaneseq
  %v4138 = vshrl.u32 %v4137, 7
  %v4139 = vsub.s32 2, %v4138
  %v4140 = vrot.slane %v4046, %v4139
  %v4141 = vlaneseq
  %v4142 = vshrl.u32 %v4141, 7
  %v4143 = vsub.s32 2, %v4142
  %v4144 = vrot.slane %v4045, %v4143
  %v4145 = vlaneseq
  %v4146 = vshrl.u32 %v4145, 7
  %v4147 = vsub.s32 2, %v4146
  %v4148 = vrot.slane %v4044, %v4147
  %v4149 = vlaneseq
  %v4150 = vshrl.u32 %v4149, 7
  %v4151 = vsub.s32 2, %v4150
  %v4152 = vrot.slane %v4043, %v4151
  %v4153 = vlaneseq
  %v4154 = vshrl.u32 %v4153, 7
  %v4155 = vsub.s32 2, %v4154
  %v4156 = vrot.slane %v4042, %v4155
  %v4157 = vlaneseq
  %v4158 = vshrl.u32 %v4157, 7
  %v4159 = vsub.s32 2, %v4158
  %v4160 = vrot.slane %v4048, %v4159
  %v4161 = vmul.f32 %v2034, %v4136
  %v4162 = vmul.f32 %v2034, %v4140
  %v4163 = vmul.f32 %v2034, %v4144
  %v4164 = vmul.f32 %v2034, %v4148
  %v4165 = vmul.f32 %v2034, %v4152
  %v4166 = vmul.f32 %v2034, %v4156
  %v4167 = vmul.f32 %v2034, %v4160
  %v4168 = vadd.f32 %v4126, %v4161
  %v4169 = vadd.f32 %v4127, %v4162
  %v4170 = vadd.f32 %v4128, %v4163
  %v4171 = vadd.f32 %v4129, %v4164
  %v4172 = vadd.f32 %v4130, %v4165
  %v4173 = vadd.f32 %v4131, %v4166
  %v4174 = vadd.f32 %v4132, %v4167
  %v4175 = vlaneseq
  %v4176 = vshrl.u32 %v4175, 7
  %v4177 = vsub.s32 3, %v4176
  %v4178 = vrot.slane %v4047, %v4177
  %v4179 = vlaneseq
  %v4180 = vshrl.u32 %v4179, 7
  %v4181 = vsub.s32 3, %v4180
  %v4182 = vrot.slane %v4046, %v4181
  %v4183 = vlaneseq
  %v4184 = vshrl.u32 %v4183, 7
  %v4185 = vsub.s32 3, %v4184
  %v4186 = vrot.slane %v4045, %v4185
  %v4187 = vlaneseq
  %v4188 = vshrl.u32 %v4187, 7
  %v4189 = vsub.s32 3, %v4188
  %v4190 = vrot.slane %v4044, %v4189
  %v4191 = vlaneseq
  %v4192 = vshrl.u32 %v4191, 7
  %v4193 = vsub.s32 3, %v4192
  %v4194 = vrot.slane %v4043, %v4193
  %v4195 = vlaneseq
  %v4196 = vshrl.u32 %v4195, 7
  %v4197 = vsub.s32 3, %v4196
  %v4198 = vrot.slane %v4042, %v4197
  %v4199 = vlaneseq
  %v4200 = vshrl.u32 %v4199, 7
  %v4201 = vsub.s32 3, %v4200
  %v4202 = vrot.slane %v4048, %v4201
  %v4203 = vmul.f32 %v2081, %v4178
  %v4204 = vmul.f32 %v2081, %v4182
  %v4205 = vmul.f32 %v2081, %v4186
  %v4206 = vmul.f32 %v2081, %v4190
  %v4207 = vmul.f32 %v2081, %v4194
  %v4208 = vmul.f32 %v2081, %v4198
  %v4209 = vmul.f32 %v2081, %v4202
  %v4210 = vadd.f32 %v4168, %v4203
  %v4211 = vadd.f32 %v4169, %v4204
  %v4212 = vadd.f32 %v4170, %v4205
  %v4213 = vadd.f32 %v4171, %v4206
  %v4214 = vadd.f32 %v4172, %v4207
  %v4215 = vadd.f32 %v4173, %v4208
  %v4216 = vadd.f32 %v4174, %v4209
  %v4217 = vadd.f32 %v4210, %v2128
  %v4218 = vadd.f32 %v4211, %v2128
  %v4219 = vadd.f32 %v4212, %v2128
  %v4220 = vadd.f32 %v4213, %v2128
  %v4221 = vadd.f32 %v4214, %v2128
  %v4222 = vadd.f32 %v4215, %v2128
  %v4223 = vadd.f32 %v4216, %v2128
  %v4224 = vmax.f32 %v4217, 0.0
  %v4225 = vmax.f32 %v4218, 0.0
  %v4226 = vmax.f32 %v4219, 0.0
  %v4227 = vmax.f32 %v4220, 0.0
  %v4228 = vmax.f32 %v4221, 0.0
  %v4229 = vmax.f32 %v4222, 0.0
  %v4230 = vmax.f32 %v4223, 0.0
  %v4231 = vlaneseq
  %v4232 = vshrl.u32 %v4231, 7
  %v4233 = vsub.s32 0, %v4232
  %v4234 = vrot.slane %v4224, %v4233
  %v4235 = vlaneseq
  %v4236 = vshrl.u32 %v4235, 7
  %v4237 = vsub.s32 0, %v4236
  %v4238 = vrot.slane %v4225, %v4237
  %v4239 = vlaneseq
  %v4240 = vshrl.u32 %v4239, 7
  %v4241 = vsub.s32 0, %v4240
  %v4242 = vrot.slane %v4226, %v4241
  %v4243 = vlaneseq
  %v4244 = vshrl.u32 %v4243, 7
  %v4245 = vsub.s32 0, %v4244
  %v4246 = vrot.slane %v4227, %v4245
  %v4247 = vlaneseq
  %v4248 = vshrl.u32 %v4247, 7
  %v4249 = vsub.s32 0, %v4248
  %v4250 = vrot.slane %v4228, %v4249
  %v4251 = vlaneseq
  %v4252 = vshrl.u32 %v4251, 7
  %v4253 = vsub.s32 0, %v4252
  %v4254 = vrot.slane %v4229, %v4253
  %v4255 = vlaneseq
  %v4256 = vshrl.u32 %v4255, 7
  %v4257 = vsub.s32 0, %v4256
  %v4258 = vrot.slane %v4230, %v4257
  %v4259 = vmul.f32 %v2147, %v4234
  %v4260 = vmul.f32 %v2147, %v4238
  %v4261 = vmul.f32 %v2147, %v4242
  %v4262 = vmul.f32 %v2147, %v4246
  %v4263 = vmul.f32 %v2147, %v4250
  %v4264 = vmul.f32 %v2147, %v4254
  %v4265 = vmul.f32 %v2147, %v4258
  %v4266 = vlaneseq
  %v4267 = vshrl.u32 %v4266, 7
  %v4268 = vsub.s32 1, %v4267
  %v4269 = vrot.slane %v4224, %v4268
  %v4270 = vlaneseq
  %v4271 = vshrl.u32 %v4270, 7
  %v4272 = vsub.s32 1, %v4271
  %v4273 = vrot.slane %v4225, %v4272
  %v4274 = vlaneseq
  %v4275 = vshrl.u32 %v4274, 7
  %v4276 = vsub.s32 1, %v4275
  %v4277 = vrot.slane %v4226, %v4276
  %v4278 = vlaneseq
  %v4279 = vshrl.u32 %v4278, 7
  %v4280 = vsub.s32 1, %v4279
  %v4281 = vrot.slane %v4227, %v4280
  %v4282 = vlaneseq
  %v4283 = vshrl.u32 %v4282, 7
  %v4284 = vsub.s32 1, %v4283
  %v4285 = vrot.slane %v4228, %v4284
  %v4286 = vlaneseq
  %v4287 = vshrl.u32 %v4286, 7
  %v4288 = vsub.s32 1, %v4287
  %v4289 = vrot.slane %v4229, %v4288
  %v4290 = vlaneseq
  %v4291 = vshrl.u32 %v4290, 7
  %v4292 = vsub.s32 1, %v4291
  %v4293 = vrot.slane %v4230, %v4292
  %v4294 = vmul.f32 %v2187, %v4269
  %v4295 = vmul.f32 %v2187, %v4273
  %v4296 = vmul.f32 %v2187, %v4277
  %v4297 = vmul.f32 %v2187, %v4281
  %v4298 = vmul.f32 %v2187, %v4285
  %v4299 = vmul.f32 %v2187, %v4289
  %v4300 = vmul.f32 %v2187, %v4293
  %v4301 = vadd.f32 %v4259, %v4294
  %v4302 = vadd.f32 %v4260, %v4295
  %v4303 = vadd.f32 %v4261, %v4296
  %v4304 = vadd.f32 %v4262, %v4297
  %v4305 = vadd.f32 %v4263, %v4298
  %v4306 = vadd.f32 %v4264, %v4299
  %v4307 = vadd.f32 %v4265, %v4300
  %v4308 = vlaneseq
  %v4309 = vshrl.u32 %v4308, 7
  %v4310 = vsub.s32 2, %v4309
  %v4311 = vrot.slane %v4224, %v4310
  %v4312 = vlaneseq
  %v4313 = vshrl.u32 %v4312, 7
  %v4314 = vsub.s32 2, %v4313
  %v4315 = vrot.slane %v4225, %v4314
  %v4316 = vlaneseq
  %v4317 = vshrl.u32 %v4316, 7
  %v4318 = vsub.s32 2, %v4317
  %v4319 = vrot.slane %v4226, %v4318
  %v4320 = vlaneseq
  %v4321 = vshrl.u32 %v4320, 7
  %v4322 = vsub.s32 2, %v4321
  %v4323 = vrot.slane %v4227, %v4322
  %v4324 = vlaneseq
  %v4325 = vshrl.u32 %v4324, 7
  %v4326 = vsub.s32 2, %v4325
  %v4327 = vrot.slane %v4228, %v4326
  %v4328 = vlaneseq
  %v4329 = vshrl.u32 %v4328, 7
  %v4330 = vsub.s32 2, %v4329
  %v4331 = vrot.slane %v4229, %v4330
  %v4332 = vlaneseq
  %v4333 = vshrl.u32 %v4332, 7
  %v4334 = vsub.s32 2, %v4333
  %v4335 = vrot.slane %v4230, %v4334
  %v4336 = vmul.f32 %v2234, %v4311
  %v4337 = vmul.f32 %v2234, %v4315
  %v4338 = vmul.f32 %v2234, %v4319
  %v4339 = vmul.f32 %v2234, %v4323
  %v4340 = vmul.f32 %v2234, %v4327
  %v4341 = vmul.f32 %v2234, %v4331
  %v4342 = vmul.f32 %v2234, %v4335
  %v4343 = vadd.f32 %v4301, %v4336
  %v4344 = vadd.f32 %v4302, %v4337
  %v4345 = vadd.f32 %v4303, %v4338
  %v4346 = vadd.f32 %v4304, %v4339
  %v4347 = vadd.f32 %v4305, %v4340
  %v4348 = vadd.f32 %v4306, %v4341
  %v4349 = vadd.f32 %v4307, %v4342
  %v4350 = vlaneseq
  %v4351 = vshrl.u32 %v4350, 7
  %v4352 = vsub.s32 3, %v4351
  %v4353 = vrot.slane %v4224, %v4352
  %v4354 = vlaneseq
  %v4355 = vshrl.u32 %v4354, 7
  %v4356 = vsub.s32 3, %v4355
  %v4357 = vrot.slane %v4225, %v4356
  %v4358 = vlaneseq
  %v4359 = vshrl.u32 %v4358, 7
  %v4360 = vsub.s32 3, %v4359
  %v4361 = vrot.slane %v4226, %v4360
  %v4362 = vlaneseq
  %v4363 = vshrl.u32 %v4362, 7
  %v4364 = vsub.s32 3, %v4363
  %v4365 = vrot.slane %v4227, %v4364
  %v4366 = vlaneseq
  %v4367 = vshrl.u32 %v4366, 7
  %v4368 = vsub.s32 3, %v4367
  %v4369 = vrot.slane %v4228, %v4368
  %v4370 = vlaneseq
  %v4371 = vshrl.u32 %v4370, 7
  %v4372 = vsub.s32 3, %v4371
  %v4373 = vrot.slane %v4229, %v4372
  %v4374 = vlaneseq
  %v4375 = vshrl.u32 %v4374, 7
  %v4376 = vsub.s32 3, %v4375
  %v4377 = vrot.slane %v4230, %v4376
  %v4378 = vmul.f32 %v2281, %v4353
  %v4379 = vmul.f32 %v2281, %v4357
  %v4380 = vmul.f32 %v2281, %v4361
  %v4381 = vmul.f32 %v2281, %v4365
  %v4382 = vmul.f32 %v2281, %v4369
  %v4383 = vmul.f32 %v2281, %v4373
  %v4384 = vmul.f32 %v2281, %v4377
  %v4385 = vadd.f32 %v4343, %v4378
  %v4386 = vadd.f32 %v4344, %v4379
  %v4387 = vadd.f32 %v4345, %v4380
  %v4388 = vadd.f32 %v4346, %v4381
  %v4389 = vadd.f32 %v4347, %v4382
  %v4390 = vadd.f32 %v4348, %v4383
  %v4391 = vadd.f32 %v4349, %v4384
  %v4393 = vlaneseq
  %v4394 = vshrl.u32 %v4393, 7
  %v4395 = vsub.s32 0, %v4394
  %v4396 = vrot.slane %v2393, %v4395
  %v4397 = vlaneseq
  %v4398 = vshrl.u32 %v4397, 7
  %v4399 = vsub.s32 1, %v4398
  %v4400 = vrot.slane %v2393, %v4399
  %v4401 = vlaneseq
  %v4402 = vshrl.u32 %v4401, 7
  %v4403 = vsub.s32 2, %v4402
  %v4404 = vrot.slane %v2393, %v4403
  %v4405 = vlaneseq
  %v4406 = vshrl.u32 %v4405, 7
  %v4407 = vsub.s32 3, %v4406
  %v4408 = vrot.slane %v2393, %v4407
  %v4409 = vlaneseq
  %v4410 = vshrl.u32 %v4409, 7
  %v4411 = vsub.s32 4, %v4410
  %v4412 = vrot.slane %v2393, %v4411
  %v4413 = vlaneseq
  %v4414 = vshrl.u32 %v4413, 7
  %v4415 = vsub.s32 5, %v4414
  %v4416 = vrot.slane %v2393, %v4415
  %v4417 = vlaneseq
  %v4418 = vshrl.u32 %v4417, 7
  %v4419 = vsub.s32 6, %v4418
  %v4420 = vrot.slane %v2393, %v4419
  %v4428 = vmul.f32 %v4385, %v4396
  %v4429 = vmul.f32 %v4386, %v4400
  %v4430 = vmul.f32 %v4387, %v4404
  %v4431 = vmul.f32 %v4388, %v4408
  %v4432 = vmul.f32 %v4389, %v4412
  %v4433 = vmul.f32 %v4390, %v4416
  %v4434 = vmul.f32 %v4391, %v4420
  %v4441 = vcombine.low %v4428, %v4429
  %v4442 = vcombine.low %v4430, %v4431
  %v4443 = vcombine.low %v4432, %v4433
  %v4447 = vadd.f32 %v2388, %v4441
  %v4448 = vadd.f32 %v2389, %v4442
  %v4449 = vadd.f32 %v2390, %v4443
  %v4450 = vadd.f32 %v2391, %v4434
  %4451 = vst [vmem:[%s5] sm:$0xff] %v4447
  %4452 = vst [vmem:[%s5 + $0x8] sm:$0xff] %v4448
  %4453 = vst [vmem:[%s5 + $0x10] sm:$0xff] %v4449
  %4454 = vst [vmem:[%s5 + $0x18] sm:$0xf] %v4450
  %v4455 = vld [vmem:[%s5] sm:$0xff]
  %v4456 = vld [vmem:[%s5 + $0x8] sm:$0xff]
  %v4457 = vld [vmem:[%s5 + $0x10] sm:$0xff]
  %v4458 = vld [vmem:[%s5 + $0x18] sm:$0xf]
  %s4459 = scalar_lea.vmem %s4, 14
  %v4460 = vld [vmem:[%s4459] sm:$0xff]
  %v4465 = vcombine.high %v4455, %v4455
  %v4466 = vcombine.high %v4456, %v4456
  %v4467 = vcombine.high %v4457, %v4457
  %4471 = vrot.lane.b32.xlu0 %v4455, 19
  %v4472 = vpop.permute.xlu0 %4471
  %4473 = vrot.lane.b32.xlu0 %v4465, 19
  %v4474 = vpop.permute.xlu0 %4473
  %4475 = vrot.lane.b32.xlu0 %v4456, 19
  %v4476 = vpop.permute.xlu0 %4475
  %4477 = vrot.lane.b32.xlu0 %v4466, 19
  %v4478 = vpop.permute.xlu0 %4477
  %4479 = vrot.lane.b32.xlu0 %v4457, 19
  %v4480 = vpop.permute.xlu0 %4479
  %4481 = vrot.lane.b32.xlu0 %v4467, 19
  %v4482 = vpop.permute.xlu0 %4481
  %4483 = vrot.lane.b32.xlu0 %v4458, 19
  %v4484 = vpop.permute.xlu0 %4483
  %v4485 = vsel %vm138, %v4482, %v4484
  %v4486 = vsel %vm138, %v4480, %v4482
  %v4487 = vsel %vm138, %v4478, %v4480
  %v4488 = vsel %vm138, %v4476, %v4478
  %v4489 = vsel %vm138, %v4474, %v4476
  %v4490 = vsel %vm138, %v4472, %v4474
  %v4491 = vsel %vm138, %v4484, %v4472
  %v4492 = vlaneseq
  %v4493 = vshrl.u32 %v4492, 7
  %v4494 = vsub.s32 0, %v4493
  %v4495 = vrot.slane %v4491, %v4494
  %v4496 = vlaneseq
  %v4497 = vshrl.u32 %v4496, 7
  %v4498 = vsub.s32 0, %v4497
  %v4499 = vrot.slane %v4490, %v4498
  %v4500 = vlaneseq
  %v4501 = vshrl.u32 %v4500, 7
  %v4502 = vsub.s32 0, %v4501
  %v4503 = vrot.slane %v4489, %v4502
  %v4504 = vlaneseq
  %v4505 = vshrl.u32 %v4504, 7
  %v4506 = vsub.s32 0, %v4505
  %v4507 = vrot.slane %v4488, %v4506
  %v4508 = vlaneseq
  %v4509 = vshrl.u32 %v4508, 7
  %v4510 = vsub.s32 0, %v4509
  %v4511 = vrot.slane %v4487, %v4510
  %v4512 = vlaneseq
  %v4513 = vshrl.u32 %v4512, 7
  %v4514 = vsub.s32 0, %v4513
  %v4515 = vrot.slane %v4486, %v4514
  %v4516 = vlaneseq
  %v4517 = vshrl.u32 %v4516, 7
  %v4518 = vsub.s32 0, %v4517
  %v4519 = vrot.slane %v4485, %v4518
  %v4520 = vmul.f32 %v149, %v4495
  %v4521 = vmul.f32 %v149, %v4499
  %v4522 = vmul.f32 %v149, %v4503
  %v4523 = vmul.f32 %v149, %v4507
  %v4524 = vmul.f32 %v149, %v4511
  %v4525 = vmul.f32 %v149, %v4515
  %v4526 = vmul.f32 %v149, %v4519
  %v4527 = vlaneseq
  %v4528 = vshrl.u32 %v4527, 7
  %v4529 = vsub.s32 1, %v4528
  %v4530 = vrot.slane %v4491, %v4529
  %v4531 = vlaneseq
  %v4532 = vshrl.u32 %v4531, 7
  %v4533 = vsub.s32 1, %v4532
  %v4534 = vrot.slane %v4490, %v4533
  %v4535 = vlaneseq
  %v4536 = vshrl.u32 %v4535, 7
  %v4537 = vsub.s32 1, %v4536
  %v4538 = vrot.slane %v4489, %v4537
  %v4539 = vlaneseq
  %v4540 = vshrl.u32 %v4539, 7
  %v4541 = vsub.s32 1, %v4540
  %v4542 = vrot.slane %v4488, %v4541
  %v4543 = vlaneseq
  %v4544 = vshrl.u32 %v4543, 7
  %v4545 = vsub.s32 1, %v4544
  %v4546 = vrot.slane %v4487, %v4545
  %v4547 = vlaneseq
  %v4548 = vshrl.u32 %v4547, 7
  %v4549 = vsub.s32 1, %v4548
  %v4550 = vrot.slane %v4486, %v4549
  %v4551 = vlaneseq
  %v4552 = vshrl.u32 %v4551, 7
  %v4553 = vsub.s32 1, %v4552
  %v4554 = vrot.slane %v4485, %v4553
  %v4555 = vmul.f32 %v189, %v4530
  %v4556 = vmul.f32 %v189, %v4534
  %v4557 = vmul.f32 %v189, %v4538
  %v4558 = vmul.f32 %v189, %v4542
  %v4559 = vmul.f32 %v189, %v4546
  %v4560 = vmul.f32 %v189, %v4550
  %v4561 = vmul.f32 %v189, %v4554
  %v4562 = vadd.f32 %v4520, %v4555
  %v4563 = vadd.f32 %v4521, %v4556
  %v4564 = vadd.f32 %v4522, %v4557
  %v4565 = vadd.f32 %v4523, %v4558
  %v4566 = vadd.f32 %v4524, %v4559
  %v4567 = vadd.f32 %v4525, %v4560
  %v4568 = vadd.f32 %v4526, %v4561
  %v4569 = vlaneseq
  %v4570 = vshrl.u32 %v4569, 7
  %v4571 = vsub.s32 2, %v4570
  %v4572 = vrot.slane %v4491, %v4571
  %v4573 = vlaneseq
  %v4574 = vshrl.u32 %v4573, 7
  %v4575 = vsub.s32 2, %v4574
  %v4576 = vrot.slane %v4490, %v4575
  %v4577 = vlaneseq
  %v4578 = vshrl.u32 %v4577, 7
  %v4579 = vsub.s32 2, %v4578
  %v4580 = vrot.slane %v4489, %v4579
  %v4581 = vlaneseq
  %v4582 = vshrl.u32 %v4581, 7
  %v4583 = vsub.s32 2, %v4582
  %v4584 = vrot.slane %v4488, %v4583
  %v4585 = vlaneseq
  %v4586 = vshrl.u32 %v4585, 7
  %v4587 = vsub.s32 2, %v4586
  %v4588 = vrot.slane %v4487, %v4587
  %v4589 = vlaneseq
  %v4590 = vshrl.u32 %v4589, 7
  %v4591 = vsub.s32 2, %v4590
  %v4592 = vrot.slane %v4486, %v4591
  %v4593 = vlaneseq
  %v4594 = vshrl.u32 %v4593, 7
  %v4595 = vsub.s32 2, %v4594
  %v4596 = vrot.slane %v4485, %v4595
  %v4597 = vmul.f32 %v236, %v4572
  %v4598 = vmul.f32 %v236, %v4576
  %v4599 = vmul.f32 %v236, %v4580
  %v4600 = vmul.f32 %v236, %v4584
  %v4601 = vmul.f32 %v236, %v4588
  %v4602 = vmul.f32 %v236, %v4592
  %v4603 = vmul.f32 %v236, %v4596
  %v4604 = vadd.f32 %v4562, %v4597
  %v4605 = vadd.f32 %v4563, %v4598
  %v4606 = vadd.f32 %v4564, %v4599
  %v4607 = vadd.f32 %v4565, %v4600
  %v4608 = vadd.f32 %v4566, %v4601
  %v4609 = vadd.f32 %v4567, %v4602
  %v4610 = vadd.f32 %v4568, %v4603
  %v4611 = vlaneseq
  %v4612 = vshrl.u32 %v4611, 7
  %v4613 = vsub.s32 3, %v4612
  %v4614 = vrot.slane %v4491, %v4613
  %v4615 = vlaneseq
  %v4616 = vshrl.u32 %v4615, 7
  %v4617 = vsub.s32 3, %v4616
  %v4618 = vrot.slane %v4490, %v4617
  %v4619 = vlaneseq
  %v4620 = vshrl.u32 %v4619, 7
  %v4621 = vsub.s32 3, %v4620
  %v4622 = vrot.slane %v4489, %v4621
  %v4623 = vlaneseq
  %v4624 = vshrl.u32 %v4623, 7
  %v4625 = vsub.s32 3, %v4624
  %v4626 = vrot.slane %v4488, %v4625
  %v4627 = vlaneseq
  %v4628 = vshrl.u32 %v4627, 7
  %v4629 = vsub.s32 3, %v4628
  %v4630 = vrot.slane %v4487, %v4629
  %v4631 = vlaneseq
  %v4632 = vshrl.u32 %v4631, 7
  %v4633 = vsub.s32 3, %v4632
  %v4634 = vrot.slane %v4486, %v4633
  %v4635 = vlaneseq
  %v4636 = vshrl.u32 %v4635, 7
  %v4637 = vsub.s32 3, %v4636
  %v4638 = vrot.slane %v4485, %v4637
  %v4639 = vmul.f32 %v283, %v4614
  %v4640 = vmul.f32 %v283, %v4618
  %v4641 = vmul.f32 %v283, %v4622
  %v4642 = vmul.f32 %v283, %v4626
  %v4643 = vmul.f32 %v283, %v4630
  %v4644 = vmul.f32 %v283, %v4634
  %v4645 = vmul.f32 %v283, %v4638
  %v4646 = vadd.f32 %v4604, %v4639
  %v4647 = vadd.f32 %v4605, %v4640
  %v4648 = vadd.f32 %v4606, %v4641
  %v4649 = vadd.f32 %v4607, %v4642
  %v4650 = vadd.f32 %v4608, %v4643
  %v4651 = vadd.f32 %v4609, %v4644
  %v4652 = vadd.f32 %v4610, %v4645
  %4653 = vrot.lane.b32.xlu0 %v4455, 18
  %v4654 = vpop.permute.xlu0 %4653
  %4655 = vrot.lane.b32.xlu0 %v4465, 18
  %v4656 = vpop.permute.xlu0 %4655
  %4657 = vrot.lane.b32.xlu0 %v4456, 18
  %v4658 = vpop.permute.xlu0 %4657
  %4659 = vrot.lane.b32.xlu0 %v4466, 18
  %v4660 = vpop.permute.xlu0 %4659
  %4661 = vrot.lane.b32.xlu0 %v4457, 18
  %v4662 = vpop.permute.xlu0 %4661
  %4663 = vrot.lane.b32.xlu0 %v4467, 18
  %v4664 = vpop.permute.xlu0 %4663
  %4665 = vrot.lane.b32.xlu0 %v4458, 18
  %v4666 = vpop.permute.xlu0 %4665
  %v4667 = vsel %vm341, %v4664, %v4666
  %v4668 = vsel %vm341, %v4662, %v4664
  %v4669 = vsel %vm341, %v4660, %v4662
  %v4670 = vsel %vm341, %v4658, %v4660
  %v4671 = vsel %vm341, %v4656, %v4658
  %v4672 = vsel %vm341, %v4654, %v4656
  %v4673 = vsel %vm341, %v4666, %v4654
  %v4674 = vlaneseq
  %v4675 = vshrl.u32 %v4674, 7
  %v4676 = vsub.s32 0, %v4675
  %v4677 = vrot.slane %v4673, %v4676
  %v4678 = vlaneseq
  %v4679 = vshrl.u32 %v4678, 7
  %v4680 = vsub.s32 0, %v4679
  %v4681 = vrot.slane %v4672, %v4680
  %v4682 = vlaneseq
  %v4683 = vshrl.u32 %v4682, 7
  %v4684 = vsub.s32 0, %v4683
  %v4685 = vrot.slane %v4671, %v4684
  %v4686 = vlaneseq
  %v4687 = vshrl.u32 %v4686, 7
  %v4688 = vsub.s32 0, %v4687
  %v4689 = vrot.slane %v4670, %v4688
  %v4690 = vlaneseq
  %v4691 = vshrl.u32 %v4690, 7
  %v4692 = vsub.s32 0, %v4691
  %v4693 = vrot.slane %v4669, %v4692
  %v4694 = vlaneseq
  %v4695 = vshrl.u32 %v4694, 7
  %v4696 = vsub.s32 0, %v4695
  %v4697 = vrot.slane %v4668, %v4696
  %v4698 = vlaneseq
  %v4699 = vshrl.u32 %v4698, 7
  %v4700 = vsub.s32 0, %v4699
  %v4701 = vrot.slane %v4667, %v4700
  %v4702 = vmul.f32 %v352, %v4677
  %v4703 = vmul.f32 %v352, %v4681
  %v4704 = vmul.f32 %v352, %v4685
  %v4705 = vmul.f32 %v352, %v4689
  %v4706 = vmul.f32 %v352, %v4693
  %v4707 = vmul.f32 %v352, %v4697
  %v4708 = vmul.f32 %v352, %v4701
  %v4709 = vadd.f32 %v4646, %v4702
  %v4710 = vadd.f32 %v4647, %v4703
  %v4711 = vadd.f32 %v4648, %v4704
  %v4712 = vadd.f32 %v4649, %v4705
  %v4713 = vadd.f32 %v4650, %v4706
  %v4714 = vadd.f32 %v4651, %v4707
  %v4715 = vadd.f32 %v4652, %v4708
  %v4716 = vlaneseq
  %v4717 = vshrl.u32 %v4716, 7
  %v4718 = vsub.s32 1, %v4717
  %v4719 = vrot.slane %v4673, %v4718
  %v4720 = vlaneseq
  %v4721 = vshrl.u32 %v4720, 7
  %v4722 = vsub.s32 1, %v4721
  %v4723 = vrot.slane %v4672, %v4722
  %v4724 = vlaneseq
  %v4725 = vshrl.u32 %v4724, 7
  %v4726 = vsub.s32 1, %v4725
  %v4727 = vrot.slane %v4671, %v4726
  %v4728 = vlaneseq
  %v4729 = vshrl.u32 %v4728, 7
  %v4730 = vsub.s32 1, %v4729
  %v4731 = vrot.slane %v4670, %v4730
  %v4732 = vlaneseq
  %v4733 = vshrl.u32 %v4732, 7
  %v4734 = vsub.s32 1, %v4733
  %v4735 = vrot.slane %v4669, %v4734
  %v4736 = vlaneseq
  %v4737 = vshrl.u32 %v4736, 7
  %v4738 = vsub.s32 1, %v4737
  %v4739 = vrot.slane %v4668, %v4738
  %v4740 = vlaneseq
  %v4741 = vshrl.u32 %v4740, 7
  %v4742 = vsub.s32 1, %v4741
  %v4743 = vrot.slane %v4667, %v4742
  %v4744 = vmul.f32 %v399, %v4719
  %v4745 = vmul.f32 %v399, %v4723
  %v4746 = vmul.f32 %v399, %v4727
  %v4747 = vmul.f32 %v399, %v4731
  %v4748 = vmul.f32 %v399, %v4735
  %v4749 = vmul.f32 %v399, %v4739
  %v4750 = vmul.f32 %v399, %v4743
  %v4751 = vadd.f32 %v4709, %v4744
  %v4752 = vadd.f32 %v4710, %v4745
  %v4753 = vadd.f32 %v4711, %v4746
  %v4754 = vadd.f32 %v4712, %v4747
  %v4755 = vadd.f32 %v4713, %v4748
  %v4756 = vadd.f32 %v4714, %v4749
  %v4757 = vadd.f32 %v4715, %v4750
  %v4758 = vlaneseq
  %v4759 = vshrl.u32 %v4758, 7
  %v4760 = vsub.s32 2, %v4759
  %v4761 = vrot.slane %v4673, %v4760
  %v4762 = vlaneseq
  %v4763 = vshrl.u32 %v4762, 7
  %v4764 = vsub.s32 2, %v4763
  %v4765 = vrot.slane %v4672, %v4764
  %v4766 = vlaneseq
  %v4767 = vshrl.u32 %v4766, 7
  %v4768 = vsub.s32 2, %v4767
  %v4769 = vrot.slane %v4671, %v4768
  %v4770 = vlaneseq
  %v4771 = vshrl.u32 %v4770, 7
  %v4772 = vsub.s32 2, %v4771
  %v4773 = vrot.slane %v4670, %v4772
  %v4774 = vlaneseq
  %v4775 = vshrl.u32 %v4774, 7
  %v4776 = vsub.s32 2, %v4775
  %v4777 = vrot.slane %v4669, %v4776
  %v4778 = vlaneseq
  %v4779 = vshrl.u32 %v4778, 7
  %v4780 = vsub.s32 2, %v4779
  %v4781 = vrot.slane %v4668, %v4780
  %v4782 = vlaneseq
  %v4783 = vshrl.u32 %v4782, 7
  %v4784 = vsub.s32 2, %v4783
  %v4785 = vrot.slane %v4667, %v4784
  %v4786 = vmul.f32 %v446, %v4761
  %v4787 = vmul.f32 %v446, %v4765
  %v4788 = vmul.f32 %v446, %v4769
  %v4789 = vmul.f32 %v446, %v4773
  %v4790 = vmul.f32 %v446, %v4777
  %v4791 = vmul.f32 %v446, %v4781
  %v4792 = vmul.f32 %v446, %v4785
  %v4793 = vadd.f32 %v4751, %v4786
  %v4794 = vadd.f32 %v4752, %v4787
  %v4795 = vadd.f32 %v4753, %v4788
  %v4796 = vadd.f32 %v4754, %v4789
  %v4797 = vadd.f32 %v4755, %v4790
  %v4798 = vadd.f32 %v4756, %v4791
  %v4799 = vadd.f32 %v4757, %v4792
  %v4800 = vlaneseq
  %v4801 = vshrl.u32 %v4800, 7
  %v4802 = vsub.s32 3, %v4801
  %v4803 = vrot.slane %v4673, %v4802
  %v4804 = vlaneseq
  %v4805 = vshrl.u32 %v4804, 7
  %v4806 = vsub.s32 3, %v4805
  %v4807 = vrot.slane %v4672, %v4806
  %v4808 = vlaneseq
  %v4809 = vshrl.u32 %v4808, 7
  %v4810 = vsub.s32 3, %v4809
  %v4811 = vrot.slane %v4671, %v4810
  %v4812 = vlaneseq
  %v4813 = vshrl.u32 %v4812, 7
  %v4814 = vsub.s32 3, %v4813
  %v4815 = vrot.slane %v4670, %v4814
  %v4816 = vlaneseq
  %v4817 = vshrl.u32 %v4816, 7
  %v4818 = vsub.s32 3, %v4817
  %v4819 = vrot.slane %v4669, %v4818
  %v4820 = vlaneseq
  %v4821 = vshrl.u32 %v4820, 7
  %v4822 = vsub.s32 3, %v4821
  %v4823 = vrot.slane %v4668, %v4822
  %v4824 = vlaneseq
  %v4825 = vshrl.u32 %v4824, 7
  %v4826 = vsub.s32 3, %v4825
  %v4827 = vrot.slane %v4667, %v4826
  %v4828 = vmul.f32 %v493, %v4803
  %v4829 = vmul.f32 %v493, %v4807
  %v4830 = vmul.f32 %v493, %v4811
  %v4831 = vmul.f32 %v493, %v4815
  %v4832 = vmul.f32 %v493, %v4819
  %v4833 = vmul.f32 %v493, %v4823
  %v4834 = vmul.f32 %v493, %v4827
  %v4835 = vadd.f32 %v4793, %v4828
  %v4836 = vadd.f32 %v4794, %v4829
  %v4837 = vadd.f32 %v4795, %v4830
  %v4838 = vadd.f32 %v4796, %v4831
  %v4839 = vadd.f32 %v4797, %v4832
  %v4840 = vadd.f32 %v4798, %v4833
  %v4841 = vadd.f32 %v4799, %v4834
  %4842 = vrot.lane.b32.xlu0 %v4455, 17
  %v4843 = vpop.permute.xlu0 %4842
  %4844 = vrot.lane.b32.xlu0 %v4465, 17
  %v4845 = vpop.permute.xlu0 %4844
  %4846 = vrot.lane.b32.xlu0 %v4456, 17
  %v4847 = vpop.permute.xlu0 %4846
  %4848 = vrot.lane.b32.xlu0 %v4466, 17
  %v4849 = vpop.permute.xlu0 %4848
  %4850 = vrot.lane.b32.xlu0 %v4457, 17
  %v4851 = vpop.permute.xlu0 %4850
  %4852 = vrot.lane.b32.xlu0 %v4467, 17
  %v4853 = vpop.permute.xlu0 %4852
  %4854 = vrot.lane.b32.xlu0 %v4458, 17
  %v4855 = vpop.permute.xlu0 %4854
  %v4856 = vsel %vm551, %v4853, %v4855
  %v4857 = vsel %vm551, %v4851, %v4853
  %v4858 = vsel %vm551, %v4849, %v4851
  %v4859 = vsel %vm551, %v4847, %v4849
  %v4860 = vsel %vm551, %v4845, %v4847
  %v4861 = vsel %vm551, %v4843, %v4845
  %v4862 = vsel %vm551, %v4855, %v4843
  %v4863 = vlaneseq
  %v4864 = vshrl.u32 %v4863, 7
  %v4865 = vsub.s32 0, %v4864
  %v4866 = vrot.slane %v4862, %v4865
  %v4867 = vlaneseq
  %v4868 = vshrl.u32 %v4867, 7
  %v4869 = vsub.s32 0, %v4868
  %v4870 = vrot.slane %v4861, %v4869
  %v4871 = vlaneseq
  %v4872 = vshrl.u32 %v4871, 7
  %v4873 = vsub.s32 0, %v4872
  %v4874 = vrot.slane %v4860, %v4873
  %v4875 = vlaneseq
  %v4876 = vshrl.u32 %v4875, 7
  %v4877 = vsub.s32 0, %v4876
  %v4878 = vrot.slane %v4859, %v4877
  %v4879 = vlaneseq
  %v4880 = vshrl.u32 %v4879, 7
  %v4881 = vsub.s32 0, %v4880
  %v4882 = vrot.slane %v4858, %v4881
  %v4883 = vlaneseq
  %v4884 = vshrl.u32 %v4883, 7
  %v4885 = vsub.s32 0, %v4884
  %v4886 = vrot.slane %v4857, %v4885
  %v4887 = vlaneseq
  %v4888 = vshrl.u32 %v4887, 7
  %v4889 = vsub.s32 0, %v4888
  %v4890 = vrot.slane %v4856, %v4889
  %v4891 = vmul.f32 %v562, %v4866
  %v4892 = vmul.f32 %v562, %v4870
  %v4893 = vmul.f32 %v562, %v4874
  %v4894 = vmul.f32 %v562, %v4878
  %v4895 = vmul.f32 %v562, %v4882
  %v4896 = vmul.f32 %v562, %v4886
  %v4897 = vmul.f32 %v562, %v4890
  %v4898 = vadd.f32 %v4835, %v4891
  %v4899 = vadd.f32 %v4836, %v4892
  %v4900 = vadd.f32 %v4837, %v4893
  %v4901 = vadd.f32 %v4838, %v4894
  %v4902 = vadd.f32 %v4839, %v4895
  %v4903 = vadd.f32 %v4840, %v4896
  %v4904 = vadd.f32 %v4841, %v4897
  %v4905 = vlaneseq
  %v4906 = vshrl.u32 %v4905, 7
  %v4907 = vsub.s32 1, %v4906
  %v4908 = vrot.slane %v4862, %v4907
  %v4909 = vlaneseq
  %v4910 = vshrl.u32 %v4909, 7
  %v4911 = vsub.s32 1, %v4910
  %v4912 = vrot.slane %v4861, %v4911
  %v4913 = vlaneseq
  %v4914 = vshrl.u32 %v4913, 7
  %v4915 = vsub.s32 1, %v4914
  %v4916 = vrot.slane %v4860, %v4915
  %v4917 = vlaneseq
  %v4918 = vshrl.u32 %v4917, 7
  %v4919 = vsub.s32 1, %v4918
  %v4920 = vrot.slane %v4859, %v4919
  %v4921 = vlaneseq
  %v4922 = vshrl.u32 %v4921, 7
  %v4923 = vsub.s32 1, %v4922
  %v4924 = vrot.slane %v4858, %v4923
  %v4925 = vlaneseq
  %v4926 = vshrl.u32 %v4925, 7
  %v4927 = vsub.s32 1, %v4926
  %v4928 = vrot.slane %v4857, %v4927
  %v4929 = vlaneseq
  %v4930 = vshrl.u32 %v4929, 7
  %v4931 = vsub.s32 1, %v4930
  %v4932 = vrot.slane %v4856, %v4931
  %v4933 = vmul.f32 %v609, %v4908
  %v4934 = vmul.f32 %v609, %v4912
  %v4935 = vmul.f32 %v609, %v4916
  %v4936 = vmul.f32 %v609, %v4920
  %v4937 = vmul.f32 %v609, %v4924
  %v4938 = vmul.f32 %v609, %v4928
  %v4939 = vmul.f32 %v609, %v4932
  %v4940 = vadd.f32 %v4898, %v4933
  %v4941 = vadd.f32 %v4899, %v4934
  %v4942 = vadd.f32 %v4900, %v4935
  %v4943 = vadd.f32 %v4901, %v4936
  %v4944 = vadd.f32 %v4902, %v4937
  %v4945 = vadd.f32 %v4903, %v4938
  %v4946 = vadd.f32 %v4904, %v4939
  %v4947 = vlaneseq
  %v4948 = vshrl.u32 %v4947, 7
  %v4949 = vsub.s32 2, %v4948
  %v4950 = vrot.slane %v4862, %v4949
  %v4951 = vlaneseq
  %v4952 = vshrl.u32 %v4951, 7
  %v4953 = vsub.s32 2, %v4952
  %v4954 = vrot.slane %v4861, %v4953
  %v4955 = vlaneseq
  %v4956 = vshrl.u32 %v4955, 7
  %v4957 = vsub.s32 2, %v4956
  %v4958 = vrot.slane %v4860, %v4957
  %v4959 = vlaneseq
  %v4960 = vshrl.u32 %v4959, 7
  %v4961 = vsub.s32 2, %v4960
  %v4962 = vrot.slane %v4859, %v4961
  %v4963 = vlaneseq
  %v4964 = vshrl.u32 %v4963, 7
  %v4965 = vsub.s32 2, %v4964
  %v4966 = vrot.slane %v4858, %v4965
  %v4967 = vlaneseq
  %v4968 = vshrl.u32 %v4967, 7
  %v4969 = vsub.s32 2, %v4968
  %v4970 = vrot.slane %v4857, %v4969
  %v4971 = vlaneseq
  %v4972 = vshrl.u32 %v4971, 7
  %v4973 = vsub.s32 2, %v4972
  %v4974 = vrot.slane %v4856, %v4973
  %v4975 = vmul.f32 %v656, %v4950
  %v4976 = vmul.f32 %v656, %v4954
  %v4977 = vmul.f32 %v656, %v4958
  %v4978 = vmul.f32 %v656, %v4962
  %v4979 = vmul.f32 %v656, %v4966
  %v4980 = vmul.f32 %v656, %v4970
  %v4981 = vmul.f32 %v656, %v4974
  %v4982 = vadd.f32 %v4940, %v4975
  %v4983 = vadd.f32 %v4941, %v4976
  %v4984 = vadd.f32 %v4942, %v4977
  %v4985 = vadd.f32 %v4943, %v4978
  %v4986 = vadd.f32 %v4944, %v4979
  %v4987 = vadd.f32 %v4945, %v4980
  %v4988 = vadd.f32 %v4946, %v4981
  %v4989 = vlaneseq
  %v4990 = vshrl.u32 %v4989, 7
  %v4991 = vsub.s32 3, %v4990
  %v4992 = vrot.slane %v4862, %v4991
  %v4993 = vlaneseq
  %v4994 = vshrl.u32 %v4993, 7
  %v4995 = vsub.s32 3, %v4994
  %v4996 = vrot.slane %v4861, %v4995
  %v4997 = vlaneseq
  %v4998 = vshrl.u32 %v4997, 7
  %v4999 = vsub.s32 3, %v4998
  %v5000 = vrot.slane %v4860, %v4999
  %v5001 = vlaneseq
  %v5002 = vshrl.u32 %v5001, 7
  %v5003 = vsub.s32 3, %v5002
  %v5004 = vrot.slane %v4859, %v5003
  %v5005 = vlaneseq
  %v5006 = vshrl.u32 %v5005, 7
  %v5007 = vsub.s32 3, %v5006
  %v5008 = vrot.slane %v4858, %v5007
  %v5009 = vlaneseq
  %v5010 = vshrl.u32 %v5009, 7
  %v5011 = vsub.s32 3, %v5010
  %v5012 = vrot.slane %v4857, %v5011
  %v5013 = vlaneseq
  %v5014 = vshrl.u32 %v5013, 7
  %v5015 = vsub.s32 3, %v5014
  %v5016 = vrot.slane %v4856, %v5015
  %v5017 = vmul.f32 %v703, %v4992
  %v5018 = vmul.f32 %v703, %v4996
  %v5019 = vmul.f32 %v703, %v5000
  %v5020 = vmul.f32 %v703, %v5004
  %v5021 = vmul.f32 %v703, %v5008
  %v5022 = vmul.f32 %v703, %v5012
  %v5023 = vmul.f32 %v703, %v5016
  %v5024 = vadd.f32 %v4982, %v5017
  %v5025 = vadd.f32 %v4983, %v5018
  %v5026 = vadd.f32 %v4984, %v5019
  %v5027 = vadd.f32 %v4985, %v5020
  %v5028 = vadd.f32 %v4986, %v5021
  %v5029 = vadd.f32 %v4987, %v5022
  %v5030 = vadd.f32 %v4988, %v5023
  %5031 = vrot.lane.b32.xlu0 %v4455, 1
  %v5032 = vpop.permute.xlu0 %5031
  %5033 = vrot.lane.b32.xlu0 %v4465, 1
  %v5034 = vpop.permute.xlu0 %5033
  %5035 = vrot.lane.b32.xlu0 %v4456, 1
  %v5036 = vpop.permute.xlu0 %5035
  %5037 = vrot.lane.b32.xlu0 %v4466, 1
  %v5038 = vpop.permute.xlu0 %5037
  %5039 = vrot.lane.b32.xlu0 %v4457, 1
  %v5040 = vpop.permute.xlu0 %5039
  %5041 = vrot.lane.b32.xlu0 %v4467, 1
  %v5042 = vpop.permute.xlu0 %5041
  %5043 = vrot.lane.b32.xlu0 %v4458, 1
  %v5044 = vpop.permute.xlu0 %5043
  %v5045 = vsel %vm761, %v5042, %v5044
  %v5046 = vsel %vm761, %v5040, %v5042
  %v5047 = vsel %vm761, %v5038, %v5040
  %v5048 = vsel %vm761, %v5036, %v5038
  %v5049 = vsel %vm761, %v5034, %v5036
  %v5050 = vsel %vm761, %v5032, %v5034
  %v5051 = vsel %vm761, %v5044, %v5032
  %v5052 = vlaneseq
  %v5053 = vshrl.u32 %v5052, 7
  %v5054 = vsub.s32 0, %v5053
  %v5055 = vrot.slane %v5051, %v5054
  %v5056 = vlaneseq
  %v5057 = vshrl.u32 %v5056, 7
  %v5058 = vsub.s32 0, %v5057
  %v5059 = vrot.slane %v5050, %v5058
  %v5060 = vlaneseq
  %v5061 = vshrl.u32 %v5060, 7
  %v5062 = vsub.s32 0, %v5061
  %v5063 = vrot.slane %v5049, %v5062
  %v5064 = vlaneseq
  %v5065 = vshrl.u32 %v5064, 7
  %v5066 = vsub.s32 0, %v5065
  %v5067 = vrot.slane %v5048, %v5066
  %v5068 = vlaneseq
  %v5069 = vshrl.u32 %v5068, 7
  %v5070 = vsub.s32 0, %v5069
  %v5071 = vrot.slane %v5047, %v5070
  %v5072 = vlaneseq
  %v5073 = vshrl.u32 %v5072, 7
  %v5074 = vsub.s32 0, %v5073
  %v5075 = vrot.slane %v5046, %v5074
  %v5076 = vlaneseq
  %v5077 = vshrl.u32 %v5076, 7
  %v5078 = vsub.s32 0, %v5077
  %v5079 = vrot.slane %v5045, %v5078
  %v5080 = vmul.f32 %v772, %v5055
  %v5081 = vmul.f32 %v772, %v5059
  %v5082 = vmul.f32 %v772, %v5063
  %v5083 = vmul.f32 %v772, %v5067
  %v5084 = vmul.f32 %v772, %v5071
  %v5085 = vmul.f32 %v772, %v5075
  %v5086 = vmul.f32 %v772, %v5079
  %v5087 = vadd.f32 %v5024, %v5080
  %v5088 = vadd.f32 %v5025, %v5081
  %v5089 = vadd.f32 %v5026, %v5082
  %v5090 = vadd.f32 %v5027, %v5083
  %v5091 = vadd.f32 %v5028, %v5084
  %v5092 = vadd.f32 %v5029, %v5085
  %v5093 = vadd.f32 %v5030, %v5086
  %v5094 = vlaneseq
  %v5095 = vshrl.u32 %v5094, 7
  %v5096 = vsub.s32 1, %v5095
  %v5097 = vrot.slane %v5051, %v5096
  %v5098 = vlaneseq
  %v5099 = vshrl.u32 %v5098, 7
  %v5100 = vsub.s32 1, %v5099
  %v5101 = vrot.slane %v5050, %v5100
  %v5102 = vlaneseq
  %v5103 = vshrl.u32 %v5102, 7
  %v5104 = vsub.s32 1, %v5103
  %v5105 = vrot.slane %v5049, %v5104
  %v5106 = vlaneseq
  %v5107 = vshrl.u32 %v5106, 7
  %v5108 = vsub.s32 1, %v5107
  %v5109 = vrot.slane %v5048, %v5108
  %v5110 = vlaneseq
  %v5111 = vshrl.u32 %v5110, 7
  %v5112 = vsub.s32 1, %v5111
  %v5113 = vrot.slane %v5047, %v5112
  %v5114 = vlaneseq
  %v5115 = vshrl.u32 %v5114, 7
  %v5116 = vsub.s32 1, %v5115
  %v5117 = vrot.slane %v5046, %v5116
  %v5118 = vlaneseq
  %v5119 = vshrl.u32 %v5118, 7
  %v5120 = vsub.s32 1, %v5119
  %v5121 = vrot.slane %v5045, %v5120
  %v5122 = vmul.f32 %v819, %v5097
  %v5123 = vmul.f32 %v819, %v5101
  %v5124 = vmul.f32 %v819, %v5105
  %v5125 = vmul.f32 %v819, %v5109
  %v5126 = vmul.f32 %v819, %v5113
  %v5127 = vmul.f32 %v819, %v5117
  %v5128 = vmul.f32 %v819, %v5121
  %v5129 = vadd.f32 %v5087, %v5122
  %v5130 = vadd.f32 %v5088, %v5123
  %v5131 = vadd.f32 %v5089, %v5124
  %v5132 = vadd.f32 %v5090, %v5125
  %v5133 = vadd.f32 %v5091, %v5126
  %v5134 = vadd.f32 %v5092, %v5127
  %v5135 = vadd.f32 %v5093, %v5128
  %v5136 = vlaneseq
  %v5137 = vshrl.u32 %v5136, 7
  %v5138 = vsub.s32 2, %v5137
  %v5139 = vrot.slane %v5051, %v5138
  %v5140 = vlaneseq
  %v5141 = vshrl.u32 %v5140, 7
  %v5142 = vsub.s32 2, %v5141
  %v5143 = vrot.slane %v5050, %v5142
  %v5144 = vlaneseq
  %v5145 = vshrl.u32 %v5144, 7
  %v5146 = vsub.s32 2, %v5145
  %v5147 = vrot.slane %v5049, %v5146
  %v5148 = vlaneseq
  %v5149 = vshrl.u32 %v5148, 7
  %v5150 = vsub.s32 2, %v5149
  %v5151 = vrot.slane %v5048, %v5150
  %v5152 = vlaneseq
  %v5153 = vshrl.u32 %v5152, 7
  %v5154 = vsub.s32 2, %v5153
  %v5155 = vrot.slane %v5047, %v5154
  %v5156 = vlaneseq
  %v5157 = vshrl.u32 %v5156, 7
  %v5158 = vsub.s32 2, %v5157
  %v5159 = vrot.slane %v5046, %v5158
  %v5160 = vlaneseq
  %v5161 = vshrl.u32 %v5160, 7
  %v5162 = vsub.s32 2, %v5161
  %v5163 = vrot.slane %v5045, %v5162
  %v5164 = vmul.f32 %v866, %v5139
  %v5165 = vmul.f32 %v866, %v5143
  %v5166 = vmul.f32 %v866, %v5147
  %v5167 = vmul.f32 %v866, %v5151
  %v5168 = vmul.f32 %v866, %v5155
  %v5169 = vmul.f32 %v866, %v5159
  %v5170 = vmul.f32 %v866, %v5163
  %v5171 = vadd.f32 %v5129, %v5164
  %v5172 = vadd.f32 %v5130, %v5165
  %v5173 = vadd.f32 %v5131, %v5166
  %v5174 = vadd.f32 %v5132, %v5167
  %v5175 = vadd.f32 %v5133, %v5168
  %v5176 = vadd.f32 %v5134, %v5169
  %v5177 = vadd.f32 %v5135, %v5170
  %v5178 = vlaneseq
  %v5179 = vshrl.u32 %v5178, 7
  %v5180 = vsub.s32 3, %v5179
  %v5181 = vrot.slane %v5051, %v5180
  %v5182 = vlaneseq
  %v5183 = vshrl.u32 %v5182, 7
  %v5184 = vsub.s32 3, %v5183
  %v5185 = vrot.slane %v5050, %v5184
  %v5186 = vlaneseq
  %v5187 = vshrl.u32 %v5186, 7
  %v5188 = vsub.s32 3, %v5187
  %v5189 = vrot.slane %v5049, %v5188
  %v5190 = vlaneseq
  %v5191 = vshrl.u32 %v5190, 7
  %v5192 = vsub.s32 3, %v5191
  %v5193 = vrot.slane %v5048, %v5192
  %v5194 = vlaneseq
  %v5195 = vshrl.u32 %v5194, 7
  %v5196 = vsub.s32 3, %v5195
  %v5197 = vrot.slane %v5047, %v5196
  %v5198 = vlaneseq
  %v5199 = vshrl.u32 %v5198, 7
  %v5200 = vsub.s32 3, %v5199
  %v5201 = vrot.slane %v5046, %v5200
  %v5202 = vlaneseq
  %v5203 = vshrl.u32 %v5202, 7
  %v5204 = vsub.s32 3, %v5203
  %v5205 = vrot.slane %v5045, %v5204
  %v5206 = vmul.f32 %v913, %v5181
  %v5207 = vmul.f32 %v913, %v5185
  %v5208 = vmul.f32 %v913, %v5189
  %v5209 = vmul.f32 %v913, %v5193
  %v5210 = vmul.f32 %v913, %v5197
  %v5211 = vmul.f32 %v913, %v5201
  %v5212 = vmul.f32 %v913, %v5205
  %v5213 = vadd.f32 %v5171, %v5206
  %v5214 = vadd.f32 %v5172, %v5207
  %v5215 = vadd.f32 %v5173, %v5208
  %v5216 = vadd.f32 %v5174, %v5209
  %v5217 = vadd.f32 %v5175, %v5210
  %v5218 = vadd.f32 %v5176, %v5211
  %v5219 = vadd.f32 %v5177, %v5212
  %v5220 = vlaneseq
  %v5221 = vshrl.u32 %v5220, 7
  %v5222 = vsub.s32 0, %v5221
  %v5223 = vrot.slane %v4455, %v5222
  %v5224 = vlaneseq
  %v5225 = vshrl.u32 %v5224, 7
  %v5226 = vsub.s32 4, %v5225
  %v5227 = vrot.slane %v4455, %v5226
  %v5228 = vlaneseq
  %v5229 = vshrl.u32 %v5228, 7
  %v5230 = vsub.s32 0, %v5229
  %v5231 = vrot.slane %v4456, %v5230
  %v5232 = vlaneseq
  %v5233 = vshrl.u32 %v5232, 7
  %v5234 = vsub.s32 4, %v5233
  %v5235 = vrot.slane %v4456, %v5234
  %v5236 = vlaneseq
  %v5237 = vshrl.u32 %v5236, 7
  %v5238 = vsub.s32 0, %v5237
  %v5239 = vrot.slane %v4457, %v5238
  %v5240 = vlaneseq
  %v5241 = vshrl.u32 %v5240, 7
  %v5242 = vsub.s32 4, %v5241
  %v5243 = vrot.slane %v4457, %v5242
  %v5244 = vlaneseq
  %v5245 = vshrl.u32 %v5244, 7
  %v5246 = vsub.s32 0, %v5245
  %v5247 = vrot.slane %v4458, %v5246
  %v5255 = vlaneseq
  %v5256 = vshrl.u32 %v5255, 7
  %v5257 = vsub.s32 0, %v5256
  %v5258 = vrot.slane %v5223, %v5257
  %v5259 = vlaneseq
  %v5260 = vshrl.u32 %v5259, 7
  %v5261 = vsub.s32 0, %v5260
  %v5262 = vrot.slane %v5227, %v5261
  %v5263 = vlaneseq
  %v5264 = vshrl.u32 %v5263, 7
  %v5265 = vsub.s32 0, %v5264
  %v5266 = vrot.slane %v5231, %v5265
  %v5267 = vlaneseq
  %v5268 = vshrl.u32 %v5267, 7
  %v5269 = vsub.s32 0, %v5268
  %v5270 = vrot.slane %v5235, %v5269
  %v5271 = vlaneseq
  %v5272 = vshrl.u32 %v5271, 7
  %v5273 = vsub.s32 0, %v5272
  %v5274 = vrot.slane %v5239, %v5273
  %v5275 = vlaneseq
  %v5276 = vshrl.u32 %v5275, 7
  %v5277 = vsub.s32 0, %v5276
  %v5278 = vrot.slane %v5243, %v5277
  %v5279 = vlaneseq
  %v5280 = vshrl.u32 %v5279, 7
  %v5281 = vsub.s32 0, %v5280
  %v5282 = vrot.slane %v5247, %v5281
  %v5283 = vmul.f32 %v960, %v5258
  %v5284 = vmul.f32 %v960, %v5262
  %v5285 = vmul.f32 %v960, %v5266
  %v5286 = vmul.f32 %v960, %v5270
  %v5287 = vmul.f32 %v960, %v5274
  %v5288 = vmul.f32 %v960, %v5278
  %v5289 = vmul.f32 %v960, %v5282
  %v5290 = vadd.f32 %v5213, %v5283
  %v5291 = vadd.f32 %v5214, %v5284
  %v5292 = vadd.f32 %v5215, %v5285
  %v5293 = vadd.f32 %v5216, %v5286
  %v5294 = vadd.f32 %v5217, %v5287
  %v5295 = vadd.f32 %v5218, %v5288
  %v5296 = vadd.f32 %v5219, %v5289
  %v5297 = vlaneseq
  %v5298 = vshrl.u32 %v5297, 7
  %v5299 = vsub.s32 1, %v5298
  %v5300 = vrot.slane %v4455, %v5299
  %v5301 = vlaneseq
  %v5302 = vshrl.u32 %v5301, 7
  %v5303 = vsub.s32 5, %v5302
  %v5304 = vrot.slane %v4455, %v5303
  %v5305 = vlaneseq
  %v5306 = vshrl.u32 %v5305, 7
  %v5307 = vsub.s32 1, %v5306
  %v5308 = vrot.slane %v4456, %v5307
  %v5309 = vlaneseq
  %v5310 = vshrl.u32 %v5309, 7
  %v5311 = vsub.s32 5, %v5310
  %v5312 = vrot.slane %v4456, %v5311
  %v5313 = vlaneseq
  %v5314 = vshrl.u32 %v5313, 7
  %v5315 = vsub.s32 1, %v5314
  %v5316 = vrot.slane %v4457, %v5315
  %v5317 = vlaneseq
  %v5318 = vshrl.u32 %v5317, 7
  %v5319 = vsub.s32 5, %v5318
  %v5320 = vrot.slane %v4457, %v5319
  %v5321 = vlaneseq
  %v5322 = vshrl.u32 %v5321, 7
  %v5323 = vsub.s32 1, %v5322
  %v5324 = vrot.slane %v4458, %v5323
  %v5332 = vlaneseq
  %v5333 = vshrl.u32 %v5332, 7
  %v5334 = vsub.s32 1, %v5333
  %v5335 = vrot.slane %v5300, %v5334
  %v5336 = vlaneseq
  %v5337 = vshrl.u32 %v5336, 7
  %v5338 = vsub.s32 1, %v5337
  %v5339 = vrot.slane %v5304, %v5338
  %v5340 = vlaneseq
  %v5341 = vshrl.u32 %v5340, 7
  %v5342 = vsub.s32 1, %v5341
  %v5343 = vrot.slane %v5308, %v5342
  %v5344 = vlaneseq
  %v5345 = vshrl.u32 %v5344, 7
  %v5346 = vsub.s32 1, %v5345
  %v5347 = vrot.slane %v5312, %v5346
  %v5348 = vlaneseq
  %v5349 = vshrl.u32 %v5348, 7
  %v5350 = vsub.s32 1, %v5349
  %v5351 = vrot.slane %v5316, %v5350
  %v5352 = vlaneseq
  %v5353 = vshrl.u32 %v5352, 7
  %v5354 = vsub.s32 1, %v5353
  %v5355 = vrot.slane %v5320, %v5354
  %v5356 = vlaneseq
  %v5357 = vshrl.u32 %v5356, 7
  %v5358 = vsub.s32 1, %v5357
  %v5359 = vrot.slane %v5324, %v5358
  %v5360 = vmul.f32 %v1042, %v5335
  %v5361 = vmul.f32 %v1042, %v5339
  %v5362 = vmul.f32 %v1042, %v5343
  %v5363 = vmul.f32 %v1042, %v5347
  %v5364 = vmul.f32 %v1042, %v5351
  %v5365 = vmul.f32 %v1042, %v5355
  %v5366 = vmul.f32 %v1042, %v5359
  %v5367 = vadd.f32 %v5290, %v5360
  %v5368 = vadd.f32 %v5291, %v5361
  %v5369 = vadd.f32 %v5292, %v5362
  %v5370 = vadd.f32 %v5293, %v5363
  %v5371 = vadd.f32 %v5294, %v5364
  %v5372 = vadd.f32 %v5295, %v5365
  %v5373 = vadd.f32 %v5296, %v5366
  %v5374 = vlaneseq
  %v5375 = vshrl.u32 %v5374, 7
  %v5376 = vsub.s32 2, %v5375
  %v5377 = vrot.slane %v4455, %v5376
  %v5378 = vlaneseq
  %v5379 = vshrl.u32 %v5378, 7
  %v5380 = vsub.s32 6, %v5379
  %v5381 = vrot.slane %v4455, %v5380
  %v5382 = vlaneseq
  %v5383 = vshrl.u32 %v5382, 7
  %v5384 = vsub.s32 2, %v5383
  %v5385 = vrot.slane %v4456, %v5384
  %v5386 = vlaneseq
  %v5387 = vshrl.u32 %v5386, 7
  %v5388 = vsub.s32 6, %v5387
  %v5389 = vrot.slane %v4456, %v5388
  %v5390 = vlaneseq
  %v5391 = vshrl.u32 %v5390, 7
  %v5392 = vsub.s32 2, %v5391
  %v5393 = vrot.slane %v4457, %v5392
  %v5394 = vlaneseq
  %v5395 = vshrl.u32 %v5394, 7
  %v5396 = vsub.s32 6, %v5395
  %v5397 = vrot.slane %v4457, %v5396
  %v5398 = vlaneseq
  %v5399 = vshrl.u32 %v5398, 7
  %v5400 = vsub.s32 2, %v5399
  %v5401 = vrot.slane %v4458, %v5400
  %v5409 = vlaneseq
  %v5410 = vshrl.u32 %v5409, 7
  %v5411 = vsub.s32 2, %v5410
  %v5412 = vrot.slane %v5377, %v5411
  %v5413 = vlaneseq
  %v5414 = vshrl.u32 %v5413, 7
  %v5415 = vsub.s32 2, %v5414
  %v5416 = vrot.slane %v5381, %v5415
  %v5417 = vlaneseq
  %v5418 = vshrl.u32 %v5417, 7
  %v5419 = vsub.s32 2, %v5418
  %v5420 = vrot.slane %v5385, %v5419
  %v5421 = vlaneseq
  %v5422 = vshrl.u32 %v5421, 7
  %v5423 = vsub.s32 2, %v5422
  %v5424 = vrot.slane %v5389, %v5423
  %v5425 = vlaneseq
  %v5426 = vshrl.u32 %v5425, 7
  %v5427 = vsub.s32 2, %v5426
  %v5428 = vrot.slane %v5393, %v5427
  %v5429 = vlaneseq
  %v5430 = vshrl.u32 %v5429, 7
  %v5431 = vsub.s32 2, %v5430
  %v5432 = vrot.slane %v5397, %v5431
  %v5433 = vlaneseq
  %v5434 = vshrl.u32 %v5433, 7
  %v5435 = vsub.s32 2, %v5434
  %v5436 = vrot.slane %v5401, %v5435
  %v5437 = vmul.f32 %v1124, %v5412
  %v5438 = vmul.f32 %v1124, %v5416
  %v5439 = vmul.f32 %v1124, %v5420
  %v5440 = vmul.f32 %v1124, %v5424
  %v5441 = vmul.f32 %v1124, %v5428
  %v5442 = vmul.f32 %v1124, %v5432
  %v5443 = vmul.f32 %v1124, %v5436
  %v5444 = vadd.f32 %v5367, %v5437
  %v5445 = vadd.f32 %v5368, %v5438
  %v5446 = vadd.f32 %v5369, %v5439
  %v5447 = vadd.f32 %v5370, %v5440
  %v5448 = vadd.f32 %v5371, %v5441
  %v5449 = vadd.f32 %v5372, %v5442
  %v5450 = vadd.f32 %v5373, %v5443
  %v5451 = vlaneseq
  %v5452 = vshrl.u32 %v5451, 7
  %v5453 = vsub.s32 3, %v5452
  %v5454 = vrot.slane %v4455, %v5453
  %v5455 = vlaneseq
  %v5456 = vshrl.u32 %v5455, 7
  %v5457 = vsub.s32 7, %v5456
  %v5458 = vrot.slane %v4455, %v5457
  %v5459 = vlaneseq
  %v5460 = vshrl.u32 %v5459, 7
  %v5461 = vsub.s32 3, %v5460
  %v5462 = vrot.slane %v4456, %v5461
  %v5463 = vlaneseq
  %v5464 = vshrl.u32 %v5463, 7
  %v5465 = vsub.s32 7, %v5464
  %v5466 = vrot.slane %v4456, %v5465
  %v5467 = vlaneseq
  %v5468 = vshrl.u32 %v5467, 7
  %v5469 = vsub.s32 3, %v5468
  %v5470 = vrot.slane %v4457, %v5469
  %v5471 = vlaneseq
  %v5472 = vshrl.u32 %v5471, 7
  %v5473 = vsub.s32 7, %v5472
  %v5474 = vrot.slane %v4457, %v5473
  %v5475 = vlaneseq
  %v5476 = vshrl.u32 %v5475, 7
  %v5477 = vsub.s32 3, %v5476
  %v5478 = vrot.slane %v4458, %v5477
  %v5486 = vlaneseq
  %v5487 = vshrl.u32 %v5486, 7
  %v5488 = vsub.s32 3, %v5487
  %v5489 = vrot.slane %v5454, %v5488
  %v5490 = vlaneseq
  %v5491 = vshrl.u32 %v5490, 7
  %v5492 = vsub.s32 3, %v5491
  %v5493 = vrot.slane %v5458, %v5492
  %v5494 = vlaneseq
  %v5495 = vshrl.u32 %v5494, 7
  %v5496 = vsub.s32 3, %v5495
  %v5497 = vrot.slane %v5462, %v5496
  %v5498 = vlaneseq
  %v5499 = vshrl.u32 %v5498, 7
  %v5500 = vsub.s32 3, %v5499
  %v5501 = vrot.slane %v5466, %v5500
  %v5502 = vlaneseq
  %v5503 = vshrl.u32 %v5502, 7
  %v5504 = vsub.s32 3, %v5503
  %v5505 = vrot.slane %v5470, %v5504
  %v5506 = vlaneseq
  %v5507 = vshrl.u32 %v5506, 7
  %v5508 = vsub.s32 3, %v5507
  %v5509 = vrot.slane %v5474, %v5508
  %v5510 = vlaneseq
  %v5511 = vshrl.u32 %v5510, 7
  %v5512 = vsub.s32 3, %v5511
  %v5513 = vrot.slane %v5478, %v5512
  %v5514 = vmul.f32 %v1206, %v5489
  %v5515 = vmul.f32 %v1206, %v5493
  %v5516 = vmul.f32 %v1206, %v5497
  %v5517 = vmul.f32 %v1206, %v5501
  %v5518 = vmul.f32 %v1206, %v5505
  %v5519 = vmul.f32 %v1206, %v5509
  %v5520 = vmul.f32 %v1206, %v5513
  %v5521 = vadd.f32 %v5444, %v5514
  %v5522 = vadd.f32 %v5445, %v5515
  %v5523 = vadd.f32 %v5446, %v5516
  %v5524 = vadd.f32 %v5447, %v5517
  %v5525 = vadd.f32 %v5448, %v5518
  %v5526 = vadd.f32 %v5449, %v5519
  %v5527 = vadd.f32 %v5450, %v5520
  %5528 = vrot.lane.b32.xlu0 %v4455, 127
  %v5529 = vpop.permute.xlu0 %5528
  %5530 = vrot.lane.b32.xlu0 %v4465, 127
  %v5531 = vpop.permute.xlu0 %5530
  %5532 = vrot.lane.b32.xlu0 %v4456, 127
  %v5533 = vpop.permute.xlu0 %5532
  %5534 = vrot.lane.b32.xlu0 %v4466, 127
  %v5535 = vpop.permute.xlu0 %5534
  %5536 = vrot.lane.b32.xlu0 %v4457, 127
  %v5537 = vpop.permute.xlu0 %5536
  %5538 = vrot.lane.b32.xlu0 %v4467, 127
  %v5539 = vpop.permute.xlu0 %5538
  %5540 = vrot.lane.b32.xlu0 %v4458, 127
  %v5541 = vpop.permute.xlu0 %5540
  %v5542 = vsel %vm1299, %v5539, %v5541
  %v5543 = vsel %vm1299, %v5537, %v5539
  %v5544 = vsel %vm1299, %v5535, %v5537
  %v5545 = vsel %vm1299, %v5533, %v5535
  %v5546 = vsel %vm1299, %v5531, %v5533
  %v5547 = vsel %vm1299, %v5529, %v5531
  %v5548 = vsel %vm1299, %v5541, %v5529
  %v5549 = vlaneseq
  %v5550 = vshrl.u32 %v5549, 7
  %v5551 = vsub.s32 0, %v5550
  %v5552 = vrot.slane %v5547, %v5551
  %v5553 = vlaneseq
  %v5554 = vshrl.u32 %v5553, 7
  %v5555 = vsub.s32 0, %v5554
  %v5556 = vrot.slane %v5546, %v5555
  %v5557 = vlaneseq
  %v5558 = vshrl.u32 %v5557, 7
  %v5559 = vsub.s32 0, %v5558
  %v5560 = vrot.slane %v5545, %v5559
  %v5561 = vlaneseq
  %v5562 = vshrl.u32 %v5561, 7
  %v5563 = vsub.s32 0, %v5562
  %v5564 = vrot.slane %v5544, %v5563
  %v5565 = vlaneseq
  %v5566 = vshrl.u32 %v5565, 7
  %v5567 = vsub.s32 0, %v5566
  %v5568 = vrot.slane %v5543, %v5567
  %v5569 = vlaneseq
  %v5570 = vshrl.u32 %v5569, 7
  %v5571 = vsub.s32 0, %v5570
  %v5572 = vrot.slane %v5542, %v5571
  %v5573 = vlaneseq
  %v5574 = vshrl.u32 %v5573, 7
  %v5575 = vsub.s32 0, %v5574
  %v5576 = vrot.slane %v5548, %v5575
  %v5577 = vmul.f32 %v1310, %v5552
  %v5578 = vmul.f32 %v1310, %v5556
  %v5579 = vmul.f32 %v1310, %v5560
  %v5580 = vmul.f32 %v1310, %v5564
  %v5581 = vmul.f32 %v1310, %v5568
  %v5582 = vmul.f32 %v1310, %v5572
  %v5583 = vmul.f32 %v1310, %v5576
  %v5584 = vadd.f32 %v5521, %v5577
  %v5585 = vadd.f32 %v5522, %v5578
  %v5586 = vadd.f32 %v5523, %v5579
  %v5587 = vadd.f32 %v5524, %v5580
  %v5588 = vadd.f32 %v5525, %v5581
  %v5589 = vadd.f32 %v5526, %v5582
  %v5590 = vadd.f32 %v5527, %v5583
  %v5591 = vlaneseq
  %v5592 = vshrl.u32 %v5591, 7
  %v5593 = vsub.s32 1, %v5592
  %v5594 = vrot.slane %v5547, %v5593
  %v5595 = vlaneseq
  %v5596 = vshrl.u32 %v5595, 7
  %v5597 = vsub.s32 1, %v5596
  %v5598 = vrot.slane %v5546, %v5597
  %v5599 = vlaneseq
  %v5600 = vshrl.u32 %v5599, 7
  %v5601 = vsub.s32 1, %v5600
  %v5602 = vrot.slane %v5545, %v5601
  %v5603 = vlaneseq
  %v5604 = vshrl.u32 %v5603, 7
  %v5605 = vsub.s32 1, %v5604
  %v5606 = vrot.slane %v5544, %v5605
  %v5607 = vlaneseq
  %v5608 = vshrl.u32 %v5607, 7
  %v5609 = vsub.s32 1, %v5608
  %v5610 = vrot.slane %v5543, %v5609
  %v5611 = vlaneseq
  %v5612 = vshrl.u32 %v5611, 7
  %v5613 = vsub.s32 1, %v5612
  %v5614 = vrot.slane %v5542, %v5613
  %v5615 = vlaneseq
  %v5616 = vshrl.u32 %v5615, 7
  %v5617 = vsub.s32 1, %v5616
  %v5618 = vrot.slane %v5548, %v5617
  %v5619 = vmul.f32 %v1357, %v5594
  %v5620 = vmul.f32 %v1357, %v5598
  %v5621 = vmul.f32 %v1357, %v5602
  %v5622 = vmul.f32 %v1357, %v5606
  %v5623 = vmul.f32 %v1357, %v5610
  %v5624 = vmul.f32 %v1357, %v5614
  %v5625 = vmul.f32 %v1357, %v5618
  %v5626 = vadd.f32 %v5584, %v5619
  %v5627 = vadd.f32 %v5585, %v5620
  %v5628 = vadd.f32 %v5586, %v5621
  %v5629 = vadd.f32 %v5587, %v5622
  %v5630 = vadd.f32 %v5588, %v5623
  %v5631 = vadd.f32 %v5589, %v5624
  %v5632 = vadd.f32 %v5590, %v5625
  %v5633 = vlaneseq
  %v5634 = vshrl.u32 %v5633, 7
  %v5635 = vsub.s32 2, %v5634
  %v5636 = vrot.slane %v5547, %v5635
  %v5637 = vlaneseq
  %v5638 = vshrl.u32 %v5637, 7
  %v5639 = vsub.s32 2, %v5638
  %v5640 = vrot.slane %v5546, %v5639
  %v5641 = vlaneseq
  %v5642 = vshrl.u32 %v5641, 7
  %v5643 = vsub.s32 2, %v5642
  %v5644 = vrot.slane %v5545, %v5643
  %v5645 = vlaneseq
  %v5646 = vshrl.u32 %v5645, 7
  %v5647 = vsub.s32 2, %v5646
  %v5648 = vrot.slane %v5544, %v5647
  %v5649 = vlaneseq
  %v5650 = vshrl.u32 %v5649, 7
  %v5651 = vsub.s32 2, %v5650
  %v5652 = vrot.slane %v5543, %v5651
  %v5653 = vlaneseq
  %v5654 = vshrl.u32 %v5653, 7
  %v5655 = vsub.s32 2, %v5654
  %v5656 = vrot.slane %v5542, %v5655
  %v5657 = vlaneseq
  %v5658 = vshrl.u32 %v5657, 7
  %v5659 = vsub.s32 2, %v5658
  %v5660 = vrot.slane %v5548, %v5659
  %v5661 = vmul.f32 %v1404, %v5636
  %v5662 = vmul.f32 %v1404, %v5640
  %v5663 = vmul.f32 %v1404, %v5644
  %v5664 = vmul.f32 %v1404, %v5648
  %v5665 = vmul.f32 %v1404, %v5652
  %v5666 = vmul.f32 %v1404, %v5656
  %v5667 = vmul.f32 %v1404, %v5660
  %v5668 = vadd.f32 %v5626, %v5661
  %v5669 = vadd.f32 %v5627, %v5662
  %v5670 = vadd.f32 %v5628, %v5663
  %v5671 = vadd.f32 %v5629, %v5664
  %v5672 = vadd.f32 %v5630, %v5665
  %v5673 = vadd.f32 %v5631, %v5666
  %v5674 = vadd.f32 %v5632, %v5667
  %v5675 = vlaneseq
  %v5676 = vshrl.u32 %v5675, 7
  %v5677 = vsub.s32 3, %v5676
  %v5678 = vrot.slane %v5547, %v5677
  %v5679 = vlaneseq
  %v5680 = vshrl.u32 %v5679, 7
  %v5681 = vsub.s32 3, %v5680
  %v5682 = vrot.slane %v5546, %v5681
  %v5683 = vlaneseq
  %v5684 = vshrl.u32 %v5683, 7
  %v5685 = vsub.s32 3, %v5684
  %v5686 = vrot.slane %v5545, %v5685
  %v5687 = vlaneseq
  %v5688 = vshrl.u32 %v5687, 7
  %v5689 = vsub.s32 3, %v5688
  %v5690 = vrot.slane %v5544, %v5689
  %v5691 = vlaneseq
  %v5692 = vshrl.u32 %v5691, 7
  %v5693 = vsub.s32 3, %v5692
  %v5694 = vrot.slane %v5543, %v5693
  %v5695 = vlaneseq
  %v5696 = vshrl.u32 %v5695, 7
  %v5697 = vsub.s32 3, %v5696
  %v5698 = vrot.slane %v5542, %v5697
  %v5699 = vlaneseq
  %v5700 = vshrl.u32 %v5699, 7
  %v5701 = vsub.s32 3, %v5700
  %v5702 = vrot.slane %v5548, %v5701
  %v5703 = vmul.f32 %v1451, %v5678
  %v5704 = vmul.f32 %v1451, %v5682
  %v5705 = vmul.f32 %v1451, %v5686
  %v5706 = vmul.f32 %v1451, %v5690
  %v5707 = vmul.f32 %v1451, %v5694
  %v5708 = vmul.f32 %v1451, %v5698
  %v5709 = vmul.f32 %v1451, %v5702
  %v5710 = vadd.f32 %v5668, %v5703
  %v5711 = vadd.f32 %v5669, %v5704
  %v5712 = vadd.f32 %v5670, %v5705
  %v5713 = vadd.f32 %v5671, %v5706
  %v5714 = vadd.f32 %v5672, %v5707
  %v5715 = vadd.f32 %v5673, %v5708
  %v5716 = vadd.f32 %v5674, %v5709
  %5717 = vrot.lane.b32.xlu0 %v4455, 111
  %v5718 = vpop.permute.xlu0 %5717
  %5719 = vrot.lane.b32.xlu0 %v4465, 111
  %v5720 = vpop.permute.xlu0 %5719
  %5721 = vrot.lane.b32.xlu0 %v4456, 111
  %v5722 = vpop.permute.xlu0 %5721
  %5723 = vrot.lane.b32.xlu0 %v4466, 111
  %v5724 = vpop.permute.xlu0 %5723
  %5725 = vrot.lane.b32.xlu0 %v4457, 111
  %v5726 = vpop.permute.xlu0 %5725
  %5727 = vrot.lane.b32.xlu0 %v4467, 111
  %v5728 = vpop.permute.xlu0 %5727
  %5729 = vrot.lane.b32.xlu0 %v4458, 111
  %v5730 = vpop.permute.xlu0 %5729
  %v5731 = vsel %vm1509, %v5728, %v5730
  %v5732 = vsel %vm1509, %v5726, %v5728
  %v5733 = vsel %vm1509, %v5724, %v5726
  %v5734 = vsel %vm1509, %v5722, %v5724
  %v5735 = vsel %vm1509, %v5720, %v5722
  %v5736 = vsel %vm1509, %v5718, %v5720
  %v5737 = vsel %vm1509, %v5730, %v5718
  %v5738 = vlaneseq
  %v5739 = vshrl.u32 %v5738, 7
  %v5740 = vsub.s32 0, %v5739
  %v5741 = vrot.slane %v5736, %v5740
  %v5742 = vlaneseq
  %v5743 = vshrl.u32 %v5742, 7
  %v5744 = vsub.s32 0, %v5743
  %v5745 = vrot.slane %v5735, %v5744
  %v5746 = vlaneseq
  %v5747 = vshrl.u32 %v5746, 7
  %v5748 = vsub.s32 0, %v5747
  %v5749 = vrot.slane %v5734, %v5748
  %v5750 = vlaneseq
  %v5751 = vshrl.u32 %v5750, 7
  %v5752 = vsub.s32 0, %v5751
  %v5753 = vrot.slane %v5733, %v5752
  %v5754 = vlaneseq
  %v5755 = vshrl.u32 %v5754, 7
  %v5756 = vsub.s32 0, %v5755
  %v5757 = vrot.slane %v5732, %v5756
  %v5758 = vlaneseq
  %v5759 = vshrl.u32 %v5758, 7
  %v5760 = vsub.s32 0, %v5759
  %v5761 = vrot.slane %v5731, %v5760
  %v5762 = vlaneseq
  %v5763 = vshrl.u32 %v5762, 7
  %v5764 = vsub.s32 0, %v5763
  %v5765 = vrot.slane %v5737, %v5764
  %v5766 = vmul.f32 %v1520, %v5741
  %v5767 = vmul.f32 %v1520, %v5745
  %v5768 = vmul.f32 %v1520, %v5749
  %v5769 = vmul.f32 %v1520, %v5753
  %v5770 = vmul.f32 %v1520, %v5757
  %v5771 = vmul.f32 %v1520, %v5761
  %v5772 = vmul.f32 %v1520, %v5765
  %v5773 = vadd.f32 %v5710, %v5766
  %v5774 = vadd.f32 %v5711, %v5767
  %v5775 = vadd.f32 %v5712, %v5768
  %v5776 = vadd.f32 %v5713, %v5769
  %v5777 = vadd.f32 %v5714, %v5770
  %v5778 = vadd.f32 %v5715, %v5771
  %v5779 = vadd.f32 %v5716, %v5772
  %v5780 = vlaneseq
  %v5781 = vshrl.u32 %v5780, 7
  %v5782 = vsub.s32 1, %v5781
  %v5783 = vrot.slane %v5736, %v5782
  %v5784 = vlaneseq
  %v5785 = vshrl.u32 %v5784, 7
  %v5786 = vsub.s32 1, %v5785
  %v5787 = vrot.slane %v5735, %v5786
  %v5788 = vlaneseq
  %v5789 = vshrl.u32 %v5788, 7
  %v5790 = vsub.s32 1, %v5789
  %v5791 = vrot.slane %v5734, %v5790
  %v5792 = vlaneseq
  %v5793 = vshrl.u32 %v5792, 7
  %v5794 = vsub.s32 1, %v5793
  %v5795 = vrot.slane %v5733, %v5794
  %v5796 = vlaneseq
  %v5797 = vshrl.u32 %v5796, 7
  %v5798 = vsub.s32 1, %v5797
  %v5799 = vrot.slane %v5732, %v5798
  %v5800 = vlaneseq
  %v5801 = vshrl.u32 %v5800, 7
  %v5802 = vsub.s32 1, %v5801
  %v5803 = vrot.slane %v5731, %v5802
  %v5804 = vlaneseq
  %v5805 = vshrl.u32 %v5804, 7
  %v5806 = vsub.s32 1, %v5805
  %v5807 = vrot.slane %v5737, %v5806
  %v5808 = vmul.f32 %v1567, %v5783
  %v5809 = vmul.f32 %v1567, %v5787
  %v5810 = vmul.f32 %v1567, %v5791
  %v5811 = vmul.f32 %v1567, %v5795
  %v5812 = vmul.f32 %v1567, %v5799
  %v5813 = vmul.f32 %v1567, %v5803
  %v5814 = vmul.f32 %v1567, %v5807
  %v5815 = vadd.f32 %v5773, %v5808
  %v5816 = vadd.f32 %v5774, %v5809
  %v5817 = vadd.f32 %v5775, %v5810
  %v5818 = vadd.f32 %v5776, %v5811
  %v5819 = vadd.f32 %v5777, %v5812
  %v5820 = vadd.f32 %v5778, %v5813
  %v5821 = vadd.f32 %v5779, %v5814
  %v5822 = vlaneseq
  %v5823 = vshrl.u32 %v5822, 7
  %v5824 = vsub.s32 2, %v5823
  %v5825 = vrot.slane %v5736, %v5824
  %v5826 = vlaneseq
  %v5827 = vshrl.u32 %v5826, 7
  %v5828 = vsub.s32 2, %v5827
  %v5829 = vrot.slane %v5735, %v5828
  %v5830 = vlaneseq
  %v5831 = vshrl.u32 %v5830, 7
  %v5832 = vsub.s32 2, %v5831
  %v5833 = vrot.slane %v5734, %v5832
  %v5834 = vlaneseq
  %v5835 = vshrl.u32 %v5834, 7
  %v5836 = vsub.s32 2, %v5835
  %v5837 = vrot.slane %v5733, %v5836
  %v5838 = vlaneseq
  %v5839 = vshrl.u32 %v5838, 7
  %v5840 = vsub.s32 2, %v5839
  %v5841 = vrot.slane %v5732, %v5840
  %v5842 = vlaneseq
  %v5843 = vshrl.u32 %v5842, 7
  %v5844 = vsub.s32 2, %v5843
  %v5845 = vrot.slane %v5731, %v5844
  %v5846 = vlaneseq
  %v5847 = vshrl.u32 %v5846, 7
  %v5848 = vsub.s32 2, %v5847
  %v5849 = vrot.slane %v5737, %v5848
  %v5850 = vmul.f32 %v1614, %v5825
  %v5851 = vmul.f32 %v1614, %v5829
  %v5852 = vmul.f32 %v1614, %v5833
  %v5853 = vmul.f32 %v1614, %v5837
  %v5854 = vmul.f32 %v1614, %v5841
  %v5855 = vmul.f32 %v1614, %v5845
  %v5856 = vmul.f32 %v1614, %v5849
  %v5857 = vadd.f32 %v5815, %v5850
  %v5858 = vadd.f32 %v5816, %v5851
  %v5859 = vadd.f32 %v5817, %v5852
  %v5860 = vadd.f32 %v5818, %v5853
  %v5861 = vadd.f32 %v5819, %v5854
  %v5862 = vadd.f32 %v5820, %v5855
  %v5863 = vadd.f32 %v5821, %v5856
  %v5864 = vlaneseq
  %v5865 = vshrl.u32 %v5864, 7
  %v5866 = vsub.s32 3, %v5865
  %v5867 = vrot.slane %v5736, %v5866
  %v5868 = vlaneseq
  %v5869 = vshrl.u32 %v5868, 7
  %v5870 = vsub.s32 3, %v5869
  %v5871 = vrot.slane %v5735, %v5870
  %v5872 = vlaneseq
  %v5873 = vshrl.u32 %v5872, 7
  %v5874 = vsub.s32 3, %v5873
  %v5875 = vrot.slane %v5734, %v5874
  %v5876 = vlaneseq
  %v5877 = vshrl.u32 %v5876, 7
  %v5878 = vsub.s32 3, %v5877
  %v5879 = vrot.slane %v5733, %v5878
  %v5880 = vlaneseq
  %v5881 = vshrl.u32 %v5880, 7
  %v5882 = vsub.s32 3, %v5881
  %v5883 = vrot.slane %v5732, %v5882
  %v5884 = vlaneseq
  %v5885 = vshrl.u32 %v5884, 7
  %v5886 = vsub.s32 3, %v5885
  %v5887 = vrot.slane %v5731, %v5886
  %v5888 = vlaneseq
  %v5889 = vshrl.u32 %v5888, 7
  %v5890 = vsub.s32 3, %v5889
  %v5891 = vrot.slane %v5737, %v5890
  %v5892 = vmul.f32 %v1661, %v5867
  %v5893 = vmul.f32 %v1661, %v5871
  %v5894 = vmul.f32 %v1661, %v5875
  %v5895 = vmul.f32 %v1661, %v5879
  %v5896 = vmul.f32 %v1661, %v5883
  %v5897 = vmul.f32 %v1661, %v5887
  %v5898 = vmul.f32 %v1661, %v5891
  %v5899 = vadd.f32 %v5857, %v5892
  %v5900 = vadd.f32 %v5858, %v5893
  %v5901 = vadd.f32 %v5859, %v5894
  %v5902 = vadd.f32 %v5860, %v5895
  %v5903 = vadd.f32 %v5861, %v5896
  %v5904 = vadd.f32 %v5862, %v5897
  %v5905 = vadd.f32 %v5863, %v5898
  %5906 = vrot.lane.b32.xlu0 %v4455, 110
  %v5907 = vpop.permute.xlu0 %5906
  %5908 = vrot.lane.b32.xlu0 %v4465, 110
  %v5909 = vpop.permute.xlu0 %5908
  %5910 = vrot.lane.b32.xlu0 %v4456, 110
  %v5911 = vpop.permute.xlu0 %5910
  %5912 = vrot.lane.b32.xlu0 %v4466, 110
  %v5913 = vpop.permute.xlu0 %5912
  %5914 = vrot.lane.b32.xlu0 %v4457, 110
  %v5915 = vpop.permute.xlu0 %5914
  %5916 = vrot.lane.b32.xlu0 %v4467, 110
  %v5917 = vpop.permute.xlu0 %5916
  %5918 = vrot.lane.b32.xlu0 %v4458, 110
  %v5919 = vpop.permute.xlu0 %5918
  %v5920 = vsel %vm1719, %v5917, %v5919
  %v5921 = vsel %vm1719, %v5915, %v5917
  %v5922 = vsel %vm1719, %v5913, %v5915
  %v5923 = vsel %vm1719, %v5911, %v5913
  %v5924 = vsel %vm1719, %v5909, %v5911
  %v5925 = vsel %vm1719, %v5907, %v5909
  %v5926 = vsel %vm1719, %v5919, %v5907
  %v5927 = vlaneseq
  %v5928 = vshrl.u32 %v5927, 7
  %v5929 = vsub.s32 0, %v5928
  %v5930 = vrot.slane %v5925, %v5929
  %v5931 = vlaneseq
  %v5932 = vshrl.u32 %v5931, 7
  %v5933 = vsub.s32 0, %v5932
  %v5934 = vrot.slane %v5924, %v5933
  %v5935 = vlaneseq
  %v5936 = vshrl.u32 %v5935, 7
  %v5937 = vsub.s32 0, %v5936
  %v5938 = vrot.slane %v5923, %v5937
  %v5939 = vlaneseq
  %v5940 = vshrl.u32 %v5939, 7
  %v5941 = vsub.s32 0, %v5940
  %v5942 = vrot.slane %v5922, %v5941
  %v5943 = vlaneseq
  %v5944 = vshrl.u32 %v5943, 7
  %v5945 = vsub.s32 0, %v5944
  %v5946 = vrot.slane %v5921, %v5945
  %v5947 = vlaneseq
  %v5948 = vshrl.u32 %v5947, 7
  %v5949 = vsub.s32 0, %v5948
  %v5950 = vrot.slane %v5920, %v5949
  %v5951 = vlaneseq
  %v5952 = vshrl.u32 %v5951, 7
  %v5953 = vsub.s32 0, %v5952
  %v5954 = vrot.slane %v5926, %v5953
  %v5955 = vmul.f32 %v1730, %v5930
  %v5956 = vmul.f32 %v1730, %v5934
  %v5957 = vmul.f32 %v1730, %v5938
  %v5958 = vmul.f32 %v1730, %v5942
  %v5959 = vmul.f32 %v1730, %v5946
  %v5960 = vmul.f32 %v1730, %v5950
  %v5961 = vmul.f32 %v1730, %v5954
  %v5962 = vadd.f32 %v5899, %v5955
  %v5963 = vadd.f32 %v5900, %v5956
  %v5964 = vadd.f32 %v5901, %v5957
  %v5965 = vadd.f32 %v5902, %v5958
  %v5966 = vadd.f32 %v5903, %v5959
  %v5967 = vadd.f32 %v5904, %v5960
  %v5968 = vadd.f32 %v5905, %v5961
  %v5969 = vlaneseq
  %v5970 = vshrl.u32 %v5969, 7
  %v5971 = vsub.s32 1, %v5970
  %v5972 = vrot.slane %v5925, %v5971
  %v5973 = vlaneseq
  %v5974 = vshrl.u32 %v5973, 7
  %v5975 = vsub.s32 1, %v5974
  %v5976 = vrot.slane %v5924, %v5975
  %v5977 = vlaneseq
  %v5978 = vshrl.u32 %v5977, 7
  %v5979 = vsub.s32 1, %v5978
  %v5980 = vrot.slane %v5923, %v5979
  %v5981 = vlaneseq
  %v5982 = vshrl.u32 %v5981, 7
  %v5983 = vsub.s32 1, %v5982
  %v5984 = vrot.slane %v5922, %v5983
  %v5985 = vlaneseq
  %v5986 = vshrl.u32 %v5985, 7
  %v5987 = vsub.s32 1, %v5986
  %v5988 = vrot.slane %v5921, %v5987
  %v5989 = vlaneseq
  %v5990 = vshrl.u32 %v5989, 7
  %v5991 = vsub.s32 1, %v5990
  %v5992 = vrot.slane %v5920, %v5991
  %v5993 = vlaneseq
  %v5994 = vshrl.u32 %v5993, 7
  %v5995 = vsub.s32 1, %v5994
  %v5996 = vrot.slane %v5926, %v5995
  %v5997 = vmul.f32 %v1777, %v5972
  %v5998 = vmul.f32 %v1777, %v5976
  %v5999 = vmul.f32 %v1777, %v5980
  %v6000 = vmul.f32 %v1777, %v5984
  %v6001 = vmul.f32 %v1777, %v5988
  %v6002 = vmul.f32 %v1777, %v5992
  %v6003 = vmul.f32 %v1777, %v5996
  %v6004 = vadd.f32 %v5962, %v5997
  %v6005 = vadd.f32 %v5963, %v5998
  %v6006 = vadd.f32 %v5964, %v5999
  %v6007 = vadd.f32 %v5965, %v6000
  %v6008 = vadd.f32 %v5966, %v6001
  %v6009 = vadd.f32 %v5967, %v6002
  %v6010 = vadd.f32 %v5968, %v6003
  %v6011 = vlaneseq
  %v6012 = vshrl.u32 %v6011, 7
  %v6013 = vsub.s32 2, %v6012
  %v6014 = vrot.slane %v5925, %v6013
  %v6015 = vlaneseq
  %v6016 = vshrl.u32 %v6015, 7
  %v6017 = vsub.s32 2, %v6016
  %v6018 = vrot.slane %v5924, %v6017
  %v6019 = vlaneseq
  %v6020 = vshrl.u32 %v6019, 7
  %v6021 = vsub.s32 2, %v6020
  %v6022 = vrot.slane %v5923, %v6021
  %v6023 = vlaneseq
  %v6024 = vshrl.u32 %v6023, 7
  %v6025 = vsub.s32 2, %v6024
  %v6026 = vrot.slane %v5922, %v6025
  %v6027 = vlaneseq
  %v6028 = vshrl.u32 %v6027, 7
  %v6029 = vsub.s32 2, %v6028
  %v6030 = vrot.slane %v5921, %v6029
  %v6031 = vlaneseq
  %v6032 = vshrl.u32 %v6031, 7
  %v6033 = vsub.s32 2, %v6032
  %v6034 = vrot.slane %v5920, %v6033
  %v6035 = vlaneseq
  %v6036 = vshrl.u32 %v6035, 7
  %v6037 = vsub.s32 2, %v6036
  %v6038 = vrot.slane %v5926, %v6037
  %v6039 = vmul.f32 %v1824, %v6014
  %v6040 = vmul.f32 %v1824, %v6018
  %v6041 = vmul.f32 %v1824, %v6022
  %v6042 = vmul.f32 %v1824, %v6026
  %v6043 = vmul.f32 %v1824, %v6030
  %v6044 = vmul.f32 %v1824, %v6034
  %v6045 = vmul.f32 %v1824, %v6038
  %v6046 = vadd.f32 %v6004, %v6039
  %v6047 = vadd.f32 %v6005, %v6040
  %v6048 = vadd.f32 %v6006, %v6041
  %v6049 = vadd.f32 %v6007, %v6042
  %v6050 = vadd.f32 %v6008, %v6043
  %v6051 = vadd.f32 %v6009, %v6044
  %v6052 = vadd.f32 %v6010, %v6045
  %v6053 = vlaneseq
  %v6054 = vshrl.u32 %v6053, 7
  %v6055 = vsub.s32 3, %v6054
  %v6056 = vrot.slane %v5925, %v6055
  %v6057 = vlaneseq
  %v6058 = vshrl.u32 %v6057, 7
  %v6059 = vsub.s32 3, %v6058
  %v6060 = vrot.slane %v5924, %v6059
  %v6061 = vlaneseq
  %v6062 = vshrl.u32 %v6061, 7
  %v6063 = vsub.s32 3, %v6062
  %v6064 = vrot.slane %v5923, %v6063
  %v6065 = vlaneseq
  %v6066 = vshrl.u32 %v6065, 7
  %v6067 = vsub.s32 3, %v6066
  %v6068 = vrot.slane %v5922, %v6067
  %v6069 = vlaneseq
  %v6070 = vshrl.u32 %v6069, 7
  %v6071 = vsub.s32 3, %v6070
  %v6072 = vrot.slane %v5921, %v6071
  %v6073 = vlaneseq
  %v6074 = vshrl.u32 %v6073, 7
  %v6075 = vsub.s32 3, %v6074
  %v6076 = vrot.slane %v5920, %v6075
  %v6077 = vlaneseq
  %v6078 = vshrl.u32 %v6077, 7
  %v6079 = vsub.s32 3, %v6078
  %v6080 = vrot.slane %v5926, %v6079
  %v6081 = vmul.f32 %v1871, %v6056
  %v6082 = vmul.f32 %v1871, %v6060
  %v6083 = vmul.f32 %v1871, %v6064
  %v6084 = vmul.f32 %v1871, %v6068
  %v6085 = vmul.f32 %v1871, %v6072
  %v6086 = vmul.f32 %v1871, %v6076
  %v6087 = vmul.f32 %v1871, %v6080
  %v6088 = vadd.f32 %v6046, %v6081
  %v6089 = vadd.f32 %v6047, %v6082
  %v6090 = vadd.f32 %v6048, %v6083
  %v6091 = vadd.f32 %v6049, %v6084
  %v6092 = vadd.f32 %v6050, %v6085
  %v6093 = vadd.f32 %v6051, %v6086
  %v6094 = vadd.f32 %v6052, %v6087
  %6095 = vrot.lane.b32.xlu0 %v4455, 109
  %v6096 = vpop.permute.xlu0 %6095
  %6097 = vrot.lane.b32.xlu0 %v4465, 109
  %v6098 = vpop.permute.xlu0 %6097
  %6099 = vrot.lane.b32.xlu0 %v4456, 109
  %v6100 = vpop.permute.xlu0 %6099
  %6101 = vrot.lane.b32.xlu0 %v4466, 109
  %v6102 = vpop.permute.xlu0 %6101
  %6103 = vrot.lane.b32.xlu0 %v4457, 109
  %v6104 = vpop.permute.xlu0 %6103
  %6105 = vrot.lane.b32.xlu0 %v4467, 109
  %v6106 = vpop.permute.xlu0 %6105
  %6107 = vrot.lane.b32.xlu0 %v4458, 109
  %v6108 = vpop.permute.xlu0 %6107
  %v6109 = vsel %vm1929, %v6106, %v6108
  %v6110 = vsel %vm1929, %v6104, %v6106
  %v6111 = vsel %vm1929, %v6102, %v6104
  %v6112 = vsel %vm1929, %v6100, %v6102
  %v6113 = vsel %vm1929, %v6098, %v6100
  %v6114 = vsel %vm1929, %v6096, %v6098
  %v6115 = vsel %vm1929, %v6108, %v6096
  %v6116 = vlaneseq
  %v6117 = vshrl.u32 %v6116, 7
  %v6118 = vsub.s32 0, %v6117
  %v6119 = vrot.slane %v6114, %v6118
  %v6120 = vlaneseq
  %v6121 = vshrl.u32 %v6120, 7
  %v6122 = vsub.s32 0, %v6121
  %v6123 = vrot.slane %v6113, %v6122
  %v6124 = vlaneseq
  %v6125 = vshrl.u32 %v6124, 7
  %v6126 = vsub.s32 0, %v6125
  %v6127 = vrot.slane %v6112, %v6126
  %v6128 = vlaneseq
  %v6129 = vshrl.u32 %v6128, 7
  %v6130 = vsub.s32 0, %v6129
  %v6131 = vrot.slane %v6111, %v6130
  %v6132 = vlaneseq
  %v6133 = vshrl.u32 %v6132, 7
  %v6134 = vsub.s32 0, %v6133
  %v6135 = vrot.slane %v6110, %v6134
  %v6136 = vlaneseq
  %v6137 = vshrl.u32 %v6136, 7
  %v6138 = vsub.s32 0, %v6137
  %v6139 = vrot.slane %v6109, %v6138
  %v6140 = vlaneseq
  %v6141 = vshrl.u32 %v6140, 7
  %v6142 = vsub.s32 0, %v6141
  %v6143 = vrot.slane %v6115, %v6142
  %v6144 = vmul.f32 %v1940, %v6119
  %v6145 = vmul.f32 %v1940, %v6123
  %v6146 = vmul.f32 %v1940, %v6127
  %v6147 = vmul.f32 %v1940, %v6131
  %v6148 = vmul.f32 %v1940, %v6135
  %v6149 = vmul.f32 %v1940, %v6139
  %v6150 = vmul.f32 %v1940, %v6143
  %v6151 = vadd.f32 %v6088, %v6144
  %v6152 = vadd.f32 %v6089, %v6145
  %v6153 = vadd.f32 %v6090, %v6146
  %v6154 = vadd.f32 %v6091, %v6147
  %v6155 = vadd.f32 %v6092, %v6148
  %v6156 = vadd.f32 %v6093, %v6149
  %v6157 = vadd.f32 %v6094, %v6150
  %v6158 = vlaneseq
  %v6159 = vshrl.u32 %v6158, 7
  %v6160 = vsub.s32 1, %v6159
  %v6161 = vrot.slane %v6114, %v6160
  %v6162 = vlaneseq
  %v6163 = vshrl.u32 %v6162, 7
  %v6164 = vsub.s32 1, %v6163
  %v6165 = vrot.slane %v6113, %v6164
  %v6166 = vlaneseq
  %v6167 = vshrl.u32 %v6166, 7
  %v6168 = vsub.s32 1, %v6167
  %v6169 = vrot.slane %v6112, %v6168
  %v6170 = vlaneseq
  %v6171 = vshrl.u32 %v6170, 7
  %v6172 = vsub.s32 1, %v6171
  %v6173 = vrot.slane %v6111, %v6172
  %v6174 = vlaneseq
  %v6175 = vshrl.u32 %v6174, 7
  %v6176 = vsub.s32 1, %v6175
  %v6177 = vrot.slane %v6110, %v6176
  %v6178 = vlaneseq
  %v6179 = vshrl.u32 %v6178, 7
  %v6180 = vsub.s32 1, %v6179
  %v6181 = vrot.slane %v6109, %v6180
  %v6182 = vlaneseq
  %v6183 = vshrl.u32 %v6182, 7
  %v6184 = vsub.s32 1, %v6183
  %v6185 = vrot.slane %v6115, %v6184
  %v6186 = vmul.f32 %v1987, %v6161
  %v6187 = vmul.f32 %v1987, %v6165
  %v6188 = vmul.f32 %v1987, %v6169
  %v6189 = vmul.f32 %v1987, %v6173
  %v6190 = vmul.f32 %v1987, %v6177
  %v6191 = vmul.f32 %v1987, %v6181
  %v6192 = vmul.f32 %v1987, %v6185
  %v6193 = vadd.f32 %v6151, %v6186
  %v6194 = vadd.f32 %v6152, %v6187
  %v6195 = vadd.f32 %v6153, %v6188
  %v6196 = vadd.f32 %v6154, %v6189
  %v6197 = vadd.f32 %v6155, %v6190
  %v6198 = vadd.f32 %v6156, %v6191
  %v6199 = vadd.f32 %v6157, %v6192
  %v6200 = vlaneseq
  %v6201 = vshrl.u32 %v6200, 7
  %v6202 = vsub.s32 2, %v6201
  %v6203 = vrot.slane %v6114, %v6202
  %v6204 = vlaneseq
  %v6205 = vshrl.u32 %v6204, 7
  %v6206 = vsub.s32 2, %v6205
  %v6207 = vrot.slane %v6113, %v6206
  %v6208 = vlaneseq
  %v6209 = vshrl.u32 %v6208, 7
  %v6210 = vsub.s32 2, %v6209
  %v6211 = vrot.slane %v6112, %v6210
  %v6212 = vlaneseq
  %v6213 = vshrl.u32 %v6212, 7
  %v6214 = vsub.s32 2, %v6213
  %v6215 = vrot.slane %v6111, %v6214
  %v6216 = vlaneseq
  %v6217 = vshrl.u32 %v6216, 7
  %v6218 = vsub.s32 2, %v6217
  %v6219 = vrot.slane %v6110, %v6218
  %v6220 = vlaneseq
  %v6221 = vshrl.u32 %v6220, 7
  %v6222 = vsub.s32 2, %v6221
  %v6223 = vrot.slane %v6109, %v6222
  %v6224 = vlaneseq
  %v6225 = vshrl.u32 %v6224, 7
  %v6226 = vsub.s32 2, %v6225
  %v6227 = vrot.slane %v6115, %v6226
  %v6228 = vmul.f32 %v2034, %v6203
  %v6229 = vmul.f32 %v2034, %v6207
  %v6230 = vmul.f32 %v2034, %v6211
  %v6231 = vmul.f32 %v2034, %v6215
  %v6232 = vmul.f32 %v2034, %v6219
  %v6233 = vmul.f32 %v2034, %v6223
  %v6234 = vmul.f32 %v2034, %v6227
  %v6235 = vadd.f32 %v6193, %v6228
  %v6236 = vadd.f32 %v6194, %v6229
  %v6237 = vadd.f32 %v6195, %v6230
  %v6238 = vadd.f32 %v6196, %v6231
  %v6239 = vadd.f32 %v6197, %v6232
  %v6240 = vadd.f32 %v6198, %v6233
  %v6241 = vadd.f32 %v6199, %v6234
  %v6242 = vlaneseq
  %v6243 = vshrl.u32 %v6242, 7
  %v6244 = vsub.s32 3, %v6243
  %v6245 = vrot.slane %v6114, %v6244
  %v6246 = vlaneseq
  %v6247 = vshrl.u32 %v6246, 7
  %v6248 = vsub.s32 3, %v6247
  %v6249 = vrot.slane %v6113, %v6248
  %v6250 = vlaneseq
  %v6251 = vshrl.u32 %v6250, 7
  %v6252 = vsub.s32 3, %v6251
  %v6253 = vrot.slane %v6112, %v6252
  %v6254 = vlaneseq
  %v6255 = vshrl.u32 %v6254, 7
  %v6256 = vsub.s32 3, %v6255
  %v6257 = vrot.slane %v6111, %v6256
  %v6258 = vlaneseq
  %v6259 = vshrl.u32 %v6258, 7
  %v6260 = vsub.s32 3, %v6259
  %v6261 = vrot.slane %v6110, %v6260
  %v6262 = vlaneseq
  %v6263 = vshrl.u32 %v6262, 7
  %v6264 = vsub.s32 3, %v6263
  %v6265 = vrot.slane %v6109, %v6264
  %v6266 = vlaneseq
  %v6267 = vshrl.u32 %v6266, 7
  %v6268 = vsub.s32 3, %v6267
  %v6269 = vrot.slane %v6115, %v6268
  %v6270 = vmul.f32 %v2081, %v6245
  %v6271 = vmul.f32 %v2081, %v6249
  %v6272 = vmul.f32 %v2081, %v6253
  %v6273 = vmul.f32 %v2081, %v6257
  %v6274 = vmul.f32 %v2081, %v6261
  %v6275 = vmul.f32 %v2081, %v6265
  %v6276 = vmul.f32 %v2081, %v6269
  %v6277 = vadd.f32 %v6235, %v6270
  %v6278 = vadd.f32 %v6236, %v6271
  %v6279 = vadd.f32 %v6237, %v6272
  %v6280 = vadd.f32 %v6238, %v6273
  %v6281 = vadd.f32 %v6239, %v6274
  %v6282 = vadd.f32 %v6240, %v6275
  %v6283 = vadd.f32 %v6241, %v6276
  %v6284 = vadd.f32 %v6277, %v2128
  %v6285 = vadd.f32 %v6278, %v2128
  %v6286 = vadd.f32 %v6279, %v2128
  %v6287 = vadd.f32 %v6280, %v2128
  %v6288 = vadd.f32 %v6281, %v2128
  %v6289 = vadd.f32 %v6282, %v2128
  %v6290 = vadd.f32 %v6283, %v2128
  %v6291 = vmax.f32 %v6284, 0.0
  %v6292 = vmax.f32 %v6285, 0.0
  %v6293 = vmax.f32 %v6286, 0.0
  %v6294 = vmax.f32 %v6287, 0.0
  %v6295 = vmax.f32 %v6288, 0.0
  %v6296 = vmax.f32 %v6289, 0.0
  %v6297 = vmax.f32 %v6290, 0.0
  %v6298 = vlaneseq
  %v6299 = vshrl.u32 %v6298, 7
  %v6300 = vsub.s32 0, %v6299
  %v6301 = vrot.slane %v6291, %v6300
  %v6302 = vlaneseq
  %v6303 = vshrl.u32 %v6302, 7
  %v6304 = vsub.s32 0, %v6303
  %v6305 = vrot.slane %v6292, %v6304
  %v6306 = vlaneseq
  %v6307 = vshrl.u32 %v6306, 7
  %v6308 = vsub.s32 0, %v6307
  %v6309 = vrot.slane %v6293, %v6308
  %v6310 = vlaneseq
  %v6311 = vshrl.u32 %v6310, 7
  %v6312 = vsub.s32 0, %v6311
  %v6313 = vrot.slane %v6294, %v6312
  %v6314 = vlaneseq
  %v6315 = vshrl.u32 %v6314, 7
  %v6316 = vsub.s32 0, %v6315
  %v6317 = vrot.slane %v6295, %v6316
  %v6318 = vlaneseq
  %v6319 = vshrl.u32 %v6318, 7
  %v6320 = vsub.s32 0, %v6319
  %v6321 = vrot.slane %v6296, %v6320
  %v6322 = vlaneseq
  %v6323 = vshrl.u32 %v6322, 7
  %v6324 = vsub.s32 0, %v6323
  %v6325 = vrot.slane %v6297, %v6324
  %v6326 = vmul.f32 %v2147, %v6301
  %v6327 = vmul.f32 %v2147, %v6305
  %v6328 = vmul.f32 %v2147, %v6309
  %v6329 = vmul.f32 %v2147, %v6313
  %v6330 = vmul.f32 %v2147, %v6317
  %v6331 = vmul.f32 %v2147, %v6321
  %v6332 = vmul.f32 %v2147, %v6325
  %v6333 = vlaneseq
  %v6334 = vshrl.u32 %v6333, 7
  %v6335 = vsub.s32 1, %v6334
  %v6336 = vrot.slane %v6291, %v6335
  %v6337 = vlaneseq
  %v6338 = vshrl.u32 %v6337, 7
  %v6339 = vsub.s32 1, %v6338
  %v6340 = vrot.slane %v6292, %v6339
  %v6341 = vlaneseq
  %v6342 = vshrl.u32 %v6341, 7
  %v6343 = vsub.s32 1, %v6342
  %v6344 = vrot.slane %v6293, %v6343
  %v6345 = vlaneseq
  %v6346 = vshrl.u32 %v6345, 7
  %v6347 = vsub.s32 1, %v6346
  %v6348 = vrot.slane %v6294, %v6347
  %v6349 = vlaneseq
  %v6350 = vshrl.u32 %v6349, 7
  %v6351 = vsub.s32 1, %v6350
  %v6352 = vrot.slane %v6295, %v6351
  %v6353 = vlaneseq
  %v6354 = vshrl.u32 %v6353, 7
  %v6355 = vsub.s32 1, %v6354
  %v6356 = vrot.slane %v6296, %v6355
  %v6357 = vlaneseq
  %v6358 = vshrl.u32 %v6357, 7
  %v6359 = vsub.s32 1, %v6358
  %v6360 = vrot.slane %v6297, %v6359
  %v6361 = vmul.f32 %v2187, %v6336
  %v6362 = vmul.f32 %v2187, %v6340
  %v6363 = vmul.f32 %v2187, %v6344
  %v6364 = vmul.f32 %v2187, %v6348
  %v6365 = vmul.f32 %v2187, %v6352
  %v6366 = vmul.f32 %v2187, %v6356
  %v6367 = vmul.f32 %v2187, %v6360
  %v6368 = vadd.f32 %v6326, %v6361
  %v6369 = vadd.f32 %v6327, %v6362
  %v6370 = vadd.f32 %v6328, %v6363
  %v6371 = vadd.f32 %v6329, %v6364
  %v6372 = vadd.f32 %v6330, %v6365
  %v6373 = vadd.f32 %v6331, %v6366
  %v6374 = vadd.f32 %v6332, %v6367
  %v6375 = vlaneseq
  %v6376 = vshrl.u32 %v6375, 7
  %v6377 = vsub.s32 2, %v6376
  %v6378 = vrot.slane %v6291, %v6377
  %v6379 = vlaneseq
  %v6380 = vshrl.u32 %v6379, 7
  %v6381 = vsub.s32 2, %v6380
  %v6382 = vrot.slane %v6292, %v6381
  %v6383 = vlaneseq
  %v6384 = vshrl.u32 %v6383, 7
  %v6385 = vsub.s32 2, %v6384
  %v6386 = vrot.slane %v6293, %v6385
  %v6387 = vlaneseq
  %v6388 = vshrl.u32 %v6387, 7
  %v6389 = vsub.s32 2, %v6388
  %v6390 = vrot.slane %v6294, %v6389
  %v6391 = vlaneseq
  %v6392 = vshrl.u32 %v6391, 7
  %v6393 = vsub.s32 2, %v6392
  %v6394 = vrot.slane %v6295, %v6393
  %v6395 = vlaneseq
  %v6396 = vshrl.u32 %v6395, 7
  %v6397 = vsub.s32 2, %v6396
  %v6398 = vrot.slane %v6296, %v6397
  %v6399 = vlaneseq
  %v6400 = vshrl.u32 %v6399, 7
  %v6401 = vsub.s32 2, %v6400
  %v6402 = vrot.slane %v6297, %v6401
  %v6403 = vmul.f32 %v2234, %v6378
  %v6404 = vmul.f32 %v2234, %v6382
  %v6405 = vmul.f32 %v2234, %v6386
  %v6406 = vmul.f32 %v2234, %v6390
  %v6407 = vmul.f32 %v2234, %v6394
  %v6408 = vmul.f32 %v2234, %v6398
  %v6409 = vmul.f32 %v2234, %v6402
  %v6410 = vadd.f32 %v6368, %v6403
  %v6411 = vadd.f32 %v6369, %v6404
  %v6412 = vadd.f32 %v6370, %v6405
  %v6413 = vadd.f32 %v6371, %v6406
  %v6414 = vadd.f32 %v6372, %v6407
  %v6415 = vadd.f32 %v6373, %v6408
  %v6416 = vadd.f32 %v6374, %v6409
  %v6417 = vlaneseq
  %v6418 = vshrl.u32 %v6417, 7
  %v6419 = vsub.s32 3, %v6418
  %v6420 = vrot.slane %v6291, %v6419
  %v6421 = vlaneseq
  %v6422 = vshrl.u32 %v6421, 7
  %v6423 = vsub.s32 3, %v6422
  %v6424 = vrot.slane %v6292, %v6423
  %v6425 = vlaneseq
  %v6426 = vshrl.u32 %v6425, 7
  %v6427 = vsub.s32 3, %v6426
  %v6428 = vrot.slane %v6293, %v6427
  %v6429 = vlaneseq
  %v6430 = vshrl.u32 %v6429, 7
  %v6431 = vsub.s32 3, %v6430
  %v6432 = vrot.slane %v6294, %v6431
  %v6433 = vlaneseq
  %v6434 = vshrl.u32 %v6433, 7
  %v6435 = vsub.s32 3, %v6434
  %v6436 = vrot.slane %v6295, %v6435
  %v6437 = vlaneseq
  %v6438 = vshrl.u32 %v6437, 7
  %v6439 = vsub.s32 3, %v6438
  %v6440 = vrot.slane %v6296, %v6439
  %v6441 = vlaneseq
  %v6442 = vshrl.u32 %v6441, 7
  %v6443 = vsub.s32 3, %v6442
  %v6444 = vrot.slane %v6297, %v6443
  %v6445 = vmul.f32 %v2281, %v6420
  %v6446 = vmul.f32 %v2281, %v6424
  %v6447 = vmul.f32 %v2281, %v6428
  %v6448 = vmul.f32 %v2281, %v6432
  %v6449 = vmul.f32 %v2281, %v6436
  %v6450 = vmul.f32 %v2281, %v6440
  %v6451 = vmul.f32 %v2281, %v6444
  %v6452 = vadd.f32 %v6410, %v6445
  %v6453 = vadd.f32 %v6411, %v6446
  %v6454 = vadd.f32 %v6412, %v6447
  %v6455 = vadd.f32 %v6413, %v6448
  %v6456 = vadd.f32 %v6414, %v6449
  %v6457 = vadd.f32 %v6415, %v6450
  %v6458 = vadd.f32 %v6416, %v6451
  %v6460 = vlaneseq
  %v6461 = vshrl.u32 %v6460, 7
  %v6462 = vsub.s32 0, %v6461
  %v6463 = vrot.slane %v4460, %v6462
  %v6464 = vlaneseq
  %v6465 = vshrl.u32 %v6464, 7
  %v6466 = vsub.s32 1, %v6465
  %v6467 = vrot.slane %v4460, %v6466
  %v6468 = vlaneseq
  %v6469 = vshrl.u32 %v6468, 7
  %v6470 = vsub.s32 2, %v6469
  %v6471 = vrot.slane %v4460, %v6470
  %v6472 = vlaneseq
  %v6473 = vshrl.u32 %v6472, 7
  %v6474 = vsub.s32 3, %v6473
  %v6475 = vrot.slane %v4460, %v6474
  %v6476 = vlaneseq
  %v6477 = vshrl.u32 %v6476, 7
  %v6478 = vsub.s32 4, %v6477
  %v6479 = vrot.slane %v4460, %v6478
  %v6480 = vlaneseq
  %v6481 = vshrl.u32 %v6480, 7
  %v6482 = vsub.s32 5, %v6481
  %v6483 = vrot.slane %v4460, %v6482
  %v6484 = vlaneseq
  %v6485 = vshrl.u32 %v6484, 7
  %v6486 = vsub.s32 6, %v6485
  %v6487 = vrot.slane %v4460, %v6486
  %v6495 = vmul.f32 %v6452, %v6463
  %v6496 = vmul.f32 %v6453, %v6467
  %v6497 = vmul.f32 %v6454, %v6471
  %v6498 = vmul.f32 %v6455, %v6475
  %v6499 = vmul.f32 %v6456, %v6479
  %v6500 = vmul.f32 %v6457, %v6483
  %v6501 = vmul.f32 %v6458, %v6487
  %v6508 = vcombine.low %v6495, %v6496
  %v6509 = vcombine.low %v6497, %v6498
  %v6510 = vcombine.low %v6499, %v6500
  %v6514 = vadd.f32 %v4455, %v6508
  %v6515 = vadd.f32 %v4456, %v6509
  %v6516 = vadd.f32 %v4457, %v6510
  %v6517 = vadd.f32 %v4458, %v6501
  %6518 = vst [vmem:[%s5] sm:$0xff] %v6514
  %6519 = vst [vmem:[%s5 + $0x8] sm:$0xff] %v6515
  %6520 = vst [vmem:[%s5 + $0x10] sm:$0xff] %v6516
  %6521 = vst [vmem:[%s5 + $0x18] sm:$0xf] %v6517
  %v6522 = vld [vmem:[%s5] sm:$0xff]
  %v6523 = vld [vmem:[%s5 + $0x8] sm:$0xff]
  %v6524 = vld [vmem:[%s5 + $0x10] sm:$0xff]
  %v6525 = vld [vmem:[%s5 + $0x18] sm:$0xf]
  %s6526 = scalar_lea.vmem %s4, 21
  %v6527 = vld [vmem:[%s6526] sm:$0xff]
  %v6532 = vcombine.high %v6522, %v6522
  %v6533 = vcombine.high %v6523, %v6523
  %v6534 = vcombine.high %v6524, %v6524
  %6538 = vrot.lane.b32.xlu0 %v6522, 19
  %v6539 = vpop.permute.xlu0 %6538
  %6540 = vrot.lane.b32.xlu0 %v6532, 19
  %v6541 = vpop.permute.xlu0 %6540
  %6542 = vrot.lane.b32.xlu0 %v6523, 19
  %v6543 = vpop.permute.xlu0 %6542
  %6544 = vrot.lane.b32.xlu0 %v6533, 19
  %v6545 = vpop.permute.xlu0 %6544
  %6546 = vrot.lane.b32.xlu0 %v6524, 19
  %v6547 = vpop.permute.xlu0 %6546
  %6548 = vrot.lane.b32.xlu0 %v6534, 19
  %v6549 = vpop.permute.xlu0 %6548
  %6550 = vrot.lane.b32.xlu0 %v6525, 19
  %v6551 = vpop.permute.xlu0 %6550
  %v6552 = vsel %vm138, %v6549, %v6551
  %v6553 = vsel %vm138, %v6547, %v6549
  %v6554 = vsel %vm138, %v6545, %v6547
  %v6555 = vsel %vm138, %v6543, %v6545
  %v6556 = vsel %vm138, %v6541, %v6543
  %v6557 = vsel %vm138, %v6539, %v6541
  %v6558 = vsel %vm138, %v6551, %v6539
  %v6559 = vlaneseq
  %v6560 = vshrl.u32 %v6559, 7
  %v6561 = vsub.s32 0, %v6560
  %v6562 = vrot.slane %v6558, %v6561
  %v6563 = vlaneseq
  %v6564 = vshrl.u32 %v6563, 7
  %v6565 = vsub.s32 0, %v6564
  %v6566 = vrot.slane %v6557, %v6565
  %v6567 = vlaneseq
  %v6568 = vshrl.u32 %v6567, 7
  %v6569 = vsub.s32 0, %v6568
  %v6570 = vrot.slane %v6556, %v6569
  %v6571 = vlaneseq
  %v6572 = vshrl.u32 %v6571, 7
  %v6573 = vsub.s32 0, %v6572
  %v6574 = vrot.slane %v6555, %v6573
  %v6575 = vlaneseq
  %v6576 = vshrl.u32 %v6575, 7
  %v6577 = vsub.s32 0, %v6576
  %v6578 = vrot.slane %v6554, %v6577
  %v6579 = vlaneseq
  %v6580 = vshrl.u32 %v6579, 7
  %v6581 = vsub.s32 0, %v6580
  %v6582 = vrot.slane %v6553, %v6581
  %v6583 = vlaneseq
  %v6584 = vshrl.u32 %v6583, 7
  %v6585 = vsub.s32 0, %v6584
  %v6586 = vrot.slane %v6552, %v6585
  %v6587 = vmul.f32 %v149, %v6562
  %v6588 = vmul.f32 %v149, %v6566
  %v6589 = vmul.f32 %v149, %v6570
  %v6590 = vmul.f32 %v149, %v6574
  %v6591 = vmul.f32 %v149, %v6578
  %v6592 = vmul.f32 %v149, %v6582
  %v6593 = vmul.f32 %v149, %v6586
  %v6594 = vlaneseq
  %v6595 = vshrl.u32 %v6594, 7
  %v6596 = vsub.s32 1, %v6595
  %v6597 = vrot.slane %v6558, %v6596
  %v6598 = vlaneseq
  %v6599 = vshrl.u32 %v6598, 7
  %v6600 = vsub.s32 1, %v6599
  %v6601 = vrot.slane %v6557, %v6600
  %v6602 = vlaneseq
  %v6603 = vshrl.u32 %v6602, 7
  %v6604 = vsub.s32 1, %v6603
  %v6605 = vrot.slane %v6556, %v6604
  %v6606 = vlaneseq
  %v6607 = vshrl.u32 %v6606, 7
  %v6608 = vsub.s32 1, %v6607
  %v6609 = vrot.slane %v6555, %v6608
  %v6610 = vlaneseq
  %v6611 = vshrl.u32 %v6610, 7
  %v6612 = vsub.s32 1, %v6611
  %v6613 = vrot.slane %v6554, %v6612
  %v6614 = vlaneseq
  %v6615 = vshrl.u32 %v6614, 7
  %v6616 = vsub.s32 1, %v6615
  %v6617 = vrot.slane %v6553, %v6616
  %v6618 = vlaneseq
  %v6619 = vshrl.u32 %v6618, 7
  %v6620 = vsub.s32 1, %v6619
  %v6621 = vrot.slane %v6552, %v6620
  %v6622 = vmul.f32 %v189, %v6597
  %v6623 = vmul.f32 %v189, %v6601
  %v6624 = vmul.f32 %v189, %v6605
  %v6625 = vmul.f32 %v189, %v6609
  %v6626 = vmul.f32 %v189, %v6613
  %v6627 = vmul.f32 %v189, %v6617
  %v6628 = vmul.f32 %v189, %v6621
  %v6629 = vadd.f32 %v6587, %v6622
  %v6630 = vadd.f32 %v6588, %v6623
  %v6631 = vadd.f32 %v6589, %v6624
  %v6632 = vadd.f32 %v6590, %v6625
  %v6633 = vadd.f32 %v6591, %v6626
  %v6634 = vadd.f32 %v6592, %v6627
  %v6635 = vadd.f32 %v6593, %v6628
  %v6636 = vlaneseq
  %v6637 = vshrl.u32 %v6636, 7
  %v6638 = vsub.s32 2, %v6637
  %v6639 = vrot.slane %v6558, %v6638
  %v6640 = vlaneseq
  %v6641 = vshrl.u32 %v6640, 7
  %v6642 = vsub.s32 2, %v6641
  %v6643 = vrot.slane %v6557, %v6642
  %v6644 = vlaneseq
  %v6645 = vshrl.u32 %v6644, 7
  %v6646 = vsub.s32 2, %v6645
  %v6647 = vrot.slane %v6556, %v6646
  %v6648 = vlaneseq
  %v6649 = vshrl.u32 %v6648, 7
  %v6650 = vsub.s32 2, %v6649
  %v6651 = vrot.slane %v6555, %v6650
  %v6652 = vlaneseq
  %v6653 = vshrl.u32 %v6652, 7
  %v6654 = vsub.s32 2, %v6653
  %v6655 = vrot.slane %v6554, %v6654
  %v6656 = vlaneseq
  %v6657 = vshrl.u32 %v6656, 7
  %v6658 = vsub.s32 2, %v6657
  %v6659 = vrot.slane %v6553, %v6658
  %v6660 = vlaneseq
  %v6661 = vshrl.u32 %v6660, 7
  %v6662 = vsub.s32 2, %v6661
  %v6663 = vrot.slane %v6552, %v6662
  %v6664 = vmul.f32 %v236, %v6639
  %v6665 = vmul.f32 %v236, %v6643
  %v6666 = vmul.f32 %v236, %v6647
  %v6667 = vmul.f32 %v236, %v6651
  %v6668 = vmul.f32 %v236, %v6655
  %v6669 = vmul.f32 %v236, %v6659
  %v6670 = vmul.f32 %v236, %v6663
  %v6671 = vadd.f32 %v6629, %v6664
  %v6672 = vadd.f32 %v6630, %v6665
  %v6673 = vadd.f32 %v6631, %v6666
  %v6674 = vadd.f32 %v6632, %v6667
  %v6675 = vadd.f32 %v6633, %v6668
  %v6676 = vadd.f32 %v6634, %v6669
  %v6677 = vadd.f32 %v6635, %v6670
  %v6678 = vlaneseq
  %v6679 = vshrl.u32 %v6678, 7
  %v6680 = vsub.s32 3, %v6679
  %v6681 = vrot.slane %v6558, %v6680
  %v6682 = vlaneseq
  %v6683 = vshrl.u32 %v6682, 7
  %v6684 = vsub.s32 3, %v6683
  %v6685 = vrot.slane %v6557, %v6684
  %v6686 = vlaneseq
  %v6687 = vshrl.u32 %v6686, 7
  %v6688 = vsub.s32 3, %v6687
  %v6689 = vrot.slane %v6556, %v6688
  %v6690 = vlaneseq
  %v6691 = vshrl.u32 %v6690, 7
  %v6692 = vsub.s32 3, %v6691
  %v6693 = vrot.slane %v6555, %v6692
  %v6694 = vlaneseq
  %v6695 = vshrl.u32 %v6694, 7
  %v6696 = vsub.s32 3, %v6695
  %v6697 = vrot.slane %v6554, %v6696
  %v6698 = vlaneseq
  %v6699 = vshrl.u32 %v6698, 7
  %v6700 = vsub.s32 3, %v6699
  %v6701 = vrot.slane %v6553, %v6700
  %v6702 = vlaneseq
  %v6703 = vshrl.u32 %v6702, 7
  %v6704 = vsub.s32 3, %v6703
  %v6705 = vrot.slane %v6552, %v6704
  %v6706 = vmul.f32 %v283, %v6681
  %v6707 = vmul.f32 %v283, %v6685
  %v6708 = vmul.f32 %v283, %v6689
  %v6709 = vmul.f32 %v283, %v6693
  %v6710 = vmul.f32 %v283, %v6697
  %v6711 = vmul.f32 %v283, %v6701
  %v6712 = vmul.f32 %v283, %v6705
  %v6713 = vadd.f32 %v6671, %v6706
  %v6714 = vadd.f32 %v6672, %v6707
  %v6715 = vadd.f32 %v6673, %v6708
  %v6716 = vadd.f32 %v6674, %v6709
  %v6717 = vadd.f32 %v6675, %v6710
  %v6718 = vadd.f32 %v6676, %v6711
  %v6719 = vadd.f32 %v6677, %v6712
  %6720 = vrot.lane.b32.xlu0 %v6522, 18
  %v6721 = vpop.permute.xlu0 %6720
  %6722 = vrot.lane.b32.xlu0 %v6532, 18
  %v6723 = vpop.permute.xlu0 %6722
  %6724 = vrot.lane.b32.xlu0 %v6523, 18
  %v6725 = vpop.permute.xlu0 %6724
  %6726 = vrot.lane.b32.xlu0 %v6533, 18
  %v6727 = vpop.permute.xlu0 %6726
  %6728 = vrot.lane.b32.xlu0 %v6524, 18
  %v6729 = vpop.permute.xlu0 %6728
  %6730 = vrot.lane.b32.xlu0 %v6534, 18
  %v6731 = vpop.permute.xlu0 %6730
  %6732 = vrot.lane.b32.xlu0 %v6525, 18
  %v6733 = vpop.permute.xlu0 %6732
  %v6734 = vsel %vm341, %v6731, %v6733
  %v6735 = vsel %vm341, %v6729, %v6731
  %v6736 = vsel %vm341, %v6727, %v6729
  %v6737 = vsel %vm341, %v6725, %v6727
  %v6738 = vsel %vm341, %v6723, %v6725
  %v6739 = vsel %vm341, %v6721, %v6723
  %v6740 = vsel %vm341, %v6733, %v6721
  %v6741 = vlaneseq
  %v6742 = vshrl.u32 %v6741, 7
  %v6743 = vsub.s32 0, %v6742
  %v6744 = vrot.slane %v6740, %v6743
  %v6745 = vlaneseq
  %v6746 = vshrl.u32 %v6745, 7
  %v6747 = vsub.s32 0, %v6746
  %v6748 = vrot.slane %v6739, %v6747
  %v6749 = vlaneseq
  %v6750 = vshrl.u32 %v6749, 7
  %v6751 = vsub.s32 0, %v6750
  %v6752 = vrot.slane %v6738, %v6751
  %v6753 = vlaneseq
  %v6754 = vshrl.u32 %v6753, 7
  %v6755 = vsub.s32 0, %v6754
  %v6756 = vrot.slane %v6737, %v6755
  %v6757 = vlaneseq
  %v6758 = vshrl.u32 %v6757, 7
  %v6759 = vsub.s32 0, %v6758
  %v6760 = vrot.slane %v6736, %v6759
  %v6761 = vlaneseq
  %v6762 = vshrl.u32 %v6761, 7
  %v6763 = vsub.s32 0, %v6762
  %v6764 = vrot.slane %v6735, %v6763
  %v6765 = vlaneseq
  %v6766 = vshrl.u32 %v6765, 7
  %v6767 = vsub.s32 0, %v6766
  %v6768 = vrot.slane %v6734, %v6767
  %v6769 = vmul.f32 %v352, %v6744
  %v6770 = vmul.f32 %v352, %v6748
  %v6771 = vmul.f32 %v352, %v6752
  %v6772 = vmul.f32 %v352, %v6756
  %v6773 = vmul.f32 %v352, %v6760
  %v6774 = vmul.f32 %v352, %v6764
  %v6775 = vmul.f32 %v352, %v6768
  %v6776 = vadd.f32 %v6713, %v6769
  %v6777 = vadd.f32 %v6714, %v6770
  %v6778 = vadd.f32 %v6715, %v6771
  %v6779 = vadd.f32 %v6716, %v6772
  %v6780 = vadd.f32 %v6717, %v6773
  %v6781 = vadd.f32 %v6718, %v6774
  %v6782 = vadd.f32 %v6719, %v6775
  %v6783 = vlaneseq
  %v6784 = vshrl.u32 %v6783, 7
  %v6785 = vsub.s32 1, %v6784
  %v6786 = vrot.slane %v6740, %v6785
  %v6787 = vlaneseq
  %v6788 = vshrl.u32 %v6787, 7
  %v6789 = vsub.s32 1, %v6788
  %v6790 = vrot.slane %v6739, %v6789
  %v6791 = vlaneseq
  %v6792 = vshrl.u32 %v6791, 7
  %v6793 = vsub.s32 1, %v6792
  %v6794 = vrot.slane %v6738, %v6793
  %v6795 = vlaneseq
  %v6796 = vshrl.u32 %v6795, 7
  %v6797 = vsub.s32 1, %v6796
  %v6798 = vrot.slane %v6737, %v6797
  %v6799 = vlaneseq
  %v6800 = vshrl.u32 %v6799, 7
  %v6801 = vsub.s32 1, %v6800
  %v6802 = vrot.slane %v6736, %v6801
  %v6803 = vlaneseq
  %v6804 = vshrl.u32 %v6803, 7
  %v6805 = vsub.s32 1, %v6804
  %v6806 = vrot.slane %v6735, %v6805
  %v6807 = vlaneseq
  %v6808 = vshrl.u32 %v6807, 7
  %v6809 = vsub.s32 1, %v6808
  %v6810 = vrot.slane %v6734, %v6809
  %v6811 = vmul.f32 %v399, %v6786
  %v6812 = vmul.f32 %v399, %v6790
  %v6813 = vmul.f32 %v399, %v6794
  %v6814 = vmul.f32 %v399, %v6798
  %v6815 = vmul.f32 %v399, %v6802
  %v6816 = vmul.f32 %v399, %v6806
  %v6817 = vmul.f32 %v399, %v6810
  %v6818 = vadd.f32 %v6776, %v6811
  %v6819 = vadd.f32 %v6777, %v6812
  %v6820 = vadd.f32 %v6778, %v6813
  %v6821 = vadd.f32 %v6779, %v6814
  %v6822 = vadd.f32 %v6780, %v6815
  %v6823 = vadd.f32 %v6781, %v6816
  %v6824 = vadd.f32 %v6782, %v6817
  %v6825 = vlaneseq
  %v6826 = vshrl.u32 %v6825, 7
  %v6827 = vsub.s32 2, %v6826
  %v6828 = vrot.slane %v6740, %v6827
  %v6829 = vlaneseq
  %v6830 = vshrl.u32 %v6829, 7
  %v6831 = vsub.s32 2, %v6830
  %v6832 = vrot.slane %v6739, %v6831
  %v6833 = vlaneseq
  %v6834 = vshrl.u32 %v6833, 7
  %v6835 = vsub.s32 2, %v6834
  %v6836 = vrot.slane %v6738, %v6835
  %v6837 = vlaneseq
  %v6838 = vshrl.u32 %v6837, 7
  %v6839 = vsub.s32 2, %v6838
  %v6840 = vrot.slane %v6737, %v6839
  %v6841 = vlaneseq
  %v6842 = vshrl.u32 %v6841, 7
  %v6843 = vsub.s32 2, %v6842
  %v6844 = vrot.slane %v6736, %v6843
  %v6845 = vlaneseq
  %v6846 = vshrl.u32 %v6845, 7
  %v6847 = vsub.s32 2, %v6846
  %v6848 = vrot.slane %v6735, %v6847
  %v6849 = vlaneseq
  %v6850 = vshrl.u32 %v6849, 7
  %v6851 = vsub.s32 2, %v6850
  %v6852 = vrot.slane %v6734, %v6851
  %v6853 = vmul.f32 %v446, %v6828
  %v6854 = vmul.f32 %v446, %v6832
  %v6855 = vmul.f32 %v446, %v6836
  %v6856 = vmul.f32 %v446, %v6840
  %v6857 = vmul.f32 %v446, %v6844
  %v6858 = vmul.f32 %v446, %v6848
  %v6859 = vmul.f32 %v446, %v6852
  %v6860 = vadd.f32 %v6818, %v6853
  %v6861 = vadd.f32 %v6819, %v6854
  %v6862 = vadd.f32 %v6820, %v6855
  %v6863 = vadd.f32 %v6821, %v6856
  %v6864 = vadd.f32 %v6822, %v6857
  %v6865 = vadd.f32 %v6823, %v6858
  %v6866 = vadd.f32 %v6824, %v6859
  %v6867 = vlaneseq
  %v6868 = vshrl.u32 %v6867, 7
  %v6869 = vsub.s32 3, %v6868
  %v6870 = vrot.slane %v6740, %v6869
  %v6871 = vlaneseq
  %v6872 = vshrl.u32 %v6871, 7
  %v6873 = vsub.s32 3, %v6872
  %v6874 = vrot.slane %v6739, %v6873
  %v6875 = vlaneseq
  %v6876 = vshrl.u32 %v6875, 7
  %v6877 = vsub.s32 3, %v6876
  %v6878 = vrot.slane %v6738, %v6877
  %v6879 = vlaneseq
  %v6880 = vshrl.u32 %v6879, 7
  %v6881 = vsub.s32 3, %v6880
  %v6882 = vrot.slane %v6737, %v6881
  %v6883 = vlaneseq
  %v6884 = vshrl.u32 %v6883, 7
  %v6885 = vsub.s32 3, %v6884
  %v6886 = vrot.slane %v6736, %v6885
  %v6887 = vlaneseq
  %v6888 = vshrl.u32 %v6887, 7
  %v6889 = vsub.s32 3, %v6888
  %v6890 = vrot.slane %v6735, %v6889
  %v6891 = vlaneseq
  %v6892 = vshrl.u32 %v6891, 7
  %v6893 = vsub.s32 3, %v6892
  %v6894 = vrot.slane %v6734, %v6893
  %v6895 = vmul.f32 %v493, %v6870
  %v6896 = vmul.f32 %v493, %v6874
  %v6897 = vmul.f32 %v493, %v6878
  %v6898 = vmul.f32 %v493, %v6882
  %v6899 = vmul.f32 %v493, %v6886
  %v6900 = vmul.f32 %v493, %v6890
  %v6901 = vmul.f32 %v493, %v6894
  %v6902 = vadd.f32 %v6860, %v6895
  %v6903 = vadd.f32 %v6861, %v6896
  %v6904 = vadd.f32 %v6862, %v6897
  %v6905 = vadd.f32 %v6863, %v6898
  %v6906 = vadd.f32 %v6864, %v6899
  %v6907 = vadd.f32 %v6865, %v6900
  %v6908 = vadd.f32 %v6866, %v6901
  %6909 = vrot.lane.b32.xlu0 %v6522, 17
  %v6910 = vpop.permute.xlu0 %6909
  %6911 = vrot.lane.b32.xlu0 %v6532, 17
  %v6912 = vpop.permute.xlu0 %6911
  %6913 = vrot.lane.b32.xlu0 %v6523, 17
  %v6914 = vpop.permute.xlu0 %6913
  %6915 = vrot.lane.b32.xlu0 %v6533, 17
  %v6916 = vpop.permute.xlu0 %6915
  %6917 = vrot.lane.b32.xlu0 %v6524, 17
  %v6918 = vpop.permute.xlu0 %6917
  %6919 = vrot.lane.b32.xlu0 %v6534, 17
  %v6920 = vpop.permute.xlu0 %6919
  %6921 = vrot.lane.b32.xlu0 %v6525, 17
  %v6922 = vpop.permute.xlu0 %6921
  %v6923 = vsel %vm551, %v6920, %v6922
  %v6924 = vsel %vm551, %v6918, %v6920
  %v6925 = vsel %vm551, %v6916, %v6918
  %v6926 = vsel %vm551, %v6914, %v6916
  %v6927 = vsel %vm551, %v6912, %v6914
  %v6928 = vsel %vm551, %v6910, %v6912
  %v6929 = vsel %vm551, %v6922, %v6910
  %v6930 = vlaneseq
  %v6931 = vshrl.u32 %v6930, 7
  %v6932 = vsub.s32 0, %v6931
  %v6933 = vrot.slane %v6929, %v6932
  %v6934 = vlaneseq
  %v6935 = vshrl.u32 %v6934, 7
  %v6936 = vsub.s32 0, %v6935
  %v6937 = vrot.slane %v6928, %v6936
  %v6938 = vlaneseq
  %v6939 = vshrl.u32 %v6938, 7
  %v6940 = vsub.s32 0, %v6939
  %v6941 = vrot.slane %v6927, %v6940
  %v6942 = vlaneseq
  %v6943 = vshrl.u32 %v6942, 7
  %v6944 = vsub.s32 0, %v6943
  %v6945 = vrot.slane %v6926, %v6944
  %v6946 = vlaneseq
  %v6947 = vshrl.u32 %v6946, 7
  %v6948 = vsub.s32 0, %v6947
  %v6949 = vrot.slane %v6925, %v6948
  %v6950 = vlaneseq
  %v6951 = vshrl.u32 %v6950, 7
  %v6952 = vsub.s32 0, %v6951
  %v6953 = vrot.slane %v6924, %v6952
  %v6954 = vlaneseq
  %v6955 = vshrl.u32 %v6954, 7
  %v6956 = vsub.s32 0, %v6955
  %v6957 = vrot.slane %v6923, %v6956
  %v6958 = vmul.f32 %v562, %v6933
  %v6959 = vmul.f32 %v562, %v6937
  %v6960 = vmul.f32 %v562, %v6941
  %v6961 = vmul.f32 %v562, %v6945
  %v6962 = vmul.f32 %v562, %v6949
  %v6963 = vmul.f32 %v562, %v6953
  %v6964 = vmul.f32 %v562, %v6957
  %v6965 = vadd.f32 %v6902, %v6958
  %v6966 = vadd.f32 %v6903, %v6959
  %v6967 = vadd.f32 %v6904, %v6960
  %v6968 = vadd.f32 %v6905, %v6961
  %v6969 = vadd.f32 %v6906, %v6962
  %v6970 = vadd.f32 %v6907, %v6963
  %v6971 = vadd.f32 %v6908, %v6964
  %v6972 = vlaneseq
  %v6973 = vshrl.u32 %v6972, 7
  %v6974 = vsub.s32 1, %v6973
  %v6975 = vrot.slane %v6929, %v6974
  %v6976 = vlaneseq
  %v6977 = vshrl.u32 %v6976, 7
  %v6978 = vsub.s32 1, %v6977
  %v6979 = vrot.slane %v6928, %v6978
  %v6980 = vlaneseq
  %v6981 = vshrl.u32 %v6980, 7
  %v6982 = vsub.s32 1, %v6981
  %v6983 = vrot.slane %v6927, %v6982
  %v6984 = vlaneseq
  %v6985 = vshrl.u32 %v6984, 7
  %v6986 = vsub.s32 1, %v6985
  %v6987 = vrot.slane %v6926, %v6986
  %v6988 = vlaneseq
  %v6989 = vshrl.u32 %v6988, 7
  %v6990 = vsub.s32 1, %v6989
  %v6991 = vrot.slane %v6925, %v6990
  %v6992 = vlaneseq
  %v6993 = vshrl.u32 %v6992, 7
  %v6994 = vsub.s32 1, %v6993
  %v6995 = vrot.slane %v6924, %v6994
  %v6996 = vlaneseq
  %v6997 = vshrl.u32 %v6996, 7
  %v6998 = vsub.s32 1, %v6997
  %v6999 = vrot.slane %v6923, %v6998
  %v7000 = vmul.f32 %v609, %v6975
  %v7001 = vmul.f32 %v609, %v6979
  %v7002 = vmul.f32 %v609, %v6983
  %v7003 = vmul.f32 %v609, %v6987
  %v7004 = vmul.f32 %v609, %v6991
  %v7005 = vmul.f32 %v609, %v6995
  %v7006 = vmul.f32 %v609, %v6999
  %v7007 = vadd.f32 %v6965, %v7000
  %v7008 = vadd.f32 %v6966, %v7001
  %v7009 = vadd.f32 %v6967, %v7002
  %v7010 = vadd.f32 %v6968, %v7003
  %v7011 = vadd.f32 %v6969, %v7004
  %v7012 = vadd.f32 %v6970, %v7005
  %v7013 = vadd.f32 %v6971, %v7006
  %v7014 = vlaneseq
  %v7015 = vshrl.u32 %v7014, 7
  %v7016 = vsub.s32 2, %v7015
  %v7017 = vrot.slane %v6929, %v7016
  %v7018 = vlaneseq
  %v7019 = vshrl.u32 %v7018, 7
  %v7020 = vsub.s32 2, %v7019
  %v7021 = vrot.slane %v6928, %v7020
  %v7022 = vlaneseq
  %v7023 = vshrl.u32 %v7022, 7
  %v7024 = vsub.s32 2, %v7023
  %v7025 = vrot.slane %v6927, %v7024
  %v7026 = vlaneseq
  %v7027 = vshrl.u32 %v7026, 7
  %v7028 = vsub.s32 2, %v7027
  %v7029 = vrot.slane %v6926, %v7028
  %v7030 = vlaneseq
  %v7031 = vshrl.u32 %v7030, 7
  %v7032 = vsub.s32 2, %v7031
  %v7033 = vrot.slane %v6925, %v7032
  %v7034 = vlaneseq
  %v7035 = vshrl.u32 %v7034, 7
  %v7036 = vsub.s32 2, %v7035
  %v7037 = vrot.slane %v6924, %v7036
  %v7038 = vlaneseq
  %v7039 = vshrl.u32 %v7038, 7
  %v7040 = vsub.s32 2, %v7039
  %v7041 = vrot.slane %v6923, %v7040
  %v7042 = vmul.f32 %v656, %v7017
  %v7043 = vmul.f32 %v656, %v7021
  %v7044 = vmul.f32 %v656, %v7025
  %v7045 = vmul.f32 %v656, %v7029
  %v7046 = vmul.f32 %v656, %v7033
  %v7047 = vmul.f32 %v656, %v7037
  %v7048 = vmul.f32 %v656, %v7041
  %v7049 = vadd.f32 %v7007, %v7042
  %v7050 = vadd.f32 %v7008, %v7043
  %v7051 = vadd.f32 %v7009, %v7044
  %v7052 = vadd.f32 %v7010, %v7045
  %v7053 = vadd.f32 %v7011, %v7046
  %v7054 = vadd.f32 %v7012, %v7047
  %v7055 = vadd.f32 %v7013, %v7048
  %v7056 = vlaneseq
  %v7057 = vshrl.u32 %v7056, 7
  %v7058 = vsub.s32 3, %v7057
  %v7059 = vrot.slane %v6929, %v7058
  %v7060 = vlaneseq
  %v7061 = vshrl.u32 %v7060, 7
  %v7062 = vsub.s32 3, %v7061
  %v7063 = vrot.slane %v6928, %v7062
  %v7064 = vlaneseq
  %v7065 = vshrl.u32 %v7064, 7
  %v7066 = vsub.s32 3, %v7065
  %v7067 = vrot.slane %v6927, %v7066
  %v7068 = vlaneseq
  %v7069 = vshrl.u32 %v7068, 7
  %v7070 = vsub.s32 3, %v7069
  %v7071 = vrot.slane %v6926, %v7070
  %v7072 = vlaneseq
  %v7073 = vshrl.u32 %v7072, 7
  %v7074 = vsub.s32 3, %v7073
  %v7075 = vrot.slane %v6925, %v7074
  %v7076 = vlaneseq
  %v7077 = vshrl.u32 %v7076, 7
  %v7078 = vsub.s32 3, %v7077
  %v7079 = vrot.slane %v6924, %v7078
  %v7080 = vlaneseq
  %v7081 = vshrl.u32 %v7080, 7
  %v7082 = vsub.s32 3, %v7081
  %v7083 = vrot.slane %v6923, %v7082
  %v7084 = vmul.f32 %v703, %v7059
  %v7085 = vmul.f32 %v703, %v7063
  %v7086 = vmul.f32 %v703, %v7067
  %v7087 = vmul.f32 %v703, %v7071
  %v7088 = vmul.f32 %v703, %v7075
  %v7089 = vmul.f32 %v703, %v7079
  %v7090 = vmul.f32 %v703, %v7083
  %v7091 = vadd.f32 %v7049, %v7084
  %v7092 = vadd.f32 %v7050, %v7085
  %v7093 = vadd.f32 %v7051, %v7086
  %v7094 = vadd.f32 %v7052, %v7087
  %v7095 = vadd.f32 %v7053, %v7088
  %v7096 = vadd.f32 %v7054, %v7089
  %v7097 = vadd.f32 %v7055, %v7090
  %7098 = vrot.lane.b32.xlu0 %v6522, 1
  %v7099 = vpop.permute.xlu0 %7098
  %7100 = vrot.lane.b32.xlu0 %v6532, 1
  %v7101 = vpop.permute.xlu0 %7100
  %7102 = vrot.lane.b32.xlu0 %v6523, 1
  %v7103 = vpop.permute.xlu0 %7102
  %7104 = vrot.lane.b32.xlu0 %v6533, 1
  %v7105 = vpop.permute.xlu0 %7104
  %7106 = vrot.lane.b32.xlu0 %v6524, 1
  %v7107 = vpop.permute.xlu0 %7106
  %7108 = vrot.lane.b32.xlu0 %v6534, 1
  %v7109 = vpop.permute.xlu0 %7108
  %7110 = vrot.lane.b32.xlu0 %v6525, 1
  %v7111 = vpop.permute.xlu0 %7110
  %v7112 = vsel %vm761, %v7109, %v7111
  %v7113 = vsel %vm761, %v7107, %v7109
  %v7114 = vsel %vm761, %v7105, %v7107
  %v7115 = vsel %vm761, %v7103, %v7105
  %v7116 = vsel %vm761, %v7101, %v7103
  %v7117 = vsel %vm761, %v7099, %v7101
  %v7118 = vsel %vm761, %v7111, %v7099
  %v7119 = vlaneseq
  %v7120 = vshrl.u32 %v7119, 7
  %v7121 = vsub.s32 0, %v7120
  %v7122 = vrot.slane %v7118, %v7121
  %v7123 = vlaneseq
  %v7124 = vshrl.u32 %v7123, 7
  %v7125 = vsub.s32 0, %v7124
  %v7126 = vrot.slane %v7117, %v7125
  %v7127 = vlaneseq
  %v7128 = vshrl.u32 %v7127, 7
  %v7129 = vsub.s32 0, %v7128
  %v7130 = vrot.slane %v7116, %v7129
  %v7131 = vlaneseq
  %v7132 = vshrl.u32 %v7131, 7
  %v7133 = vsub.s32 0, %v7132
  %v7134 = vrot.slane %v7115, %v7133
  %v7135 = vlaneseq
  %v7136 = vshrl.u32 %v7135, 7
  %v7137 = vsub.s32 0, %v7136
  %v7138 = vrot.slane %v7114, %v7137
  %v7139 = vlaneseq
  %v7140 = vshrl.u32 %v7139, 7
  %v7141 = vsub.s32 0, %v7140
  %v7142 = vrot.slane %v7113, %v7141
  %v7143 = vlaneseq
  %v7144 = vshrl.u32 %v7143, 7
  %v7145 = vsub.s32 0, %v7144
  %v7146 = vrot.slane %v7112, %v7145
  %v7147 = vmul.f32 %v772, %v7122
  %v7148 = vmul.f32 %v772, %v7126
  %v7149 = vmul.f32 %v772, %v7130
  %v7150 = vmul.f32 %v772, %v7134
  %v7151 = vmul.f32 %v772, %v7138
  %v7152 = vmul.f32 %v772, %v7142
  %v7153 = vmul.f32 %v772, %v7146
  %v7154 = vadd.f32 %v7091, %v7147
  %v7155 = vadd.f32 %v7092, %v7148
  %v7156 = vadd.f32 %v7093, %v7149
  %v7157 = vadd.f32 %v7094, %v7150
  %v7158 = vadd.f32 %v7095, %v7151
  %v7159 = vadd.f32 %v7096, %v7152
  %v7160 = vadd.f32 %v7097, %v7153
  %v7161 = vlaneseq
  %v7162 = vshrl.u32 %v7161, 7
  %v7163 = vsub.s32 1, %v7162
  %v7164 = vrot.slane %v7118, %v7163
  %v7165 = vlaneseq
  %v7166 = vshrl.u32 %v7165, 7
  %v7167 = vsub.s32 1, %v7166
  %v7168 = vrot.slane %v7117, %v7167
  %v7169 = vlaneseq
  %v7170 = vshrl.u32 %v7169, 7
  %v7171 = vsub.s32 1, %v7170
  %v7172 = vrot.slane %v7116, %v7171
  %v7173 = vlaneseq
  %v7174 = vshrl.u32 %v7173, 7
  %v7175 = vsub.s32 1, %v7174
  %v7176 = vrot.slane %v7115, %v7175
  %v7177 = vlaneseq
  %v7178 = vshrl.u32 %v7177, 7
  %v7179 = vsub.s32 1, %v7178
  %v7180 = vrot.slane %v7114, %v7179
  %v7181 = vlaneseq
  %v7182 = vshrl.u32 %v7181, 7
  %v7183 = vsub.s32 1, %v7182
  %v7184 = vrot.slane %v7113, %v7183
  %v7185 = vlaneseq
  %v7186 = vshrl.u32 %v7185, 7
  %v7187 = vsub.s32 1, %v7186
  %v7188 = vrot.slane %v7112, %v7187
  %v7189 = vmul.f32 %v819, %v7164
  %v7190 = vmul.f32 %v819, %v7168
  %v7191 = vmul.f32 %v819, %v7172
  %v7192 = vmul.f32 %v819, %v7176
  %v7193 = vmul.f32 %v819, %v7180
  %v7194 = vmul.f32 %v819, %v7184
  %v7195 = vmul.f32 %v819, %v7188
  %v7196 = vadd.f32 %v7154, %v7189
  %v7197 = vadd.f32 %v7155, %v7190
  %v7198 = vadd.f32 %v7156, %v7191
  %v7199 = vadd.f32 %v7157, %v7192
  %v7200 = vadd.f32 %v7158, %v7193
  %v7201 = vadd.f32 %v7159, %v7194
  %v7202 = vadd.f32 %v7160, %v7195
  %v7203 = vlaneseq
  %v7204 = vshrl.u32 %v7203, 7
  %v7205 = vsub.s32 2, %v7204
  %v7206 = vrot.slane %v7118, %v7205
  %v7207 = vlaneseq
  %v7208 = vshrl.u32 %v7207, 7
  %v7209 = vsub.s32 2, %v7208
  %v7210 = vrot.slane %v7117, %v7209
  %v7211 = vlaneseq
  %v7212 = vshrl.u32 %v7211, 7
  %v7213 = vsub.s32 2, %v7212
  %v7214 = vrot.slane %v7116, %v7213
  %v7215 = vlaneseq
  %v7216 = vshrl.u32 %v7215, 7
  %v7217 = vsub.s32 2, %v7216
  %v7218 = vrot.slane %v7115, %v7217
  %v7219 = vlaneseq
  %v7220 = vshrl.u32 %v7219, 7
  %v7221 = vsub.s32 2, %v7220
  %v7222 = vrot.slane %v7114, %v7221
  %v7223 = vlaneseq
  %v7224 = vshrl.u32 %v7223, 7
  %v7225 = vsub.s32 2, %v7224
  %v7226 = vrot.slane %v7113, %v7225
  %v7227 = vlaneseq
  %v7228 = vshrl.u32 %v7227, 7
  %v7229 = vsub.s32 2, %v7228
  %v7230 = vrot.slane %v7112, %v7229
  %v7231 = vmul.f32 %v866, %v7206
  %v7232 = vmul.f32 %v866, %v7210
  %v7233 = vmul.f32 %v866, %v7214
  %v7234 = vmul.f32 %v866, %v7218
  %v7235 = vmul.f32 %v866, %v7222
  %v7236 = vmul.f32 %v866, %v7226
  %v7237 = vmul.f32 %v866, %v7230
  %v7238 = vadd.f32 %v7196, %v7231
  %v7239 = vadd.f32 %v7197, %v7232
  %v7240 = vadd.f32 %v7198, %v7233
  %v7241 = vadd.f32 %v7199, %v7234
  %v7242 = vadd.f32 %v7200, %v7235
  %v7243 = vadd.f32 %v7201, %v7236
  %v7244 = vadd.f32 %v7202, %v7237
  %v7245 = vlaneseq
  %v7246 = vshrl.u32 %v7245, 7
  %v7247 = vsub.s32 3, %v7246
  %v7248 = vrot.slane %v7118, %v7247
  %v7249 = vlaneseq
  %v7250 = vshrl.u32 %v7249, 7
  %v7251 = vsub.s32 3, %v7250
  %v7252 = vrot.slane %v7117, %v7251
  %v7253 = vlaneseq
  %v7254 = vshrl.u32 %v7253, 7
  %v7255 = vsub.s32 3, %v7254
  %v7256 = vrot.slane %v7116, %v7255
  %v7257 = vlaneseq
  %v7258 = vshrl.u32 %v7257, 7
  %v7259 = vsub.s32 3, %v7258
  %v7260 = vrot.slane %v7115, %v7259
  %v7261 = vlaneseq
  %v7262 = vshrl.u32 %v7261, 7
  %v7263 = vsub.s32 3, %v7262
  %v7264 = vrot.slane %v7114, %v7263
  %v7265 = vlaneseq
  %v7266 = vshrl.u32 %v7265, 7
  %v7267 = vsub.s32 3, %v7266
  %v7268 = vrot.slane %v7113, %v7267
  %v7269 = vlaneseq
  %v7270 = vshrl.u32 %v7269, 7
  %v7271 = vsub.s32 3, %v7270
  %v7272 = vrot.slane %v7112, %v7271
  %v7273 = vmul.f32 %v913, %v7248
  %v7274 = vmul.f32 %v913, %v7252
  %v7275 = vmul.f32 %v913, %v7256
  %v7276 = vmul.f32 %v913, %v7260
  %v7277 = vmul.f32 %v913, %v7264
  %v7278 = vmul.f32 %v913, %v7268
  %v7279 = vmul.f32 %v913, %v7272
  %v7280 = vadd.f32 %v7238, %v7273
  %v7281 = vadd.f32 %v7239, %v7274
  %v7282 = vadd.f32 %v7240, %v7275
  %v7283 = vadd.f32 %v7241, %v7276
  %v7284 = vadd.f32 %v7242, %v7277
  %v7285 = vadd.f32 %v7243, %v7278
  %v7286 = vadd.f32 %v7244, %v7279
  %v7287 = vlaneseq
  %v7288 = vshrl.u32 %v7287, 7
  %v7289 = vsub.s32 0, %v7288
  %v7290 = vrot.slane %v6522, %v7289
  %v7291 = vlaneseq
  %v7292 = vshrl.u32 %v7291, 7
  %v7293 = vsub.s32 4, %v7292
  %v7294 = vrot.slane %v6522, %v7293
  %v7295 = vlaneseq
  %v7296 = vshrl.u32 %v7295, 7
  %v7297 = vsub.s32 0, %v7296
  %v7298 = vrot.slane %v6523, %v7297
  %v7299 = vlaneseq
  %v7300 = vshrl.u32 %v7299, 7
  %v7301 = vsub.s32 4, %v7300
  %v7302 = vrot.slane %v6523, %v7301
  %v7303 = vlaneseq
  %v7304 = vshrl.u32 %v7303, 7
  %v7305 = vsub.s32 0, %v7304
  %v7306 = vrot.slane %v6524, %v7305
  %v7307 = vlaneseq
  %v7308 = vshrl.u32 %v7307, 7
  %v7309 = vsub.s32 4, %v7308
  %v7310 = vrot.slane %v6524, %v7309
  %v7311 = vlaneseq
  %v7312 = vshrl.u32 %v7311, 7
  %v7313 = vsub.s32 0, %v7312
  %v7314 = vrot.slane %v6525, %v7313
  %v7322 = vlaneseq
  %v7323 = vshrl.u32 %v7322, 7
  %v7324 = vsub.s32 0, %v7323
  %v7325 = vrot.slane %v7290, %v7324
  %v7326 = vlaneseq
  %v7327 = vshrl.u32 %v7326, 7
  %v7328 = vsub.s32 0, %v7327
  %v7329 = vrot.slane %v7294, %v7328
  %v7330 = vlaneseq
  %v7331 = vshrl.u32 %v7330, 7
  %v7332 = vsub.s32 0, %v7331
  %v7333 = vrot.slane %v7298, %v7332
  %v7334 = vlaneseq
  %v7335 = vshrl.u32 %v7334, 7
  %v7336 = vsub.s32 0, %v7335
  %v7337 = vrot.slane %v7302, %v7336
  %v7338 = vlaneseq
  %v7339 = vshrl.u32 %v7338, 7
  %v7340 = vsub.s32 0, %v7339
  %v7341 = vrot.slane %v7306, %v7340
  %v7342 = vlaneseq
  %v7343 = vshrl.u32 %v7342, 7
  %v7344 = vsub.s32 0, %v7343
  %v7345 = vrot.slane %v7310, %v7344
  %v7346 = vlaneseq
  %v7347 = vshrl.u32 %v7346, 7
  %v7348 = vsub.s32 0, %v7347
  %v7349 = vrot.slane %v7314, %v7348
  %v7350 = vmul.f32 %v960, %v7325
  %v7351 = vmul.f32 %v960, %v7329
  %v7352 = vmul.f32 %v960, %v7333
  %v7353 = vmul.f32 %v960, %v7337
  %v7354 = vmul.f32 %v960, %v7341
  %v7355 = vmul.f32 %v960, %v7345
  %v7356 = vmul.f32 %v960, %v7349
  %v7357 = vadd.f32 %v7280, %v7350
  %v7358 = vadd.f32 %v7281, %v7351
  %v7359 = vadd.f32 %v7282, %v7352
  %v7360 = vadd.f32 %v7283, %v7353
  %v7361 = vadd.f32 %v7284, %v7354
  %v7362 = vadd.f32 %v7285, %v7355
  %v7363 = vadd.f32 %v7286, %v7356
  %v7364 = vlaneseq
  %v7365 = vshrl.u32 %v7364, 7
  %v7366 = vsub.s32 1, %v7365
  %v7367 = vrot.slane %v6522, %v7366
  %v7368 = vlaneseq
  %v7369 = vshrl.u32 %v7368, 7
  %v7370 = vsub.s32 5, %v7369
  %v7371 = vrot.slane %v6522, %v7370
  %v7372 = vlaneseq
  %v7373 = vshrl.u32 %v7372, 7
  %v7374 = vsub.s32 1, %v7373
  %v7375 = vrot.slane %v6523, %v7374
  %v7376 = vlaneseq
  %v7377 = vshrl.u32 %v7376, 7
  %v7378 = vsub.s32 5, %v7377
  %v7379 = vrot.slane %v6523, %v7378
  %v7380 = vlaneseq
  %v7381 = vshrl.u32 %v7380, 7
  %v7382 = vsub.s32 1, %v7381
  %v7383 = vrot.slane %v6524, %v7382
  %v7384 = vlaneseq
  %v7385 = vshrl.u32 %v7384, 7
  %v7386 = vsub.s32 5, %v7385
  %v7387 = vrot.slane %v6524, %v7386
  %v7388 = vlaneseq
  %v7389 = vshrl.u32 %v7388, 7
  %v7390 = vsub.s32 1, %v7389
  %v7391 = vrot.slane %v6525, %v7390
  %v7399 = vlaneseq
  %v7400 = vshrl.u32 %v7399, 7
  %v7401 = vsub.s32 1, %v7400
  %v7402 = vrot.slane %v7367, %v7401
  %v7403 = vlaneseq
  %v7404 = vshrl.u32 %v7403, 7
  %v7405 = vsub.s32 1, %v7404
  %v7406 = vrot.slane %v7371, %v7405
  %v7407 = vlaneseq
  %v7408 = vshrl.u32 %v7407, 7
  %v7409 = vsub.s32 1, %v7408
  %v7410 = vrot.slane %v7375, %v7409
  %v7411 = vlaneseq
  %v7412 = vshrl.u32 %v7411, 7
  %v7413 = vsub.s32 1, %v7412
  %v7414 = vrot.slane %v7379, %v7413
  %v7415 = vlaneseq
  %v7416 = vshrl.u32 %v7415, 7
  %v7417 = vsub.s32 1, %v7416
  %v7418 = vrot.slane %v7383, %v7417
  %v7419 = vlaneseq
  %v7420 = vshrl.u32 %v7419, 7
  %v7421 = vsub.s32 1, %v7420
  %v7422 = vrot.slane %v7387, %v7421
  %v7423 = vlaneseq
  %v7424 = vshrl.u32 %v7423, 7
  %v7425 = vsub.s32 1, %v7424
  %v7426 = vrot.slane %v7391, %v7425
  %v7427 = vmul.f32 %v1042, %v7402
  %v7428 = vmul.f32 %v1042, %v7406
  %v7429 = vmul.f32 %v1042, %v7410
  %v7430 = vmul.f32 %v1042, %v7414
  %v7431 = vmul.f32 %v1042, %v7418
  %v7432 = vmul.f32 %v1042, %v7422
  %v7433 = vmul.f32 %v1042, %v7426
  %v7434 = vadd.f32 %v7357, %v7427
  %v7435 = vadd.f32 %v7358, %v7428
  %v7436 = vadd.f32 %v7359, %v7429
  %v7437 = vadd.f32 %v7360, %v7430
  %v7438 = vadd.f32 %v7361, %v7431
  %v7439 = vadd.f32 %v7362, %v7432
  %v7440 = vadd.f32 %v7363, %v7433
  %v7441 = vlaneseq
  %v7442 = vshrl.u32 %v7441, 7
  %v7443 = vsub.s32 2, %v7442
  %v7444 = vrot.slane %v6522, %v7443
  %v7445 = vlaneseq
  %v7446 = vshrl.u32 %v7445, 7
  %v7447 = vsub.s32 6, %v7446
  %v7448 = vrot.slane %v6522, %v7447
  %v7449 = vlaneseq
  %v7450 = vshrl.u32 %v7449, 7
  %v7451 = vsub.s32 2, %v7450
  %v7452 = vrot.slane %v6523, %v7451
  %v7453 = vlaneseq
  %v7454 = vshrl.u32 %v7453, 7
  %v7455 = vsub.s32 6, %v7454
  %v7456 = vrot.slane %v6523, %v7455
  %v7457 = vlaneseq
  %v7458 = vshrl.u32 %v7457, 7
  %v7459 = vsub.s32 2, %v7458
  %v7460 = vrot.slane %v6524, %v7459
  %v7461 = vlaneseq
  %v7462 = vshrl.u32 %v7461, 7
  %v7463 = vsub.s32 6, %v7462
  %v7464 = vrot.slane %v6524, %v7463
  %v7465 = vlaneseq
  %v7466 = vshrl.u32 %v7465, 7
  %v7467 = vsub.s32 2, %v7466
  %v7468 = vrot.slane %v6525, %v7467
  %v7476 = vlaneseq
  %v7477 = vshrl.u32 %v7476, 7
  %v7478 = vsub.s32 2, %v7477
  %v7479 = vrot.slane %v7444, %v7478
  %v7480 = vlaneseq
  %v7481 = vshrl.u32 %v7480, 7
  %v7482 = vsub.s32 2, %v7481
  %v7483 = vrot.slane %v7448, %v7482
  %v7484 = vlaneseq
  %v7485 = vshrl.u32 %v7484, 7
  %v7486 = vsub.s32 2, %v7485
  %v7487 = vrot.slane %v7452, %v7486
  %v7488 = vlaneseq
  %v7489 = vshrl.u32 %v7488, 7
  %v7490 = vsub.s32 2, %v7489
  %v7491 = vrot.slane %v7456, %v7490
  %v7492 = vlaneseq
  %v7493 = vshrl.u32 %v7492, 7
  %v7494 = vsub.s32 2, %v7493
  %v7495 = vrot.slane %v7460, %v7494
  %v7496 = vlaneseq
  %v7497 = vshrl.u32 %v7496, 7
  %v7498 = vsub.s32 2, %v7497
  %v7499 = vrot.slane %v7464, %v7498
  %v7500 = vlaneseq
  %v7501 = vshrl.u32 %v7500, 7
  %v7502 = vsub.s32 2, %v7501
  %v7503 = vrot.slane %v7468, %v7502
  %v7504 = vmul.f32 %v1124, %v7479
  %v7505 = vmul.f32 %v1124, %v7483
  %v7506 = vmul.f32 %v1124, %v7487
  %v7507 = vmul.f32 %v1124, %v7491
  %v7508 = vmul.f32 %v1124, %v7495
  %v7509 = vmul.f32 %v1124, %v7499
  %v7510 = vmul.f32 %v1124, %v7503
  %v7511 = vadd.f32 %v7434, %v7504
  %v7512 = vadd.f32 %v7435, %v7505
  %v7513 = vadd.f32 %v7436, %v7506
  %v7514 = vadd.f32 %v7437, %v7507
  %v7515 = vadd.f32 %v7438, %v7508
  %v7516 = vadd.f32 %v7439, %v7509
  %v7517 = vadd.f32 %v7440, %v7510
  %v7518 = vlaneseq
  %v7519 = vshrl.u32 %v7518, 7
  %v7520 = vsub.s32 3, %v7519
  %v7521 = vrot.slane %v6522, %v7520
  %v7522 = vlaneseq
  %v7523 = vshrl.u32 %v7522, 7
  %v7524 = vsub.s32 7, %v7523
  %v7525 = vrot.slane %v6522, %v7524
  %v7526 = vlaneseq
  %v7527 = vshrl.u32 %v7526, 7
  %v7528 = vsub.s32 3, %v7527
  %v7529 = vrot.slane %v6523, %v7528
  %v7530 = vlaneseq
  %v7531 = vshrl.u32 %v7530, 7
  %v7532 = vsub.s32 7, %v7531
  %v7533 = vrot.slane %v6523, %v7532
  %v7534 = vlaneseq
  %v7535 = vshrl.u32 %v7534, 7
  %v7536 = vsub.s32 3, %v7535
  %v7537 = vrot.slane %v6524, %v7536
  %v7538 = vlaneseq
  %v7539 = vshrl.u32 %v7538, 7
  %v7540 = vsub.s32 7, %v7539
  %v7541 = vrot.slane %v6524, %v7540
  %v7542 = vlaneseq
  %v7543 = vshrl.u32 %v7542, 7
  %v7544 = vsub.s32 3, %v7543
  %v7545 = vrot.slane %v6525, %v7544
  %v7553 = vlaneseq
  %v7554 = vshrl.u32 %v7553, 7
  %v7555 = vsub.s32 3, %v7554
  %v7556 = vrot.slane %v7521, %v7555
  %v7557 = vlaneseq
  %v7558 = vshrl.u32 %v7557, 7
  %v7559 = vsub.s32 3, %v7558
  %v7560 = vrot.slane %v7525, %v7559
  %v7561 = vlaneseq
  %v7562 = vshrl.u32 %v7561, 7
  %v7563 = vsub.s32 3, %v7562
  %v7564 = vrot.slane %v7529, %v7563
  %v7565 = vlaneseq
  %v7566 = vshrl.u32 %v7565, 7
  %v7567 = vsub.s32 3, %v7566
  %v7568 = vrot.slane %v7533, %v7567
  %v7569 = vlaneseq
  %v7570 = vshrl.u32 %v7569, 7
  %v7571 = vsub.s32 3, %v7570
  %v7572 = vrot.slane %v7537, %v7571
  %v7573 = vlaneseq
  %v7574 = vshrl.u32 %v7573, 7
  %v7575 = vsub.s32 3, %v7574
  %v7576 = vrot.slane %v7541, %v7575
  %v7577 = vlaneseq
  %v7578 = vshrl.u32 %v7577, 7
  %v7579 = vsub.s32 3, %v7578
  %v7580 = vrot.slane %v7545, %v7579
  %v7581 = vmul.f32 %v1206, %v7556
  %v7582 = vmul.f32 %v1206, %v7560
  %v7583 = vmul.f32 %v1206, %v7564
  %v7584 = vmul.f32 %v1206, %v7568
  %v7585 = vmul.f32 %v1206, %v7572
  %v7586 = vmul.f32 %v1206, %v7576
  %v7587 = vmul.f32 %v1206, %v7580
  %v7588 = vadd.f32 %v7511, %v7581
  %v7589 = vadd.f32 %v7512, %v7582
  %v7590 = vadd.f32 %v7513, %v7583
  %v7591 = vadd.f32 %v7514, %v7584
  %v7592 = vadd.f32 %v7515, %v7585
  %v7593 = vadd.f32 %v7516, %v7586
  %v7594 = vadd.f32 %v7517, %v7587
  %7595 = vrot.lane.b32.xlu0 %v6522, 127
  %v7596 = vpop.permute.xlu0 %7595
  %7597 = vrot.lane.b32.xlu0 %v6532, 127
  %v7598 = vpop.permute.xlu0 %7597
  %7599 = vrot.lane.b32.xlu0 %v6523, 127
  %v7600 = vpop.permute.xlu0 %7599
  %7601 = vrot.lane.b32.xlu0 %v6533, 127
  %v7602 = vpop.permute.xlu0 %7601
  %7603 = vrot.lane.b32.xlu0 %v6524, 127
  %v7604 = vpop.permute.xlu0 %7603
  %7605 = vrot.lane.b32.xlu0 %v6534, 127
  %v7606 = vpop.permute.xlu0 %7605
  %7607 = vrot.lane.b32.xlu0 %v6525, 127
  %v7608 = vpop.permute.xlu0 %7607
  %v7609 = vsel %vm1299, %v7606, %v7608
  %v7610 = vsel %vm1299, %v7604, %v7606
  %v7611 = vsel %vm1299, %v7602, %v7604
  %v7612 = vsel %vm1299, %v7600, %v7602
  %v7613 = vsel %vm1299, %v7598, %v7600
  %v7614 = vsel %vm1299, %v7596, %v7598
  %v7615 = vsel %vm1299, %v7608, %v7596
  %v7616 = vlaneseq
  %v7617 = vshrl.u32 %v7616, 7
  %v7618 = vsub.s32 0, %v7617
  %v7619 = vrot.slane %v7614, %v7618
  %v7620 = vlaneseq
  %v7621 = vshrl.u32 %v7620, 7
  %v7622 = vsub.s32 0, %v7621
  %v7623 = vrot.slane %v7613, %v7622
  %v7624 = vlaneseq
  %v7625 = vshrl.u32 %v7624, 7
  %v7626 = vsub.s32 0, %v7625
  %v7627 = vrot.slane %v7612, %v7626
  %v7628 = vlaneseq
  %v7629 = vshrl.u32 %v7628, 7
  %v7630 = vsub.s32 0, %v7629
  %v7631 = vrot.slane %v7611, %v7630
  %v7632 = vlaneseq
  %v7633 = vshrl.u32 %v7632, 7
  %v7634 = vsub.s32 0, %v7633
  %v7635 = vrot.slane %v7610, %v7634
  %v7636 = vlaneseq
  %v7637 = vshrl.u32 %v7636, 7
  %v7638 = vsub.s32 0, %v7637
  %v7639 = vrot.slane %v7609, %v7638
  %v7640 = vlaneseq
  %v7641 = vshrl.u32 %v7640, 7
  %v7642 = vsub.s32 0, %v7641
  %v7643 = vrot.slane %v7615, %v7642
  %v7644 = vmul.f32 %v1310, %v7619
  %v7645 = vmul.f32 %v1310, %v7623
  %v7646 = vmul.f32 %v1310, %v7627
  %v7647 = vmul.f32 %v1310, %v7631
  %v7648 = vmul.f32 %v1310, %v7635
  %v7649 = vmul.f32 %v1310, %v7639
  %v7650 = vmul.f32 %v1310, %v7643
  %v7651 = vadd.f32 %v7588, %v7644
  %v7652 = vadd.f32 %v7589, %v7645
  %v7653 = vadd.f32 %v7590, %v7646
  %v7654 = vadd.f32 %v7591, %v7647
  %v7655 = vadd.f32 %v7592, %v7648
  %v7656 = vadd.f32 %v7593, %v7649
  %v7657 = vadd.f32 %v7594, %v7650
  %v7658 = vlaneseq
  %v7659 = vshrl.u32 %v7658, 7
  %v7660 = vsub.s32 1, %v7659
  %v7661 = vrot.slane %v7614, %v7660
  %v7662 = vlaneseq
  %v7663 = vshrl.u32 %v7662, 7
  %v7664 = vsub.s32 1, %v7663
  %v7665 = vrot.slane %v7613, %v7664
  %v7666 = vlaneseq
  %v7667 = vshrl.u32 %v7666, 7
  %v7668 = vsub.s32 1, %v7667
  %v7669 = vrot.slane %v7612, %v7668
  %v7670 = vlaneseq
  %v7671 = vshrl.u32 %v7670, 7
  %v7672 = vsub.s32 1, %v7671
  %v7673 = vrot.slane %v7611, %v7672
  %v7674 = vlaneseq
  %v7675 = vshrl.u32 %v7674, 7
  %v7676 = vsub.s32 1, %v7675
  %v7677 = vrot.slane %v7610, %v7676
  %v7678 = vlaneseq
  %v7679 = vshrl.u32 %v7678, 7
  %v7680 = vsub.s32 1, %v7679
  %v7681 = vrot.slane %v7609, %v7680
  %v7682 = vlaneseq
  %v7683 = vshrl.u32 %v7682, 7
  %v7684 = vsub.s32 1, %v7683
  %v7685 = vrot.slane %v7615, %v7684
  %v7686 = vmul.f32 %v1357, %v7661
  %v7687 = vmul.f32 %v1357, %v7665
  %v7688 = vmul.f32 %v1357, %v7669
  %v7689 = vmul.f32 %v1357, %v7673
  %v7690 = vmul.f32 %v1357, %v7677
  %v7691 = vmul.f32 %v1357, %v7681
  %v7692 = vmul.f32 %v1357, %v7685
  %v7693 = vadd.f32 %v7651, %v7686
  %v7694 = vadd.f32 %v7652, %v7687
  %v7695 = vadd.f32 %v7653, %v7688
  %v7696 = vadd.f32 %v7654, %v7689
  %v7697 = vadd.f32 %v7655, %v7690
  %v7698 = vadd.f32 %v7656, %v7691
  %v7699 = vadd.f32 %v7657, %v7692
  %v7700 = vlaneseq
  %v7701 = vshrl.u32 %v7700, 7
  %v7702 = vsub.s32 2, %v7701
  %v7703 = vrot.slane %v7614, %v7702
  %v7704 = vlaneseq
  %v7705 = vshrl.u32 %v7704, 7
  %v7706 = vsub.s32 2, %v7705
  %v7707 = vrot.slane %v7613, %v7706
  %v7708 = vlaneseq
  %v7709 = vshrl.u32 %v7708, 7
  %v7710 = vsub.s32 2, %v7709
  %v7711 = vrot.slane %v7612, %v7710
  %v7712 = vlaneseq
  %v7713 = vshrl.u32 %v7712, 7
  %v7714 = vsub.s32 2, %v7713
  %v7715 = vrot.slane %v7611, %v7714
  %v7716 = vlaneseq
  %v7717 = vshrl.u32 %v7716, 7
  %v7718 = vsub.s32 2, %v7717
  %v7719 = vrot.slane %v7610, %v7718
  %v7720 = vlaneseq
  %v7721 = vshrl.u32 %v7720, 7
  %v7722 = vsub.s32 2, %v7721
  %v7723 = vrot.slane %v7609, %v7722
  %v7724 = vlaneseq
  %v7725 = vshrl.u32 %v7724, 7
  %v7726 = vsub.s32 2, %v7725
  %v7727 = vrot.slane %v7615, %v7726
  %v7728 = vmul.f32 %v1404, %v7703
  %v7729 = vmul.f32 %v1404, %v7707
  %v7730 = vmul.f32 %v1404, %v7711
  %v7731 = vmul.f32 %v1404, %v7715
  %v7732 = vmul.f32 %v1404, %v7719
  %v7733 = vmul.f32 %v1404, %v7723
  %v7734 = vmul.f32 %v1404, %v7727
  %v7735 = vadd.f32 %v7693, %v7728
  %v7736 = vadd.f32 %v7694, %v7729
  %v7737 = vadd.f32 %v7695, %v7730
  %v7738 = vadd.f32 %v7696, %v7731
  %v7739 = vadd.f32 %v7697, %v7732
  %v7740 = vadd.f32 %v7698, %v7733
  %v7741 = vadd.f32 %v7699, %v7734
  %v7742 = vlaneseq
  %v7743 = vshrl.u32 %v7742, 7
  %v7744 = vsub.s32 3, %v7743
  %v7745 = vrot.slane %v7614, %v7744
  %v7746 = vlaneseq
  %v7747 = vshrl.u32 %v7746, 7
  %v7748 = vsub.s32 3, %v7747
  %v7749 = vrot.slane %v7613, %v7748
  %v7750 = vlaneseq
  %v7751 = vshrl.u32 %v7750, 7
  %v7752 = vsub.s32 3, %v7751
  %v7753 = vrot.slane %v7612, %v7752
  %v7754 = vlaneseq
  %v7755 = vshrl.u32 %v7754, 7
  %v7756 = vsub.s32 3, %v7755
  %v7757 = vrot.slane %v7611, %v7756
  %v7758 = vlaneseq
  %v7759 = vshrl.u32 %v7758, 7
  %v7760 = vsub.s32 3, %v7759
  %v7761 = vrot.slane %v7610, %v7760
  %v7762 = vlaneseq
  %v7763 = vshrl.u32 %v7762, 7
  %v7764 = vsub.s32 3, %v7763
  %v7765 = vrot.slane %v7609, %v7764
  %v7766 = vlaneseq
  %v7767 = vshrl.u32 %v7766, 7
  %v7768 = vsub.s32 3, %v7767
  %v7769 = vrot.slane %v7615, %v7768
  %v7770 = vmul.f32 %v1451, %v7745
  %v7771 = vmul.f32 %v1451, %v7749
  %v7772 = vmul.f32 %v1451, %v7753
  %v7773 = vmul.f32 %v1451, %v7757
  %v7774 = vmul.f32 %v1451, %v7761
  %v7775 = vmul.f32 %v1451, %v7765
  %v7776 = vmul.f32 %v1451, %v7769
  %v7777 = vadd.f32 %v7735, %v7770
  %v7778 = vadd.f32 %v7736, %v7771
  %v7779 = vadd.f32 %v7737, %v7772
  %v7780 = vadd.f32 %v7738, %v7773
  %v7781 = vadd.f32 %v7739, %v7774
  %v7782 = vadd.f32 %v7740, %v7775
  %v7783 = vadd.f32 %v7741, %v7776
  %7784 = vrot.lane.b32.xlu0 %v6522, 111
  %v7785 = vpop.permute.xlu0 %7784
  %7786 = vrot.lane.b32.xlu0 %v6532, 111
  %v7787 = vpop.permute.xlu0 %7786
  %7788 = vrot.lane.b32.xlu0 %v6523, 111
  %v7789 = vpop.permute.xlu0 %7788
  %7790 = vrot.lane.b32.xlu0 %v6533, 111
  %v7791 = vpop.permute.xlu0 %7790
  %7792 = vrot.lane.b32.xlu0 %v6524, 111
  %v7793 = vpop.permute.xlu0 %7792
  %7794 = vrot.lane.b32.xlu0 %v6534, 111
  %v7795 = vpop.permute.xlu0 %7794
  %7796 = vrot.lane.b32.xlu0 %v6525, 111
  %v7797 = vpop.permute.xlu0 %7796
  %v7798 = vsel %vm1509, %v7795, %v7797
  %v7799 = vsel %vm1509, %v7793, %v7795
  %v7800 = vsel %vm1509, %v7791, %v7793
  %v7801 = vsel %vm1509, %v7789, %v7791
  %v7802 = vsel %vm1509, %v7787, %v7789
  %v7803 = vsel %vm1509, %v7785, %v7787
  %v7804 = vsel %vm1509, %v7797, %v7785
  %v7805 = vlaneseq
  %v7806 = vshrl.u32 %v7805, 7
  %v7807 = vsub.s32 0, %v7806
  %v7808 = vrot.slane %v7803, %v7807
  %v7809 = vlaneseq
  %v7810 = vshrl.u32 %v7809, 7
  %v7811 = vsub.s32 0, %v7810
  %v7812 = vrot.slane %v7802, %v7811
  %v7813 = vlaneseq
  %v7814 = vshrl.u32 %v7813, 7
  %v7815 = vsub.s32 0, %v7814
  %v7816 = vrot.slane %v7801, %v7815
  %v7817 = vlaneseq
  %v7818 = vshrl.u32 %v7817, 7
  %v7819 = vsub.s32 0, %v7818
  %v7820 = vrot.slane %v7800, %v7819
  %v7821 = vlaneseq
  %v7822 = vshrl.u32 %v7821, 7
  %v7823 = vsub.s32 0, %v7822
  %v7824 = vrot.slane %v7799, %v7823
  %v7825 = vlaneseq
  %v7826 = vshrl.u32 %v7825, 7
  %v7827 = vsub.s32 0, %v7826
  %v7828 = vrot.slane %v7798, %v7827
  %v7829 = vlaneseq
  %v7830 = vshrl.u32 %v7829, 7
  %v7831 = vsub.s32 0, %v7830
  %v7832 = vrot.slane %v7804, %v7831
  %v7833 = vmul.f32 %v1520, %v7808
  %v7834 = vmul.f32 %v1520, %v7812
  %v7835 = vmul.f32 %v1520, %v7816
  %v7836 = vmul.f32 %v1520, %v7820
  %v7837 = vmul.f32 %v1520, %v7824
  %v7838 = vmul.f32 %v1520, %v7828
  %v7839 = vmul.f32 %v1520, %v7832
  %v7840 = vadd.f32 %v7777, %v7833
  %v7841 = vadd.f32 %v7778, %v7834
  %v7842 = vadd.f32 %v7779, %v7835
  %v7843 = vadd.f32 %v7780, %v7836
  %v7844 = vadd.f32 %v7781, %v7837
  %v7845 = vadd.f32 %v7782, %v7838
  %v7846 = vadd.f32 %v7783, %v7839
  %v7847 = vlaneseq
  %v7848 = vshrl.u32 %v7847, 7
  %v7849 = vsub.s32 1, %v7848
  %v7850 = vrot.slane %v7803, %v7849
  %v7851 = vlaneseq
  %v7852 = vshrl.u32 %v7851, 7
  %v7853 = vsub.s32 1, %v7852
  %v7854 = vrot.slane %v7802, %v7853
  %v7855 = vlaneseq
  %v7856 = vshrl.u32 %v7855, 7
  %v7857 = vsub.s32 1, %v7856
  %v7858 = vrot.slane %v7801, %v7857
  %v7859 = vlaneseq
  %v7860 = vshrl.u32 %v7859, 7
  %v7861 = vsub.s32 1, %v7860
  %v7862 = vrot.slane %v7800, %v7861
  %v7863 = vlaneseq
  %v7864 = vshrl.u32 %v7863, 7
  %v7865 = vsub.s32 1, %v7864
  %v7866 = vrot.slane %v7799, %v7865
  %v7867 = vlaneseq
  %v7868 = vshrl.u32 %v7867, 7
  %v7869 = vsub.s32 1, %v7868
  %v7870 = vrot.slane %v7798, %v7869
  %v7871 = vlaneseq
  %v7872 = vshrl.u32 %v7871, 7
  %v7873 = vsub.s32 1, %v7872
  %v7874 = vrot.slane %v7804, %v7873
  %v7875 = vmul.f32 %v1567, %v7850
  %v7876 = vmul.f32 %v1567, %v7854
  %v7877 = vmul.f32 %v1567, %v7858
  %v7878 = vmul.f32 %v1567, %v7862
  %v7879 = vmul.f32 %v1567, %v7866
  %v7880 = vmul.f32 %v1567, %v7870
  %v7881 = vmul.f32 %v1567, %v7874
  %v7882 = vadd.f32 %v7840, %v7875
  %v7883 = vadd.f32 %v7841, %v7876
  %v7884 = vadd.f32 %v7842, %v7877
  %v7885 = vadd.f32 %v7843, %v7878
  %v7886 = vadd.f32 %v7844, %v7879
  %v7887 = vadd.f32 %v7845, %v7880
  %v7888 = vadd.f32 %v7846, %v7881
  %v7889 = vlaneseq
  %v7890 = vshrl.u32 %v7889, 7
  %v7891 = vsub.s32 2, %v7890
  %v7892 = vrot.slane %v7803, %v7891
  %v7893 = vlaneseq
  %v7894 = vshrl.u32 %v7893, 7
  %v7895 = vsub.s32 2, %v7894
  %v7896 = vrot.slane %v7802, %v7895
  %v7897 = vlaneseq
  %v7898 = vshrl.u32 %v7897, 7
  %v7899 = vsub.s32 2, %v7898
  %v7900 = vrot.slane %v7801, %v7899
  %v7901 = vlaneseq
  %v7902 = vshrl.u32 %v7901, 7
  %v7903 = vsub.s32 2, %v7902
  %v7904 = vrot.slane %v7800, %v7903
  %v7905 = vlaneseq
  %v7906 = vshrl.u32 %v7905, 7
  %v7907 = vsub.s32 2, %v7906
  %v7908 = vrot.slane %v7799, %v7907
  %v7909 = vlaneseq
  %v7910 = vshrl.u32 %v7909, 7
  %v7911 = vsub.s32 2, %v7910
  %v7912 = vrot.slane %v7798, %v7911
  %v7913 = vlaneseq
  %v7914 = vshrl.u32 %v7913, 7
  %v7915 = vsub.s32 2, %v7914
  %v7916 = vrot.slane %v7804, %v7915
  %v7917 = vmul.f32 %v1614, %v7892
  %v7918 = vmul.f32 %v1614, %v7896
  %v7919 = vmul.f32 %v1614, %v7900
  %v7920 = vmul.f32 %v1614, %v7904
  %v7921 = vmul.f32 %v1614, %v7908
  %v7922 = vmul.f32 %v1614, %v7912
  %v7923 = vmul.f32 %v1614, %v7916
  %v7924 = vadd.f32 %v7882, %v7917
  %v7925 = vadd.f32 %v7883, %v7918
  %v7926 = vadd.f32 %v7884, %v7919
  %v7927 = vadd.f32 %v7885, %v7920
  %v7928 = vadd.f32 %v7886, %v7921
  %v7929 = vadd.f32 %v7887, %v7922
  %v7930 = vadd.f32 %v7888, %v7923
  %v7931 = vlaneseq
  %v7932 = vshrl.u32 %v7931, 7
  %v7933 = vsub.s32 3, %v7932
  %v7934 = vrot.slane %v7803, %v7933
  %v7935 = vlaneseq
  %v7936 = vshrl.u32 %v7935, 7
  %v7937 = vsub.s32 3, %v7936
  %v7938 = vrot.slane %v7802, %v7937
  %v7939 = vlaneseq
  %v7940 = vshrl.u32 %v7939, 7
  %v7941 = vsub.s32 3, %v7940
  %v7942 = vrot.slane %v7801, %v7941
  %v7943 = vlaneseq
  %v7944 = vshrl.u32 %v7943, 7
  %v7945 = vsub.s32 3, %v7944
  %v7946 = vrot.slane %v7800, %v7945
  %v7947 = vlaneseq
  %v7948 = vshrl.u32 %v7947, 7
  %v7949 = vsub.s32 3, %v7948
  %v7950 = vrot.slane %v7799, %v7949
  %v7951 = vlaneseq
  %v7952 = vshrl.u32 %v7951, 7
  %v7953 = vsub.s32 3, %v7952
  %v7954 = vrot.slane %v7798, %v7953
  %v7955 = vlaneseq
  %v7956 = vshrl.u32 %v7955, 7
  %v7957 = vsub.s32 3, %v7956
  %v7958 = vrot.slane %v7804, %v7957
  %v7959 = vmul.f32 %v1661, %v7934
  %v7960 = vmul.f32 %v1661, %v7938
  %v7961 = vmul.f32 %v1661, %v7942
  %v7962 = vmul.f32 %v1661, %v7946
  %v7963 = vmul.f32 %v1661, %v7950
  %v7964 = vmul.f32 %v1661, %v7954
  %v7965 = vmul.f32 %v1661, %v7958
  %v7966 = vadd.f32 %v7924, %v7959
  %v7967 = vadd.f32 %v7925, %v7960
  %v7968 = vadd.f32 %v7926, %v7961
  %v7969 = vadd.f32 %v7927, %v7962
  %v7970 = vadd.f32 %v7928, %v7963
  %v7971 = vadd.f32 %v7929, %v7964
  %v7972 = vadd.f32 %v7930, %v7965
  %7973 = vrot.lane.b32.xlu0 %v6522, 110
  %v7974 = vpop.permute.xlu0 %7973
  %7975 = vrot.lane.b32.xlu0 %v6532, 110
  %v7976 = vpop.permute.xlu0 %7975
  %7977 = vrot.lane.b32.xlu0 %v6523, 110
  %v7978 = vpop.permute.xlu0 %7977
  %7979 = vrot.lane.b32.xlu0 %v6533, 110
  %v7980 = vpop.permute.xlu0 %7979
  %7981 = vrot.lane.b32.xlu0 %v6524, 110
  %v7982 = vpop.permute.xlu0 %7981
  %7983 = vrot.lane.b32.xlu0 %v6534, 110
  %v7984 = vpop.permute.xlu0 %7983
  %7985 = vrot.lane.b32.xlu0 %v6525, 110
  %v7986 = vpop.permute.xlu0 %7985
  %v7987 = vsel %vm1719, %v7984, %v7986
  %v7988 = vsel %vm1719, %v7982, %v7984
  %v7989 = vsel %vm1719, %v7980, %v7982
  %v7990 = vsel %vm1719, %v7978, %v7980
  %v7991 = vsel %vm1719, %v7976, %v7978
  %v7992 = vsel %vm1719, %v7974, %v7976
  %v7993 = vsel %vm1719, %v7986, %v7974
  %v7994 = vlaneseq
  %v7995 = vshrl.u32 %v7994, 7
  %v7996 = vsub.s32 0, %v7995
  %v7997 = vrot.slane %v7992, %v7996
  %v7998 = vlaneseq
  %v7999 = vshrl.u32 %v7998, 7
  %v8000 = vsub.s32 0, %v7999
  %v8001 = vrot.slane %v7991, %v8000
  %v8002 = vlaneseq
  %v8003 = vshrl.u32 %v8002, 7
  %v8004 = vsub.s32 0, %v8003
  %v8005 = vrot.slane %v7990, %v8004
  %v8006 = vlaneseq
  %v8007 = vshrl.u32 %v8006, 7
  %v8008 = vsub.s32 0, %v8007
  %v8009 = vrot.slane %v7989, %v8008
  %v8010 = vlaneseq
  %v8011 = vshrl.u32 %v8010, 7
  %v8012 = vsub.s32 0, %v8011
  %v8013 = vrot.slane %v7988, %v8012
  %v8014 = vlaneseq
  %v8015 = vshrl.u32 %v8014, 7
  %v8016 = vsub.s32 0, %v8015
  %v8017 = vrot.slane %v7987, %v8016
  %v8018 = vlaneseq
  %v8019 = vshrl.u32 %v8018, 7
  %v8020 = vsub.s32 0, %v8019
  %v8021 = vrot.slane %v7993, %v8020
  %v8022 = vmul.f32 %v1730, %v7997
  %v8023 = vmul.f32 %v1730, %v8001
  %v8024 = vmul.f32 %v1730, %v8005
  %v8025 = vmul.f32 %v1730, %v8009
  %v8026 = vmul.f32 %v1730, %v8013
  %v8027 = vmul.f32 %v1730, %v8017
  %v8028 = vmul.f32 %v1730, %v8021
  %v8029 = vadd.f32 %v7966, %v8022
  %v8030 = vadd.f32 %v7967, %v8023
  %v8031 = vadd.f32 %v7968, %v8024
  %v8032 = vadd.f32 %v7969, %v8025
  %v8033 = vadd.f32 %v7970, %v8026
  %v8034 = vadd.f32 %v7971, %v8027
  %v8035 = vadd.f32 %v7972, %v8028
  %v8036 = vlaneseq
  %v8037 = vshrl.u32 %v8036, 7
  %v8038 = vsub.s32 1, %v8037
  %v8039 = vrot.slane %v7992, %v8038
  %v8040 = vlaneseq
  %v8041 = vshrl.u32 %v8040, 7
  %v8042 = vsub.s32 1, %v8041
  %v8043 = vrot.slane %v7991, %v8042
  %v8044 = vlaneseq
  %v8045 = vshrl.u32 %v8044, 7
  %v8046 = vsub.s32 1, %v8045
  %v8047 = vrot.slane %v7990, %v8046
  %v8048 = vlaneseq
  %v8049 = vshrl.u32 %v8048, 7
  %v8050 = vsub.s32 1, %v8049
  %v8051 = vrot.slane %v7989, %v8050
  %v8052 = vlaneseq
  %v8053 = vshrl.u32 %v8052, 7
  %v8054 = vsub.s32 1, %v8053
  %v8055 = vrot.slane %v7988, %v8054
  %v8056 = vlaneseq
  %v8057 = vshrl.u32 %v8056, 7
  %v8058 = vsub.s32 1, %v8057
  %v8059 = vrot.slane %v7987, %v8058
  %v8060 = vlaneseq
  %v8061 = vshrl.u32 %v8060, 7
  %v8062 = vsub.s32 1, %v8061
  %v8063 = vrot.slane %v7993, %v8062
  %v8064 = vmul.f32 %v1777, %v8039
  %v8065 = vmul.f32 %v1777, %v8043
  %v8066 = vmul.f32 %v1777, %v8047
  %v8067 = vmul.f32 %v1777, %v8051
  %v8068 = vmul.f32 %v1777, %v8055
  %v8069 = vmul.f32 %v1777, %v8059
  %v8070 = vmul.f32 %v1777, %v8063
  %v8071 = vadd.f32 %v8029, %v8064
  %v8072 = vadd.f32 %v8030, %v8065
  %v8073 = vadd.f32 %v8031, %v8066
  %v8074 = vadd.f32 %v8032, %v8067
  %v8075 = vadd.f32 %v8033, %v8068
  %v8076 = vadd.f32 %v8034, %v8069
  %v8077 = vadd.f32 %v8035, %v8070
  %v8078 = vlaneseq
  %v8079 = vshrl.u32 %v8078, 7
  %v8080 = vsub.s32 2, %v8079
  %v8081 = vrot.slane %v7992, %v8080
  %v8082 = vlaneseq
  %v8083 = vshrl.u32 %v8082, 7
  %v8084 = vsub.s32 2, %v8083
  %v8085 = vrot.slane %v7991, %v8084
  %v8086 = vlaneseq
  %v8087 = vshrl.u32 %v8086, 7
  %v8088 = vsub.s32 2, %v8087
  %v8089 = vrot.slane %v7990, %v8088
  %v8090 = vlaneseq
  %v8091 = vshrl.u32 %v8090, 7
  %v8092 = vsub.s32 2, %v8091
  %v8093 = vrot.slane %v7989, %v8092
  %v8094 = vlaneseq
  %v8095 = vshrl.u32 %v8094, 7
  %v8096 = vsub.s32 2, %v8095
  %v8097 = vrot.slane %v7988, %v8096
  %v8098 = vlaneseq
  %v8099 = vshrl.u32 %v8098, 7
  %v8100 = vsub.s32 2, %v8099
  %v8101 = vrot.slane %v7987, %v8100
  %v8102 = vlaneseq
  %v8103 = vshrl.u32 %v8102, 7
  %v8104 = vsub.s32 2, %v8103
  %v8105 = vrot.slane %v7993, %v8104
  %v8106 = vmul.f32 %v1824, %v8081
  %v8107 = vmul.f32 %v1824, %v8085
  %v8108 = vmul.f32 %v1824, %v8089
  %v8109 = vmul.f32 %v1824, %v8093
  %v8110 = vmul.f32 %v1824, %v8097
  %v8111 = vmul.f32 %v1824, %v8101
  %v8112 = vmul.f32 %v1824, %v8105
  %v8113 = vadd.f32 %v8071, %v8106
  %v8114 = vadd.f32 %v8072, %v8107
  %v8115 = vadd.f32 %v8073, %v8108
  %v8116 = vadd.f32 %v8074, %v8109
  %v8117 = vadd.f32 %v8075, %v8110
  %v8118 = vadd.f32 %v8076, %v8111
  %v8119 = vadd.f32 %v8077, %v8112
  %v8120 = vlaneseq
  %v8121 = vshrl.u32 %v8120, 7
  %v8122 = vsub.s32 3, %v8121
  %v8123 = vrot.slane %v7992, %v8122
  %v8124 = vlaneseq
  %v8125 = vshrl.u32 %v8124, 7
  %v8126 = vsub.s32 3, %v8125
  %v8127 = vrot.slane %v7991, %v8126
  %v8128 = vlaneseq
  %v8129 = vshrl.u32 %v8128, 7
  %v8130 = vsub.s32 3, %v8129
  %v8131 = vrot.slane %v7990, %v8130
  %v8132 = vlaneseq
  %v8133 = vshrl.u32 %v8132, 7
  %v8134 = vsub.s32 3, %v8133
  %v8135 = vrot.slane %v7989, %v8134
  %v8136 = vlaneseq
  %v8137 = vshrl.u32 %v8136, 7
  %v8138 = vsub.s32 3, %v8137
  %v8139 = vrot.slane %v7988, %v8138
  %v8140 = vlaneseq
  %v8141 = vshrl.u32 %v8140, 7
  %v8142 = vsub.s32 3, %v8141
  %v8143 = vrot.slane %v7987, %v8142
  %v8144 = vlaneseq
  %v8145 = vshrl.u32 %v8144, 7
  %v8146 = vsub.s32 3, %v8145
  %v8147 = vrot.slane %v7993, %v8146
  %v8148 = vmul.f32 %v1871, %v8123
  %v8149 = vmul.f32 %v1871, %v8127
  %v8150 = vmul.f32 %v1871, %v8131
  %v8151 = vmul.f32 %v1871, %v8135
  %v8152 = vmul.f32 %v1871, %v8139
  %v8153 = vmul.f32 %v1871, %v8143
  %v8154 = vmul.f32 %v1871, %v8147
  %v8155 = vadd.f32 %v8113, %v8148
  %v8156 = vadd.f32 %v8114, %v8149
  %v8157 = vadd.f32 %v8115, %v8150
  %v8158 = vadd.f32 %v8116, %v8151
  %v8159 = vadd.f32 %v8117, %v8152
  %v8160 = vadd.f32 %v8118, %v8153
  %v8161 = vadd.f32 %v8119, %v8154
  %8162 = vrot.lane.b32.xlu0 %v6522, 109
  %v8163 = vpop.permute.xlu0 %8162
  %8164 = vrot.lane.b32.xlu0 %v6532, 109
  %v8165 = vpop.permute.xlu0 %8164
  %8166 = vrot.lane.b32.xlu0 %v6523, 109
  %v8167 = vpop.permute.xlu0 %8166
  %8168 = vrot.lane.b32.xlu0 %v6533, 109
  %v8169 = vpop.permute.xlu0 %8168
  %8170 = vrot.lane.b32.xlu0 %v6524, 109
  %v8171 = vpop.permute.xlu0 %8170
  %8172 = vrot.lane.b32.xlu0 %v6534, 109
  %v8173 = vpop.permute.xlu0 %8172
  %8174 = vrot.lane.b32.xlu0 %v6525, 109
  %v8175 = vpop.permute.xlu0 %8174
  %v8176 = vsel %vm1929, %v8173, %v8175
  %v8177 = vsel %vm1929, %v8171, %v8173
  %v8178 = vsel %vm1929, %v8169, %v8171
  %v8179 = vsel %vm1929, %v8167, %v8169
  %v8180 = vsel %vm1929, %v8165, %v8167
  %v8181 = vsel %vm1929, %v8163, %v8165
  %v8182 = vsel %vm1929, %v8175, %v8163
  %v8183 = vlaneseq
  %v8184 = vshrl.u32 %v8183, 7
  %v8185 = vsub.s32 0, %v8184
  %v8186 = vrot.slane %v8181, %v8185
  %v8187 = vlaneseq
  %v8188 = vshrl.u32 %v8187, 7
  %v8189 = vsub.s32 0, %v8188
  %v8190 = vrot.slane %v8180, %v8189
  %v8191 = vlaneseq
  %v8192 = vshrl.u32 %v8191, 7
  %v8193 = vsub.s32 0, %v8192
  %v8194 = vrot.slane %v8179, %v8193
  %v8195 = vlaneseq
  %v8196 = vshrl.u32 %v8195, 7
  %v8197 = vsub.s32 0, %v8196
  %v8198 = vrot.slane %v8178, %v8197
  %v8199 = vlaneseq
  %v8200 = vshrl.u32 %v8199, 7
  %v8201 = vsub.s32 0, %v8200
  %v8202 = vrot.slane %v8177, %v8201
  %v8203 = vlaneseq
  %v8204 = vshrl.u32 %v8203, 7
  %v8205 = vsub.s32 0, %v8204
  %v8206 = vrot.slane %v8176, %v8205
  %v8207 = vlaneseq
  %v8208 = vshrl.u32 %v8207, 7
  %v8209 = vsub.s32 0, %v8208
  %v8210 = vrot.slane %v8182, %v8209
  %v8211 = vmul.f32 %v1940, %v8186
  %v8212 = vmul.f32 %v1940, %v8190
  %v8213 = vmul.f32 %v1940, %v8194
  %v8214 = vmul.f32 %v1940, %v8198
  %v8215 = vmul.f32 %v1940, %v8202
  %v8216 = vmul.f32 %v1940, %v8206
  %v8217 = vmul.f32 %v1940, %v8210
  %v8218 = vadd.f32 %v8155, %v8211
  %v8219 = vadd.f32 %v8156, %v8212
  %v8220 = vadd.f32 %v8157, %v8213
  %v8221 = vadd.f32 %v8158, %v8214
  %v8222 = vadd.f32 %v8159, %v8215
  %v8223 = vadd.f32 %v8160, %v8216
  %v8224 = vadd.f32 %v8161, %v8217
  %v8225 = vlaneseq
  %v8226 = vshrl.u32 %v8225, 7
  %v8227 = vsub.s32 1, %v8226
  %v8228 = vrot.slane %v8181, %v8227
  %v8229 = vlaneseq
  %v8230 = vshrl.u32 %v8229, 7
  %v8231 = vsub.s32 1, %v8230
  %v8232 = vrot.slane %v8180, %v8231
  %v8233 = vlaneseq
  %v8234 = vshrl.u32 %v8233, 7
  %v8235 = vsub.s32 1, %v8234
  %v8236 = vrot.slane %v8179, %v8235
  %v8237 = vlaneseq
  %v8238 = vshrl.u32 %v8237, 7
  %v8239 = vsub.s32 1, %v8238
  %v8240 = vrot.slane %v8178, %v8239
  %v8241 = vlaneseq
  %v8242 = vshrl.u32 %v8241, 7
  %v8243 = vsub.s32 1, %v8242
  %v8244 = vrot.slane %v8177, %v8243
  %v8245 = vlaneseq
  %v8246 = vshrl.u32 %v8245, 7
  %v8247 = vsub.s32 1, %v8246
  %v8248 = vrot.slane %v8176, %v8247
  %v8249 = vlaneseq
  %v8250 = vshrl.u32 %v8249, 7
  %v8251 = vsub.s32 1, %v8250
  %v8252 = vrot.slane %v8182, %v8251
  %v8253 = vmul.f32 %v1987, %v8228
  %v8254 = vmul.f32 %v1987, %v8232
  %v8255 = vmul.f32 %v1987, %v8236
  %v8256 = vmul.f32 %v1987, %v8240
  %v8257 = vmul.f32 %v1987, %v8244
  %v8258 = vmul.f32 %v1987, %v8248
  %v8259 = vmul.f32 %v1987, %v8252
  %v8260 = vadd.f32 %v8218, %v8253
  %v8261 = vadd.f32 %v8219, %v8254
  %v8262 = vadd.f32 %v8220, %v8255
  %v8263 = vadd.f32 %v8221, %v8256
  %v8264 = vadd.f32 %v8222, %v8257
  %v8265 = vadd.f32 %v8223, %v8258
  %v8266 = vadd.f32 %v8224, %v8259
  %v8267 = vlaneseq
  %v8268 = vshrl.u32 %v8267, 7
  %v8269 = vsub.s32 2, %v8268
  %v8270 = vrot.slane %v8181, %v8269
  %v8271 = vlaneseq
  %v8272 = vshrl.u32 %v8271, 7
  %v8273 = vsub.s32 2, %v8272
  %v8274 = vrot.slane %v8180, %v8273
  %v8275 = vlaneseq
  %v8276 = vshrl.u32 %v8275, 7
  %v8277 = vsub.s32 2, %v8276
  %v8278 = vrot.slane %v8179, %v8277
  %v8279 = vlaneseq
  %v8280 = vshrl.u32 %v8279, 7
  %v8281 = vsub.s32 2, %v8280
  %v8282 = vrot.slane %v8178, %v8281
  %v8283 = vlaneseq
  %v8284 = vshrl.u32 %v8283, 7
  %v8285 = vsub.s32 2, %v8284
  %v8286 = vrot.slane %v8177, %v8285
  %v8287 = vlaneseq
  %v8288 = vshrl.u32 %v8287, 7
  %v8289 = vsub.s32 2, %v8288
  %v8290 = vrot.slane %v8176, %v8289
  %v8291 = vlaneseq
  %v8292 = vshrl.u32 %v8291, 7
  %v8293 = vsub.s32 2, %v8292
  %v8294 = vrot.slane %v8182, %v8293
  %v8295 = vmul.f32 %v2034, %v8270
  %v8296 = vmul.f32 %v2034, %v8274
  %v8297 = vmul.f32 %v2034, %v8278
  %v8298 = vmul.f32 %v2034, %v8282
  %v8299 = vmul.f32 %v2034, %v8286
  %v8300 = vmul.f32 %v2034, %v8290
  %v8301 = vmul.f32 %v2034, %v8294
  %v8302 = vadd.f32 %v8260, %v8295
  %v8303 = vadd.f32 %v8261, %v8296
  %v8304 = vadd.f32 %v8262, %v8297
  %v8305 = vadd.f32 %v8263, %v8298
  %v8306 = vadd.f32 %v8264, %v8299
  %v8307 = vadd.f32 %v8265, %v8300
  %v8308 = vadd.f32 %v8266, %v8301
  %v8309 = vlaneseq
  %v8310 = vshrl.u32 %v8309, 7
  %v8311 = vsub.s32 3, %v8310
  %v8312 = vrot.slane %v8181, %v8311
  %v8313 = vlaneseq
  %v8314 = vshrl.u32 %v8313, 7
  %v8315 = vsub.s32 3, %v8314
  %v8316 = vrot.slane %v8180, %v8315
  %v8317 = vlaneseq
  %v8318 = vshrl.u32 %v8317, 7
  %v8319 = vsub.s32 3, %v8318
  %v8320 = vrot.slane %v8179, %v8319
  %v8321 = vlaneseq
  %v8322 = vshrl.u32 %v8321, 7
  %v8323 = vsub.s32 3, %v8322
  %v8324 = vrot.slane %v8178, %v8323
  %v8325 = vlaneseq
  %v8326 = vshrl.u32 %v8325, 7
  %v8327 = vsub.s32 3, %v8326
  %v8328 = vrot.slane %v8177, %v8327
  %v8329 = vlaneseq
  %v8330 = vshrl.u32 %v8329, 7
  %v8331 = vsub.s32 3, %v8330
  %v8332 = vrot.slane %v8176, %v8331
  %v8333 = vlaneseq
  %v8334 = vshrl.u32 %v8333, 7
  %v8335 = vsub.s32 3, %v8334
  %v8336 = vrot.slane %v8182, %v8335
  %v8337 = vmul.f32 %v2081, %v8312
  %v8338 = vmul.f32 %v2081, %v8316
  %v8339 = vmul.f32 %v2081, %v8320
  %v8340 = vmul.f32 %v2081, %v8324
  %v8341 = vmul.f32 %v2081, %v8328
  %v8342 = vmul.f32 %v2081, %v8332
  %v8343 = vmul.f32 %v2081, %v8336
  %v8344 = vadd.f32 %v8302, %v8337
  %v8345 = vadd.f32 %v8303, %v8338
  %v8346 = vadd.f32 %v8304, %v8339
  %v8347 = vadd.f32 %v8305, %v8340
  %v8348 = vadd.f32 %v8306, %v8341
  %v8349 = vadd.f32 %v8307, %v8342
  %v8350 = vadd.f32 %v8308, %v8343
  %v8351 = vadd.f32 %v8344, %v2128
  %v8352 = vadd.f32 %v8345, %v2128
  %v8353 = vadd.f32 %v8346, %v2128
  %v8354 = vadd.f32 %v8347, %v2128
  %v8355 = vadd.f32 %v8348, %v2128
  %v8356 = vadd.f32 %v8349, %v2128
  %v8357 = vadd.f32 %v8350, %v2128
  %v8358 = vmax.f32 %v8351, 0.0
  %v8359 = vmax.f32 %v8352, 0.0
  %v8360 = vmax.f32 %v8353, 0.0
  %v8361 = vmax.f32 %v8354, 0.0
  %v8362 = vmax.f32 %v8355, 0.0
  %v8363 = vmax.f32 %v8356, 0.0
  %v8364 = vmax.f32 %v8357, 0.0
  %v8365 = vlaneseq
  %v8366 = vshrl.u32 %v8365, 7
  %v8367 = vsub.s32 0, %v8366
  %v8368 = vrot.slane %v8358, %v8367
  %v8369 = vlaneseq
  %v8370 = vshrl.u32 %v8369, 7
  %v8371 = vsub.s32 0, %v8370
  %v8372 = vrot.slane %v8359, %v8371
  %v8373 = vlaneseq
  %v8374 = vshrl.u32 %v8373, 7
  %v8375 = vsub.s32 0, %v8374
  %v8376 = vrot.slane %v8360, %v8375
  %v8377 = vlaneseq
  %v8378 = vshrl.u32 %v8377, 7
  %v8379 = vsub.s32 0, %v8378
  %v8380 = vrot.slane %v8361, %v8379
  %v8381 = vlaneseq
  %v8382 = vshrl.u32 %v8381, 7
  %v8383 = vsub.s32 0, %v8382
  %v8384 = vrot.slane %v8362, %v8383
  %v8385 = vlaneseq
  %v8386 = vshrl.u32 %v8385, 7
  %v8387 = vsub.s32 0, %v8386
  %v8388 = vrot.slane %v8363, %v8387
  %v8389 = vlaneseq
  %v8390 = vshrl.u32 %v8389, 7
  %v8391 = vsub.s32 0, %v8390
  %v8392 = vrot.slane %v8364, %v8391
  %v8393 = vmul.f32 %v2147, %v8368
  %v8394 = vmul.f32 %v2147, %v8372
  %v8395 = vmul.f32 %v2147, %v8376
  %v8396 = vmul.f32 %v2147, %v8380
  %v8397 = vmul.f32 %v2147, %v8384
  %v8398 = vmul.f32 %v2147, %v8388
  %v8399 = vmul.f32 %v2147, %v8392
  %v8400 = vlaneseq
  %v8401 = vshrl.u32 %v8400, 7
  %v8402 = vsub.s32 1, %v8401
  %v8403 = vrot.slane %v8358, %v8402
  %v8404 = vlaneseq
  %v8405 = vshrl.u32 %v8404, 7
  %v8406 = vsub.s32 1, %v8405
  %v8407 = vrot.slane %v8359, %v8406
  %v8408 = vlaneseq
  %v8409 = vshrl.u32 %v8408, 7
  %v8410 = vsub.s32 1, %v8409
  %v8411 = vrot.slane %v8360, %v8410
  %v8412 = vlaneseq
  %v8413 = vshrl.u32 %v8412, 7
  %v8414 = vsub.s32 1, %v8413
  %v8415 = vrot.slane %v8361, %v8414
  %v8416 = vlaneseq
  %v8417 = vshrl.u32 %v8416, 7
  %v8418 = vsub.s32 1, %v8417
  %v8419 = vrot.slane %v8362, %v8418
  %v8420 = vlaneseq
  %v8421 = vshrl.u32 %v8420, 7
  %v8422 = vsub.s32 1, %v8421
  %v8423 = vrot.slane %v8363, %v8422
  %v8424 = vlaneseq
  %v8425 = vshrl.u32 %v8424, 7
  %v8426 = vsub.s32 1, %v8425
  %v8427 = vrot.slane %v8364, %v8426
  %v8428 = vmul.f32 %v2187, %v8403
  %v8429 = vmul.f32 %v2187, %v8407
  %v8430 = vmul.f32 %v2187, %v8411
  %v8431 = vmul.f32 %v2187, %v8415
  %v8432 = vmul.f32 %v2187, %v8419
  %v8433 = vmul.f32 %v2187, %v8423
  %v8434 = vmul.f32 %v2187, %v8427
  %v8435 = vadd.f32 %v8393, %v8428
  %v8436 = vadd.f32 %v8394, %v8429
  %v8437 = vadd.f32 %v8395, %v8430
  %v8438 = vadd.f32 %v8396, %v8431
  %v8439 = vadd.f32 %v8397, %v8432
  %v8440 = vadd.f32 %v8398, %v8433
  %v8441 = vadd.f32 %v8399, %v8434
  %v8442 = vlaneseq
  %v8443 = vshrl.u32 %v8442, 7
  %v8444 = vsub.s32 2, %v8443
  %v8445 = vrot.slane %v8358, %v8444
  %v8446 = vlaneseq
  %v8447 = vshrl.u32 %v8446, 7
  %v8448 = vsub.s32 2, %v8447
  %v8449 = vrot.slane %v8359, %v8448
  %v8450 = vlaneseq
  %v8451 = vshrl.u32 %v8450, 7
  %v8452 = vsub.s32 2, %v8451
  %v8453 = vrot.slane %v8360, %v8452
  %v8454 = vlaneseq
  %v8455 = vshrl.u32 %v8454, 7
  %v8456 = vsub.s32 2, %v8455
  %v8457 = vrot.slane %v8361, %v8456
  %v8458 = vlaneseq
  %v8459 = vshrl.u32 %v8458, 7
  %v8460 = vsub.s32 2, %v8459
  %v8461 = vrot.slane %v8362, %v8460
  %v8462 = vlaneseq
  %v8463 = vshrl.u32 %v8462, 7
  %v8464 = vsub.s32 2, %v8463
  %v8465 = vrot.slane %v8363, %v8464
  %v8466 = vlaneseq
  %v8467 = vshrl.u32 %v8466, 7
  %v8468 = vsub.s32 2, %v8467
  %v8469 = vrot.slane %v8364, %v8468
  %v8470 = vmul.f32 %v2234, %v8445
  %v8471 = vmul.f32 %v2234, %v8449
  %v8472 = vmul.f32 %v2234, %v8453
  %v8473 = vmul.f32 %v2234, %v8457
  %v8474 = vmul.f32 %v2234, %v8461
  %v8475 = vmul.f32 %v2234, %v8465
  %v8476 = vmul.f32 %v2234, %v8469
  %v8477 = vadd.f32 %v8435, %v8470
  %v8478 = vadd.f32 %v8436, %v8471
  %v8479 = vadd.f32 %v8437, %v8472
  %v8480 = vadd.f32 %v8438, %v8473
  %v8481 = vadd.f32 %v8439, %v8474
  %v8482 = vadd.f32 %v8440, %v8475
  %v8483 = vadd.f32 %v8441, %v8476
  %v8484 = vlaneseq
  %v8485 = vshrl.u32 %v8484, 7
  %v8486 = vsub.s32 3, %v8485
  %v8487 = vrot.slane %v8358, %v8486
  %v8488 = vlaneseq
  %v8489 = vshrl.u32 %v8488, 7
  %v8490 = vsub.s32 3, %v8489
  %v8491 = vrot.slane %v8359, %v8490
  %v8492 = vlaneseq
  %v8493 = vshrl.u32 %v8492, 7
  %v8494 = vsub.s32 3, %v8493
  %v8495 = vrot.slane %v8360, %v8494
  %v8496 = vlaneseq
  %v8497 = vshrl.u32 %v8496, 7
  %v8498 = vsub.s32 3, %v8497
  %v8499 = vrot.slane %v8361, %v8498
  %v8500 = vlaneseq
  %v8501 = vshrl.u32 %v8500, 7
  %v8502 = vsub.s32 3, %v8501
  %v8503 = vrot.slane %v8362, %v8502
  %v8504 = vlaneseq
  %v8505 = vshrl.u32 %v8504, 7
  %v8506 = vsub.s32 3, %v8505
  %v8507 = vrot.slane %v8363, %v8506
  %v8508 = vlaneseq
  %v8509 = vshrl.u32 %v8508, 7
  %v8510 = vsub.s32 3, %v8509
  %v8511 = vrot.slane %v8364, %v8510
  %v8512 = vmul.f32 %v2281, %v8487
  %v8513 = vmul.f32 %v2281, %v8491
  %v8514 = vmul.f32 %v2281, %v8495
  %v8515 = vmul.f32 %v2281, %v8499
  %v8516 = vmul.f32 %v2281, %v8503
  %v8517 = vmul.f32 %v2281, %v8507
  %v8518 = vmul.f32 %v2281, %v8511
  %v8519 = vadd.f32 %v8477, %v8512
  %v8520 = vadd.f32 %v8478, %v8513
  %v8521 = vadd.f32 %v8479, %v8514
  %v8522 = vadd.f32 %v8480, %v8515
  %v8523 = vadd.f32 %v8481, %v8516
  %v8524 = vadd.f32 %v8482, %v8517
  %v8525 = vadd.f32 %v8483, %v8518
  %v8527 = vlaneseq
  %v8528 = vshrl.u32 %v8527, 7
  %v8529 = vsub.s32 0, %v8528
  %v8530 = vrot.slane %v6527, %v8529
  %v8531 = vlaneseq
  %v8532 = vshrl.u32 %v8531, 7
  %v8533 = vsub.s32 1, %v8532
  %v8534 = vrot.slane %v6527, %v8533
  %v8535 = vlaneseq
  %v8536 = vshrl.u32 %v8535, 7
  %v8537 = vsub.s32 2, %v8536
  %v8538 = vrot.slane %v6527, %v8537
  %v8539 = vlaneseq
  %v8540 = vshrl.u32 %v8539, 7
  %v8541 = vsub.s32 3, %v8540
  %v8542 = vrot.slane %v6527, %v8541
  %v8543 = vlaneseq
  %v8544 = vshrl.u32 %v8543, 7
  %v8545 = vsub.s32 4, %v8544
  %v8546 = vrot.slane %v6527, %v8545
  %v8547 = vlaneseq
  %v8548 = vshrl.u32 %v8547, 7
  %v8549 = vsub.s32 5, %v8548
  %v8550 = vrot.slane %v6527, %v8549
  %v8551 = vlaneseq
  %v8552 = vshrl.u32 %v8551, 7
  %v8553 = vsub.s32 6, %v8552
  %v8554 = vrot.slane %v6527, %v8553
  %v8562 = vmul.f32 %v8519, %v8530
  %v8563 = vmul.f32 %v8520, %v8534
  %v8564 = vmul.f32 %v8521, %v8538
  %v8565 = vmul.f32 %v8522, %v8542
  %v8566 = vmul.f32 %v8523, %v8546
  %v8567 = vmul.f32 %v8524, %v8550
  %v8568 = vmul.f32 %v8525, %v8554
  %v8575 = vcombine.low %v8562, %v8563
  %v8576 = vcombine.low %v8564, %v8565
  %v8577 = vcombine.low %v8566, %v8567
  %v8581 = vadd.f32 %v6522, %v8575
  %v8582 = vadd.f32 %v6523, %v8576
  %v8583 = vadd.f32 %v6524, %v8577
  %v8584 = vadd.f32 %v6525, %v8568
  %8585 = vst [vmem:[%s5] sm:$0xff] %v8581
  %8586 = vst [vmem:[%s5 + $0x8] sm:$0xff] %v8582
  %8587 = vst [vmem:[%s5 + $0x10] sm:$0xff] %v8583
  %8588 = vst [vmem:[%s5 + $0x18] sm:$0xf] %v8584
  // Predicated region
  $region22: #{nca_conv_forward.1} parent=0 // pred_check
    _
  $region23: #{nca_conv_forward.1} parent=0 // pred_check_branch
    %8590 = sbr.rel (0) target = $region25
  $region24: #{nca_conv_forward.1} parent=0 // pred_region
    _
  $region25: #{nca_conv_forward.1} parent=0 // pred_fallthru
    _
  // Predicated region
  $region26: #{nca_conv_forward.1} parent=0 // pred_check
    _
  $region27: #{nca_conv_forward.1} parent=0 // pred_check_branch
    %8592 = sbr.rel (0) target = $region29
  $region28: #{nca_conv_forward.1} parent=0 // pred_region
    _
  $region29: #{nca_conv_forward.1} parent=0 // pred_fallthru
    _

</llo_original>
